<compile_context>
chip_gen: v7x
topology: tpu7x:2x2x1
jax: 0.10.0
libtpu: 0.0.40
codegen_flags: <defaults>
</compile_context>

<pallas_src>
import functools

import jax
import jax.numpy as jnp
from jax import lax
from jax.experimental import pallas as pl
from jax.experimental.pallas import tpu as pltpu
import numpy as np

OUT_PAD = 8          # fc7 output rows padded to one full sublane group


def _round_up(n, m):
    return ((n + m - 1) // m) * m


# ---------------------------------------------------------------------------
# Fused Pallas kernel
# ---------------------------------------------------------------------------

def _conv_bn_relu_pool(a, w, scale, shift, *, bt):
    """conv1d('same') + BN(eval) + ReLU + maxpool1d(2) on lane-packed activations.

    a:     (C_in, L*bt) f32     lane index = l*bt + b  (position-major, batch-minor)
    w:     (C_out, K*C_in) bf16 im2col filters, contraction index = k*C_in + c_in
    scale: (C_out, 1) f32 folded BN scale;  shift: (C_out, 1) f32 folded BN shift
    returns (C_out, (L//2)*bt) f32
    """
    c_in = a.shape[0]
    L = a.shape[1] // bt
    K = w.shape[1] // c_in
    pad = (K - 1) // 2                                   # 'same' (all DeepSTARR kernels odd)

    zeros = jnp.zeros((c_in, pad * bt), a.dtype)
    a_pad = jnp.concatenate([zeros, a, zeros], axis=1)   # (C_in, (L+2*pad)*bt)

    # im2col: K shifted views stacked on the contraction axis; every slice is 128-aligned.
    x_col = jnp.concatenate([a_pad[:, k * bt:(k + L) * bt] for k in range(K)], axis=0)

    y = jnp.dot(w, x_col.astype(w.dtype), preferred_element_type=jnp.float32)
    y = jnp.maximum(y * scale + shift, 0.0)              # BN(eval) + ReLU, f32 epilogue

    # maxpool1d(kernel=2, stride=2): adjacent positions are adjacent bt-wide lane blocks.
    half = L // 2
    return jnp.concatenate(
        [jnp.maximum(y[:, (2 * m) * bt:(2 * m + 1) * bt],
                     y[:, (2 * m + 1) * bt:(2 * m + 2) * bt]) for m in range(half)],
        axis=1)


def deepstarr_kernel(x_ref,
                     w1, s1, t1, w2, s2, t2, w3, s3, t3, w4, s4, t4,
                     w5t, b5, s5, t5, w6t, b6, s6, t6, w7t, b7,
                     o_ref):
    bt = o_ref.shape[1]

    a = _conv_bn_relu_pool(x_ref[...], w1[...], s1[...], t1[...], bt=bt)
    a = _conv_bn_relu_pool(a, w2[...], s2[...], t2[...], bt=bt)
    a = _conv_bn_relu_pool(a, w3[...], s3[...], t3[...], bt=bt)
    a = _conv_bn_relu_pool(a, w4[...], s4[...], t4[...], bt=bt)   # (C4p, L4*bt)

    # Flatten -> (features, batch): feature row = l*C4p + c (w5 rows were permuted to match).
    L4 = a.shape[1] // bt
    feats = jnp.concatenate([a[:, l * bt:(l + 1) * bt] for l in range(L4)], axis=0)

    z = jnp.dot(w5t[...], feats.astype(jnp.bfloat16),
                preferred_element_type=jnp.float32) + b5[...]
    z = jnp.maximum(z * s5[...] + t5[...], 0.0)                   # bn5 + relu (dropout = id)
    z = jnp.dot(w6t[...], z.astype(jnp.bfloat16),
                preferred_element_type=jnp.float32) + b6[...]
    z = jnp.maximum(z * s6[...] + t6[...], 0.0)                   # bn6 + relu (dropout = id)
    o_ref[...] = jnp.dot(w7t[...], z.astype(jnp.bfloat16),
                         preferred_element_type=jnp.float32) + b7[...]


# ---------------------------------------------------------------------------
# Wrapper: layout plumbing + pallas_call
# ---------------------------------------------------------------------------

def deepstarr_forward(x, kp, *, output_dim, bt=128):
    """Eval-mode DeepSTARR forward. x: (B, 4, L) f32 -> (B, output_dim) f32."""
    B, c_in, L = x.shape
    g = pl.cdiv(B, bt)
    b_pad = g * bt
    c_pad = _round_up(c_in, 8)
    if b_pad != B or c_pad != c_in:
        x = jnp.pad(x, ((0, b_pad - B), (0, c_pad - c_in), (0, 0)))

    # (B,4,L) -> (c_pad, g*L*bt); within a tile, lane index = l*bt + b_local (all aligned).
    xr = x.reshape(g, bt, c_pad, L).transpose(2, 0, 3, 1).reshape(c_pad, g * L * bt)

    order = ("w1", "s1", "t1", "w2", "s2", "t2", "w3", "s3", "t3",
             "w4", "s4", "t4", "w5t", "b5", "s5", "t5",
             "w6t", "b6", "s6", "t6", "w7t", "b7")
    params = [kp[k] for k in order]

    def _const_spec(a):
        return pl.BlockSpec(a.shape, lambda i: (0,) * a.ndim)

    out = pl.pallas_call(
        deepstarr_kernel,
        out_shape=jax.ShapeDtypeStruct((OUT_PAD, b_pad), jnp.float32),
        grid_spec=pltpu.PrefetchScalarGridSpec(
            num_scalar_prefetch=0,
            grid=(g,),
            in_specs=[pl.BlockSpec((c_pad, L * bt), lambda i: (0, i))]
                     + [_const_spec(a) for a in params],
            out_specs=pl.BlockSpec((OUT_PAD, bt), lambda i: (0, i)),
        ),
        compiler_params=pltpu.CompilerParams(dimension_semantics=("parallel",)),
    )(xr, *params)

    return jnp.transpose(out)[:B, :output_dim]


# ---------------------------------------------------------------------------
# Parameter preparation (padding, permutation folding, bf16 casts)
# ---------------------------------------------------------------------------

def fold_bn(gamma, beta, mean, var, eps=1e-5):
    scale = gamma / jnp.sqrt(var + eps)
    shift = beta - mean * scale
    return scale, shift


def _pad_conv(w, c_out_pad, c_in_pad):
    c_out, c_in, _ = w.shape
    return jnp.pad(w, ((0, c_out_pad - c_out), (0, c_in_pad - c_in), (0, 0)))


def _im2col_weight(w):
    """(C_out, C_in, K) -> (C_out, K*C_in) bf16, contraction index = k*C_in + c_in."""
    c_out, c_in, k = w.shape
    return jnp.transpose(w, (0, 2, 1)).reshape(c_out, k * c_in).astype(jnp.bfloat16)


def _pad_vec(v, n):
    return jnp.pad(v, (0, n - v.shape[0]))


def prepare_kernel_params(p, L):
    """Zero-pad channels to TPU-friendly sizes, fold the torch-flatten permutation into
    fc5, transpose FC weights for the (features, batch) head orientation, and cast all
    matmul operands to bf16 (BN/bias terms stay f32)."""
    c0 = _round_up(p["conv1_w"].shape[1], 8)        # 4   -> 8   (input channels)
    c1 = _round_up(p["conv1_w"].shape[0], 8)        # d   (64)
    c2 = _round_up(p["conv2_w"].shape[0], 8)        # 60  -> 64
    c3 = _round_up(p["conv3_w"].shape[0], 8)        # 60  -> 64
    c4 = _round_up(p["conv4_w"].shape[0], 128)      # 120 -> 128 (flatten feature blocks)
    c4_real = p["conv4_w"].shape[0]
    L4 = L // 16                                    # spatial size after 4x maxpool(2)

    kp = {}
    kp["w1"] = _im2col_weight(_pad_conv(p["conv1_w"], c1, c0))
    kp["w2"] = _im2col_weight(_pad_conv(p["conv2_w"], c2, c1))
    kp["w3"] = _im2col_weight(_pad_conv(p["conv3_w"], c3, c2))
    kp["w4"] = _im2col_weight(_pad_conv(p["conv4_w"], c4, c3))
    for i, c in zip((1, 2, 3, 4), (c1, c2, c3, c4)):
        kp[f"s{i}"] = _pad_vec(p[f"bn{i}_scale"], c).reshape(c, 1).astype(jnp.float32)
        kp[f"t{i}"] = _pad_vec(p[f"bn{i}_shift"], c).reshape(c, 1).astype(jnp.float32)

    # fc5: torch flatten row (c*L4 + l) -> kernel feature row (l*c4 + c); padded rows are 0.
    h5 = p["w5"].shape[1]
    w5_pp = jnp.zeros((L4 * c4, h5), jnp.float32)
    c_idx = jnp.arange(c4_real)
    for l in range(L4):
        w5_pp = w5_pp.at[l * c4 + c_idx, :].set(p["w5"][c_idx * L4 + l, :])
    kp["w5t"] = w5_pp.T.astype(jnp.bfloat16)        # (256, L4*c4)
    kp["b5"], kp["s5"], kp["t5"] = (v.reshape(h5, 1).astype(jnp.float32)
                                    for v in (p["b5"], p["s5"], p["t5"]))

    h6 = p["w6"].shape[1]
    kp["w6t"] = p["w6"].T.astype(jnp.bfloat16)
    kp["b6"], kp["s6"], kp["t6"] = (v.reshape(h6, 1).astype(jnp.float32)
                                    for v in (p["b6"], p["s6"], p["t6"]))

    out_dim = p["w7"].shape[1]
    kp["w7t"] = jnp.pad(p["w7"], ((0, 0), (0, OUT_PAD - out_dim))).T.astype(jnp.bfloat16)
    kp["b7"] = jnp.pad(p["b7"], (0, OUT_PAD - out_dim)).reshape(OUT_PAD, 1)
    return kp


# ---------------------------------------------------------------------------
# Pure-JAX reference (correctness checking only)
# ---------------------------------------------------------------------------

def _ref_conv_block(x, w, scale, shift):
    pad = (w.shape[2] - 1) // 2
    y = lax.conv_general_dilated(x, w, window_strides=(1,), padding=[(pad, pad)],
                                 dimension_numbers=("NCH", "OIH", "NCH"))
    y = y * scale[None, :, None] + shift[None, :, None]
    y = jnp.maximum(y, 0.0)
    B, C, L = y.shape
    return y.reshape(B, C, L // 2, 2).max(axis=-1)


def deepstarr_reference(x, p):
    h = _ref_conv_block(x, p["conv1_w"], p["bn1_scale"], p["bn1_shift"])
    h = _ref_conv_block(h, p["conv2_w"], p["bn2_scale"], p["bn2_shift"])
    h = _ref_conv_block(h, p["conv3_w"], p["bn3_scale"], p["bn3_shift"])
    h = _ref_conv_block(h, p["conv4_w"], p["bn4_scale"], p["bn4_shift"])
    h = h.reshape(h.shape[0], -1)
    h = h @ p["w5"] + p["b5"]
    h = jnp.maximum(h * p["s5"] + p["t5"], 0.0)
    h = h @ p["w6"] + p["b6"]
    h = jnp.maximum(h * p["s6"] + p["t6"], 0.0)
    return h @ p["w7"] + p["b7"]


# ---------------------------------------------------------------------------
# Deterministic synthetic parameters (no checkpoint loading)
# ---------------------------------------------------------------------------

def make_params(key, d=64, L=32, output_dim=2):
    ks = iter(jax.random.split(key, 16))

    def kaiming_conv(k, shape):                     # (C_out, C_in, K)
        fan_in = shape[1] * shape[2]
        return jax.random.normal(k, shape, jnp.float32) * jnp.sqrt(2.0 / fan_in)

    def bn(k, c):
        k1, k2, k3, k4 = jax.random.split(k, 4)
        gamma = jax.random.uniform(k1, (c,), jnp.float32, 0.5, 1.5)
        beta = 0.1 * jax.random.normal(k2, (c,), jnp.float32)
        mean = 0.1 * jax.random.normal(k3, (c,), jnp.float32)
        var = jax.random.uniform(k4, (c,), jnp.float32, 0.5, 1.5)
        return fold_bn(gamma, beta, mean, var)

    def linear(k, fin, fout):
        k1, k2 = jax.random.split(k)
        bound = 1.0 / np.sqrt(fin)
        w = jax.random.uniform(k1, (fin, fout), jnp.float32, -bound, bound)
        b = jax.random.uniform(k2, (fout,), jnp.float32, -bound, bound)
        return w, b

    p = {}
    p["conv1_w"] = kaiming_conv(next(ks), (d, 4, 7))
    p["bn1_scale"], p["bn1_shift"] = bn(next(ks), d)
    p["conv2_w"] = kaiming_conv(next(ks), (60, d, 3))
    p["bn2_scale"], p["bn2_shift"] = bn(next(ks), 60)
    p["conv3_w"] = kaiming_conv(next(ks), (60, 60, 5))
    p["bn3_scale"], p["bn3_shift"] = bn(next(ks), 60)
    p["conv4_w"] = kaiming_conv(next(ks), (120, 60, 3))
    p["bn4_scale"], p["bn4_shift"] = bn(next(ks), 120)

    flat_dim = 120 * (L // 16)                      # nn.Flatten output size
    p["w5"], p["b5"] = linear(next(ks), flat_dim, 256)
    p["s5"], p["t5"] = bn(next(ks), 256)
    p["w6"], p["b6"] = linear(next(ks), 256, 256)
    p["s6"], p["t6"] = bn(next(ks), 256)
    p["w7"], p["b7"] = linear(next(ks), 256, output_dim)
    return p


# ---------------------------------------------------------------------------
# Main
# ---------------------------------------------------------------------------

if __name__ == "__main__":
    B, C_IN, L = 256, 4, 32        # L divisible by 16 (4x maxpool(2)); B fills 2 batch tiles
    D = 64                         # first-layer conv filters (original DeepSTARR: 256)
    OUTPUT_DIM = 2
    BT = 128                       # batch tile per grid step == lane width

    key = jax.random.PRNGKey(0)
    k_x, k_p = jax.random.split(key)
    x = jax.random.normal(k_x, (B, C_IN, L), jnp.float32)
    params = make_params(k_p, d=D, L=L, output_dim=OUTPUT_DIM)
    kparams = prepare_kernel_params(params, L)

    fwd = jax.jit(functools.partial(deepstarr_forward, output_dim=OUTPUT_DIM, bt=BT))
    y = jax.block_until_ready(fwd(x, kparams))

    y_ref = jax.block_until_ready(deepstarr_reference(x, params))
    # bf16 MXU operands (per perf guidance) vs. a pure-f32 reference -> slightly wider tol.
    np.testing.assert_allclose(np.asarray(y), np.asarray(y_ref), rtol=5e-2, atol=5e-2)
    assert y.shape == (B, OUTPUT_DIM) and y.dtype == jnp.float32

    print("KERNEL_OK")
</pallas_src>

<mosaic_0001>
module attributes {stable_mosaic.version = 11 : i64} {
  func.func @deepstarr_kernel(%arg0: i32, %arg1: memref<8x4096xf32, #tpu.memory_space<vmem>>, %arg2: memref<64x56xbf16, #tpu.memory_space<vmem>>, %arg3: memref<64x1xf32, #tpu.memory_space<vmem>>, %arg4: memref<64x1xf32, #tpu.memory_space<vmem>>, %arg5: memref<64x192xbf16, #tpu.memory_space<vmem>>, %arg6: memref<64x1xf32, #tpu.memory_space<vmem>>, %arg7: memref<64x1xf32, #tpu.memory_space<vmem>>, %arg8: memref<64x320xbf16, #tpu.memory_space<vmem>>, %arg9: memref<64x1xf32, #tpu.memory_space<vmem>>, %arg10: memref<64x1xf32, #tpu.memory_space<vmem>>, %arg11: memref<128x192xbf16, #tpu.memory_space<vmem>>, %arg12: memref<128x1xf32, #tpu.memory_space<vmem>>, %arg13: memref<128x1xf32, #tpu.memory_space<vmem>>, %arg14: memref<256x256xbf16, #tpu.memory_space<vmem>>, %arg15: memref<256x1xf32, #tpu.memory_space<vmem>>, %arg16: memref<256x1xf32, #tpu.memory_space<vmem>>, %arg17: memref<256x1xf32, #tpu.memory_space<vmem>>, %arg18: memref<256x256xbf16, #tpu.memory_space<vmem>>, %arg19: memref<256x1xf32, #tpu.memory_space<vmem>>, %arg20: memref<256x1xf32, #tpu.memory_space<vmem>>, %arg21: memref<256x1xf32, #tpu.memory_space<vmem>>, %arg22: memref<8x256xbf16, #tpu.memory_space<vmem>>, %arg23: memref<8x1xf32, #tpu.memory_space<vmem>>, %arg24: memref<8x128xf32, #tpu.memory_space<vmem>>) attributes {dimension_semantics = [#tpu.dimension_semantics<parallel>], iteration_bounds = array<i64: 2>, scalar_prefetch = 0 : i64, scratch_operands = 0 : i64, tpu.core_type = #tpu.core_type<tc>, window_params = [{transform_indices = @transform_0, window_bounds = array<i64: 8, 4096>}, {pipeline_mode = #tpu.pipeline_mode<synchronous>, transform_indices = @transform_1, window_bounds = array<i64: 64, 56>}, {pipeline_mode = #tpu.pipeline_mode<synchronous>, transform_indices = @transform_2, window_bounds = array<i64: 64, 1>}, {pipeline_mode = #tpu.pipeline_mode<synchronous>, transform_indices = @transform_3, window_bounds = array<i64: 64, 1>}, {pipeline_mode = #tpu.pipeline_mode<synchronous>, transform_indices = @transform_4, window_bounds = array<i64: 64, 192>}, {pipeline_mode = #tpu.pipeline_mode<synchronous>, transform_indices = @transform_5, window_bounds = array<i64: 64, 1>}, {pipeline_mode = #tpu.pipeline_mode<synchronous>, transform_indices = @transform_6, window_bounds = array<i64: 64, 1>}, {pipeline_mode = #tpu.pipeline_mode<synchronous>, transform_indices = @transform_7, window_bounds = array<i64: 64, 320>}, {pipeline_mode = #tpu.pipeline_mode<synchronous>, transform_indices = @transform_8, window_bounds = array<i64: 64, 1>}, {pipeline_mode = #tpu.pipeline_mode<synchronous>, transform_indices = @transform_9, window_bounds = array<i64: 64, 1>}, {pipeline_mode = #tpu.pipeline_mode<synchronous>, transform_indices = @transform_10, window_bounds = array<i64: 128, 192>}, {pipeline_mode = #tpu.pipeline_mode<synchronous>, transform_indices = @transform_11, window_bounds = array<i64: 128, 1>}, {pipeline_mode = #tpu.pipeline_mode<synchronous>, transform_indices = @transform_12, window_bounds = array<i64: 128, 1>}, {pipeline_mode = #tpu.pipeline_mode<synchronous>, transform_indices = @transform_13, window_bounds = array<i64: 256, 256>}, {pipeline_mode = #tpu.pipeline_mode<synchronous>, transform_indices = @transform_14, window_bounds = array<i64: 256, 1>}, {pipeline_mode = #tpu.pipeline_mode<synchronous>, transform_indices = @transform_15, window_bounds = array<i64: 256, 1>}, {pipeline_mode = #tpu.pipeline_mode<synchronous>, transform_indices = @transform_16, window_bounds = array<i64: 256, 1>}, {pipeline_mode = #tpu.pipeline_mode<synchronous>, transform_indices = @transform_17, window_bounds = array<i64: 256, 256>}, {pipeline_mode = #tpu.pipeline_mode<synchronous>, transform_indices = @transform_18, window_bounds = array<i64: 256, 1>}, {pipeline_mode = #tpu.pipeline_mode<synchronous>, transform_indices = @transform_19, window_bounds = array<i64: 256, 1>}, {pipeline_mode = #tpu.pipeline_mode<synchronous>, transform_indices = @transform_20, window_bounds = array<i64: 256, 1>}, {pipeline_mode = #tpu.pipeline_mode<synchronous>, transform_indices = @transform_21, window_bounds = array<i64: 8, 256>}, {pipeline_mode = #tpu.pipeline_mode<synchronous>, transform_indices = @transform_22, window_bounds = array<i64: 8, 1>}, {transform_indices = @transform_23, window_bounds = array<i64: 8, 128>}]} {
    %c0 = arith.constant 0 : index
    %c0_0 = arith.constant 0 : index
    %0 = vector.load %arg1[%c0, %c0_0] : memref<8x4096xf32, #tpu.memory_space<vmem>>, vector<8x4096xf32>
    %c0_1 = arith.constant 0 : index
    %c0_2 = arith.constant 0 : index
    %1 = vector.load %arg2[%c0_1, %c0_2] : memref<64x56xbf16, #tpu.memory_space<vmem>>, vector<64x56xbf16>
    %c0_3 = arith.constant 0 : index
    %c0_4 = arith.constant 0 : index
    %2 = vector.load %arg3[%c0_3, %c0_4] : memref<64x1xf32, #tpu.memory_space<vmem>>, vector<64x1xf32>
    %c0_5 = arith.constant 0 : index
    %c0_6 = arith.constant 0 : index
    %3 = vector.load %arg4[%c0_5, %c0_6] : memref<64x1xf32, #tpu.memory_space<vmem>>, vector<64x1xf32>
    %cst = arith.constant 0.000000e+00 : f32
    %4 = vector.broadcast %cst : f32 to vector<8x384xf32>
    %5 = tpu.concatenate %4, %0, %4 in 1 : vector<8x384xf32>, vector<8x4096xf32>, vector<8x384xf32> -> vector<8x4864xf32>
    %6 = vector.extract_strided_slice %5 {offsets = [0, 0], sizes = [8, 4096], strides = [1, 1]} : vector<8x4864xf32> to vector<8x4096xf32>
    %7 = vector.extract_strided_slice %5 {offsets = [0, 128], sizes = [8, 4096], strides = [1, 1]} : vector<8x4864xf32> to vector<8x4096xf32>
    %8 = vector.extract_strided_slice %5 {offsets = [0, 256], sizes = [8, 4096], strides = [1, 1]} : vector<8x4864xf32> to vector<8x4096xf32>
    %9 = vector.extract_strided_slice %5 {offsets = [0, 384], sizes = [8, 4096], strides = [1, 1]} : vector<8x4864xf32> to vector<8x4096xf32>
    %10 = vector.extract_strided_slice %5 {offsets = [0, 512], sizes = [8, 4096], strides = [1, 1]} : vector<8x4864xf32> to vector<8x4096xf32>
    %11 = vector.extract_strided_slice %5 {offsets = [0, 640], sizes = [8, 4096], strides = [1, 1]} : vector<8x4864xf32> to vector<8x4096xf32>
    %12 = vector.extract_strided_slice %5 {offsets = [0, 768], sizes = [8, 4096], strides = [1, 1]} : vector<8x4864xf32> to vector<8x4096xf32>
    %13 = tpu.concatenate %6, %7, %8, %9, %10, %11, %12 in 0 : vector<8x4096xf32>, vector<8x4096xf32>, vector<8x4096xf32>, vector<8x4096xf32>, vector<8x4096xf32>, vector<8x4096xf32>, vector<8x4096xf32> -> vector<56x4096xf32>
    %14 = arith.truncf %13 : vector<56x4096xf32> to vector<56x4096xbf16>
    %cst_7 = arith.constant dense<0.000000e+00> : vector<64x4096xf32>
    %15 = tpu.matmul %1, %14, %cst_7 {dimension_numbers = #tpu.dot_dimension_numbers<[1], [0], [0], [1], [0, 0, 1, 1], [], []>} : vector<64x56xbf16>, vector<56x4096xbf16>, vector<64x4096xf32> -> vector<64x4096xf32>
    %16 = vector.broadcast %2 : vector<64x1xf32> to vector<64x4096xf32>
    %17 = arith.mulf %15, %16 : vector<64x4096xf32>
    %18 = vector.broadcast %3 : vector<64x1xf32> to vector<64x4096xf32>
    %19 = arith.addf %17, %18 : vector<64x4096xf32>
    %cst_8 = arith.constant 0.000000e+00 : f32
    %20 = vector.broadcast %cst_8 : f32 to vector<64x4096xf32>
    %21 = arith.maximumf %19, %20 : vector<64x4096xf32>
    %22 = vector.extract_strided_slice %21 {offsets = [0, 0], sizes = [64, 128], strides = [1, 1]} : vector<64x4096xf32> to vector<64x128xf32>
    %23 = vector.extract_strided_slice %21 {offsets = [0, 128], sizes = [64, 128], strides = [1, 1]} : vector<64x4096xf32> to vector<64x128xf32>
    %24 = arith.maximumf %22, %23 : vector<64x128xf32>
    %25 = vector.extract_strided_slice %21 {offsets = [0, 256], sizes = [64, 128], strides = [1, 1]} : vector<64x4096xf32> to vector<64x128xf32>
    %26 = vector.extract_strided_slice %21 {offsets = [0, 384], sizes = [64, 128], strides = [1, 1]} : vector<64x4096xf32> to vector<64x128xf32>
    %27 = arith.maximumf %25, %26 : vector<64x128xf32>
    %28 = vector.extract_strided_slice %21 {offsets = [0, 512], sizes = [64, 128], strides = [1, 1]} : vector<64x4096xf32> to vector<64x128xf32>
    %29 = vector.extract_strided_slice %21 {offsets = [0, 640], sizes = [64, 128], strides = [1, 1]} : vector<64x4096xf32> to vector<64x128xf32>
    %30 = arith.maximumf %28, %29 : vector<64x128xf32>
    %31 = vector.extract_strided_slice %21 {offsets = [0, 768], sizes = [64, 128], strides = [1, 1]} : vector<64x4096xf32> to vector<64x128xf32>
    %32 = vector.extract_strided_slice %21 {offsets = [0, 896], sizes = [64, 128], strides = [1, 1]} : vector<64x4096xf32> to vector<64x128xf32>
    %33 = arith.maximumf %31, %32 : vector<64x128xf32>
    %34 = vector.extract_strided_slice %21 {offsets = [0, 1024], sizes = [64, 128], strides = [1, 1]} : vector<64x4096xf32> to vector<64x128xf32>
    %35 = vector.extract_strided_slice %21 {offsets = [0, 1152], sizes = [64, 128], strides = [1, 1]} : vector<64x4096xf32> to vector<64x128xf32>
    %36 = arith.maximumf %34, %35 : vector<64x128xf32>
    %37 = vector.extract_strided_slice %21 {offsets = [0, 1280], sizes = [64, 128], strides = [1, 1]} : vector<64x4096xf32> to vector<64x128xf32>
    %38 = vector.extract_strided_slice %21 {offsets = [0, 1408], sizes = [64, 128], strides = [1, 1]} : vector<64x4096xf32> to vector<64x128xf32>
    %39 = arith.maximumf %37, %38 : vector<64x128xf32>
    %40 = vector.extract_strided_slice %21 {offsets = [0, 1536], sizes = [64, 128], strides = [1, 1]} : vector<64x4096xf32> to vector<64x128xf32>
    %41 = vector.extract_strided_slice %21 {offsets = [0, 1664], sizes = [64, 128], strides = [1, 1]} : vector<64x4096xf32> to vector<64x128xf32>
    %42 = arith.maximumf %40, %41 : vector<64x128xf32>
    %43 = vector.extract_strided_slice %21 {offsets = [0, 1792], sizes = [64, 128], strides = [1, 1]} : vector<64x4096xf32> to vector<64x128xf32>
    %44 = vector.extract_strided_slice %21 {offsets = [0, 1920], sizes = [64, 128], strides = [1, 1]} : vector<64x4096xf32> to vector<64x128xf32>
    %45 = arith.maximumf %43, %44 : vector<64x128xf32>
    %46 = vector.extract_strided_slice %21 {offsets = [0, 2048], sizes = [64, 128], strides = [1, 1]} : vector<64x4096xf32> to vector<64x128xf32>
    %47 = vector.extract_strided_slice %21 {offsets = [0, 2176], sizes = [64, 128], strides = [1, 1]} : vector<64x4096xf32> to vector<64x128xf32>
    %48 = arith.maximumf %46, %47 : vector<64x128xf32>
    %49 = vector.extract_strided_slice %21 {offsets = [0, 2304], sizes = [64, 128], strides = [1, 1]} : vector<64x4096xf32> to vector<64x128xf32>
    %50 = vector.extract_strided_slice %21 {offsets = [0, 2432], sizes = [64, 128], strides = [1, 1]} : vector<64x4096xf32> to vector<64x128xf32>
    %51 = arith.maximumf %49, %50 : vector<64x128xf32>
    %52 = vector.extract_strided_slice %21 {offsets = [0, 2560], sizes = [64, 128], strides = [1, 1]} : vector<64x4096xf32> to vector<64x128xf32>
    %53 = vector.extract_strided_slice %21 {offsets = [0, 2688], sizes = [64, 128], strides = [1, 1]} : vector<64x4096xf32> to vector<64x128xf32>
    %54 = arith.maximumf %52, %53 : vector<64x128xf32>
    %55 = vector.extract_strided_slice %21 {offsets = [0, 2816], sizes = [64, 128], strides = [1, 1]} : vector<64x4096xf32> to vector<64x128xf32>
    %56 = vector.extract_strided_slice %21 {offsets = [0, 2944], sizes = [64, 128], strides = [1, 1]} : vector<64x4096xf32> to vector<64x128xf32>
    %57 = arith.maximumf %55, %56 : vector<64x128xf32>
    %58 = vector.extract_strided_slice %21 {offsets = [0, 3072], sizes = [64, 128], strides = [1, 1]} : vector<64x4096xf32> to vector<64x128xf32>
    %59 = vector.extract_strided_slice %21 {offsets = [0, 3200], sizes = [64, 128], strides = [1, 1]} : vector<64x4096xf32> to vector<64x128xf32>
    %60 = arith.maximumf %58, %59 : vector<64x128xf32>
    %61 = vector.extract_strided_slice %21 {offsets = [0, 3328], sizes = [64, 128], strides = [1, 1]} : vector<64x4096xf32> to vector<64x128xf32>
    %62 = vector.extract_strided_slice %21 {offsets = [0, 3456], sizes = [64, 128], strides = [1, 1]} : vector<64x4096xf32> to vector<64x128xf32>
    %63 = arith.maximumf %61, %62 : vector<64x128xf32>
    %64 = vector.extract_strided_slice %21 {offsets = [0, 3584], sizes = [64, 128], strides = [1, 1]} : vector<64x4096xf32> to vector<64x128xf32>
    %65 = vector.extract_strided_slice %21 {offsets = [0, 3712], sizes = [64, 128], strides = [1, 1]} : vector<64x4096xf32> to vector<64x128xf32>
    %66 = arith.maximumf %64, %65 : vector<64x128xf32>
    %67 = vector.extract_strided_slice %21 {offsets = [0, 3840], sizes = [64, 128], strides = [1, 1]} : vector<64x4096xf32> to vector<64x128xf32>
    %68 = vector.extract_strided_slice %21 {offsets = [0, 3968], sizes = [64, 128], strides = [1, 1]} : vector<64x4096xf32> to vector<64x128xf32>
    %69 = arith.maximumf %67, %68 : vector<64x128xf32>
    %70 = tpu.concatenate %24, %27, %30, %33, %36, %39, %42, %45, %48, %51, %54, %57, %60, %63, %66, %69 in 1 : vector<64x128xf32>, vector<64x128xf32>, vector<64x128xf32>, vector<64x128xf32>, vector<64x128xf32>, vector<64x128xf32>, vector<64x128xf32>, vector<64x128xf32>, vector<64x128xf32>, vector<64x128xf32>, vector<64x128xf32>, vector<64x128xf32>, vector<64x128xf32>, vector<64x128xf32>, vector<64x128xf32>, vector<64x128xf32> -> vector<64x2048xf32>
    %c0_9 = arith.constant 0 : index
    %c0_10 = arith.constant 0 : index
    %71 = vector.load %arg5[%c0_9, %c0_10] : memref<64x192xbf16, #tpu.memory_space<vmem>>, vector<64x192xbf16>
    %c0_11 = arith.constant 0 : index
    %c0_12 = arith.constant 0 : index
    %72 = vector.load %arg6[%c0_11, %c0_12] : memref<64x1xf32, #tpu.memory_space<vmem>>, vector<64x1xf32>
    %c0_13 = arith.constant 0 : index
    %c0_14 = arith.constant 0 : index
    %73 = vector.load %arg7[%c0_13, %c0_14] : memref<64x1xf32, #tpu.memory_space<vmem>>, vector<64x1xf32>
    %cst_15 = arith.constant 0.000000e+00 : f32
    %74 = vector.broadcast %cst_15 : f32 to vector<64x128xf32>
    %75 = tpu.concatenate %74, %70, %74 in 1 : vector<64x128xf32>, vector<64x2048xf32>, vector<64x128xf32> -> vector<64x2304xf32>
    %76 = vector.extract_strided_slice %75 {offsets = [0, 0], sizes = [64, 2048], strides = [1, 1]} : vector<64x2304xf32> to vector<64x2048xf32>
    %77 = vector.extract_strided_slice %75 {offsets = [0, 128], sizes = [64, 2048], strides = [1, 1]} : vector<64x2304xf32> to vector<64x2048xf32>
    %78 = vector.extract_strided_slice %75 {offsets = [0, 256], sizes = [64, 2048], strides = [1, 1]} : vector<64x2304xf32> to vector<64x2048xf32>
    %79 = tpu.concatenate %76, %77, %78 in 0 : vector<64x2048xf32>, vector<64x2048xf32>, vector<64x2048xf32> -> vector<192x2048xf32>
    %80 = arith.truncf %79 : vector<192x2048xf32> to vector<192x2048xbf16>
    %cst_16 = arith.constant dense<0.000000e+00> : vector<64x2048xf32>
    %81 = tpu.matmul %71, %80, %cst_16 {dimension_numbers = #tpu.dot_dimension_numbers<[1], [0], [0], [1], [0, 0, 1, 1], [], []>} : vector<64x192xbf16>, vector<192x2048xbf16>, vector<64x2048xf32> -> vector<64x2048xf32>
    %82 = vector.broadcast %72 : vector<64x1xf32> to vector<64x2048xf32>
    %83 = arith.mulf %81, %82 : vector<64x2048xf32>
    %84 = vector.broadcast %73 : vector<64x1xf32> to vector<64x2048xf32>
    %85 = arith.addf %83, %84 : vector<64x2048xf32>
    %cst_17 = arith.constant 0.000000e+00 : f32
    %86 = vector.broadcast %cst_17 : f32 to vector<64x2048xf32>
    %87 = arith.maximumf %85, %86 : vector<64x2048xf32>
    %88 = vector.extract_strided_slice %87 {offsets = [0, 0], sizes = [64, 128], strides = [1, 1]} : vector<64x2048xf32> to vector<64x128xf32>
    %89 = vector.extract_strided_slice %87 {offsets = [0, 128], sizes = [64, 128], strides = [1, 1]} : vector<64x2048xf32> to vector<64x128xf32>
    %90 = arith.maximumf %88, %89 : vector<64x128xf32>
    %91 = vector.extract_strided_slice %87 {offsets = [0, 256], sizes = [64, 128], strides = [1, 1]} : vector<64x2048xf32> to vector<64x128xf32>
    %92 = vector.extract_strided_slice %87 {offsets = [0, 384], sizes = [64, 128], strides = [1, 1]} : vector<64x2048xf32> to vector<64x128xf32>
    %93 = arith.maximumf %91, %92 : vector<64x128xf32>
    %94 = vector.extract_strided_slice %87 {offsets = [0, 512], sizes = [64, 128], strides = [1, 1]} : vector<64x2048xf32> to vector<64x128xf32>
    %95 = vector.extract_strided_slice %87 {offsets = [0, 640], sizes = [64, 128], strides = [1, 1]} : vector<64x2048xf32> to vector<64x128xf32>
    %96 = arith.maximumf %94, %95 : vector<64x128xf32>
    %97 = vector.extract_strided_slice %87 {offsets = [0, 768], sizes = [64, 128], strides = [1, 1]} : vector<64x2048xf32> to vector<64x128xf32>
    %98 = vector.extract_strided_slice %87 {offsets = [0, 896], sizes = [64, 128], strides = [1, 1]} : vector<64x2048xf32> to vector<64x128xf32>
    %99 = arith.maximumf %97, %98 : vector<64x128xf32>
    %100 = vector.extract_strided_slice %87 {offsets = [0, 1024], sizes = [64, 128], strides = [1, 1]} : vector<64x2048xf32> to vector<64x128xf32>
    %101 = vector.extract_strided_slice %87 {offsets = [0, 1152], sizes = [64, 128], strides = [1, 1]} : vector<64x2048xf32> to vector<64x128xf32>
    %102 = arith.maximumf %100, %101 : vector<64x128xf32>
    %103 = vector.extract_strided_slice %87 {offsets = [0, 1280], sizes = [64, 128], strides = [1, 1]} : vector<64x2048xf32> to vector<64x128xf32>
    %104 = vector.extract_strided_slice %87 {offsets = [0, 1408], sizes = [64, 128], strides = [1, 1]} : vector<64x2048xf32> to vector<64x128xf32>
    %105 = arith.maximumf %103, %104 : vector<64x128xf32>
    %106 = vector.extract_strided_slice %87 {offsets = [0, 1536], sizes = [64, 128], strides = [1, 1]} : vector<64x2048xf32> to vector<64x128xf32>
    %107 = vector.extract_strided_slice %87 {offsets = [0, 1664], sizes = [64, 128], strides = [1, 1]} : vector<64x2048xf32> to vector<64x128xf32>
    %108 = arith.maximumf %106, %107 : vector<64x128xf32>
    %109 = vector.extract_strided_slice %87 {offsets = [0, 1792], sizes = [64, 128], strides = [1, 1]} : vector<64x2048xf32> to vector<64x128xf32>
    %110 = vector.extract_strided_slice %87 {offsets = [0, 1920], sizes = [64, 128], strides = [1, 1]} : vector<64x2048xf32> to vector<64x128xf32>
    %111 = arith.maximumf %109, %110 : vector<64x128xf32>
    %112 = tpu.concatenate %90, %93, %96, %99, %102, %105, %108, %111 in 1 : vector<64x128xf32>, vector<64x128xf32>, vector<64x128xf32>, vector<64x128xf32>, vector<64x128xf32>, vector<64x128xf32>, vector<64x128xf32>, vector<64x128xf32> -> vector<64x1024xf32>
    %c0_18 = arith.constant 0 : index
    %c0_19 = arith.constant 0 : index
    %113 = vector.load %arg8[%c0_18, %c0_19] : memref<64x320xbf16, #tpu.memory_space<vmem>>, vector<64x320xbf16>
    %c0_20 = arith.constant 0 : index
    %c0_21 = arith.constant 0 : index
    %114 = vector.load %arg9[%c0_20, %c0_21] : memref<64x1xf32, #tpu.memory_space<vmem>>, vector<64x1xf32>
    %c0_22 = arith.constant 0 : index
    %c0_23 = arith.constant 0 : index
    %115 = vector.load %arg10[%c0_22, %c0_23] : memref<64x1xf32, #tpu.memory_space<vmem>>, vector<64x1xf32>
    %cst_24 = arith.constant 0.000000e+00 : f32
    %116 = vector.broadcast %cst_24 : f32 to vector<64x256xf32>
    %117 = tpu.concatenate %116, %112, %116 in 1 : vector<64x256xf32>, vector<64x1024xf32>, vector<64x256xf32> -> vector<64x1536xf32>
    %118 = vector.extract_strided_slice %117 {offsets = [0, 0], sizes = [64, 1024], strides = [1, 1]} : vector<64x1536xf32> to vector<64x1024xf32>
    %119 = vector.extract_strided_slice %117 {offsets = [0, 128], sizes = [64, 1024], strides = [1, 1]} : vector<64x1536xf32> to vector<64x1024xf32>
    %120 = vector.extract_strided_slice %117 {offsets = [0, 256], sizes = [64, 1024], strides = [1, 1]} : vector<64x1536xf32> to vector<64x1024xf32>
    %121 = vector.extract_strided_slice %117 {offsets = [0, 384], sizes = [64, 1024], strides = [1, 1]} : vector<64x1536xf32> to vector<64x1024xf32>
    %122 = vector.extract_strided_slice %117 {offsets = [0, 512], sizes = [64, 1024], strides = [1, 1]} : vector<64x1536xf32> to vector<64x1024xf32>
    %123 = tpu.concatenate %118, %119, %120, %121, %122 in 0 : vector<64x1024xf32>, vector<64x1024xf32>, vector<64x1024xf32>, vector<64x1024xf32>, vector<64x1024xf32> -> vector<320x1024xf32>
    %124 = arith.truncf %123 : vector<320x1024xf32> to vector<320x1024xbf16>
    %cst_25 = arith.constant dense<0.000000e+00> : vector<64x1024xf32>
    %125 = tpu.matmul %113, %124, %cst_25 {dimension_numbers = #tpu.dot_dimension_numbers<[1], [0], [0], [1], [0, 0, 1, 1], [], []>} : vector<64x320xbf16>, vector<320x1024xbf16>, vector<64x1024xf32> -> vector<64x1024xf32>
    %126 = vector.broadcast %114 : vector<64x1xf32> to vector<64x1024xf32>
    %127 = arith.mulf %125, %126 : vector<64x1024xf32>
    %128 = vector.broadcast %115 : vector<64x1xf32> to vector<64x1024xf32>
    %129 = arith.addf %127, %128 : vector<64x1024xf32>
    %cst_26 = arith.constant 0.000000e+00 : f32
    %130 = vector.broadcast %cst_26 : f32 to vector<64x1024xf32>
    %131 = arith.maximumf %129, %130 : vector<64x1024xf32>
    %132 = vector.extract_strided_slice %131 {offsets = [0, 0], sizes = [64, 128], strides = [1, 1]} : vector<64x1024xf32> to vector<64x128xf32>
    %133 = vector.extract_strided_slice %131 {offsets = [0, 128], sizes = [64, 128], strides = [1, 1]} : vector<64x1024xf32> to vector<64x128xf32>
    %134 = arith.maximumf %132, %133 : vector<64x128xf32>
    %135 = vector.extract_strided_slice %131 {offsets = [0, 256], sizes = [64, 128], strides = [1, 1]} : vector<64x1024xf32> to vector<64x128xf32>
    %136 = vector.extract_strided_slice %131 {offsets = [0, 384], sizes = [64, 128], strides = [1, 1]} : vector<64x1024xf32> to vector<64x128xf32>
    %137 = arith.maximumf %135, %136 : vector<64x128xf32>
    %138 = vector.extract_strided_slice %131 {offsets = [0, 512], sizes = [64, 128], strides = [1, 1]} : vector<64x1024xf32> to vector<64x128xf32>
    %139 = vector.extract_strided_slice %131 {offsets = [0, 640], sizes = [64, 128], strides = [1, 1]} : vector<64x1024xf32> to vector<64x128xf32>
    %140 = arith.maximumf %138, %139 : vector<64x128xf32>
    %141 = vector.extract_strided_slice %131 {offsets = [0, 768], sizes = [64, 128], strides = [1, 1]} : vector<64x1024xf32> to vector<64x128xf32>
    %142 = vector.extract_strided_slice %131 {offsets = [0, 896], sizes = [64, 128], strides = [1, 1]} : vector<64x1024xf32> to vector<64x128xf32>
    %143 = arith.maximumf %141, %142 : vector<64x128xf32>
    %144 = tpu.concatenate %134, %137, %140, %143 in 1 : vector<64x128xf32>, vector<64x128xf32>, vector<64x128xf32>, vector<64x128xf32> -> vector<64x512xf32>
    %c0_27 = arith.constant 0 : index
    %c0_28 = arith.constant 0 : index
    %145 = vector.load %arg11[%c0_27, %c0_28] : memref<128x192xbf16, #tpu.memory_space<vmem>>, vector<128x192xbf16>
    %c0_29 = arith.constant 0 : index
    %c0_30 = arith.constant 0 : index
    %146 = vector.load %arg12[%c0_29, %c0_30] : memref<128x1xf32, #tpu.memory_space<vmem>>, vector<128x1xf32>
    %c0_31 = arith.constant 0 : index
    %c0_32 = arith.constant 0 : index
    %147 = vector.load %arg13[%c0_31, %c0_32] : memref<128x1xf32, #tpu.memory_space<vmem>>, vector<128x1xf32>
    %cst_33 = arith.constant 0.000000e+00 : f32
    %148 = vector.broadcast %cst_33 : f32 to vector<64x128xf32>
    %149 = tpu.concatenate %148, %144, %148 in 1 : vector<64x128xf32>, vector<64x512xf32>, vector<64x128xf32> -> vector<64x768xf32>
    %150 = vector.extract_strided_slice %149 {offsets = [0, 0], sizes = [64, 512], strides = [1, 1]} : vector<64x768xf32> to vector<64x512xf32>
    %151 = vector.extract_strided_slice %149 {offsets = [0, 128], sizes = [64, 512], strides = [1, 1]} : vector<64x768xf32> to vector<64x512xf32>
    %152 = vector.extract_strided_slice %149 {offsets = [0, 256], sizes = [64, 512], strides = [1, 1]} : vector<64x768xf32> to vector<64x512xf32>
    %153 = tpu.concatenate %150, %151, %152 in 0 : vector<64x512xf32>, vector<64x512xf32>, vector<64x512xf32> -> vector<192x512xf32>
    %154 = arith.truncf %153 : vector<192x512xf32> to vector<192x512xbf16>
    %cst_34 = arith.constant dense<0.000000e+00> : vector<128x512xf32>
    %155 = tpu.matmul %145, %154, %cst_34 {dimension_numbers = #tpu.dot_dimension_numbers<[1], [0], [0], [1], [0, 0, 1, 1], [], []>} : vector<128x192xbf16>, vector<192x512xbf16>, vector<128x512xf32> -> vector<128x512xf32>
    %156 = vector.broadcast %146 : vector<128x1xf32> to vector<128x512xf32>
    %157 = arith.mulf %155, %156 : vector<128x512xf32>
    %158 = vector.broadcast %147 : vector<128x1xf32> to vector<128x512xf32>
    %159 = arith.addf %157, %158 : vector<128x512xf32>
    %cst_35 = arith.constant 0.000000e+00 : f32
    %160 = vector.broadcast %cst_35 : f32 to vector<128x512xf32>
    %161 = arith.maximumf %159, %160 : vector<128x512xf32>
    %162 = vector.extract_strided_slice %161 {offsets = [0, 0], sizes = [128, 128], strides = [1, 1]} : vector<128x512xf32> to vector<128x128xf32>
    %163 = vector.extract_strided_slice %161 {offsets = [0, 128], sizes = [128, 128], strides = [1, 1]} : vector<128x512xf32> to vector<128x128xf32>
    %164 = arith.maximumf %162, %163 : vector<128x128xf32>
    %165 = vector.extract_strided_slice %161 {offsets = [0, 256], sizes = [128, 128], strides = [1, 1]} : vector<128x512xf32> to vector<128x128xf32>
    %166 = vector.extract_strided_slice %161 {offsets = [0, 384], sizes = [128, 128], strides = [1, 1]} : vector<128x512xf32> to vector<128x128xf32>
    %167 = arith.maximumf %165, %166 : vector<128x128xf32>
    %168 = tpu.concatenate %164, %167 in 1 : vector<128x128xf32>, vector<128x128xf32> -> vector<128x256xf32>
    %169 = vector.extract_strided_slice %168 {offsets = [0, 0], sizes = [128, 128], strides = [1, 1]} : vector<128x256xf32> to vector<128x128xf32>
    %170 = vector.extract_strided_slice %168 {offsets = [0, 128], sizes = [128, 128], strides = [1, 1]} : vector<128x256xf32> to vector<128x128xf32>
    %171 = tpu.concatenate %169, %170 in 0 : vector<128x128xf32>, vector<128x128xf32> -> vector<256x128xf32>
    %c0_36 = arith.constant 0 : index
    %c0_37 = arith.constant 0 : index
    %172 = vector.load %arg14[%c0_36, %c0_37] : memref<256x256xbf16, #tpu.memory_space<vmem>>, vector<256x256xbf16>
    %173 = arith.truncf %171 : vector<256x128xf32> to vector<256x128xbf16>
    %cst_38 = arith.constant dense<0.000000e+00> : vector<256x128xf32>
    %174 = tpu.matmul %172, %173, %cst_38 {dimension_numbers = #tpu.dot_dimension_numbers<[1], [0], [0], [1], [0, 0, 1, 1], [], []>} : vector<256x256xbf16>, vector<256x128xbf16>, vector<256x128xf32> -> vector<256x128xf32>
    %c0_39 = arith.constant 0 : index
    %c0_40 = arith.constant 0 : index
    %175 = vector.load %arg15[%c0_39, %c0_40] : memref<256x1xf32, #tpu.memory_space<vmem>>, vector<256x1xf32>
    %176 = vector.broadcast %175 : vector<256x1xf32> to vector<256x128xf32>
    %177 = arith.addf %174, %176 : vector<256x128xf32>
    %c0_41 = arith.constant 0 : index
    %c0_42 = arith.constant 0 : index
    %178 = vector.load %arg16[%c0_41, %c0_42] : memref<256x1xf32, #tpu.memory_space<vmem>>, vector<256x1xf32>
    %179 = vector.broadcast %178 : vector<256x1xf32> to vector<256x128xf32>
    %180 = arith.mulf %177, %179 : vector<256x128xf32>
    %c0_43 = arith.constant 0 : index
    %c0_44 = arith.constant 0 : index
    %181 = vector.load %arg17[%c0_43, %c0_44] : memref<256x1xf32, #tpu.memory_space<vmem>>, vector<256x1xf32>
    %182 = vector.broadcast %181 : vector<256x1xf32> to vector<256x128xf32>
    %183 = arith.addf %180, %182 : vector<256x128xf32>
    %cst_45 = arith.constant 0.000000e+00 : f32
    %184 = vector.broadcast %cst_45 : f32 to vector<256x128xf32>
    %185 = arith.maximumf %183, %184 : vector<256x128xf32>
    %c0_46 = arith.constant 0 : index
    %c0_47 = arith.constant 0 : index
    %186 = vector.load %arg18[%c0_46, %c0_47] : memref<256x256xbf16, #tpu.memory_space<vmem>>, vector<256x256xbf16>
    %187 = arith.truncf %185 : vector<256x128xf32> to vector<256x128xbf16>
    %cst_48 = arith.constant dense<0.000000e+00> : vector<256x128xf32>
    %188 = tpu.matmul %186, %187, %cst_48 {dimension_numbers = #tpu.dot_dimension_numbers<[1], [0], [0], [1], [0, 0, 1, 1], [], []>} : vector<256x256xbf16>, vector<256x128xbf16>, vector<256x128xf32> -> vector<256x128xf32>
    %c0_49 = arith.constant 0 : index
    %c0_50 = arith.constant 0 : index
    %189 = vector.load %arg19[%c0_49, %c0_50] : memref<256x1xf32, #tpu.memory_space<vmem>>, vector<256x1xf32>
    %190 = vector.broadcast %189 : vector<256x1xf32> to vector<256x128xf32>
    %191 = arith.addf %188, %190 : vector<256x128xf32>
    %c0_51 = arith.constant 0 : index
    %c0_52 = arith.constant 0 : index
    %192 = vector.load %arg20[%c0_51, %c0_52] : memref<256x1xf32, #tpu.memory_space<vmem>>, vector<256x1xf32>
    %193 = vector.broadcast %192 : vector<256x1xf32> to vector<256x128xf32>
    %194 = arith.mulf %191, %193 : vector<256x128xf32>
    %c0_53 = arith.constant 0 : index
    %c0_54 = arith.constant 0 : index
    %195 = vector.load %arg21[%c0_53, %c0_54] : memref<256x1xf32, #tpu.memory_space<vmem>>, vector<256x1xf32>
    %196 = vector.broadcast %195 : vector<256x1xf32> to vector<256x128xf32>
    %197 = arith.addf %194, %196 : vector<256x128xf32>
    %cst_55 = arith.constant 0.000000e+00 : f32
    %198 = vector.broadcast %cst_55 : f32 to vector<256x128xf32>
    %199 = arith.maximumf %197, %198 : vector<256x128xf32>
    %c0_56 = arith.constant 0 : index
    %c0_57 = arith.constant 0 : index
    %200 = vector.load %arg22[%c0_56, %c0_57] : memref<8x256xbf16, #tpu.memory_space<vmem>>, vector<8x256xbf16>
    %201 = arith.truncf %199 : vector<256x128xf32> to vector<256x128xbf16>
    %cst_58 = arith.constant dense<0.000000e+00> : vector<8x128xf32>
    %202 = tpu.matmul %200, %201, %cst_58 {dimension_numbers = #tpu.dot_dimension_numbers<[1], [0], [0], [1], [0, 0, 1, 1], [], []>} : vector<8x256xbf16>, vector<256x128xbf16>, vector<8x128xf32> -> vector<8x128xf32>
    %c0_59 = arith.constant 0 : index
    %c0_60 = arith.constant 0 : index
    %203 = vector.load %arg23[%c0_59, %c0_60] : memref<8x1xf32, #tpu.memory_space<vmem>>, vector<8x1xf32>
    %204 = vector.broadcast %203 : vector<8x1xf32> to vector<8x128xf32>
    %205 = arith.addf %202, %204 : vector<8x128xf32>
    %c0_61 = arith.constant 0 : index
    %c0_62 = arith.constant 0 : index
    %206 = vector.load %arg24[%c0_61, %c0_62] : memref<8x128xf32, #tpu.memory_space<vmem>>, vector<8x128xf32>
    tpu.vector_store %arg24[%c0_61, %c0_62], %205 {strides = array<i32>} : memref<8x128xf32, #tpu.memory_space<vmem>>, vector<8x128xf32>,
    return
  }
  func.func @transform_0(%arg0: i32) -> (i32, i32) {
    %c0_i32 = arith.constant 0 : i32
    %c0_i32_0 = arith.constant 0 : i32
    return %c0_i32, %arg0 : i32, i32
  }
  func.func @transform_1(%arg0: i32) -> (i32, i32) {
    %c0_i32 = arith.constant 0 : i32
    %c0_i32_0 = arith.constant 0 : i32
    %c0_i32_1 = arith.constant 0 : i32
    return %c0_i32, %c0_i32_0 : i32, i32
  }
  func.func @transform_2(%arg0: i32) -> (i32, i32) {
    %c0_i32 = arith.constant 0 : i32
    %c0_i32_0 = arith.constant 0 : i32
    %c0_i32_1 = arith.constant 0 : i32
    return %c0_i32, %c0_i32_0 : i32, i32
  }
  func.func @transform_3(%arg0: i32) -> (i32, i32) {
    %c0_i32 = arith.constant 0 : i32
    %c0_i32_0 = arith.constant 0 : i32
    %c0_i32_1 = arith.constant 0 : i32
    return %c0_i32, %c0_i32_0 : i32, i32
  }
  func.func @transform_4(%arg0: i32) -> (i32, i32) {
    %c0_i32 = arith.constant 0 : i32
    %c0_i32_0 = arith.constant 0 : i32
    %c0_i32_1 = arith.constant 0 : i32
    return %c0_i32, %c0_i32_0 : i32, i32
  }
  func.func @transform_5(%arg0: i32) -> (i32, i32) {
    %c0_i32 = arith.constant 0 : i32
    %c0_i32_0 = arith.constant 0 : i32
    %c0_i32_1 = arith.constant 0 : i32
    return %c0_i32, %c0_i32_0 : i32, i32
  }
  func.func @transform_6(%arg0: i32) -> (i32, i32) {
    %c0_i32 = arith.constant 0 : i32
    %c0_i32_0 = arith.constant 0 : i32
    %c0_i32_1 = arith.constant 0 : i32
    return %c0_i32, %c0_i32_0 : i32, i32
  }
  func.func @transform_7(%arg0: i32) -> (i32, i32) {
    %c0_i32 = arith.constant 0 : i32
    %c0_i32_0 = arith.constant 0 : i32
    %c0_i32_1 = arith.constant 0 : i32
    return %c0_i32, %c0_i32_0 : i32, i32
  }
  func.func @transform_8(%arg0: i32) -> (i32, i32) {
    %c0_i32 = arith.constant 0 : i32
    %c0_i32_0 = arith.constant 0 : i32
    %c0_i32_1 = arith.constant 0 : i32
    return %c0_i32, %c0_i32_0 : i32, i32
  }
  func.func @transform_9(%arg0: i32) -> (i32, i32) {
    %c0_i32 = arith.constant 0 : i32
    %c0_i32_0 = arith.constant 0 : i32
    %c0_i32_1 = arith.constant 0 : i32
    return %c0_i32, %c0_i32_0 : i32, i32
  }
  func.func @transform_10(%arg0: i32) -> (i32, i32) {
    %c0_i32 = arith.constant 0 : i32
    %c0_i32_0 = arith.constant 0 : i32
    %c0_i32_1 = arith.constant 0 : i32
    return %c0_i32, %c0_i32_0 : i32, i32
  }
  func.func @transform_11(%arg0: i32) -> (i32, i32) {
    %c0_i32 = arith.constant 0 : i32
    %c0_i32_0 = arith.constant 0 : i32
    %c0_i32_1 = arith.constant 0 : i32
    return %c0_i32, %c0_i32_0 : i32, i32
  }
  func.func @transform_12(%arg0: i32) -> (i32, i32) {
    %c0_i32 = arith.constant 0 : i32
    %c0_i32_0 = arith.constant 0 : i32
    %c0_i32_1 = arith.constant 0 : i32
    return %c0_i32, %c0_i32_0 : i32, i32
  }
  func.func @transform_13(%arg0: i32) -> (i32, i32) {
    %c0_i32 = arith.constant 0 : i32
    %c0_i32_0 = arith.constant 0 : i32
    %c0_i32_1 = arith.constant 0 : i32
    return %c0_i32, %c0_i32_0 : i32, i32
  }
  func.func @transform_14(%arg0: i32) -> (i32, i32) {
    %c0_i32 = arith.constant 0 : i32
    %c0_i32_0 = arith.constant 0 : i32
    %c0_i32_1 = arith.constant 0 : i32
    return %c0_i32, %c0_i32_0 : i32, i32
  }
  func.func @transform_15(%arg0: i32) -> (i32, i32) {
    %c0_i32 = arith.constant 0 : i32
    %c0_i32_0 = arith.constant 0 : i32
    %c0_i32_1 = arith.constant 0 : i32
    return %c0_i32, %c0_i32_0 : i32, i32
  }
  func.func @transform_16(%arg0: i32) -> (i32, i32) {
    %c0_i32 = arith.constant 0 : i32
    %c0_i32_0 = arith.constant 0 : i32
    %c0_i32_1 = arith.constant 0 : i32
    return %c0_i32, %c0_i32_0 : i32, i32
  }
  func.func @transform_17(%arg0: i32) -> (i32, i32) {
    %c0_i32 = arith.constant 0 : i32
    %c0_i32_0 = arith.constant 0 : i32
    %c0_i32_1 = arith.constant 0 : i32
    return %c0_i32, %c0_i32_0 : i32, i32
  }
  func.func @transform_18(%arg0: i32) -> (i32, i32) {
    %c0_i32 = arith.constant 0 : i32
    %c0_i32_0 = arith.constant 0 : i32
    %c0_i32_1 = arith.constant 0 : i32
    return %c0_i32, %c0_i32_0 : i32, i32
  }
  func.func @transform_19(%arg0: i32) -> (i32, i32) {
    %c0_i32 = arith.constant 0 : i32
    %c0_i32_0 = arith.constant 0 : i32
    %c0_i32_1 = arith.constant 0 : i32
    return %c0_i32, %c0_i32_0 : i32, i32
  }
  func.func @transform_20(%arg0: i32) -> (i32, i32) {
    %c0_i32 = arith.constant 0 : i32
    %c0_i32_0 = arith.constant 0 : i32
    %c0_i32_1 = arith.constant 0 : i32
    return %c0_i32, %c0_i32_0 : i32, i32
  }
  func.func @transform_21(%arg0: i32) -> (i32, i32) {
    %c0_i32 = arith.constant 0 : i32
    %c0_i32_0 = arith.constant 0 : i32
    %c0_i32_1 = arith.constant 0 : i32
    return %c0_i32, %c0_i32_0 : i32, i32
  }
  func.func @transform_22(%arg0: i32) -> (i32, i32) {
    %c0_i32 = arith.constant 0 : i32
    %c0_i32_0 = arith.constant 0 : i32
    %c0_i32_1 = arith.constant 0 : i32
    return %c0_i32, %c0_i32_0 : i32, i32
  }
  func.func @transform_23(%arg0: i32) -> (i32, i32) {
    %c0_i32 = arith.constant 0 : i32
    %c0_i32_0 = arith.constant 0 : i32
    return %c0_i32, %arg0 : i32, i32
  }
}

</mosaic_0001>

<llo_original>
// kernel: deepstarr_forward.1
$region0: #{deepstarr_forward.1}
  #allocation0 [shape = 'u32[]', space=smem, size = 0x4, offset = 0x4, fixed_abs, tag = 'smem constant byte address 0x4 - core index']
  #allocation1 [shape = 'u32[144,128]{1,0:T(1,128)}', space=vmem, size = 0x12000, scoped, tag = 'internal scratch']
  %s0 = inlined_call_operand.vmem [shape: f32[8,8192], index: 0, kind: input, shape index: {}]
  %s1 = inlined_call_operand.vmem [shape: bf16[64,56], index: 1, kind: input, shape index: {}]
  %s2 = inlined_call_operand.vmem [shape: f32[64,1], index: 2, kind: input, shape index: {}]
  %s3 = inlined_call_operand.vmem [shape: f32[64,1], index: 3, kind: input, shape index: {}]
  %s4 = inlined_call_operand.vmem [shape: bf16[64,192], index: 4, kind: input, shape index: {}]
  %s5 = inlined_call_operand.vmem [shape: f32[64,1], index: 5, kind: input, shape index: {}]
  %s6 = inlined_call_operand.vmem [shape: f32[64,1], index: 6, kind: input, shape index: {}]
  %s7 = inlined_call_operand.vmem [shape: bf16[64,320], index: 7, kind: input, shape index: {}]
  %s8 = inlined_call_operand.vmem [shape: f32[64,1], index: 8, kind: input, shape index: {}]
  %s9 = inlined_call_operand.vmem [shape: f32[64,1], index: 9, kind: input, shape index: {}]
  %s10 = inlined_call_operand.vmem [shape: bf16[128,192], index: 10, kind: input, shape index: {}]
  %s11 = inlined_call_operand.vmem [shape: f32[128,1], index: 11, kind: input, shape index: {}]
  %s12 = inlined_call_operand.vmem [shape: f32[128,1], index: 12, kind: input, shape index: {}]
  %s13 = inlined_call_operand.vmem [shape: bf16[256,256], index: 13, kind: input, shape index: {}]
  %s14 = inlined_call_operand.vmem [shape: f32[256,1], index: 14, kind: input, shape index: {}]
  %s15 = inlined_call_operand.vmem [shape: f32[256,1], index: 15, kind: input, shape index: {}]
  %s16 = inlined_call_operand.vmem [shape: f32[256,1], index: 16, kind: input, shape index: {}]
  %s17 = inlined_call_operand.vmem [shape: bf16[256,256], index: 17, kind: input, shape index: {}]
  %s18 = inlined_call_operand.vmem [shape: f32[256,1], index: 18, kind: input, shape index: {}]
  %s19 = inlined_call_operand.vmem [shape: f32[256,1], index: 19, kind: input, shape index: {}]
  %s20 = inlined_call_operand.vmem [shape: f32[256,1], index: 20, kind: input, shape index: {}]
  %s21 = inlined_call_operand.vmem [shape: bf16[8,256], index: 21, kind: input, shape index: {}]
  %s22 = inlined_call_operand.vmem [shape: f32[8,1], index: 22, kind: input, shape index: {}]
  %s23 = inlined_call_operand.vmem [shape: f32[8,256], index: 23, kind: output, shape index: {}]
  %s24 = sld [smem:[#allocation0]]
  $region125: #{deepstarr_forward.1} parent=0
    _
  %s26 = ssub.s32 1, %s24
  %s27 = scalar_select 0, %s26, %s24
  loop: start=0, step=1, limit=4
  $region2: #{deepstarr_forward.1} parent=0 // loop_pre_header
    _
  $region3: #{deepstarr_forward.1} parent=0 // loop_header
    %s29 = sphi 0, %s33
    %p30 = scmp.ge.s32.totalorder %s29, 4
    %s39 = sphi 0, %s41
    %s42 = sphi 0, %s39
    %s43 = sphi 0, %s42
    %s59 = sphi 0, %s43
    %s63 = sphi 0, %s63
    %s65 = sphi 0, %s63
    %s66 = sphi 0, %s65
    %s80 = sphi 0, %s66
    %s84 = sphi 0, %s84
    %s86 = sphi 0, %s84
    %s87 = sphi 0, %s86
    %s101 = sphi 0, %s87
    %s105 = sphi 0, %s105
    %s107 = sphi 0, %s105
    %s108 = sphi 0, %s107
    %s122 = sphi 0, %s108
    %s126 = sphi 0, %s126
    %s128 = sphi 0, %s126
    %s129 = sphi 0, %s128
    %s143 = sphi 0, %s129
    %s147 = sphi 0, %s147
    %s149 = sphi 0, %s147
    %s150 = sphi 0, %s149
    %s164 = sphi 0, %s150
    %s168 = sphi 0, %s168
    %s170 = sphi 0, %s168
    %s171 = sphi 0, %s170
    %s185 = sphi 0, %s171
    %s189 = sphi 0, %s189
    %s191 = sphi 0, %s189
    %s192 = sphi 0, %s191
    %s206 = sphi 0, %s192
    %s210 = sphi 0, %s210
    %s212 = sphi 0, %s210
    %s213 = sphi 0, %s212
    %s227 = sphi 0, %s213
    %s231 = sphi 0, %s231
    %s233 = sphi 0, %s231
    %s234 = sphi 0, %s233
    %s248 = sphi 0, %s234
    %s252 = sphi 0, %s252
    %s254 = sphi 0, %s252
    %s255 = sphi 0, %s254
    %s269 = sphi 0, %s255
    %s273 = sphi 0, %s273
    %s275 = sphi 0, %s273
    %s276 = sphi 0, %s275
    %s290 = sphi 0, %s276
    %s294 = sphi 0, %s294
    %s296 = sphi 0, %s294
    %s297 = sphi 0, %s296
    %s311 = sphi 0, %s297
    %s315 = sphi 0, %s315
    %s317 = sphi 0, %s315
    %s318 = sphi 0, %s317
    %s332 = sphi 0, %s318
    %s336 = sphi 0, %s336
    %s338 = sphi 0, %s336
    %s339 = sphi 0, %s338
    %s353 = sphi 0, %s339
    %s357 = sphi 0, %s357
    %s359 = sphi 0, %s357
    %s360 = sphi 0, %s359
    %s374 = sphi 0, %s360
    %s378 = sphi 0, %s378
    %s380 = sphi 0, %s378
    %s381 = sphi 0, %s380
    %s395 = sphi 0, %s381
    %s399 = sphi 0, %s399
    %s401 = sphi 0, %s399
    %s402 = sphi 0, %s401
    %s416 = sphi 0, %s402
    %s420 = sphi 0, %s420
    %s422 = sphi 0, %s420
    %s423 = sphi 0, %s422
    %s437 = sphi 0, %s423
    %s441 = sphi 0, %s441
    %s443 = sphi 0, %s441
    %s444 = sphi 0, %s443
    %s458 = sphi 0, %s444
    %s462 = sphi 0, %s462
    %s464 = sphi 0, %s462
    %s465 = sphi 0, %s464
    %s479 = sphi 0, %s465
    %s483 = sphi 0, %s483
    %s485 = sphi 0, %s483
    %s486 = sphi 0, %s485
    %s500 = sphi 0, %s486
    %s504 = sphi 0, %s504
    %s506 = sphi 0, %s504
    %s507 = sphi 0, %s506
    %s521 = sphi 0, %s507
    %s527 = sphi 0, %s529
    %s530 = sphi 0, %s527
    %s531 = sphi 0, %s530
    %s547 = sphi 0, %s531
  $region4: #{deepstarr_forward.1} parent=0 // loop_header_branch
    %32 = sbr.rel (%p30) target = $region8
  $region5: #{deepstarr_forward.1} parent=0 // loop_body
    %s34 = ssub.s32 %s29, 1
    %s35 = ssub.s32 %s29, 2
    %s36 = sadd.s32 %s29, 1
    %s37 = ssub.s32 %s29, %s36
    %p38 = scmp.eq.s32.totalorder %s37, 0
    %s40 = sadd.s32 %s39, 1
    %s41 = scalar_select %p38, %s39, %s40
    %p44 = pneg %p38
    %p45 = scmp.eq.s32.totalorder %s29, 1
    %p46 = por %p44, %p45
    %p47 = scmp.ne.s32.totalorder %s39, %s42
    %p48 = scmp.eq.s32.totalorder %s29, 0
    %p49 = por %p47, %p48
    %p50 = scmp.ne.s32.totalorder %s39, %s42
    %p51 = scmp.eq.s32.totalorder %s34, 1
    %p52 = por %p50, %p51
    %p53 = scmp.ne.s32.totalorder %s42, %s43
    %p54 = scmp.eq.s32.totalorder %s34, 0
    %p55 = por %p53, %p54
    %p56 = scmp.ne.s32.totalorder %s42, %s43
    %p57 = scmp.eq.s32.totalorder %s35, 1
    %p58 = por %p56, %p57
    %p60 = scmp.ne.s32.totalorder %s43, %s59
    %p61 = scmp.eq.s32.totalorder %s35, 0
    %p62 = por %p60, %p61
    %s64 = sadd.s32 %s63, 1
    %p67 = scmp.eq.s32.totalorder %s29, 1
    %p68 = scmp.ne.s32.totalorder %s63, %s65
    %p69 = scmp.eq.s32.totalorder %s29, 0
    %p70 = por %p68, %p69
    %p71 = scmp.ne.s32.totalorder %s63, %s65
    %p72 = scmp.eq.s32.totalorder %s34, 1
    %p73 = por %p71, %p72
    %p74 = scmp.ne.s32.totalorder %s65, %s66
    %p75 = scmp.eq.s32.totalorder %s34, 0
    %p76 = por %p74, %p75
    %p77 = scmp.ne.s32.totalorder %s65, %s66
    %p78 = scmp.eq.s32.totalorder %s35, 1
    %p79 = por %p77, %p78
    %p81 = scmp.ne.s32.totalorder %s66, %s80
    %p82 = scmp.eq.s32.totalorder %s35, 0
    %p83 = por %p81, %p82
    %s85 = sadd.s32 %s84, 1
    %p88 = scmp.eq.s32.totalorder %s29, 1
    %p89 = scmp.ne.s32.totalorder %s84, %s86
    %p90 = scmp.eq.s32.totalorder %s29, 0
    %p91 = por %p89, %p90
    %p92 = scmp.ne.s32.totalorder %s84, %s86
    %p93 = scmp.eq.s32.totalorder %s34, 1
    %p94 = por %p92, %p93
    %p95 = scmp.ne.s32.totalorder %s86, %s87
    %p96 = scmp.eq.s32.totalorder %s34, 0
    %p97 = por %p95, %p96
    %p98 = scmp.ne.s32.totalorder %s86, %s87
    %p99 = scmp.eq.s32.totalorder %s35, 1
    %p100 = por %p98, %p99
    %p102 = scmp.ne.s32.totalorder %s87, %s101
    %p103 = scmp.eq.s32.totalorder %s35, 0
    %p104 = por %p102, %p103
    %s106 = sadd.s32 %s105, 1
    %p109 = scmp.eq.s32.totalorder %s29, 1
    %p110 = scmp.ne.s32.totalorder %s105, %s107
    %p111 = scmp.eq.s32.totalorder %s29, 0
    %p112 = por %p110, %p111
    %p113 = scmp.ne.s32.totalorder %s105, %s107
    %p114 = scmp.eq.s32.totalorder %s34, 1
    %p115 = por %p113, %p114
    %p116 = scmp.ne.s32.totalorder %s107, %s108
    %p117 = scmp.eq.s32.totalorder %s34, 0
    %p118 = por %p116, %p117
    %p119 = scmp.ne.s32.totalorder %s107, %s108
    %p120 = scmp.eq.s32.totalorder %s35, 1
    %p121 = por %p119, %p120
    %p123 = scmp.ne.s32.totalorder %s108, %s122
    %p124 = scmp.eq.s32.totalorder %s35, 0
    %p125 = por %p123, %p124
    %s127 = sadd.s32 %s126, 1
    %p130 = scmp.eq.s32.totalorder %s29, 1
    %p131 = scmp.ne.s32.totalorder %s126, %s128
    %p132 = scmp.eq.s32.totalorder %s29, 0
    %p133 = por %p131, %p132
    %p134 = scmp.ne.s32.totalorder %s126, %s128
    %p135 = scmp.eq.s32.totalorder %s34, 1
    %p136 = por %p134, %p135
    %p137 = scmp.ne.s32.totalorder %s128, %s129
    %p138 = scmp.eq.s32.totalorder %s34, 0
    %p139 = por %p137, %p138
    %p140 = scmp.ne.s32.totalorder %s128, %s129
    %p141 = scmp.eq.s32.totalorder %s35, 1
    %p142 = por %p140, %p141
    %p144 = scmp.ne.s32.totalorder %s129, %s143
    %p145 = scmp.eq.s32.totalorder %s35, 0
    %p146 = por %p144, %p145
    %s148 = sadd.s32 %s147, 1
    %p151 = scmp.eq.s32.totalorder %s29, 1
    %p152 = scmp.ne.s32.totalorder %s147, %s149
    %p153 = scmp.eq.s32.totalorder %s29, 0
    %p154 = por %p152, %p153
    %p155 = scmp.ne.s32.totalorder %s147, %s149
    %p156 = scmp.eq.s32.totalorder %s34, 1
    %p157 = por %p155, %p156
    %p158 = scmp.ne.s32.totalorder %s149, %s150
    %p159 = scmp.eq.s32.totalorder %s34, 0
    %p160 = por %p158, %p159
    %p161 = scmp.ne.s32.totalorder %s149, %s150
    %p162 = scmp.eq.s32.totalorder %s35, 1
    %p163 = por %p161, %p162
    %p165 = scmp.ne.s32.totalorder %s150, %s164
    %p166 = scmp.eq.s32.totalorder %s35, 0
    %p167 = por %p165, %p166
    %s169 = sadd.s32 %s168, 1
    %p172 = scmp.eq.s32.totalorder %s29, 1
    %p173 = scmp.ne.s32.totalorder %s168, %s170
    %p174 = scmp.eq.s32.totalorder %s29, 0
    %p175 = por %p173, %p174
    %p176 = scmp.ne.s32.totalorder %s168, %s170
    %p177 = scmp.eq.s32.totalorder %s34, 1
    %p178 = por %p176, %p177
    %p179 = scmp.ne.s32.totalorder %s170, %s171
    %p180 = scmp.eq.s32.totalorder %s34, 0
    %p181 = por %p179, %p180
    %p182 = scmp.ne.s32.totalorder %s170, %s171
    %p183 = scmp.eq.s32.totalorder %s35, 1
    %p184 = por %p182, %p183
    %p186 = scmp.ne.s32.totalorder %s171, %s185
    %p187 = scmp.eq.s32.totalorder %s35, 0
    %p188 = por %p186, %p187
    %s190 = sadd.s32 %s189, 1
    %p193 = scmp.eq.s32.totalorder %s29, 1
    %p194 = scmp.ne.s32.totalorder %s189, %s191
    %p195 = scmp.eq.s32.totalorder %s29, 0
    %p196 = por %p194, %p195
    %p197 = scmp.ne.s32.totalorder %s189, %s191
    %p198 = scmp.eq.s32.totalorder %s34, 1
    %p199 = por %p197, %p198
    %p200 = scmp.ne.s32.totalorder %s191, %s192
    %p201 = scmp.eq.s32.totalorder %s34, 0
    %p202 = por %p200, %p201
    %p203 = scmp.ne.s32.totalorder %s191, %s192
    %p204 = scmp.eq.s32.totalorder %s35, 1
    %p205 = por %p203, %p204
    %p207 = scmp.ne.s32.totalorder %s192, %s206
    %p208 = scmp.eq.s32.totalorder %s35, 0
    %p209 = por %p207, %p208
    %s211 = sadd.s32 %s210, 1
    %p214 = scmp.eq.s32.totalorder %s29, 1
    %p215 = scmp.ne.s32.totalorder %s210, %s212
    %p216 = scmp.eq.s32.totalorder %s29, 0
    %p217 = por %p215, %p216
    %p218 = scmp.ne.s32.totalorder %s210, %s212
    %p219 = scmp.eq.s32.totalorder %s34, 1
    %p220 = por %p218, %p219
    %p221 = scmp.ne.s32.totalorder %s212, %s213
    %p222 = scmp.eq.s32.totalorder %s34, 0
    %p223 = por %p221, %p222
    %p224 = scmp.ne.s32.totalorder %s212, %s213
    %p225 = scmp.eq.s32.totalorder %s35, 1
    %p226 = por %p224, %p225
    %p228 = scmp.ne.s32.totalorder %s213, %s227
    %p229 = scmp.eq.s32.totalorder %s35, 0
    %p230 = por %p228, %p229
    %s232 = sadd.s32 %s231, 1
    %p235 = scmp.eq.s32.totalorder %s29, 1
    %p236 = scmp.ne.s32.totalorder %s231, %s233
    %p237 = scmp.eq.s32.totalorder %s29, 0
    %p238 = por %p236, %p237
    %p239 = scmp.ne.s32.totalorder %s231, %s233
    %p240 = scmp.eq.s32.totalorder %s34, 1
    %p241 = por %p239, %p240
    %p242 = scmp.ne.s32.totalorder %s233, %s234
    %p243 = scmp.eq.s32.totalorder %s34, 0
    %p244 = por %p242, %p243
    %p245 = scmp.ne.s32.totalorder %s233, %s234
    %p246 = scmp.eq.s32.totalorder %s35, 1
    %p247 = por %p245, %p246
    %p249 = scmp.ne.s32.totalorder %s234, %s248
    %p250 = scmp.eq.s32.totalorder %s35, 0
    %p251 = por %p249, %p250
    %s253 = sadd.s32 %s252, 1
    %p256 = scmp.eq.s32.totalorder %s29, 1
    %p257 = scmp.ne.s32.totalorder %s252, %s254
    %p258 = scmp.eq.s32.totalorder %s29, 0
    %p259 = por %p257, %p258
    %p260 = scmp.ne.s32.totalorder %s252, %s254
    %p261 = scmp.eq.s32.totalorder %s34, 1
    %p262 = por %p260, %p261
    %p263 = scmp.ne.s32.totalorder %s254, %s255
    %p264 = scmp.eq.s32.totalorder %s34, 0
    %p265 = por %p263, %p264
    %p266 = scmp.ne.s32.totalorder %s254, %s255
    %p267 = scmp.eq.s32.totalorder %s35, 1
    %p268 = por %p266, %p267
    %p270 = scmp.ne.s32.totalorder %s255, %s269
    %p271 = scmp.eq.s32.totalorder %s35, 0
    %p272 = por %p270, %p271
    %s274 = sadd.s32 %s273, 1
    %p277 = scmp.eq.s32.totalorder %s29, 1
    %p278 = scmp.ne.s32.totalorder %s273, %s275
    %p279 = scmp.eq.s32.totalorder %s29, 0
    %p280 = por %p278, %p279
    %p281 = scmp.ne.s32.totalorder %s273, %s275
    %p282 = scmp.eq.s32.totalorder %s34, 1
    %p283 = por %p281, %p282
    %p284 = scmp.ne.s32.totalorder %s275, %s276
    %p285 = scmp.eq.s32.totalorder %s34, 0
    %p286 = por %p284, %p285
    %p287 = scmp.ne.s32.totalorder %s275, %s276
    %p288 = scmp.eq.s32.totalorder %s35, 1
    %p289 = por %p287, %p288
    %p291 = scmp.ne.s32.totalorder %s276, %s290
    %p292 = scmp.eq.s32.totalorder %s35, 0
    %p293 = por %p291, %p292
    %s295 = sadd.s32 %s294, 1
    %p298 = scmp.eq.s32.totalorder %s29, 1
    %p299 = scmp.ne.s32.totalorder %s294, %s296
    %p300 = scmp.eq.s32.totalorder %s29, 0
    %p301 = por %p299, %p300
    %p302 = scmp.ne.s32.totalorder %s294, %s296
    %p303 = scmp.eq.s32.totalorder %s34, 1
    %p304 = por %p302, %p303
    %p305 = scmp.ne.s32.totalorder %s296, %s297
    %p306 = scmp.eq.s32.totalorder %s34, 0
    %p307 = por %p305, %p306
    %p308 = scmp.ne.s32.totalorder %s296, %s297
    %p309 = scmp.eq.s32.totalorder %s35, 1
    %p310 = por %p308, %p309
    %p312 = scmp.ne.s32.totalorder %s297, %s311
    %p313 = scmp.eq.s32.totalorder %s35, 0
    %p314 = por %p312, %p313
    %s316 = sadd.s32 %s315, 1
    %p319 = scmp.eq.s32.totalorder %s29, 1
    %p320 = scmp.ne.s32.totalorder %s315, %s317
    %p321 = scmp.eq.s32.totalorder %s29, 0
    %p322 = por %p320, %p321
    %p323 = scmp.ne.s32.totalorder %s315, %s317
    %p324 = scmp.eq.s32.totalorder %s34, 1
    %p325 = por %p323, %p324
    %p326 = scmp.ne.s32.totalorder %s317, %s318
    %p327 = scmp.eq.s32.totalorder %s34, 0
    %p328 = por %p326, %p327
    %p329 = scmp.ne.s32.totalorder %s317, %s318
    %p330 = scmp.eq.s32.totalorder %s35, 1
    %p331 = por %p329, %p330
    %p333 = scmp.ne.s32.totalorder %s318, %s332
    %p334 = scmp.eq.s32.totalorder %s35, 0
    %p335 = por %p333, %p334
    %s337 = sadd.s32 %s336, 1
    %p340 = scmp.eq.s32.totalorder %s29, 1
    %p341 = scmp.ne.s32.totalorder %s336, %s338
    %p342 = scmp.eq.s32.totalorder %s29, 0
    %p343 = por %p341, %p342
    %p344 = scmp.ne.s32.totalorder %s336, %s338
    %p345 = scmp.eq.s32.totalorder %s34, 1
    %p346 = por %p344, %p345
    %p347 = scmp.ne.s32.totalorder %s338, %s339
    %p348 = scmp.eq.s32.totalorder %s34, 0
    %p349 = por %p347, %p348
    %p350 = scmp.ne.s32.totalorder %s338, %s339
    %p351 = scmp.eq.s32.totalorder %s35, 1
    %p352 = por %p350, %p351
    %p354 = scmp.ne.s32.totalorder %s339, %s353
    %p355 = scmp.eq.s32.totalorder %s35, 0
    %p356 = por %p354, %p355
    %s358 = sadd.s32 %s357, 1
    %p361 = scmp.eq.s32.totalorder %s29, 1
    %p362 = scmp.ne.s32.totalorder %s357, %s359
    %p363 = scmp.eq.s32.totalorder %s29, 0
    %p364 = por %p362, %p363
    %p365 = scmp.ne.s32.totalorder %s357, %s359
    %p366 = scmp.eq.s32.totalorder %s34, 1
    %p367 = por %p365, %p366
    %p368 = scmp.ne.s32.totalorder %s359, %s360
    %p369 = scmp.eq.s32.totalorder %s34, 0
    %p370 = por %p368, %p369
    %p371 = scmp.ne.s32.totalorder %s359, %s360
    %p372 = scmp.eq.s32.totalorder %s35, 1
    %p373 = por %p371, %p372
    %p375 = scmp.ne.s32.totalorder %s360, %s374
    %p376 = scmp.eq.s32.totalorder %s35, 0
    %p377 = por %p375, %p376
    %s379 = sadd.s32 %s378, 1
    %p382 = scmp.eq.s32.totalorder %s29, 1
    %p383 = scmp.ne.s32.totalorder %s378, %s380
    %p384 = scmp.eq.s32.totalorder %s29, 0
    %p385 = por %p383, %p384
    %p386 = scmp.ne.s32.totalorder %s378, %s380
    %p387 = scmp.eq.s32.totalorder %s34, 1
    %p388 = por %p386, %p387
    %p389 = scmp.ne.s32.totalorder %s380, %s381
    %p390 = scmp.eq.s32.totalorder %s34, 0
    %p391 = por %p389, %p390
    %p392 = scmp.ne.s32.totalorder %s380, %s381
    %p393 = scmp.eq.s32.totalorder %s35, 1
    %p394 = por %p392, %p393
    %p396 = scmp.ne.s32.totalorder %s381, %s395
    %p397 = scmp.eq.s32.totalorder %s35, 0
    %p398 = por %p396, %p397
    %s400 = sadd.s32 %s399, 1
    %p403 = scmp.eq.s32.totalorder %s29, 1
    %p404 = scmp.ne.s32.totalorder %s399, %s401
    %p405 = scmp.eq.s32.totalorder %s29, 0
    %p406 = por %p404, %p405
    %p407 = scmp.ne.s32.totalorder %s399, %s401
    %p408 = scmp.eq.s32.totalorder %s34, 1
    %p409 = por %p407, %p408
    %p410 = scmp.ne.s32.totalorder %s401, %s402
    %p411 = scmp.eq.s32.totalorder %s34, 0
    %p412 = por %p410, %p411
    %p413 = scmp.ne.s32.totalorder %s401, %s402
    %p414 = scmp.eq.s32.totalorder %s35, 1
    %p415 = por %p413, %p414
    %p417 = scmp.ne.s32.totalorder %s402, %s416
    %p418 = scmp.eq.s32.totalorder %s35, 0
    %p419 = por %p417, %p418
    %s421 = sadd.s32 %s420, 1
    %p424 = scmp.eq.s32.totalorder %s29, 1
    %p425 = scmp.ne.s32.totalorder %s420, %s422
    %p426 = scmp.eq.s32.totalorder %s29, 0
    %p427 = por %p425, %p426
    %p428 = scmp.ne.s32.totalorder %s420, %s422
    %p429 = scmp.eq.s32.totalorder %s34, 1
    %p430 = por %p428, %p429
    %p431 = scmp.ne.s32.totalorder %s422, %s423
    %p432 = scmp.eq.s32.totalorder %s34, 0
    %p433 = por %p431, %p432
    %p434 = scmp.ne.s32.totalorder %s422, %s423
    %p435 = scmp.eq.s32.totalorder %s35, 1
    %p436 = por %p434, %p435
    %p438 = scmp.ne.s32.totalorder %s423, %s437
    %p439 = scmp.eq.s32.totalorder %s35, 0
    %p440 = por %p438, %p439
    %s442 = sadd.s32 %s441, 1
    %p445 = scmp.eq.s32.totalorder %s29, 1
    %p446 = scmp.ne.s32.totalorder %s441, %s443
    %p447 = scmp.eq.s32.totalorder %s29, 0
    %p448 = por %p446, %p447
    %p449 = scmp.ne.s32.totalorder %s441, %s443
    %p450 = scmp.eq.s32.totalorder %s34, 1
    %p451 = por %p449, %p450
    %p452 = scmp.ne.s32.totalorder %s443, %s444
    %p453 = scmp.eq.s32.totalorder %s34, 0
    %p454 = por %p452, %p453
    %p455 = scmp.ne.s32.totalorder %s443, %s444
    %p456 = scmp.eq.s32.totalorder %s35, 1
    %p457 = por %p455, %p456
    %p459 = scmp.ne.s32.totalorder %s444, %s458
    %p460 = scmp.eq.s32.totalorder %s35, 0
    %p461 = por %p459, %p460
    %s463 = sadd.s32 %s462, 1
    %p466 = scmp.eq.s32.totalorder %s29, 1
    %p467 = scmp.ne.s32.totalorder %s462, %s464
    %p468 = scmp.eq.s32.totalorder %s29, 0
    %p469 = por %p467, %p468
    %p470 = scmp.ne.s32.totalorder %s462, %s464
    %p471 = scmp.eq.s32.totalorder %s34, 1
    %p472 = por %p470, %p471
    %p473 = scmp.ne.s32.totalorder %s464, %s465
    %p474 = scmp.eq.s32.totalorder %s34, 0
    %p475 = por %p473, %p474
    %p476 = scmp.ne.s32.totalorder %s464, %s465
    %p477 = scmp.eq.s32.totalorder %s35, 1
    %p478 = por %p476, %p477
    %p480 = scmp.ne.s32.totalorder %s465, %s479
    %p481 = scmp.eq.s32.totalorder %s35, 0
    %p482 = por %p480, %p481
    %s484 = sadd.s32 %s483, 1
    %p487 = scmp.eq.s32.totalorder %s29, 1
    %p488 = scmp.ne.s32.totalorder %s483, %s485
    %p489 = scmp.eq.s32.totalorder %s29, 0
    %p490 = por %p488, %p489
    %p491 = scmp.ne.s32.totalorder %s483, %s485
    %p492 = scmp.eq.s32.totalorder %s34, 1
    %p493 = por %p491, %p492
    %p494 = scmp.ne.s32.totalorder %s485, %s486
    %p495 = scmp.eq.s32.totalorder %s34, 0
    %p496 = por %p494, %p495
    %p497 = scmp.ne.s32.totalorder %s485, %s486
    %p498 = scmp.eq.s32.totalorder %s35, 1
    %p499 = por %p497, %p498
    %p501 = scmp.ne.s32.totalorder %s486, %s500
    %p502 = scmp.eq.s32.totalorder %s35, 0
    %p503 = por %p501, %p502
    %s505 = sadd.s32 %s504, 1
    %p508 = scmp.eq.s32.totalorder %s29, 1
    %p509 = scmp.ne.s32.totalorder %s504, %s506
    %p510 = scmp.eq.s32.totalorder %s29, 0
    %p511 = por %p509, %p510
    %p512 = scmp.ne.s32.totalorder %s504, %s506
    %p513 = scmp.eq.s32.totalorder %s34, 1
    %p514 = por %p512, %p513
    %p515 = scmp.ne.s32.totalorder %s506, %s507
    %p516 = scmp.eq.s32.totalorder %s34, 0
    %p517 = por %p515, %p516
    %p518 = scmp.ne.s32.totalorder %s506, %s507
    %p519 = scmp.eq.s32.totalorder %s35, 1
    %p520 = por %p518, %p519
    %p522 = scmp.ne.s32.totalorder %s507, %s521
    %p523 = scmp.eq.s32.totalorder %s35, 0
    %p524 = por %p522, %p523
    %s525 = ssub.s32 %s29, %s36
    %p526 = scmp.eq.s32.totalorder %s525, 0
    %s528 = sadd.s32 %s527, 1
    %s529 = scalar_select %p526, %s527, %s528
    %p532 = pneg %p526
    %p533 = scmp.eq.s32.totalorder %s29, 1
    %p534 = por %p532, %p533
    %p535 = scmp.ne.s32.totalorder %s527, %s530
    %p536 = scmp.eq.s32.totalorder %s29, 0
    %p537 = por %p535, %p536
    %p538 = scmp.ne.s32.totalorder %s527, %s530
    %p539 = scmp.eq.s32.totalorder %s34, 1
    %p540 = por %p538, %p539
    %p541 = scmp.ne.s32.totalorder %s530, %s531
    %p542 = scmp.eq.s32.totalorder %s34, 0
    %p543 = por %p541, %p542
    %p544 = scmp.ne.s32.totalorder %s530, %s531
    %p545 = scmp.eq.s32.totalorder %s35, 1
    %p546 = por %p544, %p545
    %p548 = scmp.ne.s32.totalorder %s531, %s547
    %p549 = scmp.eq.s32.totalorder %s35, 0
    %p550 = por %p548, %p549
    %p551 = scmp.le.s32.totalorder 1, %s29
    %p552 = scmp.lt.s32.totalorder %s29, 3
    %p553 = pnand %p551, %p552
    %p554 = pneg %p553
    // Predicated region
    $region9: #{deepstarr_forward.1} parent=5 // pred_check
      _
    $region10: #{deepstarr_forward.1} parent=5 // pred_check_branch
      %556 = sbr.rel (%p553) target = $region12
    $region11: #{deepstarr_forward.1} parent=5 // pred_region
      %s557 = ssub.s32 %s29, 1
      // Predicated region
      $region13: #{deepstarr_forward.1} parent=11 // pred_check
        %p558 = pneg %p76
      $region14: #{deepstarr_forward.1} parent=11 // pred_check_branch
        %560 = sbr.rel (%p558) target = $region16
      $region15: #{deepstarr_forward.1} parent=11 // pred_region
        _
      $region16: #{deepstarr_forward.1} parent=11 // pred_fallthru
        _
      // Predicated region
      $region17: #{deepstarr_forward.1} parent=11 // pred_check
        %p561 = pneg %p97
      $region18: #{deepstarr_forward.1} parent=11 // pred_check_branch
        %563 = sbr.rel (%p561) target = $region20
      $region19: #{deepstarr_forward.1} parent=11 // pred_region
        _
      $region20: #{deepstarr_forward.1} parent=11 // pred_fallthru
        _
      // Predicated region
      $region21: #{deepstarr_forward.1} parent=11 // pred_check
        %p564 = pneg %p118
      $region22: #{deepstarr_forward.1} parent=11 // pred_check_branch
        %566 = sbr.rel (%p564) target = $region24
      $region23: #{deepstarr_forward.1} parent=11 // pred_region
        _
      $region24: #{deepstarr_forward.1} parent=11 // pred_fallthru
        _
      // Predicated region
      $region25: #{deepstarr_forward.1} parent=11 // pred_check
        %p567 = pneg %p139
      $region26: #{deepstarr_forward.1} parent=11 // pred_check_branch
        %569 = sbr.rel (%p567) target = $region28
      $region27: #{deepstarr_forward.1} parent=11 // pred_region
        _
      $region28: #{deepstarr_forward.1} parent=11 // pred_fallthru
        _
      // Predicated region
      $region29: #{deepstarr_forward.1} parent=11 // pred_check
        %p570 = pneg %p160
      $region30: #{deepstarr_forward.1} parent=11 // pred_check_branch
        %572 = sbr.rel (%p570) target = $region32
      $region31: #{deepstarr_forward.1} parent=11 // pred_region
        _
      $region32: #{deepstarr_forward.1} parent=11 // pred_fallthru
        _
      // Predicated region
      $region33: #{deepstarr_forward.1} parent=11 // pred_check
        %p573 = pneg %p181
      $region34: #{deepstarr_forward.1} parent=11 // pred_check_branch
        %575 = sbr.rel (%p573) target = $region36
      $region35: #{deepstarr_forward.1} parent=11 // pred_region
        _
      $region36: #{deepstarr_forward.1} parent=11 // pred_fallthru
        _
      // Predicated region
      $region37: #{deepstarr_forward.1} parent=11 // pred_check
        %p576 = pneg %p202
      $region38: #{deepstarr_forward.1} parent=11 // pred_check_branch
        %578 = sbr.rel (%p576) target = $region40
      $region39: #{deepstarr_forward.1} parent=11 // pred_region
        _
      $region40: #{deepstarr_forward.1} parent=11 // pred_fallthru
        _
      // Predicated region
      $region41: #{deepstarr_forward.1} parent=11 // pred_check
        %p579 = pneg %p223
      $region42: #{deepstarr_forward.1} parent=11 // pred_check_branch
        %581 = sbr.rel (%p579) target = $region44
      $region43: #{deepstarr_forward.1} parent=11 // pred_region
        _
      $region44: #{deepstarr_forward.1} parent=11 // pred_fallthru
        _
      // Predicated region
      $region45: #{deepstarr_forward.1} parent=11 // pred_check
        %p582 = pneg %p244
      $region46: #{deepstarr_forward.1} parent=11 // pred_check_branch
        %584 = sbr.rel (%p582) target = $region48
      $region47: #{deepstarr_forward.1} parent=11 // pred_region
        _
      $region48: #{deepstarr_forward.1} parent=11 // pred_fallthru
        _
      // Predicated region
      $region49: #{deepstarr_forward.1} parent=11 // pred_check
        %p585 = pneg %p265
      $region50: #{deepstarr_forward.1} parent=11 // pred_check_branch
        %587 = sbr.rel (%p585) target = $region52
      $region51: #{deepstarr_forward.1} parent=11 // pred_region
        _
      $region52: #{deepstarr_forward.1} parent=11 // pred_fallthru
        _
      // Predicated region
      $region53: #{deepstarr_forward.1} parent=11 // pred_check
        %p588 = pneg %p286
      $region54: #{deepstarr_forward.1} parent=11 // pred_check_branch
        %590 = sbr.rel (%p588) target = $region56
      $region55: #{deepstarr_forward.1} parent=11 // pred_region
        _
      $region56: #{deepstarr_forward.1} parent=11 // pred_fallthru
        _
      // Predicated region
      $region57: #{deepstarr_forward.1} parent=11 // pred_check
        %p591 = pneg %p307
      $region58: #{deepstarr_forward.1} parent=11 // pred_check_branch
        %593 = sbr.rel (%p591) target = $region60
      $region59: #{deepstarr_forward.1} parent=11 // pred_region
        _
      $region60: #{deepstarr_forward.1} parent=11 // pred_fallthru
        _
      // Predicated region
      $region61: #{deepstarr_forward.1} parent=11 // pred_check
        %p594 = pneg %p328
      $region62: #{deepstarr_forward.1} parent=11 // pred_check_branch
        %596 = sbr.rel (%p594) target = $region64
      $region63: #{deepstarr_forward.1} parent=11 // pred_region
        _
      $region64: #{deepstarr_forward.1} parent=11 // pred_fallthru
        _
      // Predicated region
      $region65: #{deepstarr_forward.1} parent=11 // pred_check
        %p597 = pneg %p349
      $region66: #{deepstarr_forward.1} parent=11 // pred_check_branch
        %599 = sbr.rel (%p597) target = $region68
      $region67: #{deepstarr_forward.1} parent=11 // pred_region
        _
      $region68: #{deepstarr_forward.1} parent=11 // pred_fallthru
        _
      // Predicated region
      $region69: #{deepstarr_forward.1} parent=11 // pred_check
        %p600 = pneg %p370
      $region70: #{deepstarr_forward.1} parent=11 // pred_check_branch
        %602 = sbr.rel (%p600) target = $region72
      $region71: #{deepstarr_forward.1} parent=11 // pred_region
        _
      $region72: #{deepstarr_forward.1} parent=11 // pred_fallthru
        _
      // Predicated region
      $region73: #{deepstarr_forward.1} parent=11 // pred_check
        %p603 = pneg %p391
      $region74: #{deepstarr_forward.1} parent=11 // pred_check_branch
        %605 = sbr.rel (%p603) target = $region76
      $region75: #{deepstarr_forward.1} parent=11 // pred_region
        _
      $region76: #{deepstarr_forward.1} parent=11 // pred_fallthru
        _
      // Predicated region
      $region77: #{deepstarr_forward.1} parent=11 // pred_check
        %p606 = pneg %p412
      $region78: #{deepstarr_forward.1} parent=11 // pred_check_branch
        %608 = sbr.rel (%p606) target = $region80
      $region79: #{deepstarr_forward.1} parent=11 // pred_region
        _
      $region80: #{deepstarr_forward.1} parent=11 // pred_fallthru
        _
      // Predicated region
      $region81: #{deepstarr_forward.1} parent=11 // pred_check
        %p609 = pneg %p433
      $region82: #{deepstarr_forward.1} parent=11 // pred_check_branch
        %611 = sbr.rel (%p609) target = $region84
      $region83: #{deepstarr_forward.1} parent=11 // pred_region
        _
      $region84: #{deepstarr_forward.1} parent=11 // pred_fallthru
        _
      // Predicated region
      $region85: #{deepstarr_forward.1} parent=11 // pred_check
        %p612 = pneg %p454
      $region86: #{deepstarr_forward.1} parent=11 // pred_check_branch
        %614 = sbr.rel (%p612) target = $region88
      $region87: #{deepstarr_forward.1} parent=11 // pred_region
        _
      $region88: #{deepstarr_forward.1} parent=11 // pred_fallthru
        _
      // Predicated region
      $region89: #{deepstarr_forward.1} parent=11 // pred_check
        %p615 = pneg %p475
      $region90: #{deepstarr_forward.1} parent=11 // pred_check_branch
        %617 = sbr.rel (%p615) target = $region92
      $region91: #{deepstarr_forward.1} parent=11 // pred_region
        _
      $region92: #{deepstarr_forward.1} parent=11 // pred_fallthru
        _
      // Predicated region
      $region93: #{deepstarr_forward.1} parent=11 // pred_check
        %p618 = pneg %p496
      $region94: #{deepstarr_forward.1} parent=11 // pred_check_branch
        %620 = sbr.rel (%p618) target = $region96
      $region95: #{deepstarr_forward.1} parent=11 // pred_region
        _
      $region96: #{deepstarr_forward.1} parent=11 // pred_fallthru
        _
      // Predicated region
      $region97: #{deepstarr_forward.1} parent=11 // pred_check
        %p621 = pneg %p517
      $region98: #{deepstarr_forward.1} parent=11 // pred_check_branch
        %623 = sbr.rel (%p621) target = $region100
      $region99: #{deepstarr_forward.1} parent=11 // pred_region
        _
      $region100: #{deepstarr_forward.1} parent=11 // pred_fallthru
        _
    $region12: #{deepstarr_forward.1} parent=5 // pred_fallthru
      _
    %p624 = scmp.lt.s32.totalorder %s29, 2
    // Predicated region
    $region101: #{deepstarr_forward.1} parent=5 // pred_check
      %p625 = pneg %p624
    $region102: #{deepstarr_forward.1} parent=5 // pred_check_branch
      %627 = sbr.rel (%p625) target = $region104
    $region103: #{deepstarr_forward.1} parent=5 // pred_region
      // Predicated region
      $region105: #{deepstarr_forward.1} parent=103 // pred_check
        %p628 = pneg %p49
      $region106: #{deepstarr_forward.1} parent=103 // pred_check_branch
        %630 = sbr.rel (%p628) target = $region108
      $region107: #{deepstarr_forward.1} parent=103 // pred_region
        %s631 = smul.u32 32, %s29
        %p632 = scmp.lt.s32.totalorder %s631, 63
        %s633 = scalar_select %p632, %s631, 63
        %s634 = smul.addr %s633, 8
        %s635 = scalar_lea.vmem %s0, %s634
        %s636 = smul.u32 32, %s29
      $region108: #{deepstarr_forward.1} parent=103 // pred_fallthru
        _
    $region104: #{deepstarr_forward.1} parent=5 // pred_fallthru
      _
    %p637 = scmp.le.s32.totalorder 1, %s29
    %p638 = scmp.lt.s32.totalorder %s29, 3
    %p639 = pnand %p637, %p638
    %p640 = pneg %p639
    // Predicated region
    $region109: #{deepstarr_forward.1} parent=5 // pred_check
      _
    $region110: #{deepstarr_forward.1} parent=5 // pred_check_branch
      %642 = sbr.rel (%p639) target = $region112
    $region111: #{deepstarr_forward.1} parent=5 // pred_region
      %s643 = ssub.s32 %s29, 1
      %s644 = smul.u32 32, %s34
      %p645 = scmp.lt.s32.totalorder %s644, 63
      %s646 = scalar_select %p645, %s644, 63
      %s647 = smul.addr %s646, 8
      %s648 = scalar_lea.vmem %s0, %s647
      %p649 = pneg %p55
      %p650 = pneg %p52
      %p651 = pneg %p76
      %p652 = pneg %p73
      %p653 = pneg %p97
      %p654 = pneg %p94
      %p655 = pneg %p118
      %p656 = pneg %p115
      %p657 = pneg %p139
      %p658 = pneg %p136
      %p659 = pneg %p160
      %p660 = pneg %p157
      %p661 = pneg %p181
      %p662 = pneg %p178
      %p663 = pneg %p202
      %p664 = pneg %p199
      %p665 = pneg %p223
      %p666 = pneg %p220
      %p667 = pneg %p244
      %p668 = pneg %p241
      %p669 = pneg %p265
      %p670 = pneg %p262
      %p671 = pneg %p286
      %p672 = pneg %p283
      %p673 = pneg %p307
      %p674 = pneg %p304
      %p675 = pneg %p328
      %p676 = pneg %p325
      %p677 = pneg %p349
      %p678 = pneg %p346
      %p679 = pneg %p370
      %p680 = pneg %p367
      %p681 = pneg %p391
      %p682 = pneg %p388
      %p683 = pneg %p412
      %p684 = pneg %p409
      %p685 = pneg %p433
      %p686 = pneg %p430
      %p687 = pneg %p454
      %p688 = pneg %p451
      %p689 = pneg %p475
      %p690 = pneg %p472
      %p691 = pneg %p496
      %p692 = pneg %p493
      %p693 = pneg %p517
      %p694 = pneg %p514
      %p695 = pneg %p543
      %p696 = pneg %p540
      %p697 = scmp.lt.s32.totalorder %s34, 1
      %s698 = scalar_select %p697, %s34, 1
      %s699 = smul.addr %s698, 8
      %s700 = scalar_lea.vmem %s23, %s699
      %s701 = smul.u32 32, %s34
      %p702 = scmp.lt.s32.totalorder %s701, 63
      %s703 = scalar_select %p702, %s701, 63
      %s704 = smul.addr %s703, 8
      %s705 = scalar_lea.vmem %s0, %s704
      %s706 = smul.u32 32, %s34
      %p707 = scmp.lt.s32.totalorder %s34, 1
      %s708 = scalar_select %p707, %s34, 1
      %s709 = smul.addr %s708, 8
      %s710 = scalar_lea.vmem %s23, %s709
      %v712 = vld [vmem:[%s705] sm:$0xff]
      %v713 = vld [vmem:[%s705 + $0x8] sm:$0xff]
      %v714 = vld [vmem:[%s705 + $0x10] sm:$0xff]
      %v715 = vld [vmem:[%s705 + $0x18] sm:$0xff]
      %v716 = vld [vmem:[%s705 + $0x20] sm:$0xff]
      %v717 = vld [vmem:[%s705 + $0x28] sm:$0xff]
      %v718 = vld [vmem:[%s705 + $0x30] sm:$0xff]
      %v719 = vld [vmem:[%s705 + $0x38] sm:$0xff]
      %v720 = vld [vmem:[%s705 + $0x40] sm:$0xff]
      %v721 = vld [vmem:[%s705 + $0x48] sm:$0xff]
      %v722 = vld [vmem:[%s705 + $0x50] sm:$0xff]
      %v723 = vld [vmem:[%s705 + $0x58] sm:$0xff]
      %v724 = vld [vmem:[%s705 + $0x60] sm:$0xff]
      %v725 = vld [vmem:[%s705 + $0x68] sm:$0xff]
      %v726 = vld [vmem:[%s705 + $0x70] sm:$0xff]
      %v727 = vld [vmem:[%s705 + $0x78] sm:$0xff]
      %v728 = vld [vmem:[%s705 + $0x80] sm:$0xff]
      %v729 = vld [vmem:[%s705 + $0x88] sm:$0xff]
      %v730 = vld [vmem:[%s705 + $0x90] sm:$0xff]
      %v731 = vld [vmem:[%s705 + $0x98] sm:$0xff]
      %v732 = vld [vmem:[%s705 + $0xa0] sm:$0xff]
      %v733 = vld [vmem:[%s705 + $0xa8] sm:$0xff]
      %v734 = vld [vmem:[%s705 + $0xb0] sm:$0xff]
      %v735 = vld [vmem:[%s705 + $0xb8] sm:$0xff]
      %v736 = vld [vmem:[%s705 + $0xc0] sm:$0xff]
      %v737 = vld [vmem:[%s705 + $0xc8] sm:$0xff]
      %v738 = vld [vmem:[%s705 + $0xd0] sm:$0xff]
      %v739 = vld [vmem:[%s705 + $0xd8] sm:$0xff]
      %v740 = vld [vmem:[%s705 + $0xe0] sm:$0xff]
      %v741 = vld [vmem:[%s705 + $0xe8] sm:$0xff]
      %v742 = vld [vmem:[%s705 + $0xf0] sm:$0xff]
      %v743 = vld [vmem:[%s705 + $0xf8] sm:$0xff]
      %v744 = vld [vmem:[%s1] sm:$0xf]
      %v745 = vld [vmem:[%s1 + $0x4] sm:$0xf]
      %v746 = vld [vmem:[%s1 + $0x8] sm:$0xf]
      %v747 = vld [vmem:[%s1 + $0xc] sm:$0xf]
      %v748 = vld [vmem:[%s1 + $0x10] sm:$0xf]
      %v749 = vld [vmem:[%s1 + $0x14] sm:$0xf]
      %v750 = vld [vmem:[%s1 + $0x18] sm:$0xf]
      %v751 = vld [vmem:[%s1 + $0x1c] sm:$0xf]
      %v752 = vld [vmem:[%s2] sm:$0xff]
      %v753 = vld [vmem:[%s2 + $0x8] sm:$0xff]
      %v754 = vld [vmem:[%s2 + $0x10] sm:$0xff]
      %v755 = vld [vmem:[%s2 + $0x18] sm:$0xff]
      %v756 = vld [vmem:[%s2 + $0x20] sm:$0xff]
      %v757 = vld [vmem:[%s2 + $0x28] sm:$0xff]
      %v758 = vld [vmem:[%s2 + $0x30] sm:$0xff]
      %v759 = vld [vmem:[%s2 + $0x38] sm:$0xff]
      %v760 = vld [vmem:[%s3] sm:$0xff]
      %v761 = vld [vmem:[%s3 + $0x8] sm:$0xff]
      %v762 = vld [vmem:[%s3 + $0x10] sm:$0xff]
      %v763 = vld [vmem:[%s3 + $0x18] sm:$0xff]
      %v764 = vld [vmem:[%s3 + $0x20] sm:$0xff]
      %v765 = vld [vmem:[%s3 + $0x28] sm:$0xff]
      %v766 = vld [vmem:[%s3 + $0x30] sm:$0xff]
      %v767 = vld [vmem:[%s3 + $0x38] sm:$0xff]
      %v768 = vpack.c.bf16 0.0, 0.0
      %v769 = vpack.c.bf16 %v712, 0.0
      %v770 = vpack.c.bf16 %v713, %v712
      %v771 = vpack.c.bf16 %v714, %v713
      %v772 = vpack.c.bf16 %v715, %v714
      %v773 = vpack.c.bf16 %v716, %v715
      %v774 = vpack.c.bf16 %v717, %v716
      %v775 = vpack.c.bf16 %v718, %v717
      %v776 = vpack.c.bf16 %v719, %v718
      %v777 = vpack.c.bf16 %v720, %v719
      %v778 = vpack.c.bf16 %v721, %v720
      %v779 = vpack.c.bf16 %v722, %v721
      %v780 = vpack.c.bf16 %v723, %v722
      %v781 = vpack.c.bf16 %v724, %v723
      %v782 = vpack.c.bf16 %v725, %v724
      %v783 = vpack.c.bf16 %v726, %v725
      %v784 = vpack.c.bf16 %v727, %v726
      %v785 = vpack.c.bf16 %v728, %v727
      %v786 = vpack.c.bf16 %v729, %v728
      %v787 = vpack.c.bf16 %v730, %v729
      %v788 = vpack.c.bf16 %v731, %v730
      %v789 = vpack.c.bf16 %v732, %v731
      %v790 = vpack.c.bf16 %v733, %v732
      %v791 = vpack.c.bf16 %v734, %v733
      %v792 = vpack.c.bf16 %v735, %v734
      %v793 = vpack.c.bf16 %v736, %v735
      %v794 = vpack.c.bf16 %v737, %v736
      %v795 = vpack.c.bf16 %v738, %v737
      %v796 = vpack.c.bf16 %v739, %v738
      %v797 = vpack.c.bf16 %v740, %v739
      %v798 = vpack.c.bf16 %v741, %v740
      %v799 = vpack.c.bf16 %v742, %v741
      %v800 = vpack.c.bf16 %v743, %v742
      %v801 = vpack.c.bf16 0.0, %v743
      %v802 = vpack.c.bf16 %v715, %v715
      %v803 = vpack.c.bf16 %v716, %v716
      %v804 = vpack.c.bf16 %v717, %v717
      %v805 = vpack.c.bf16 %v718, %v718
      %v806 = vpack.c.bf16 %v719, %v719
      %v807 = vpack.c.bf16 %v720, %v720
      %v808 = vpack.c.bf16 %v721, %v721
      %v809 = vpack.c.bf16 %v722, %v722
      %v810 = vpack.c.bf16 %v723, %v723
      %v811 = vpack.c.bf16 %v724, %v724
      %v812 = vpack.c.bf16 %v725, %v725
      %v813 = vpack.c.bf16 %v726, %v726
      %v814 = vpack.c.bf16 %v727, %v727
      %v815 = vpack.c.bf16 %v728, %v728
      %v816 = vpack.c.bf16 %v729, %v729
      %v817 = vpack.c.bf16 %v730, %v730
      %v818 = vpack.c.bf16 %v731, %v731
      %v819 = vpack.c.bf16 %v732, %v732
      %v820 = vpack.c.bf16 %v733, %v733
      %v821 = vpack.c.bf16 %v734, %v734
      %v822 = vpack.c.bf16 %v735, %v735
      %v823 = vpack.c.bf16 %v736, %v736
      %v824 = vpack.c.bf16 %v737, %v737
      %v825 = vpack.c.bf16 %v738, %v738
      %v826 = vpack.c.bf16 %v739, %v739
      %v827 = vpack.c.bf16 %v740, %v740
      %v828 = vpack.c.bf16 %v741, %v741
      %v829 = vpack.c.bf16 %v742, %v742
      %v830 = vpack.c.bf16 %v743, %v743
      %v839 = vunpack.c.l.b16 %v744
      %v840 = vunpack.c.l.b16 %v745
      %v841 = vunpack.c.l.b16 %v746
      %v842 = vunpack.c.l.b16 %v747
      %v843 = vunpack.c.l.b16 %v748
      %v844 = vunpack.c.l.b16 %v749
      %v845 = vunpack.c.l.b16 %v750
      %v846 = vunpack.c.l.b16 %v751
      %v847 = vpack.c.b16 %v840, %v839
      %v848 = vpack.c.b16 %v842, %v841
      %v849 = vpack.c.b16 %v844, %v843
      %v850 = vpack.c.b16 %v846, %v845
      %vm851 = vcmask 457728
      %v853 = vsel %vm851, %v847, 0
      %v856 = vsel %vm851, %v848, 0
      %v859 = vsel %vm851, %v849, 0
      %v862 = vsel %vm851, %v850, 0
      %vm864 = vcmask 1043456
      %v866 = vsel %vm864, %v802, 0
      %v869 = vsel %vm864, %v803, 0
      %v872 = vsel %vm864, %v804, 0
      %v875 = vsel %vm864, %v805, 0
      %v878 = vsel %vm864, %v806, 0
      %v881 = vsel %vm864, %v807, 0
      %v884 = vsel %vm864, %v808, 0
      %v887 = vsel %vm864, %v809, 0
      %v890 = vsel %vm864, %v810, 0
      %v893 = vsel %vm864, %v811, 0
      %v896 = vsel %vm864, %v812, 0
      %v899 = vsel %vm864, %v813, 0
      %v902 = vsel %vm864, %v814, 0
      %v905 = vsel %vm864, %v815, 0
      %v908 = vsel %vm864, %v816, 0
      %v911 = vsel %vm864, %v817, 0
      %v914 = vsel %vm864, %v818, 0
      %v917 = vsel %vm864, %v819, 0
      %v920 = vsel %vm864, %v820, 0
      %v923 = vsel %vm864, %v821, 0
      %v926 = vsel %vm864, %v822, 0
      %v929 = vsel %vm864, %v823, 0
      %v932 = vsel %vm864, %v824, 0
      %v935 = vsel %vm864, %v825, 0
      %v938 = vsel %vm864, %v826, 0
      %v941 = vsel %vm864, %v827, 0
      %v944 = vsel %vm864, %v828, 0
      %v947 = vsel %vm864, %v829, 0
      %v950 = vsel %vm864, %v830, 0
      %v953 = vsel %vm864, %v768, 0
      %955 = vmatprep.subr.bf16.mxu0 %v768
      %956 = vmatpush1.bf16.msra.mxu0 %v768
      %957 = vmatprep.subr.bf16.mxu0 %v770
      %958 = vmatpush1.bf16.msra.mxu0 %v769
      %959 = vmatprep.subr.bf16.mxu0 %v772
      %960 = vmatpush1.bf16.msra.mxu0 %v771
      %961 = vmatprep.subr.bf16.mxu0 %v869
      %962 = vmatpush1.bf16.msra.mxu0 %v866
      %963 = vmatprep.subr.bf16.mxu0 0
      %964 = vmatpush1.bf16.msra.mxu0 0
      %965 = vmatprep.subr.bf16.mxu0 0
      %966 = vmatpush1.bf16.msra.mxu0 0
      %967 = vmatprep.subr.bf16.mxu0 0
      %968 = vmatpush1.bf16.msra.mxu0 0
      %969 = vmatprep.subr.bf16.mxu0 0
      %970 = vmatpush1.bf16.msra.mxu0 0
      %971 = vmatprep.subr.bf16.mxu0 0
      %972 = vmatpush1.bf16.msra.mxu0 0
      %973 = vmatprep.subr.bf16.mxu0 0
      %974 = vmatpush1.bf16.msra.mxu0 0
      %975 = vmatprep.subr.bf16.mxu0 0
      %976 = vmatpush1.bf16.msra.mxu0 0
      %977 = vmatprep.subr.bf16.mxu0 0
      %978 = vmatpush1.bf16.msra.mxu0 0
      %979 = vmatprep.subr.bf16.mxu0 0
      %980 = vmatpush1.bf16.msra.mxu0 0
      %981 = vmatprep.subr.bf16.mxu0 0
      %982 = vmatpush1.bf16.msra.mxu0 0
      %983 = vmatprep.subr.bf16.mxu0 0
      %984 = vmatpush1.bf16.msra.mxu0 0
      %985 = vmatprep.subr.bf16.mxu0 0
      %986 = vmatpush1.bf16.msra.mxu0 0
      %987 = vmatprep.mubr.bf16.mxu0 0
      %988 = vmatmul.mubr.bf16.gmra.mrb[0].mxu0 %v853
      %v989 = vpop.f32.mrb[0].mxu0
      %v990 = vadd.f32 0.0, %v989
      %v991 = vpop.f32.mrb[0].mxu0
      %v992 = vadd.f32 0.0, %v991
      %v993 = vpop.f32.mrb[0].mxu0
      %v994 = vadd.f32 0.0, %v993
      %v995 = vpop.f32.mrb[0].mxu0
      %v996 = vadd.f32 0.0, %v995
      %997 = vmatprep.mubr.bf16.mxu0 0
      %998 = vmatmul.mubr.bf16.gmra.mrb[0].mxu0 %v856
      %v999 = vpop.f32.mrb[0].mxu0
      %v1000 = vadd.f32 0.0, %v999
      %v1001 = vpop.f32.mrb[0].mxu0
      %v1002 = vadd.f32 0.0, %v1001
      %v1003 = vpop.f32.mrb[0].mxu0
      %v1004 = vadd.f32 0.0, %v1003
      %v1005 = vpop.f32.mrb[0].mxu0
      %v1006 = vadd.f32 0.0, %v1005
      %1007 = vmatprep.mubr.bf16.mxu0 0
      %1008 = vmatmul.mubr.bf16.gmra.mrb[0].mxu0 %v859
      %v1009 = vpop.f32.mrb[0].mxu0
      %v1010 = vadd.f32 0.0, %v1009
      %v1011 = vpop.f32.mrb[0].mxu0
      %v1012 = vadd.f32 0.0, %v1011
      %v1013 = vpop.f32.mrb[0].mxu0
      %v1014 = vadd.f32 0.0, %v1013
      %v1015 = vpop.f32.mrb[0].mxu0
      %v1016 = vadd.f32 0.0, %v1015
      %1017 = vmatprep.mubr.bf16.mxu0 0
      %1018 = vmatmul.mubr.bf16.gmra.mrb[0].mxu0 %v862
      %v1019 = vpop.f32.mrb[0].mxu0
      %v1020 = vadd.f32 0.0, %v1019
      %v1021 = vpop.f32.mrb[0].mxu0
      %v1022 = vadd.f32 0.0, %v1021
      %v1023 = vpop.f32.mrb[0].mxu0
      %v1024 = vadd.f32 0.0, %v1023
      %v1025 = vpop.f32.mrb[0].mxu0
      %v1026 = vadd.f32 0.0, %v1025
      %1027 = vdwg.mxu0
      %1028 = vmatprep.subr.bf16.mxu0 %v770
      %1029 = vmatpush1.bf16.msra.mxu0 %v769
      %1030 = vmatprep.subr.bf16.mxu0 %v772
      %1031 = vmatpush1.bf16.msra.mxu0 %v771
      %1032 = vmatprep.subr.bf16.mxu0 %v774
      %1033 = vmatpush1.bf16.msra.mxu0 %v773
      %1034 = vmatprep.subr.bf16.mxu0 %v875
      %1035 = vmatpush1.bf16.msra.mxu0 %v872
      %1036 = vmatprep.subr.bf16.mxu0 0
      %1037 = vmatpush1.bf16.msra.mxu0 0
      %1038 = vmatprep.subr.bf16.mxu0 0
      %1039 = vmatpush1.bf16.msra.mxu0 0
      %1040 = vmatprep.subr.bf16.mxu0 0
      %1041 = vmatpush1.bf16.msra.mxu0 0
      %1042 = vmatprep.subr.bf16.mxu0 0
      %1043 = vmatpush1.bf16.msra.mxu0 0
      %1044 = vmatprep.subr.bf16.mxu0 0
      %1045 = vmatpush1.bf16.msra.mxu0 0
      %1046 = vmatprep.subr.bf16.mxu0 0
      %1047 = vmatpush1.bf16.msra.mxu0 0
      %1048 = vmatprep.subr.bf16.mxu0 0
      %1049 = vmatpush1.bf16.msra.mxu0 0
      %1050 = vmatprep.subr.bf16.mxu0 0
      %1051 = vmatpush1.bf16.msra.mxu0 0
      %1052 = vmatprep.subr.bf16.mxu0 0
      %1053 = vmatpush1.bf16.msra.mxu0 0
      %1054 = vmatprep.subr.bf16.mxu0 0
      %1055 = vmatpush1.bf16.msra.mxu0 0
      %1056 = vmatprep.subr.bf16.mxu0 0
      %1057 = vmatpush1.bf16.msra.mxu0 0
      %1058 = vmatprep.subr.bf16.mxu0 0
      %1059 = vmatpush1.bf16.msra.mxu0 0
      %1060 = vmatprep.mubr.bf16.mxu0 0
      %1061 = vmatmul.mubr.bf16.gmra.mrb[0].mxu0 %v853
      %v1062 = vpop.f32.mrb[0].mxu0
      %v1063 = vadd.f32 0.0, %v1062
      %v1064 = vpop.f32.mrb[0].mxu0
      %v1065 = vadd.f32 0.0, %v1064
      %v1066 = vpop.f32.mrb[0].mxu0
      %v1067 = vadd.f32 0.0, %v1066
      %v1068 = vpop.f32.mrb[0].mxu0
      %v1069 = vadd.f32 0.0, %v1068
      %1070 = vmatprep.mubr.bf16.mxu0 0
      %1071 = vmatmul.mubr.bf16.gmra.mrb[0].mxu0 %v856
      %v1072 = vpop.f32.mrb[0].mxu0
      %v1073 = vadd.f32 0.0, %v1072
      %v1074 = vpop.f32.mrb[0].mxu0
      %v1075 = vadd.f32 0.0, %v1074
      %v1076 = vpop.f32.mrb[0].mxu0
      %v1077 = vadd.f32 0.0, %v1076
      %v1078 = vpop.f32.mrb[0].mxu0
      %v1079 = vadd.f32 0.0, %v1078
      %1080 = vmatprep.mubr.bf16.mxu0 0
      %1081 = vmatmul.mubr.bf16.gmra.mrb[0].mxu0 %v859
      %v1082 = vpop.f32.mrb[0].mxu0
      %v1083 = vadd.f32 0.0, %v1082
      %v1084 = vpop.f32.mrb[0].mxu0
      %v1085 = vadd.f32 0.0, %v1084
      %v1086 = vpop.f32.mrb[0].mxu0
      %v1087 = vadd.f32 0.0, %v1086
      %v1088 = vpop.f32.mrb[0].mxu0
      %v1089 = vadd.f32 0.0, %v1088
      %1090 = vmatprep.mubr.bf16.mxu0 0
      %1091 = vmatmul.mubr.bf16.gmra.mrb[0].mxu0 %v862
      %v1092 = vpop.f32.mrb[0].mxu0
      %v1093 = vadd.f32 0.0, %v1092
      %v1094 = vpop.f32.mrb[0].mxu0
      %v1095 = vadd.f32 0.0, %v1094
      %v1096 = vpop.f32.mrb[0].mxu0
      %v1097 = vadd.f32 0.0, %v1096
      %v1098 = vpop.f32.mrb[0].mxu0
      %v1099 = vadd.f32 0.0, %v1098
      %1100 = vdwg.mxu0
      %1101 = vmatprep.subr.bf16.mxu0 %v772
      %1102 = vmatpush1.bf16.msra.mxu0 %v771
      %1103 = vmatprep.subr.bf16.mxu0 %v774
      %1104 = vmatpush1.bf16.msra.mxu0 %v773
      %1105 = vmatprep.subr.bf16.mxu0 %v776
      %1106 = vmatpush1.bf16.msra.mxu0 %v775
      %1107 = vmatprep.subr.bf16.mxu0 %v881
      %1108 = vmatpush1.bf16.msra.mxu0 %v878
      %1109 = vmatprep.subr.bf16.mxu0 0
      %1110 = vmatpush1.bf16.msra.mxu0 0
      %1111 = vmatprep.subr.bf16.mxu0 0
      %1112 = vmatpush1.bf16.msra.mxu0 0
      %1113 = vmatprep.subr.bf16.mxu0 0
      %1114 = vmatpush1.bf16.msra.mxu0 0
      %1115 = vmatprep.subr.bf16.mxu0 0
      %1116 = vmatpush1.bf16.msra.mxu0 0
      %1117 = vmatprep.subr.bf16.mxu0 0
      %1118 = vmatpush1.bf16.msra.mxu0 0
      %1119 = vmatprep.subr.bf16.mxu0 0
      %1120 = vmatpush1.bf16.msra.mxu0 0
      %1121 = vmatprep.subr.bf16.mxu0 0
      %1122 = vmatpush1.bf16.msra.mxu0 0
      %1123 = vmatprep.subr.bf16.mxu0 0
      %1124 = vmatpush1.bf16.msra.mxu0 0
      %1125 = vmatprep.subr.bf16.mxu0 0
      %1126 = vmatpush1.bf16.msra.mxu0 0
      %1127 = vmatprep.subr.bf16.mxu0 0
      %1128 = vmatpush1.bf16.msra.mxu0 0
      %1129 = vmatprep.subr.bf16.mxu0 0
      %1130 = vmatpush1.bf16.msra.mxu0 0
      %1131 = vmatprep.subr.bf16.mxu0 0
      %1132 = vmatpush1.bf16.msra.mxu0 0
      %1133 = vmatprep.mubr.bf16.mxu0 0
      %1134 = vmatmul.mubr.bf16.gmra.mrb[0].mxu0 %v853
      %v1135 = vpop.f32.mrb[0].mxu0
      %v1136 = vadd.f32 0.0, %v1135
      %v1137 = vpop.f32.mrb[0].mxu0
      %v1138 = vadd.f32 0.0, %v1137
      %v1139 = vpop.f32.mrb[0].mxu0
      %v1140 = vadd.f32 0.0, %v1139
      %v1141 = vpop.f32.mrb[0].mxu0
      %v1142 = vadd.f32 0.0, %v1141
      %1143 = vmatprep.mubr.bf16.mxu0 0
      %1144 = vmatmul.mubr.bf16.gmra.mrb[0].mxu0 %v856
      %v1145 = vpop.f32.mrb[0].mxu0
      %v1146 = vadd.f32 0.0, %v1145
      %v1147 = vpop.f32.mrb[0].mxu0
      %v1148 = vadd.f32 0.0, %v1147
      %v1149 = vpop.f32.mrb[0].mxu0
      %v1150 = vadd.f32 0.0, %v1149
      %v1151 = vpop.f32.mrb[0].mxu0
      %v1152 = vadd.f32 0.0, %v1151
      %1153 = vmatprep.mubr.bf16.mxu0 0
      %1154 = vmatmul.mubr.bf16.gmra.mrb[0].mxu0 %v859
      %v1155 = vpop.f32.mrb[0].mxu0
      %v1156 = vadd.f32 0.0, %v1155
      %v1157 = vpop.f32.mrb[0].mxu0
      %v1158 = vadd.f32 0.0, %v1157
      %v1159 = vpop.f32.mrb[0].mxu0
      %v1160 = vadd.f32 0.0, %v1159
      %v1161 = vpop.f32.mrb[0].mxu0
      %v1162 = vadd.f32 0.0, %v1161
      %1163 = vmatprep.mubr.bf16.mxu0 0
      %1164 = vmatmul.mubr.bf16.gmra.mrb[0].mxu0 %v862
      %v1165 = vpop.f32.mrb[0].mxu0
      %v1166 = vadd.f32 0.0, %v1165
      %v1167 = vpop.f32.mrb[0].mxu0
      %v1168 = vadd.f32 0.0, %v1167
      %v1169 = vpop.f32.mrb[0].mxu0
      %v1170 = vadd.f32 0.0, %v1169
      %v1171 = vpop.f32.mrb[0].mxu0
      %v1172 = vadd.f32 0.0, %v1171
      %1173 = vdwg.mxu0
      %1174 = vmatprep.subr.bf16.mxu0 %v774
      %1175 = vmatpush1.bf16.msra.mxu0 %v773
      %1176 = vmatprep.subr.bf16.mxu0 %v776
      %1177 = vmatpush1.bf16.msra.mxu0 %v775
      %1178 = vmatprep.subr.bf16.mxu0 %v778
      %1179 = vmatpush1.bf16.msra.mxu0 %v777
      %1180 = vmatprep.subr.bf16.mxu0 %v887
      %1181 = vmatpush1.bf16.msra.mxu0 %v884
      %1182 = vmatprep.subr.bf16.mxu0 0
      %1183 = vmatpush1.bf16.msra.mxu0 0
      %1184 = vmatprep.subr.bf16.mxu0 0
      %1185 = vmatpush1.bf16.msra.mxu0 0
      %1186 = vmatprep.subr.bf16.mxu0 0
      %1187 = vmatpush1.bf16.msra.mxu0 0
      %1188 = vmatprep.subr.bf16.mxu0 0
      %1189 = vmatpush1.bf16.msra.mxu0 0
      %1190 = vmatprep.subr.bf16.mxu0 0
      %1191 = vmatpush1.bf16.msra.mxu0 0
      %1192 = vmatprep.subr.bf16.mxu0 0
      %1193 = vmatpush1.bf16.msra.mxu0 0
      %1194 = vmatprep.subr.bf16.mxu0 0
      %1195 = vmatpush1.bf16.msra.mxu0 0
      %1196 = vmatprep.subr.bf16.mxu0 0
      %1197 = vmatpush1.bf16.msra.mxu0 0
      %1198 = vmatprep.subr.bf16.mxu0 0
      %1199 = vmatpush1.bf16.msra.mxu0 0
      %1200 = vmatprep.subr.bf16.mxu0 0
      %1201 = vmatpush1.bf16.msra.mxu0 0
      %1202 = vmatprep.subr.bf16.mxu0 0
      %1203 = vmatpush1.bf16.msra.mxu0 0
      %1204 = vmatprep.subr.bf16.mxu0 0
      %1205 = vmatpush1.bf16.msra.mxu0 0
      %1206 = vmatprep.mubr.bf16.mxu0 0
      %1207 = vmatmul.mubr.bf16.gmra.mrb[0].mxu0 %v853
      %v1208 = vpop.f32.mrb[0].mxu0
      %v1209 = vadd.f32 0.0, %v1208
      %v1210 = vpop.f32.mrb[0].mxu0
      %v1211 = vadd.f32 0.0, %v1210
      %v1212 = vpop.f32.mrb[0].mxu0
      %v1213 = vadd.f32 0.0, %v1212
      %v1214 = vpop.f32.mrb[0].mxu0
      %v1215 = vadd.f32 0.0, %v1214
      %1216 = vmatprep.mubr.bf16.mxu0 0
      %1217 = vmatmul.mubr.bf16.gmra.mrb[0].mxu0 %v856
      %v1218 = vpop.f32.mrb[0].mxu0
      %v1219 = vadd.f32 0.0, %v1218
      %v1220 = vpop.f32.mrb[0].mxu0
      %v1221 = vadd.f32 0.0, %v1220
      %v1222 = vpop.f32.mrb[0].mxu0
      %v1223 = vadd.f32 0.0, %v1222
      %v1224 = vpop.f32.mrb[0].mxu0
      %v1225 = vadd.f32 0.0, %v1224
      %1226 = vmatprep.mubr.bf16.mxu0 0
      %1227 = vmatmul.mubr.bf16.gmra.mrb[0].mxu0 %v859
      %v1228 = vpop.f32.mrb[0].mxu0
      %v1229 = vadd.f32 0.0, %v1228
      %v1230 = vpop.f32.mrb[0].mxu0
      %v1231 = vadd.f32 0.0, %v1230
      %v1232 = vpop.f32.mrb[0].mxu0
      %v1233 = vadd.f32 0.0, %v1232
      %v1234 = vpop.f32.mrb[0].mxu0
      %v1235 = vadd.f32 0.0, %v1234
      %1236 = vmatprep.mubr.bf16.mxu0 0
      %1237 = vmatmul.mubr.bf16.gmra.mrb[0].mxu0 %v862
      %v1238 = vpop.f32.mrb[0].mxu0
      %v1239 = vadd.f32 0.0, %v1238
      %v1240 = vpop.f32.mrb[0].mxu0
      %v1241 = vadd.f32 0.0, %v1240
      %v1242 = vpop.f32.mrb[0].mxu0
      %v1243 = vadd.f32 0.0, %v1242
      %v1244 = vpop.f32.mrb[0].mxu0
      %v1245 = vadd.f32 0.0, %v1244
      %1246 = vdwg.mxu0
      %1247 = vmatprep.subr.bf16.mxu0 %v776
      %1248 = vmatpush1.bf16.msra.mxu0 %v775
      %1249 = vmatprep.subr.bf16.mxu0 %v778
      %1250 = vmatpush1.bf16.msra.mxu0 %v777
      %1251 = vmatprep.subr.bf16.mxu0 %v780
      %1252 = vmatpush1.bf16.msra.mxu0 %v779
      %1253 = vmatprep.subr.bf16.mxu0 %v893
      %1254 = vmatpush1.bf16.msra.mxu0 %v890
      %1255 = vmatprep.subr.bf16.mxu0 0
      %1256 = vmatpush1.bf16.msra.mxu0 0
      %1257 = vmatprep.subr.bf16.mxu0 0
      %1258 = vmatpush1.bf16.msra.mxu0 0
      %1259 = vmatprep.subr.bf16.mxu0 0
      %1260 = vmatpush1.bf16.msra.mxu0 0
      %1261 = vmatprep.subr.bf16.mxu0 0
      %1262 = vmatpush1.bf16.msra.mxu0 0
      %1263 = vmatprep.subr.bf16.mxu0 0
      %1264 = vmatpush1.bf16.msra.mxu0 0
      %1265 = vmatprep.subr.bf16.mxu0 0
      %1266 = vmatpush1.bf16.msra.mxu0 0
      %1267 = vmatprep.subr.bf16.mxu0 0
      %1268 = vmatpush1.bf16.msra.mxu0 0
      %1269 = vmatprep.subr.bf16.mxu0 0
      %1270 = vmatpush1.bf16.msra.mxu0 0
      %1271 = vmatprep.subr.bf16.mxu0 0
      %1272 = vmatpush1.bf16.msra.mxu0 0
      %1273 = vmatprep.subr.bf16.mxu0 0
      %1274 = vmatpush1.bf16.msra.mxu0 0
      %1275 = vmatprep.subr.bf16.mxu0 0
      %1276 = vmatpush1.bf16.msra.mxu0 0
      %1277 = vmatprep.subr.bf16.mxu0 0
      %1278 = vmatpush1.bf16.msra.mxu0 0
      %1279 = vmatprep.mubr.bf16.mxu0 0
      %1280 = vmatmul.mubr.bf16.gmra.mrb[0].mxu0 %v853
      %v1281 = vpop.f32.mrb[0].mxu0
      %v1282 = vadd.f32 0.0, %v1281
      %v1283 = vpop.f32.mrb[0].mxu0
      %v1284 = vadd.f32 0.0, %v1283
      %v1285 = vpop.f32.mrb[0].mxu0
      %v1286 = vadd.f32 0.0, %v1285
      %v1287 = vpop.f32.mrb[0].mxu0
      %v1288 = vadd.f32 0.0, %v1287
      %1289 = vmatprep.mubr.bf16.mxu0 0
      %1290 = vmatmul.mubr.bf16.gmra.mrb[0].mxu0 %v856
      %v1291 = vpop.f32.mrb[0].mxu0
      %v1292 = vadd.f32 0.0, %v1291
      %v1293 = vpop.f32.mrb[0].mxu0
      %v1294 = vadd.f32 0.0, %v1293
      %v1295 = vpop.f32.mrb[0].mxu0
      %v1296 = vadd.f32 0.0, %v1295
      %v1297 = vpop.f32.mrb[0].mxu0
      %v1298 = vadd.f32 0.0, %v1297
      %1299 = vmatprep.mubr.bf16.mxu0 0
      %1300 = vmatmul.mubr.bf16.gmra.mrb[0].mxu0 %v859
      %v1301 = vpop.f32.mrb[0].mxu0
      %v1302 = vadd.f32 0.0, %v1301
      %v1303 = vpop.f32.mrb[0].mxu0
      %v1304 = vadd.f32 0.0, %v1303
      %v1305 = vpop.f32.mrb[0].mxu0
      %v1306 = vadd.f32 0.0, %v1305
      %v1307 = vpop.f32.mrb[0].mxu0
      %v1308 = vadd.f32 0.0, %v1307
      %1309 = vmatprep.mubr.bf16.mxu0 0
      %1310 = vmatmul.mubr.bf16.gmra.mrb[0].mxu0 %v862
      %v1311 = vpop.f32.mrb[0].mxu0
      %v1312 = vadd.f32 0.0, %v1311
      %v1313 = vpop.f32.mrb[0].mxu0
      %v1314 = vadd.f32 0.0, %v1313
      %v1315 = vpop.f32.mrb[0].mxu0
      %v1316 = vadd.f32 0.0, %v1315
      %v1317 = vpop.f32.mrb[0].mxu0
      %v1318 = vadd.f32 0.0, %v1317
      %1319 = vdwg.mxu0
      %1320 = vmatprep.subr.bf16.mxu0 %v778
      %1321 = vmatpush1.bf16.msra.mxu0 %v777
      %1322 = vmatprep.subr.bf16.mxu0 %v780
      %1323 = vmatpush1.bf16.msra.mxu0 %v779
      %1324 = vmatprep.subr.bf16.mxu0 %v782
      %1325 = vmatpush1.bf16.msra.mxu0 %v781
      %1326 = vmatprep.subr.bf16.mxu0 %v899
      %1327 = vmatpush1.bf16.msra.mxu0 %v896
      %1328 = vmatprep.subr.bf16.mxu0 0
      %1329 = vmatpush1.bf16.msra.mxu0 0
      %1330 = vmatprep.subr.bf16.mxu0 0
      %1331 = vmatpush1.bf16.msra.mxu0 0
      %1332 = vmatprep.subr.bf16.mxu0 0
      %1333 = vmatpush1.bf16.msra.mxu0 0
      %1334 = vmatprep.subr.bf16.mxu0 0
      %1335 = vmatpush1.bf16.msra.mxu0 0
      %1336 = vmatprep.subr.bf16.mxu0 0
      %1337 = vmatpush1.bf16.msra.mxu0 0
      %1338 = vmatprep.subr.bf16.mxu0 0
      %1339 = vmatpush1.bf16.msra.mxu0 0
      %1340 = vmatprep.subr.bf16.mxu0 0
      %1341 = vmatpush1.bf16.msra.mxu0 0
      %1342 = vmatprep.subr.bf16.mxu0 0
      %1343 = vmatpush1.bf16.msra.mxu0 0
      %1344 = vmatprep.subr.bf16.mxu0 0
      %1345 = vmatpush1.bf16.msra.mxu0 0
      %1346 = vmatprep.subr.bf16.mxu0 0
      %1347 = vmatpush1.bf16.msra.mxu0 0
      %1348 = vmatprep.subr.bf16.mxu0 0
      %1349 = vmatpush1.bf16.msra.mxu0 0
      %1350 = vmatprep.subr.bf16.mxu0 0
      %1351 = vmatpush1.bf16.msra.mxu0 0
      %1352 = vmatprep.mubr.bf16.mxu0 0
      %1353 = vmatmul.mubr.bf16.gmra.mrb[0].mxu0 %v853
      %v1354 = vpop.f32.mrb[0].mxu0
      %v1355 = vadd.f32 0.0, %v1354
      %v1356 = vpop.f32.mrb[0].mxu0
      %v1357 = vadd.f32 0.0, %v1356
      %v1358 = vpop.f32.mrb[0].mxu0
      %v1359 = vadd.f32 0.0, %v1358
      %v1360 = vpop.f32.mrb[0].mxu0
      %v1361 = vadd.f32 0.0, %v1360
      %1362 = vmatprep.mubr.bf16.mxu0 0
      %1363 = vmatmul.mubr.bf16.gmra.mrb[0].mxu0 %v856
      %v1364 = vpop.f32.mrb[0].mxu0
      %v1365 = vadd.f32 0.0, %v1364
      %v1366 = vpop.f32.mrb[0].mxu0
      %v1367 = vadd.f32 0.0, %v1366
      %v1368 = vpop.f32.mrb[0].mxu0
      %v1369 = vadd.f32 0.0, %v1368
      %v1370 = vpop.f32.mrb[0].mxu0
      %v1371 = vadd.f32 0.0, %v1370
      %1372 = vmatprep.mubr.bf16.mxu0 0
      %1373 = vmatmul.mubr.bf16.gmra.mrb[0].mxu0 %v859
      %v1374 = vpop.f32.mrb[0].mxu0
      %v1375 = vadd.f32 0.0, %v1374
      %v1376 = vpop.f32.mrb[0].mxu0
      %v1377 = vadd.f32 0.0, %v1376
      %v1378 = vpop.f32.mrb[0].mxu0
      %v1379 = vadd.f32 0.0, %v1378
      %v1380 = vpop.f32.mrb[0].mxu0
      %v1381 = vadd.f32 0.0, %v1380
      %1382 = vmatprep.mubr.bf16.mxu0 0
      %1383 = vmatmul.mubr.bf16.gmra.mrb[0].mxu0 %v862
      %v1384 = vpop.f32.mrb[0].mxu0
      %v1385 = vadd.f32 0.0, %v1384
      %v1386 = vpop.f32.mrb[0].mxu0
      %v1387 = vadd.f32 0.0, %v1386
      %v1388 = vpop.f32.mrb[0].mxu0
      %v1389 = vadd.f32 0.0, %v1388
      %v1390 = vpop.f32.mrb[0].mxu0
      %v1391 = vadd.f32 0.0, %v1390
      %1392 = vdwg.mxu0
      %1393 = vmatprep.subr.bf16.mxu0 %v780
      %1394 = vmatpush1.bf16.msra.mxu0 %v779
      %1395 = vmatprep.subr.bf16.mxu0 %v782
      %1396 = vmatpush1.bf16.msra.mxu0 %v781
      %1397 = vmatprep.subr.bf16.mxu0 %v784
      %1398 = vmatpush1.bf16.msra.mxu0 %v783
      %1399 = vmatprep.subr.bf16.mxu0 %v905
      %1400 = vmatpush1.bf16.msra.mxu0 %v902
      %1401 = vmatprep.subr.bf16.mxu0 0
      %1402 = vmatpush1.bf16.msra.mxu0 0
      %1403 = vmatprep.subr.bf16.mxu0 0
      %1404 = vmatpush1.bf16.msra.mxu0 0
      %1405 = vmatprep.subr.bf16.mxu0 0
      %1406 = vmatpush1.bf16.msra.mxu0 0
      %1407 = vmatprep.subr.bf16.mxu0 0
      %1408 = vmatpush1.bf16.msra.mxu0 0
      %1409 = vmatprep.subr.bf16.mxu0 0
      %1410 = vmatpush1.bf16.msra.mxu0 0
      %1411 = vmatprep.subr.bf16.mxu0 0
      %1412 = vmatpush1.bf16.msra.mxu0 0
      %1413 = vmatprep.subr.bf16.mxu0 0
      %1414 = vmatpush1.bf16.msra.mxu0 0
      %1415 = vmatprep.subr.bf16.mxu0 0
      %1416 = vmatpush1.bf16.msra.mxu0 0
      %1417 = vmatprep.subr.bf16.mxu0 0
      %1418 = vmatpush1.bf16.msra.mxu0 0
      %1419 = vmatprep.subr.bf16.mxu0 0
      %1420 = vmatpush1.bf16.msra.mxu0 0
      %1421 = vmatprep.subr.bf16.mxu0 0
      %1422 = vmatpush1.bf16.msra.mxu0 0
      %1423 = vmatprep.subr.bf16.mxu0 0
      %1424 = vmatpush1.bf16.msra.mxu0 0
      %1425 = vmatprep.mubr.bf16.mxu0 0
      %1426 = vmatmul.mubr.bf16.gmra.mrb[0].mxu0 %v853
      %v1427 = vpop.f32.mrb[0].mxu0
      %v1428 = vadd.f32 0.0, %v1427
      %v1429 = vpop.f32.mrb[0].mxu0
      %v1430 = vadd.f32 0.0, %v1429
      %v1431 = vpop.f32.mrb[0].mxu0
      %v1432 = vadd.f32 0.0, %v1431
      %v1433 = vpop.f32.mrb[0].mxu0
      %v1434 = vadd.f32 0.0, %v1433
      %1435 = vmatprep.mubr.bf16.mxu0 0
      %1436 = vmatmul.mubr.bf16.gmra.mrb[0].mxu0 %v856
      %v1437 = vpop.f32.mrb[0].mxu0
      %v1438 = vadd.f32 0.0, %v1437
      %v1439 = vpop.f32.mrb[0].mxu0
      %v1440 = vadd.f32 0.0, %v1439
      %v1441 = vpop.f32.mrb[0].mxu0
      %v1442 = vadd.f32 0.0, %v1441
      %v1443 = vpop.f32.mrb[0].mxu0
      %v1444 = vadd.f32 0.0, %v1443
      %1445 = vmatprep.mubr.bf16.mxu0 0
      %1446 = vmatmul.mubr.bf16.gmra.mrb[0].mxu0 %v859
      %v1447 = vpop.f32.mrb[0].mxu0
      %v1448 = vadd.f32 0.0, %v1447
      %v1449 = vpop.f32.mrb[0].mxu0
      %v1450 = vadd.f32 0.0, %v1449
      %v1451 = vpop.f32.mrb[0].mxu0
      %v1452 = vadd.f32 0.0, %v1451
      %v1453 = vpop.f32.mrb[0].mxu0
      %v1454 = vadd.f32 0.0, %v1453
      %1455 = vmatprep.mubr.bf16.mxu0 0
      %1456 = vmatmul.mubr.bf16.gmra.mrb[0].mxu0 %v862
      %v1457 = vpop.f32.mrb[0].mxu0
      %v1458 = vadd.f32 0.0, %v1457
      %v1459 = vpop.f32.mrb[0].mxu0
      %v1460 = vadd.f32 0.0, %v1459
      %v1461 = vpop.f32.mrb[0].mxu0
      %v1462 = vadd.f32 0.0, %v1461
      %v1463 = vpop.f32.mrb[0].mxu0
      %v1464 = vadd.f32 0.0, %v1463
      %1465 = vdwg.mxu0
      %1466 = vmatprep.subr.bf16.mxu0 %v782
      %1467 = vmatpush1.bf16.msra.mxu0 %v781
      %1468 = vmatprep.subr.bf16.mxu0 %v784
      %1469 = vmatpush1.bf16.msra.mxu0 %v783
      %1470 = vmatprep.subr.bf16.mxu0 %v786
      %1471 = vmatpush1.bf16.msra.mxu0 %v785
      %1472 = vmatprep.subr.bf16.mxu0 %v911
      %1473 = vmatpush1.bf16.msra.mxu0 %v908
      %1474 = vmatprep.subr.bf16.mxu0 0
      %1475 = vmatpush1.bf16.msra.mxu0 0
      %1476 = vmatprep.subr.bf16.mxu0 0
      %1477 = vmatpush1.bf16.msra.mxu0 0
      %1478 = vmatprep.subr.bf16.mxu0 0
      %1479 = vmatpush1.bf16.msra.mxu0 0
      %1480 = vmatprep.subr.bf16.mxu0 0
      %1481 = vmatpush1.bf16.msra.mxu0 0
      %1482 = vmatprep.subr.bf16.mxu0 0
      %1483 = vmatpush1.bf16.msra.mxu0 0
      %1484 = vmatprep.subr.bf16.mxu0 0
      %1485 = vmatpush1.bf16.msra.mxu0 0
      %1486 = vmatprep.subr.bf16.mxu0 0
      %1487 = vmatpush1.bf16.msra.mxu0 0
      %1488 = vmatprep.subr.bf16.mxu0 0
      %1489 = vmatpush1.bf16.msra.mxu0 0
      %1490 = vmatprep.subr.bf16.mxu0 0
      %1491 = vmatpush1.bf16.msra.mxu0 0
      %1492 = vmatprep.subr.bf16.mxu0 0
      %1493 = vmatpush1.bf16.msra.mxu0 0
      %1494 = vmatprep.subr.bf16.mxu0 0
      %1495 = vmatpush1.bf16.msra.mxu0 0
      %1496 = vmatprep.subr.bf16.mxu0 0
      %1497 = vmatpush1.bf16.msra.mxu0 0
      %1498 = vmatprep.mubr.bf16.mxu0 0
      %1499 = vmatmul.mubr.bf16.gmra.mrb[0].mxu0 %v853
      %v1500 = vpop.f32.mrb[0].mxu0
      %v1501 = vadd.f32 0.0, %v1500
      %v1502 = vpop.f32.mrb[0].mxu0
      %v1503 = vadd.f32 0.0, %v1502
      %v1504 = vpop.f32.mrb[0].mxu0
      %v1505 = vadd.f32 0.0, %v1504
      %v1506 = vpop.f32.mrb[0].mxu0
      %v1507 = vadd.f32 0.0, %v1506
      %1508 = vmatprep.mubr.bf16.mxu0 0
      %1509 = vmatmul.mubr.bf16.gmra.mrb[0].mxu0 %v856
      %v1510 = vpop.f32.mrb[0].mxu0
      %v1511 = vadd.f32 0.0, %v1510
      %v1512 = vpop.f32.mrb[0].mxu0
      %v1513 = vadd.f32 0.0, %v1512
      %v1514 = vpop.f32.mrb[0].mxu0
      %v1515 = vadd.f32 0.0, %v1514
      %v1516 = vpop.f32.mrb[0].mxu0
      %v1517 = vadd.f32 0.0, %v1516
      %1518 = vmatprep.mubr.bf16.mxu0 0
      %1519 = vmatmul.mubr.bf16.gmra.mrb[0].mxu0 %v859
      %v1520 = vpop.f32.mrb[0].mxu0
      %v1521 = vadd.f32 0.0, %v1520
      %v1522 = vpop.f32.mrb[0].mxu0
      %v1523 = vadd.f32 0.0, %v1522
      %v1524 = vpop.f32.mrb[0].mxu0
      %v1525 = vadd.f32 0.0, %v1524
      %v1526 = vpop.f32.mrb[0].mxu0
      %v1527 = vadd.f32 0.0, %v1526
      %1528 = vmatprep.mubr.bf16.mxu0 0
      %1529 = vmatmul.mubr.bf16.gmra.mrb[0].mxu0 %v862
      %v1530 = vpop.f32.mrb[0].mxu0
      %v1531 = vadd.f32 0.0, %v1530
      %v1532 = vpop.f32.mrb[0].mxu0
      %v1533 = vadd.f32 0.0, %v1532
      %v1534 = vpop.f32.mrb[0].mxu0
      %v1535 = vadd.f32 0.0, %v1534
      %v1536 = vpop.f32.mrb[0].mxu0
      %v1537 = vadd.f32 0.0, %v1536
      %1538 = vdwg.mxu0
      %1539 = vmatprep.subr.bf16.mxu0 %v784
      %1540 = vmatpush1.bf16.msra.mxu0 %v783
      %1541 = vmatprep.subr.bf16.mxu0 %v786
      %1542 = vmatpush1.bf16.msra.mxu0 %v785
      %1543 = vmatprep.subr.bf16.mxu0 %v788
      %1544 = vmatpush1.bf16.msra.mxu0 %v787
      %1545 = vmatprep.subr.bf16.mxu0 %v917
      %1546 = vmatpush1.bf16.msra.mxu0 %v914
      %1547 = vmatprep.subr.bf16.mxu0 0
      %1548 = vmatpush1.bf16.msra.mxu0 0
      %1549 = vmatprep.subr.bf16.mxu0 0
      %1550 = vmatpush1.bf16.msra.mxu0 0
      %1551 = vmatprep.subr.bf16.mxu0 0
      %1552 = vmatpush1.bf16.msra.mxu0 0
      %1553 = vmatprep.subr.bf16.mxu0 0
      %1554 = vmatpush1.bf16.msra.mxu0 0
      %1555 = vmatprep.subr.bf16.mxu0 0
      %1556 = vmatpush1.bf16.msra.mxu0 0
      %1557 = vmatprep.subr.bf16.mxu0 0
      %1558 = vmatpush1.bf16.msra.mxu0 0
      %1559 = vmatprep.subr.bf16.mxu0 0
      %1560 = vmatpush1.bf16.msra.mxu0 0
      %1561 = vmatprep.subr.bf16.mxu0 0
      %1562 = vmatpush1.bf16.msra.mxu0 0
      %1563 = vmatprep.subr.bf16.mxu0 0
      %1564 = vmatpush1.bf16.msra.mxu0 0
      %1565 = vmatprep.subr.bf16.mxu0 0
      %1566 = vmatpush1.bf16.msra.mxu0 0
      %1567 = vmatprep.subr.bf16.mxu0 0
      %1568 = vmatpush1.bf16.msra.mxu0 0
      %1569 = vmatprep.subr.bf16.mxu0 0
      %1570 = vmatpush1.bf16.msra.mxu0 0
      %1571 = vmatprep.mubr.bf16.mxu0 0
      %1572 = vmatmul.mubr.bf16.gmra.mrb[0].mxu0 %v853
      %v1573 = vpop.f32.mrb[0].mxu0
      %v1574 = vadd.f32 0.0, %v1573
      %v1575 = vpop.f32.mrb[0].mxu0
      %v1576 = vadd.f32 0.0, %v1575
      %v1577 = vpop.f32.mrb[0].mxu0
      %v1578 = vadd.f32 0.0, %v1577
      %v1579 = vpop.f32.mrb[0].mxu0
      %v1580 = vadd.f32 0.0, %v1579
      %1581 = vmatprep.mubr.bf16.mxu0 0
      %1582 = vmatmul.mubr.bf16.gmra.mrb[0].mxu0 %v856
      %v1583 = vpop.f32.mrb[0].mxu0
      %v1584 = vadd.f32 0.0, %v1583
      %v1585 = vpop.f32.mrb[0].mxu0
      %v1586 = vadd.f32 0.0, %v1585
      %v1587 = vpop.f32.mrb[0].mxu0
      %v1588 = vadd.f32 0.0, %v1587
      %v1589 = vpop.f32.mrb[0].mxu0
      %v1590 = vadd.f32 0.0, %v1589
      %1591 = vmatprep.mubr.bf16.mxu0 0
      %1592 = vmatmul.mubr.bf16.gmra.mrb[0].mxu0 %v859
      %v1593 = vpop.f32.mrb[0].mxu0
      %v1594 = vadd.f32 0.0, %v1593
      %v1595 = vpop.f32.mrb[0].mxu0
      %v1596 = vadd.f32 0.0, %v1595
      %v1597 = vpop.f32.mrb[0].mxu0
      %v1598 = vadd.f32 0.0, %v1597
      %v1599 = vpop.f32.mrb[0].mxu0
      %v1600 = vadd.f32 0.0, %v1599
      %1601 = vmatprep.mubr.bf16.mxu0 0
      %1602 = vmatmul.mubr.bf16.gmra.mrb[0].mxu0 %v862
      %v1603 = vpop.f32.mrb[0].mxu0
      %v1604 = vadd.f32 0.0, %v1603
      %v1605 = vpop.f32.mrb[0].mxu0
      %v1606 = vadd.f32 0.0, %v1605
      %v1607 = vpop.f32.mrb[0].mxu0
      %v1608 = vadd.f32 0.0, %v1607
      %v1609 = vpop.f32.mrb[0].mxu0
      %v1610 = vadd.f32 0.0, %v1609
      %1611 = vdwg.mxu0
      %1612 = vmatprep.subr.bf16.mxu0 %v786
      %1613 = vmatpush1.bf16.msra.mxu0 %v785
      %1614 = vmatprep.subr.bf16.mxu0 %v788
      %1615 = vmatpush1.bf16.msra.mxu0 %v787
      %1616 = vmatprep.subr.bf16.mxu0 %v790
      %1617 = vmatpush1.bf16.msra.mxu0 %v789
      %1618 = vmatprep.subr.bf16.mxu0 %v923
      %1619 = vmatpush1.bf16.msra.mxu0 %v920
      %1620 = vmatprep.subr.bf16.mxu0 0
      %1621 = vmatpush1.bf16.msra.mxu0 0
      %1622 = vmatprep.subr.bf16.mxu0 0
      %1623 = vmatpush1.bf16.msra.mxu0 0
      %1624 = vmatprep.subr.bf16.mxu0 0
      %1625 = vmatpush1.bf16.msra.mxu0 0
      %1626 = vmatprep.subr.bf16.mxu0 0
      %1627 = vmatpush1.bf16.msra.mxu0 0
      %1628 = vmatprep.subr.bf16.mxu0 0
      %1629 = vmatpush1.bf16.msra.mxu0 0
      %1630 = vmatprep.subr.bf16.mxu0 0
      %1631 = vmatpush1.bf16.msra.mxu0 0
      %1632 = vmatprep.subr.bf16.mxu0 0
      %1633 = vmatpush1.bf16.msra.mxu0 0
      %1634 = vmatprep.subr.bf16.mxu0 0
      %1635 = vmatpush1.bf16.msra.mxu0 0
      %1636 = vmatprep.subr.bf16.mxu0 0
      %1637 = vmatpush1.bf16.msra.mxu0 0
      %1638 = vmatprep.subr.bf16.mxu0 0
      %1639 = vmatpush1.bf16.msra.mxu0 0
      %1640 = vmatprep.subr.bf16.mxu0 0
      %1641 = vmatpush1.bf16.msra.mxu0 0
      %1642 = vmatprep.subr.bf16.mxu0 0
      %1643 = vmatpush1.bf16.msra.mxu0 0
      %1644 = vmatprep.mubr.bf16.mxu0 0
      %1645 = vmatmul.mubr.bf16.gmra.mrb[0].mxu0 %v853
      %v1646 = vpop.f32.mrb[0].mxu0
      %v1647 = vadd.f32 0.0, %v1646
      %v1648 = vpop.f32.mrb[0].mxu0
      %v1649 = vadd.f32 0.0, %v1648
      %v1650 = vpop.f32.mrb[0].mxu0
      %v1651 = vadd.f32 0.0, %v1650
      %v1652 = vpop.f32.mrb[0].mxu0
      %v1653 = vadd.f32 0.0, %v1652
      %1654 = vmatprep.mubr.bf16.mxu0 0
      %1655 = vmatmul.mubr.bf16.gmra.mrb[0].mxu0 %v856
      %v1656 = vpop.f32.mrb[0].mxu0
      %v1657 = vadd.f32 0.0, %v1656
      %v1658 = vpop.f32.mrb[0].mxu0
      %v1659 = vadd.f32 0.0, %v1658
      %v1660 = vpop.f32.mrb[0].mxu0
      %v1661 = vadd.f32 0.0, %v1660
      %v1662 = vpop.f32.mrb[0].mxu0
      %v1663 = vadd.f32 0.0, %v1662
      %1664 = vmatprep.mubr.bf16.mxu0 0
      %1665 = vmatmul.mubr.bf16.gmra.mrb[0].mxu0 %v859
      %v1666 = vpop.f32.mrb[0].mxu0
      %v1667 = vadd.f32 0.0, %v1666
      %v1668 = vpop.f32.mrb[0].mxu0
      %v1669 = vadd.f32 0.0, %v1668
      %v1670 = vpop.f32.mrb[0].mxu0
      %v1671 = vadd.f32 0.0, %v1670
      %v1672 = vpop.f32.mrb[0].mxu0
      %v1673 = vadd.f32 0.0, %v1672
      %1674 = vmatprep.mubr.bf16.mxu0 0
      %1675 = vmatmul.mubr.bf16.gmra.mrb[0].mxu0 %v862
      %v1676 = vpop.f32.mrb[0].mxu0
      %v1677 = vadd.f32 0.0, %v1676
      %v1678 = vpop.f32.mrb[0].mxu0
      %v1679 = vadd.f32 0.0, %v1678
      %v1680 = vpop.f32.mrb[0].mxu0
      %v1681 = vadd.f32 0.0, %v1680
      %v1682 = vpop.f32.mrb[0].mxu0
      %v1683 = vadd.f32 0.0, %v1682
      %1684 = vdwg.mxu0
      %1685 = vmatprep.subr.bf16.mxu0 %v788
      %1686 = vmatpush1.bf16.msra.mxu0 %v787
      %1687 = vmatprep.subr.bf16.mxu0 %v790
      %1688 = vmatpush1.bf16.msra.mxu0 %v789
      %1689 = vmatprep.subr.bf16.mxu0 %v792
      %1690 = vmatpush1.bf16.msra.mxu0 %v791
      %1691 = vmatprep.subr.bf16.mxu0 %v929
      %1692 = vmatpush1.bf16.msra.mxu0 %v926
      %1693 = vmatprep.subr.bf16.mxu0 0
      %1694 = vmatpush1.bf16.msra.mxu0 0
      %1695 = vmatprep.subr.bf16.mxu0 0
      %1696 = vmatpush1.bf16.msra.mxu0 0
      %1697 = vmatprep.subr.bf16.mxu0 0
      %1698 = vmatpush1.bf16.msra.mxu0 0
      %1699 = vmatprep.subr.bf16.mxu0 0
      %1700 = vmatpush1.bf16.msra.mxu0 0
      %1701 = vmatprep.subr.bf16.mxu0 0
      %1702 = vmatpush1.bf16.msra.mxu0 0
      %1703 = vmatprep.subr.bf16.mxu0 0
      %1704 = vmatpush1.bf16.msra.mxu0 0
      %1705 = vmatprep.subr.bf16.mxu0 0
      %1706 = vmatpush1.bf16.msra.mxu0 0
      %1707 = vmatprep.subr.bf16.mxu0 0
      %1708 = vmatpush1.bf16.msra.mxu0 0
      %1709 = vmatprep.subr.bf16.mxu0 0
      %1710 = vmatpush1.bf16.msra.mxu0 0
      %1711 = vmatprep.subr.bf16.mxu0 0
      %1712 = vmatpush1.bf16.msra.mxu0 0
      %1713 = vmatprep.subr.bf16.mxu0 0
      %1714 = vmatpush1.bf16.msra.mxu0 0
      %1715 = vmatprep.subr.bf16.mxu0 0
      %1716 = vmatpush1.bf16.msra.mxu0 0
      %1717 = vmatprep.mubr.bf16.mxu0 0
      %1718 = vmatmul.mubr.bf16.gmra.mrb[0].mxu0 %v853
      %v1719 = vpop.f32.mrb[0].mxu0
      %v1720 = vadd.f32 0.0, %v1719
      %v1721 = vpop.f32.mrb[0].mxu0
      %v1722 = vadd.f32 0.0, %v1721
      %v1723 = vpop.f32.mrb[0].mxu0
      %v1724 = vadd.f32 0.0, %v1723
      %v1725 = vpop.f32.mrb[0].mxu0
      %v1726 = vadd.f32 0.0, %v1725
      %1727 = vmatprep.mubr.bf16.mxu0 0
      %1728 = vmatmul.mubr.bf16.gmra.mrb[0].mxu0 %v856
      %v1729 = vpop.f32.mrb[0].mxu0
      %v1730 = vadd.f32 0.0, %v1729
      %v1731 = vpop.f32.mrb[0].mxu0
      %v1732 = vadd.f32 0.0, %v1731
      %v1733 = vpop.f32.mrb[0].mxu0
      %v1734 = vadd.f32 0.0, %v1733
      %v1735 = vpop.f32.mrb[0].mxu0
      %v1736 = vadd.f32 0.0, %v1735
      %1737 = vmatprep.mubr.bf16.mxu0 0
      %1738 = vmatmul.mubr.bf16.gmra.mrb[0].mxu0 %v859
      %v1739 = vpop.f32.mrb[0].mxu0
      %v1740 = vadd.f32 0.0, %v1739
      %v1741 = vpop.f32.mrb[0].mxu0
      %v1742 = vadd.f32 0.0, %v1741
      %v1743 = vpop.f32.mrb[0].mxu0
      %v1744 = vadd.f32 0.0, %v1743
      %v1745 = vpop.f32.mrb[0].mxu0
      %v1746 = vadd.f32 0.0, %v1745
      %1747 = vmatprep.mubr.bf16.mxu0 0
      %1748 = vmatmul.mubr.bf16.gmra.mrb[0].mxu0 %v862
      %v1749 = vpop.f32.mrb[0].mxu0
      %v1750 = vadd.f32 0.0, %v1749
      %v1751 = vpop.f32.mrb[0].mxu0
      %v1752 = vadd.f32 0.0, %v1751
      %v1753 = vpop.f32.mrb[0].mxu0
      %v1754 = vadd.f32 0.0, %v1753
      %v1755 = vpop.f32.mrb[0].mxu0
      %v1756 = vadd.f32 0.0, %v1755
      %1757 = vdwg.mxu0
      %1758 = vmatprep.subr.bf16.mxu0 %v790
      %1759 = vmatpush1.bf16.msra.mxu0 %v789
      %1760 = vmatprep.subr.bf16.mxu0 %v792
      %1761 = vmatpush1.bf16.msra.mxu0 %v791
      %1762 = vmatprep.subr.bf16.mxu0 %v794
      %1763 = vmatpush1.bf16.msra.mxu0 %v793
      %1764 = vmatprep.subr.bf16.mxu0 %v935
      %1765 = vmatpush1.bf16.msra.mxu0 %v932
      %1766 = vmatprep.subr.bf16.mxu0 0
      %1767 = vmatpush1.bf16.msra.mxu0 0
      %1768 = vmatprep.subr.bf16.mxu0 0
      %1769 = vmatpush1.bf16.msra.mxu0 0
      %1770 = vmatprep.subr.bf16.mxu0 0
      %1771 = vmatpush1.bf16.msra.mxu0 0
      %1772 = vmatprep.subr.bf16.mxu0 0
      %1773 = vmatpush1.bf16.msra.mxu0 0
      %1774 = vmatprep.subr.bf16.mxu0 0
      %1775 = vmatpush1.bf16.msra.mxu0 0
      %1776 = vmatprep.subr.bf16.mxu0 0
      %1777 = vmatpush1.bf16.msra.mxu0 0
      %1778 = vmatprep.subr.bf16.mxu0 0
      %1779 = vmatpush1.bf16.msra.mxu0 0
      %1780 = vmatprep.subr.bf16.mxu0 0
      %1781 = vmatpush1.bf16.msra.mxu0 0
      %1782 = vmatprep.subr.bf16.mxu0 0
      %1783 = vmatpush1.bf16.msra.mxu0 0
      %1784 = vmatprep.subr.bf16.mxu0 0
      %1785 = vmatpush1.bf16.msra.mxu0 0
      %1786 = vmatprep.subr.bf16.mxu0 0
      %1787 = vmatpush1.bf16.msra.mxu0 0
      %1788 = vmatprep.subr.bf16.mxu0 0
      %1789 = vmatpush1.bf16.msra.mxu0 0
      %1790 = vmatprep.mubr.bf16.mxu0 0
      %1791 = vmatmul.mubr.bf16.gmra.mrb[0].mxu0 %v853
      %v1792 = vpop.f32.mrb[0].mxu0
      %v1793 = vadd.f32 0.0, %v1792
      %v1794 = vpop.f32.mrb[0].mxu0
      %v1795 = vadd.f32 0.0, %v1794
      %v1796 = vpop.f32.mrb[0].mxu0
      %v1797 = vadd.f32 0.0, %v1796
      %v1798 = vpop.f32.mrb[0].mxu0
      %v1799 = vadd.f32 0.0, %v1798
      %1800 = vmatprep.mubr.bf16.mxu0 0
      %1801 = vmatmul.mubr.bf16.gmra.mrb[0].mxu0 %v856
      %v1802 = vpop.f32.mrb[0].mxu0
      %v1803 = vadd.f32 0.0, %v1802
      %v1804 = vpop.f32.mrb[0].mxu0
      %v1805 = vadd.f32 0.0, %v1804
      %v1806 = vpop.f32.mrb[0].mxu0
      %v1807 = vadd.f32 0.0, %v1806
      %v1808 = vpop.f32.mrb[0].mxu0
      %v1809 = vadd.f32 0.0, %v1808
      %1810 = vmatprep.mubr.bf16.mxu0 0
      %1811 = vmatmul.mubr.bf16.gmra.mrb[0].mxu0 %v859
      %v1812 = vpop.f32.mrb[0].mxu0
      %v1813 = vadd.f32 0.0, %v1812
      %v1814 = vpop.f32.mrb[0].mxu0
      %v1815 = vadd.f32 0.0, %v1814
      %v1816 = vpop.f32.mrb[0].mxu0
      %v1817 = vadd.f32 0.0, %v1816
      %v1818 = vpop.f32.mrb[0].mxu0
      %v1819 = vadd.f32 0.0, %v1818
      %1820 = vmatprep.mubr.bf16.mxu0 0
      %1821 = vmatmul.mubr.bf16.gmra.mrb[0].mxu0 %v862
      %v1822 = vpop.f32.mrb[0].mxu0
      %v1823 = vadd.f32 0.0, %v1822
      %v1824 = vpop.f32.mrb[0].mxu0
      %v1825 = vadd.f32 0.0, %v1824
      %v1826 = vpop.f32.mrb[0].mxu0
      %v1827 = vadd.f32 0.0, %v1826
      %v1828 = vpop.f32.mrb[0].mxu0
      %v1829 = vadd.f32 0.0, %v1828
      %1830 = vdwg.mxu0
      %1831 = vmatprep.subr.bf16.mxu0 %v792
      %1832 = vmatpush1.bf16.msra.mxu0 %v791
      %1833 = vmatprep.subr.bf16.mxu0 %v794
      %1834 = vmatpush1.bf16.msra.mxu0 %v793
      %1835 = vmatprep.subr.bf16.mxu0 %v796
      %1836 = vmatpush1.bf16.msra.mxu0 %v795
      %1837 = vmatprep.subr.bf16.mxu0 %v941
      %1838 = vmatpush1.bf16.msra.mxu0 %v938
      %1839 = vmatprep.subr.bf16.mxu0 0
      %1840 = vmatpush1.bf16.msra.mxu0 0
      %1841 = vmatprep.subr.bf16.mxu0 0
      %1842 = vmatpush1.bf16.msra.mxu0 0
      %1843 = vmatprep.subr.bf16.mxu0 0
      %1844 = vmatpush1.bf16.msra.mxu0 0
      %1845 = vmatprep.subr.bf16.mxu0 0
      %1846 = vmatpush1.bf16.msra.mxu0 0
      %1847 = vmatprep.subr.bf16.mxu0 0
      %1848 = vmatpush1.bf16.msra.mxu0 0
      %1849 = vmatprep.subr.bf16.mxu0 0
      %1850 = vmatpush1.bf16.msra.mxu0 0
      %1851 = vmatprep.subr.bf16.mxu0 0
      %1852 = vmatpush1.bf16.msra.mxu0 0
      %1853 = vmatprep.subr.bf16.mxu0 0
      %1854 = vmatpush1.bf16.msra.mxu0 0
      %1855 = vmatprep.subr.bf16.mxu0 0
      %1856 = vmatpush1.bf16.msra.mxu0 0
      %1857 = vmatprep.subr.bf16.mxu0 0
      %1858 = vmatpush1.bf16.msra.mxu0 0
      %1859 = vmatprep.subr.bf16.mxu0 0
      %1860 = vmatpush1.bf16.msra.mxu0 0
      %1861 = vmatprep.subr.bf16.mxu0 0
      %1862 = vmatpush1.bf16.msra.mxu0 0
      %1863 = vmatprep.mubr.bf16.mxu0 0
      %1864 = vmatmul.mubr.bf16.gmra.mrb[0].mxu0 %v853
      %v1865 = vpop.f32.mrb[0].mxu0
      %v1866 = vadd.f32 0.0, %v1865
      %v1867 = vpop.f32.mrb[0].mxu0
      %v1868 = vadd.f32 0.0, %v1867
      %v1869 = vpop.f32.mrb[0].mxu0
      %v1870 = vadd.f32 0.0, %v1869
      %v1871 = vpop.f32.mrb[0].mxu0
      %v1872 = vadd.f32 0.0, %v1871
      %1873 = vmatprep.mubr.bf16.mxu0 0
      %1874 = vmatmul.mubr.bf16.gmra.mrb[0].mxu0 %v856
      %v1875 = vpop.f32.mrb[0].mxu0
      %v1876 = vadd.f32 0.0, %v1875
      %v1877 = vpop.f32.mrb[0].mxu0
      %v1878 = vadd.f32 0.0, %v1877
      %v1879 = vpop.f32.mrb[0].mxu0
      %v1880 = vadd.f32 0.0, %v1879
      %v1881 = vpop.f32.mrb[0].mxu0
      %v1882 = vadd.f32 0.0, %v1881
      %1883 = vmatprep.mubr.bf16.mxu0 0
      %1884 = vmatmul.mubr.bf16.gmra.mrb[0].mxu0 %v859
      %v1885 = vpop.f32.mrb[0].mxu0
      %v1886 = vadd.f32 0.0, %v1885
      %v1887 = vpop.f32.mrb[0].mxu0
      %v1888 = vadd.f32 0.0, %v1887
      %v1889 = vpop.f32.mrb[0].mxu0
      %v1890 = vadd.f32 0.0, %v1889
      %v1891 = vpop.f32.mrb[0].mxu0
      %v1892 = vadd.f32 0.0, %v1891
      %1893 = vmatprep.mubr.bf16.mxu0 0
      %1894 = vmatmul.mubr.bf16.gmra.mrb[0].mxu0 %v862
      %v1895 = vpop.f32.mrb[0].mxu0
      %v1896 = vadd.f32 0.0, %v1895
      %v1897 = vpop.f32.mrb[0].mxu0
      %v1898 = vadd.f32 0.0, %v1897
      %v1899 = vpop.f32.mrb[0].mxu0
      %v1900 = vadd.f32 0.0, %v1899
      %v1901 = vpop.f32.mrb[0].mxu0
      %v1902 = vadd.f32 0.0, %v1901
      %1903 = vdwg.mxu0
      %1904 = vmatprep.subr.bf16.mxu0 %v794
      %1905 = vmatpush1.bf16.msra.mxu0 %v793
      %1906 = vmatprep.subr.bf16.mxu0 %v796
      %1907 = vmatpush1.bf16.msra.mxu0 %v795
      %1908 = vmatprep.subr.bf16.mxu0 %v798
      %1909 = vmatpush1.bf16.msra.mxu0 %v797
      %1910 = vmatprep.subr.bf16.mxu0 %v947
      %1911 = vmatpush1.bf16.msra.mxu0 %v944
      %1912 = vmatprep.subr.bf16.mxu0 0
      %1913 = vmatpush1.bf16.msra.mxu0 0
      %1914 = vmatprep.subr.bf16.mxu0 0
      %1915 = vmatpush1.bf16.msra.mxu0 0
      %1916 = vmatprep.subr.bf16.mxu0 0
      %1917 = vmatpush1.bf16.msra.mxu0 0
      %1918 = vmatprep.subr.bf16.mxu0 0
      %1919 = vmatpush1.bf16.msra.mxu0 0
      %1920 = vmatprep.subr.bf16.mxu0 0
      %1921 = vmatpush1.bf16.msra.mxu0 0
      %1922 = vmatprep.subr.bf16.mxu0 0
      %1923 = vmatpush1.bf16.msra.mxu0 0
      %1924 = vmatprep.subr.bf16.mxu0 0
      %1925 = vmatpush1.bf16.msra.mxu0 0
      %1926 = vmatprep.subr.bf16.mxu0 0
      %1927 = vmatpush1.bf16.msra.mxu0 0
      %1928 = vmatprep.subr.bf16.mxu0 0
      %1929 = vmatpush1.bf16.msra.mxu0 0
      %1930 = vmatprep.subr.bf16.mxu0 0
      %1931 = vmatpush1.bf16.msra.mxu0 0
      %1932 = vmatprep.subr.bf16.mxu0 0
      %1933 = vmatpush1.bf16.msra.mxu0 0
      %1934 = vmatprep.subr.bf16.mxu0 0
      %1935 = vmatpush1.bf16.msra.mxu0 0
      %1936 = vmatprep.mubr.bf16.mxu0 0
      %1937 = vmatmul.mubr.bf16.gmra.mrb[0].mxu0 %v853
      %v1938 = vpop.f32.mrb[0].mxu0
      %v1939 = vadd.f32 0.0, %v1938
      %v1940 = vpop.f32.mrb[0].mxu0
      %v1941 = vadd.f32 0.0, %v1940
      %v1942 = vpop.f32.mrb[0].mxu0
      %v1943 = vadd.f32 0.0, %v1942
      %v1944 = vpop.f32.mrb[0].mxu0
      %v1945 = vadd.f32 0.0, %v1944
      %1946 = vmatprep.mubr.bf16.mxu0 0
      %1947 = vmatmul.mubr.bf16.gmra.mrb[0].mxu0 %v856
      %v1948 = vpop.f32.mrb[0].mxu0
      %v1949 = vadd.f32 0.0, %v1948
      %v1950 = vpop.f32.mrb[0].mxu0
      %v1951 = vadd.f32 0.0, %v1950
      %v1952 = vpop.f32.mrb[0].mxu0
      %v1953 = vadd.f32 0.0, %v1952
      %v1954 = vpop.f32.mrb[0].mxu0
      %v1955 = vadd.f32 0.0, %v1954
      %1956 = vmatprep.mubr.bf16.mxu0 0
      %1957 = vmatmul.mubr.bf16.gmra.mrb[0].mxu0 %v859
      %v1958 = vpop.f32.mrb[0].mxu0
      %v1959 = vadd.f32 0.0, %v1958
      %v1960 = vpop.f32.mrb[0].mxu0
      %v1961 = vadd.f32 0.0, %v1960
      %v1962 = vpop.f32.mrb[0].mxu0
      %v1963 = vadd.f32 0.0, %v1962
      %v1964 = vpop.f32.mrb[0].mxu0
      %v1965 = vadd.f32 0.0, %v1964
      %1966 = vmatprep.mubr.bf16.mxu0 0
      %1967 = vmatmul.mubr.bf16.gmra.mrb[0].mxu0 %v862
      %v1968 = vpop.f32.mrb[0].mxu0
      %v1969 = vadd.f32 0.0, %v1968
      %v1970 = vpop.f32.mrb[0].mxu0
      %v1971 = vadd.f32 0.0, %v1970
      %v1972 = vpop.f32.mrb[0].mxu0
      %v1973 = vadd.f32 0.0, %v1972
      %v1974 = vpop.f32.mrb[0].mxu0
      %v1975 = vadd.f32 0.0, %v1974
      %1976 = vdwg.mxu0
      %1977 = vmatprep.subr.bf16.mxu0 %v796
      %1978 = vmatpush1.bf16.msra.mxu0 %v795
      %1979 = vmatprep.subr.bf16.mxu0 %v798
      %1980 = vmatpush1.bf16.msra.mxu0 %v797
      %1981 = vmatprep.subr.bf16.mxu0 %v800
      %1982 = vmatpush1.bf16.msra.mxu0 %v799
      %1983 = vmatprep.subr.bf16.mxu0 %v953
      %1984 = vmatpush1.bf16.msra.mxu0 %v950
      %1985 = vmatprep.subr.bf16.mxu0 0
      %1986 = vmatpush1.bf16.msra.mxu0 0
      %1987 = vmatprep.subr.bf16.mxu0 0
      %1988 = vmatpush1.bf16.msra.mxu0 0
      %1989 = vmatprep.subr.bf16.mxu0 0
      %1990 = vmatpush1.bf16.msra.mxu0 0
      %1991 = vmatprep.subr.bf16.mxu0 0
      %1992 = vmatpush1.bf16.msra.mxu0 0
      %1993 = vmatprep.subr.bf16.mxu0 0
      %1994 = vmatpush1.bf16.msra.mxu0 0
      %1995 = vmatprep.subr.bf16.mxu0 0
      %1996 = vmatpush1.bf16.msra.mxu0 0
      %1997 = vmatprep.subr.bf16.mxu0 0
      %1998 = vmatpush1.bf16.msra.mxu0 0
      %1999 = vmatprep.subr.bf16.mxu0 0
      %2000 = vmatpush1.bf16.msra.mxu0 0
      %2001 = vmatprep.subr.bf16.mxu0 0
      %2002 = vmatpush1.bf16.msra.mxu0 0
      %2003 = vmatprep.subr.bf16.mxu0 0
      %2004 = vmatpush1.bf16.msra.mxu0 0
      %2005 = vmatprep.subr.bf16.mxu0 0
      %2006 = vmatpush1.bf16.msra.mxu0 0
      %2007 = vmatprep.subr.bf16.mxu0 0
      %2008 = vmatpush1.bf16.msra.mxu0 0
      %2009 = vmatprep.mubr.bf16.mxu0 0
      %2010 = vmatmul.mubr.bf16.gmra.mrb[0].mxu0 %v853
      %v2011 = vpop.f32.mrb[0].mxu0
      %v2012 = vadd.f32 0.0, %v2011
      %v2013 = vpop.f32.mrb[0].mxu0
      %v2014 = vadd.f32 0.0, %v2013
      %v2015 = vpop.f32.mrb[0].mxu0
      %v2016 = vadd.f32 0.0, %v2015
      %v2017 = vpop.f32.mrb[0].mxu0
      %v2018 = vadd.f32 0.0, %v2017
      %2019 = vmatprep.mubr.bf16.mxu0 0
      %2020 = vmatmul.mubr.bf16.gmra.mrb[0].mxu0 %v856
      %v2021 = vpop.f32.mrb[0].mxu0
      %v2022 = vadd.f32 0.0, %v2021
      %v2023 = vpop.f32.mrb[0].mxu0
      %v2024 = vadd.f32 0.0, %v2023
      %v2025 = vpop.f32.mrb[0].mxu0
      %v2026 = vadd.f32 0.0, %v2025
      %v2027 = vpop.f32.mrb[0].mxu0
      %v2028 = vadd.f32 0.0, %v2027
      %2029 = vmatprep.mubr.bf16.mxu0 0
      %2030 = vmatmul.mubr.bf16.gmra.mrb[0].mxu0 %v859
      %v2031 = vpop.f32.mrb[0].mxu0
      %v2032 = vadd.f32 0.0, %v2031
      %v2033 = vpop.f32.mrb[0].mxu0
      %v2034 = vadd.f32 0.0, %v2033
      %v2035 = vpop.f32.mrb[0].mxu0
      %v2036 = vadd.f32 0.0, %v2035
      %v2037 = vpop.f32.mrb[0].mxu0
      %v2038 = vadd.f32 0.0, %v2037
      %2039 = vmatprep.mubr.bf16.mxu0 0
      %2040 = vmatmul.mubr.bf16.gmra.mrb[0].mxu0 %v862
      %v2041 = vpop.f32.mrb[0].mxu0
      %v2042 = vadd.f32 0.0, %v2041
      %v2043 = vpop.f32.mrb[0].mxu0
      %v2044 = vadd.f32 0.0, %v2043
      %v2045 = vpop.f32.mrb[0].mxu0
      %v2046 = vadd.f32 0.0, %v2045
      %v2047 = vpop.f32.mrb[0].mxu0
      %v2048 = vadd.f32 0.0, %v2047
      %2049 = vdwg.mxu0
      %2050 = vmatprep.subr.bf16.mxu0 %v798
      %2051 = vmatpush1.bf16.msra.mxu0 %v797
      %2052 = vmatprep.subr.bf16.mxu0 %v800
      %2053 = vmatpush1.bf16.msra.mxu0 %v799
      %2054 = vmatprep.subr.bf16.mxu0 %v768
      %2055 = vmatpush1.bf16.msra.mxu0 %v801
      %2056 = vmatprep.subr.bf16.mxu0 %v953
      %2057 = vmatpush1.bf16.msra.mxu0 %v953
      %2058 = vmatprep.subr.bf16.mxu0 0
      %2059 = vmatpush1.bf16.msra.mxu0 0
      %2060 = vmatprep.subr.bf16.mxu0 0
      %2061 = vmatpush1.bf16.msra.mxu0 0
      %2062 = vmatprep.subr.bf16.mxu0 0
      %2063 = vmatpush1.bf16.msra.mxu0 0
      %2064 = vmatprep.subr.bf16.mxu0 0
      %2065 = vmatpush1.bf16.msra.mxu0 0
      %2066 = vmatprep.subr.bf16.mxu0 0
      %2067 = vmatpush1.bf16.msra.mxu0 0
      %2068 = vmatprep.subr.bf16.mxu0 0
      %2069 = vmatpush1.bf16.msra.mxu0 0
      %2070 = vmatprep.subr.bf16.mxu0 0
      %2071 = vmatpush1.bf16.msra.mxu0 0
      %2072 = vmatprep.subr.bf16.mxu0 0
      %2073 = vmatpush1.bf16.msra.mxu0 0
      %2074 = vmatprep.subr.bf16.mxu0 0
      %2075 = vmatpush1.bf16.msra.mxu0 0
      %2076 = vmatprep.subr.bf16.mxu0 0
      %2077 = vmatpush1.bf16.msra.mxu0 0
      %2078 = vmatprep.subr.bf16.mxu0 0
      %2079 = vmatpush1.bf16.msra.mxu0 0
      %2080 = vmatprep.subr.bf16.mxu0 0
      %2081 = vmatpush1.bf16.msra.mxu0 0
      %2082 = vmatprep.mubr.bf16.mxu0 0
      %2083 = vmatmul.mubr.bf16.gmra.mrb[0].mxu0 %v853
      %v2084 = vpop.f32.mrb[0].mxu0
      %v2085 = vadd.f32 0.0, %v2084
      %v2086 = vpop.f32.mrb[0].mxu0
      %v2087 = vadd.f32 0.0, %v2086
      %v2088 = vpop.f32.mrb[0].mxu0
      %v2089 = vadd.f32 0.0, %v2088
      %v2090 = vpop.f32.mrb[0].mxu0
      %v2091 = vadd.f32 0.0, %v2090
      %2092 = vmatprep.mubr.bf16.mxu0 0
      %2093 = vmatmul.mubr.bf16.gmra.mrb[0].mxu0 %v856
      %v2094 = vpop.f32.mrb[0].mxu0
      %v2095 = vadd.f32 0.0, %v2094
      %v2096 = vpop.f32.mrb[0].mxu0
      %v2097 = vadd.f32 0.0, %v2096
      %v2098 = vpop.f32.mrb[0].mxu0
      %v2099 = vadd.f32 0.0, %v2098
      %v2100 = vpop.f32.mrb[0].mxu0
      %v2101 = vadd.f32 0.0, %v2100
      %2102 = vmatprep.mubr.bf16.mxu0 0
      %2103 = vmatmul.mubr.bf16.gmra.mrb[0].mxu0 %v859
      %v2104 = vpop.f32.mrb[0].mxu0
      %v2105 = vadd.f32 0.0, %v2104
      %v2106 = vpop.f32.mrb[0].mxu0
      %v2107 = vadd.f32 0.0, %v2106
      %v2108 = vpop.f32.mrb[0].mxu0
      %v2109 = vadd.f32 0.0, %v2108
      %v2110 = vpop.f32.mrb[0].mxu0
      %v2111 = vadd.f32 0.0, %v2110
      %2112 = vmatprep.mubr.bf16.mxu0 0
      %2113 = vmatmul.mubr.bf16.gmra.mrb[0].mxu0 %v862
      %v2114 = vpop.f32.mrb[0].mxu0
      %v2115 = vadd.f32 0.0, %v2114
      %v2116 = vpop.f32.mrb[0].mxu0
      %v2117 = vadd.f32 0.0, %v2116
      %v2118 = vpop.f32.mrb[0].mxu0
      %v2119 = vadd.f32 0.0, %v2118
      %v2120 = vpop.f32.mrb[0].mxu0
      %v2121 = vadd.f32 0.0, %v2120
      %2122 = vdwg.mxu0
      %2124 = vset.pattern.permute.xlu0 0
      %2125 = vperm.xlu0 %2124, %v752
      %v2126 = vpop.permute.xlu0 %2125
      %2129 = vset.pattern.permute.xlu0 0
      %2130 = vperm.xlu0 %2129, %v753
      %v2131 = vpop.permute.xlu0 %2130
      %2134 = vset.pattern.permute.xlu0 0
      %2135 = vperm.xlu0 %2134, %v754
      %v2136 = vpop.permute.xlu0 %2135
      %2139 = vset.pattern.permute.xlu0 0
      %2140 = vperm.xlu0 %2139, %v755
      %v2141 = vpop.permute.xlu0 %2140
      %2144 = vset.pattern.permute.xlu0 0
      %2145 = vperm.xlu0 %2144, %v756
      %v2146 = vpop.permute.xlu0 %2145
      %2149 = vset.pattern.permute.xlu0 0
      %2150 = vperm.xlu0 %2149, %v757
      %v2151 = vpop.permute.xlu0 %2150
      %2154 = vset.pattern.permute.xlu0 0
      %2155 = vperm.xlu0 %2154, %v758
      %v2156 = vpop.permute.xlu0 %2155
      %2159 = vset.pattern.permute.xlu0 0
      %2160 = vperm.xlu0 %2159, %v759
      %v2161 = vpop.permute.xlu0 %2160
      %v2163 = vmul.f32 %v990, %v2126
      %v2164 = vmul.f32 %v992, %v2126
      %v2165 = vmul.f32 %v1063, %v2126
      %v2166 = vmul.f32 %v1065, %v2126
      %v2167 = vmul.f32 %v1136, %v2126
      %v2168 = vmul.f32 %v1138, %v2126
      %v2169 = vmul.f32 %v1209, %v2126
      %v2170 = vmul.f32 %v1211, %v2126
      %v2171 = vmul.f32 %v1282, %v2126
      %v2172 = vmul.f32 %v1284, %v2126
      %v2173 = vmul.f32 %v1355, %v2126
      %v2174 = vmul.f32 %v1357, %v2126
      %v2175 = vmul.f32 %v1428, %v2126
      %v2176 = vmul.f32 %v1430, %v2126
      %v2177 = vmul.f32 %v1501, %v2126
      %v2178 = vmul.f32 %v1503, %v2126
      %v2179 = vmul.f32 %v1574, %v2126
      %v2180 = vmul.f32 %v1576, %v2126
      %v2181 = vmul.f32 %v1647, %v2126
      %v2182 = vmul.f32 %v1649, %v2126
      %v2183 = vmul.f32 %v1720, %v2126
      %v2184 = vmul.f32 %v1722, %v2126
      %v2185 = vmul.f32 %v1793, %v2126
      %v2186 = vmul.f32 %v1795, %v2126
      %v2187 = vmul.f32 %v1866, %v2126
      %v2188 = vmul.f32 %v1868, %v2126
      %v2189 = vmul.f32 %v1939, %v2126
      %v2190 = vmul.f32 %v1941, %v2126
      %v2191 = vmul.f32 %v2012, %v2126
      %v2192 = vmul.f32 %v2014, %v2126
      %v2193 = vmul.f32 %v2085, %v2126
      %v2194 = vmul.f32 %v2087, %v2126
      %v2195 = vmul.f32 %v994, %v2131
      %v2196 = vmul.f32 %v996, %v2131
      %v2197 = vmul.f32 %v1067, %v2131
      %v2198 = vmul.f32 %v1069, %v2131
      %v2199 = vmul.f32 %v1140, %v2131
      %v2200 = vmul.f32 %v1142, %v2131
      %v2201 = vmul.f32 %v1213, %v2131
      %v2202 = vmul.f32 %v1215, %v2131
      %v2203 = vmul.f32 %v1286, %v2131
      %v2204 = vmul.f32 %v1288, %v2131
      %v2205 = vmul.f32 %v1359, %v2131
      %v2206 = vmul.f32 %v1361, %v2131
      %v2207 = vmul.f32 %v1432, %v2131
      %v2208 = vmul.f32 %v1434, %v2131
      %v2209 = vmul.f32 %v1505, %v2131
      %v2210 = vmul.f32 %v1507, %v2131
      %v2211 = vmul.f32 %v1578, %v2131
      %v2212 = vmul.f32 %v1580, %v2131
      %v2213 = vmul.f32 %v1651, %v2131
      %v2214 = vmul.f32 %v1653, %v2131
      %v2215 = vmul.f32 %v1724, %v2131
      %v2216 = vmul.f32 %v1726, %v2131
      %v2217 = vmul.f32 %v1797, %v2131
      %v2218 = vmul.f32 %v1799, %v2131
      %v2219 = vmul.f32 %v1870, %v2131
      %v2220 = vmul.f32 %v1872, %v2131
      %v2221 = vmul.f32 %v1943, %v2131
      %v2222 = vmul.f32 %v1945, %v2131
      %v2223 = vmul.f32 %v2016, %v2131
      %v2224 = vmul.f32 %v2018, %v2131
      %v2225 = vmul.f32 %v2089, %v2131
      %v2226 = vmul.f32 %v2091, %v2131
      %v2227 = vmul.f32 %v1000, %v2136
      %v2228 = vmul.f32 %v1002, %v2136
      %v2229 = vmul.f32 %v1073, %v2136
      %v2230 = vmul.f32 %v1075, %v2136
      %v2231 = vmul.f32 %v1146, %v2136
      %v2232 = vmul.f32 %v1148, %v2136
      %v2233 = vmul.f32 %v1219, %v2136
      %v2234 = vmul.f32 %v1221, %v2136
      %v2235 = vmul.f32 %v1292, %v2136
      %v2236 = vmul.f32 %v1294, %v2136
      %v2237 = vmul.f32 %v1365, %v2136
      %v2238 = vmul.f32 %v1367, %v2136
      %v2239 = vmul.f32 %v1438, %v2136
      %v2240 = vmul.f32 %v1440, %v2136
      %v2241 = vmul.f32 %v1511, %v2136
      %v2242 = vmul.f32 %v1513, %v2136
      %v2243 = vmul.f32 %v1584, %v2136
      %v2244 = vmul.f32 %v1586, %v2136
      %v2245 = vmul.f32 %v1657, %v2136
      %v2246 = vmul.f32 %v1659, %v2136
      %v2247 = vmul.f32 %v1730, %v2136
      %v2248 = vmul.f32 %v1732, %v2136
      %v2249 = vmul.f32 %v1803, %v2136
      %v2250 = vmul.f32 %v1805, %v2136
      %v2251 = vmul.f32 %v1876, %v2136
      %v2252 = vmul.f32 %v1878, %v2136
      %v2253 = vmul.f32 %v1949, %v2136
      %v2254 = vmul.f32 %v1951, %v2136
      %v2255 = vmul.f32 %v2022, %v2136
      %v2256 = vmul.f32 %v2024, %v2136
      %v2257 = vmul.f32 %v2095, %v2136
      %v2258 = vmul.f32 %v2097, %v2136
      %v2259 = vmul.f32 %v1004, %v2141
      %v2260 = vmul.f32 %v1006, %v2141
      %v2261 = vmul.f32 %v1077, %v2141
      %v2262 = vmul.f32 %v1079, %v2141
      %v2263 = vmul.f32 %v1150, %v2141
      %v2264 = vmul.f32 %v1152, %v2141
      %v2265 = vmul.f32 %v1223, %v2141
      %v2266 = vmul.f32 %v1225, %v2141
      %v2267 = vmul.f32 %v1296, %v2141
      %v2268 = vmul.f32 %v1298, %v2141
      %v2269 = vmul.f32 %v1369, %v2141
      %v2270 = vmul.f32 %v1371, %v2141
      %v2271 = vmul.f32 %v1442, %v2141
      %v2272 = vmul.f32 %v1444, %v2141
      %v2273 = vmul.f32 %v1515, %v2141
      %v2274 = vmul.f32 %v1517, %v2141
      %v2275 = vmul.f32 %v1588, %v2141
      %v2276 = vmul.f32 %v1590, %v2141
      %v2277 = vmul.f32 %v1661, %v2141
      %v2278 = vmul.f32 %v1663, %v2141
      %v2279 = vmul.f32 %v1734, %v2141
      %v2280 = vmul.f32 %v1736, %v2141
      %v2281 = vmul.f32 %v1807, %v2141
      %v2282 = vmul.f32 %v1809, %v2141
      %v2283 = vmul.f32 %v1880, %v2141
      %v2284 = vmul.f32 %v1882, %v2141
      %v2285 = vmul.f32 %v1953, %v2141
      %v2286 = vmul.f32 %v1955, %v2141
      %v2287 = vmul.f32 %v2026, %v2141
      %v2288 = vmul.f32 %v2028, %v2141
      %v2289 = vmul.f32 %v2099, %v2141
      %v2290 = vmul.f32 %v2101, %v2141
      %v2291 = vmul.f32 %v1010, %v2146
      %v2292 = vmul.f32 %v1012, %v2146
      %v2293 = vmul.f32 %v1083, %v2146
      %v2294 = vmul.f32 %v1085, %v2146
      %v2295 = vmul.f32 %v1156, %v2146
      %v2296 = vmul.f32 %v1158, %v2146
      %v2297 = vmul.f32 %v1229, %v2146
      %v2298 = vmul.f32 %v1231, %v2146
      %v2299 = vmul.f32 %v1302, %v2146
      %v2300 = vmul.f32 %v1304, %v2146
      %v2301 = vmul.f32 %v1375, %v2146
      %v2302 = vmul.f32 %v1377, %v2146
      %v2303 = vmul.f32 %v1448, %v2146
      %v2304 = vmul.f32 %v1450, %v2146
      %v2305 = vmul.f32 %v1521, %v2146
      %v2306 = vmul.f32 %v1523, %v2146
      %v2307 = vmul.f32 %v1594, %v2146
      %v2308 = vmul.f32 %v1596, %v2146
      %v2309 = vmul.f32 %v1667, %v2146
      %v2310 = vmul.f32 %v1669, %v2146
      %v2311 = vmul.f32 %v1740, %v2146
      %v2312 = vmul.f32 %v1742, %v2146
      %v2313 = vmul.f32 %v1813, %v2146
      %v2314 = vmul.f32 %v1815, %v2146
      %v2315 = vmul.f32 %v1886, %v2146
      %v2316 = vmul.f32 %v1888, %v2146
      %v2317 = vmul.f32 %v1959, %v2146
      %v2318 = vmul.f32 %v1961, %v2146
      %v2319 = vmul.f32 %v2032, %v2146
      %v2320 = vmul.f32 %v2034, %v2146
      %v2321 = vmul.f32 %v2105, %v2146
      %v2322 = vmul.f32 %v2107, %v2146
      %v2323 = vmul.f32 %v1014, %v2151
      %v2324 = vmul.f32 %v1016, %v2151
      %v2325 = vmul.f32 %v1087, %v2151
      %v2326 = vmul.f32 %v1089, %v2151
      %v2327 = vmul.f32 %v1160, %v2151
      %v2328 = vmul.f32 %v1162, %v2151
      %v2329 = vmul.f32 %v1233, %v2151
      %v2330 = vmul.f32 %v1235, %v2151
      %v2331 = vmul.f32 %v1306, %v2151
      %v2332 = vmul.f32 %v1308, %v2151
      %v2333 = vmul.f32 %v1379, %v2151
      %v2334 = vmul.f32 %v1381, %v2151
      %v2335 = vmul.f32 %v1452, %v2151
      %v2336 = vmul.f32 %v1454, %v2151
      %v2337 = vmul.f32 %v1525, %v2151
      %v2338 = vmul.f32 %v1527, %v2151
      %v2339 = vmul.f32 %v1598, %v2151
      %v2340 = vmul.f32 %v1600, %v2151
      %v2341 = vmul.f32 %v1671, %v2151
      %v2342 = vmul.f32 %v1673, %v2151
      %v2343 = vmul.f32 %v1744, %v2151
      %v2344 = vmul.f32 %v1746, %v2151
      %v2345 = vmul.f32 %v1817, %v2151
      %v2346 = vmul.f32 %v1819, %v2151
      %v2347 = vmul.f32 %v1890, %v2151
      %v2348 = vmul.f32 %v1892, %v2151
      %v2349 = vmul.f32 %v1963, %v2151
      %v2350 = vmul.f32 %v1965, %v2151
      %v2351 = vmul.f32 %v2036, %v2151
      %v2352 = vmul.f32 %v2038, %v2151
      %v2353 = vmul.f32 %v2109, %v2151
      %v2354 = vmul.f32 %v2111, %v2151
      %v2355 = vmul.f32 %v1020, %v2156
      %v2356 = vmul.f32 %v1022, %v2156
      %v2357 = vmul.f32 %v1093, %v2156
      %v2358 = vmul.f32 %v1095, %v2156
      %v2359 = vmul.f32 %v1166, %v2156
      %v2360 = vmul.f32 %v1168, %v2156
      %v2361 = vmul.f32 %v1239, %v2156
      %v2362 = vmul.f32 %v1241, %v2156
      %v2363 = vmul.f32 %v1312, %v2156
      %v2364 = vmul.f32 %v1314, %v2156
      %v2365 = vmul.f32 %v1385, %v2156
      %v2366 = vmul.f32 %v1387, %v2156
      %v2367 = vmul.f32 %v1458, %v2156
      %v2368 = vmul.f32 %v1460, %v2156
      %v2369 = vmul.f32 %v1531, %v2156
      %v2370 = vmul.f32 %v1533, %v2156
      %v2371 = vmul.f32 %v1604, %v2156
      %v2372 = vmul.f32 %v1606, %v2156
      %v2373 = vmul.f32 %v1677, %v2156
      %v2374 = vmul.f32 %v1679, %v2156
      %v2375 = vmul.f32 %v1750, %v2156
      %v2376 = vmul.f32 %v1752, %v2156
      %v2377 = vmul.f32 %v1823, %v2156
      %v2378 = vmul.f32 %v1825, %v2156
      %v2379 = vmul.f32 %v1896, %v2156
      %v2380 = vmul.f32 %v1898, %v2156
      %v2381 = vmul.f32 %v1969, %v2156
      %v2382 = vmul.f32 %v1971, %v2156
      %v2383 = vmul.f32 %v2042, %v2156
      %v2384 = vmul.f32 %v2044, %v2156
      %v2385 = vmul.f32 %v2115, %v2156
      %v2386 = vmul.f32 %v2117, %v2156
      %v2387 = vmul.f32 %v1024, %v2161
      %v2388 = vmul.f32 %v1026, %v2161
      %v2389 = vmul.f32 %v1097, %v2161
      %v2390 = vmul.f32 %v1099, %v2161
      %v2391 = vmul.f32 %v1170, %v2161
      %v2392 = vmul.f32 %v1172, %v2161
      %v2393 = vmul.f32 %v1243, %v2161
      %v2394 = vmul.f32 %v1245, %v2161
      %v2395 = vmul.f32 %v1316, %v2161
      %v2396 = vmul.f32 %v1318, %v2161
      %v2397 = vmul.f32 %v1389, %v2161
      %v2398 = vmul.f32 %v1391, %v2161
      %v2399 = vmul.f32 %v1462, %v2161
      %v2400 = vmul.f32 %v1464, %v2161
      %v2401 = vmul.f32 %v1535, %v2161
      %v2402 = vmul.f32 %v1537, %v2161
      %v2403 = vmul.f32 %v1608, %v2161
      %v2404 = vmul.f32 %v1610, %v2161
      %v2405 = vmul.f32 %v1681, %v2161
      %v2406 = vmul.f32 %v1683, %v2161
      %v2407 = vmul.f32 %v1754, %v2161
      %v2408 = vmul.f32 %v1756, %v2161
      %v2409 = vmul.f32 %v1827, %v2161
      %v2410 = vmul.f32 %v1829, %v2161
      %v2411 = vmul.f32 %v1900, %v2161
      %v2412 = vmul.f32 %v1902, %v2161
      %v2413 = vmul.f32 %v1973, %v2161
      %v2414 = vmul.f32 %v1975, %v2161
      %v2415 = vmul.f32 %v2046, %v2161
      %v2416 = vmul.f32 %v2048, %v2161
      %v2417 = vmul.f32 %v2119, %v2161
      %v2418 = vmul.f32 %v2121, %v2161
      %2420 = vset.pattern.permute.xlu0 0
      %2421 = vperm.xlu0 %2420, %v760
      %v2422 = vpop.permute.xlu0 %2421
      %2425 = vset.pattern.permute.xlu0 0
      %2426 = vperm.xlu0 %2425, %v761
      %v2427 = vpop.permute.xlu0 %2426
      %2430 = vset.pattern.permute.xlu0 0
      %2431 = vperm.xlu0 %2430, %v762
      %v2432 = vpop.permute.xlu0 %2431
      %2435 = vset.pattern.permute.xlu0 0
      %2436 = vperm.xlu0 %2435, %v763
      %v2437 = vpop.permute.xlu0 %2436
      %2440 = vset.pattern.permute.xlu0 0
      %2441 = vperm.xlu0 %2440, %v764
      %v2442 = vpop.permute.xlu0 %2441
      %2445 = vset.pattern.permute.xlu0 0
      %2446 = vperm.xlu0 %2445, %v765
      %v2447 = vpop.permute.xlu0 %2446
      %2450 = vset.pattern.permute.xlu0 0
      %2451 = vperm.xlu0 %2450, %v766
      %v2452 = vpop.permute.xlu0 %2451
      %2455 = vset.pattern.permute.xlu0 0
      %2456 = vperm.xlu0 %2455, %v767
      %v2457 = vpop.permute.xlu0 %2456
      %v2459 = vadd.f32 %v2163, %v2422
      %v2460 = vadd.f32 %v2164, %v2422
      %v2461 = vadd.f32 %v2165, %v2422
      %v2462 = vadd.f32 %v2166, %v2422
      %v2463 = vadd.f32 %v2167, %v2422
      %v2464 = vadd.f32 %v2168, %v2422
      %v2465 = vadd.f32 %v2169, %v2422
      %v2466 = vadd.f32 %v2170, %v2422
      %v2467 = vadd.f32 %v2171, %v2422
      %v2468 = vadd.f32 %v2172, %v2422
      %v2469 = vadd.f32 %v2173, %v2422
      %v2470 = vadd.f32 %v2174, %v2422
      %v2471 = vadd.f32 %v2175, %v2422
      %v2472 = vadd.f32 %v2176, %v2422
      %v2473 = vadd.f32 %v2177, %v2422
      %v2474 = vadd.f32 %v2178, %v2422
      %v2475 = vadd.f32 %v2179, %v2422
      %v2476 = vadd.f32 %v2180, %v2422
      %v2477 = vadd.f32 %v2181, %v2422
      %v2478 = vadd.f32 %v2182, %v2422
      %v2479 = vadd.f32 %v2183, %v2422
      %v2480 = vadd.f32 %v2184, %v2422
      %v2481 = vadd.f32 %v2185, %v2422
      %v2482 = vadd.f32 %v2186, %v2422
      %v2483 = vadd.f32 %v2187, %v2422
      %v2484 = vadd.f32 %v2188, %v2422
      %v2485 = vadd.f32 %v2189, %v2422
      %v2486 = vadd.f32 %v2190, %v2422
      %v2487 = vadd.f32 %v2191, %v2422
      %v2488 = vadd.f32 %v2192, %v2422
      %v2489 = vadd.f32 %v2193, %v2422
      %v2490 = vadd.f32 %v2194, %v2422
      %v2491 = vadd.f32 %v2195, %v2427
      %v2492 = vadd.f32 %v2196, %v2427
      %v2493 = vadd.f32 %v2197, %v2427
      %v2494 = vadd.f32 %v2198, %v2427
      %v2495 = vadd.f32 %v2199, %v2427
      %v2496 = vadd.f32 %v2200, %v2427
      %v2497 = vadd.f32 %v2201, %v2427
      %v2498 = vadd.f32 %v2202, %v2427
      %v2499 = vadd.f32 %v2203, %v2427
      %v2500 = vadd.f32 %v2204, %v2427
      %v2501 = vadd.f32 %v2205, %v2427
      %v2502 = vadd.f32 %v2206, %v2427
      %v2503 = vadd.f32 %v2207, %v2427
      %v2504 = vadd.f32 %v2208, %v2427
      %v2505 = vadd.f32 %v2209, %v2427
      %v2506 = vadd.f32 %v2210, %v2427
      %v2507 = vadd.f32 %v2211, %v2427
      %v2508 = vadd.f32 %v2212, %v2427
      %v2509 = vadd.f32 %v2213, %v2427
      %v2510 = vadd.f32 %v2214, %v2427
      %v2511 = vadd.f32 %v2215, %v2427
      %v2512 = vadd.f32 %v2216, %v2427
      %v2513 = vadd.f32 %v2217, %v2427
      %v2514 = vadd.f32 %v2218, %v2427
      %v2515 = vadd.f32 %v2219, %v2427
      %v2516 = vadd.f32 %v2220, %v2427
      %v2517 = vadd.f32 %v2221, %v2427
      %v2518 = vadd.f32 %v2222, %v2427
      %v2519 = vadd.f32 %v2223, %v2427
      %v2520 = vadd.f32 %v2224, %v2427
      %v2521 = vadd.f32 %v2225, %v2427
      %v2522 = vadd.f32 %v2226, %v2427
      %v2523 = vadd.f32 %v2227, %v2432
      %v2524 = vadd.f32 %v2228, %v2432
      %v2525 = vadd.f32 %v2229, %v2432
      %v2526 = vadd.f32 %v2230, %v2432
      %v2527 = vadd.f32 %v2231, %v2432
      %v2528 = vadd.f32 %v2232, %v2432
      %v2529 = vadd.f32 %v2233, %v2432
      %v2530 = vadd.f32 %v2234, %v2432
      %v2531 = vadd.f32 %v2235, %v2432
      %v2532 = vadd.f32 %v2236, %v2432
      %v2533 = vadd.f32 %v2237, %v2432
      %v2534 = vadd.f32 %v2238, %v2432
      %v2535 = vadd.f32 %v2239, %v2432
      %v2536 = vadd.f32 %v2240, %v2432
      %v2537 = vadd.f32 %v2241, %v2432
      %v2538 = vadd.f32 %v2242, %v2432
      %v2539 = vadd.f32 %v2243, %v2432
      %v2540 = vadd.f32 %v2244, %v2432
      %v2541 = vadd.f32 %v2245, %v2432
      %v2542 = vadd.f32 %v2246, %v2432
      %v2543 = vadd.f32 %v2247, %v2432
      %v2544 = vadd.f32 %v2248, %v2432
      %v2545 = vadd.f32 %v2249, %v2432
      %v2546 = vadd.f32 %v2250, %v2432
      %v2547 = vadd.f32 %v2251, %v2432
      %v2548 = vadd.f32 %v2252, %v2432
      %v2549 = vadd.f32 %v2253, %v2432
      %v2550 = vadd.f32 %v2254, %v2432
      %v2551 = vadd.f32 %v2255, %v2432
      %v2552 = vadd.f32 %v2256, %v2432
      %v2553 = vadd.f32 %v2257, %v2432
      %v2554 = vadd.f32 %v2258, %v2432
      %v2555 = vadd.f32 %v2259, %v2437
      %v2556 = vadd.f32 %v2260, %v2437
      %v2557 = vadd.f32 %v2261, %v2437
      %v2558 = vadd.f32 %v2262, %v2437
      %v2559 = vadd.f32 %v2263, %v2437
      %v2560 = vadd.f32 %v2264, %v2437
      %v2561 = vadd.f32 %v2265, %v2437
      %v2562 = vadd.f32 %v2266, %v2437
      %v2563 = vadd.f32 %v2267, %v2437
      %v2564 = vadd.f32 %v2268, %v2437
      %v2565 = vadd.f32 %v2269, %v2437
      %v2566 = vadd.f32 %v2270, %v2437
      %v2567 = vadd.f32 %v2271, %v2437
      %v2568 = vadd.f32 %v2272, %v2437
      %v2569 = vadd.f32 %v2273, %v2437
      %v2570 = vadd.f32 %v2274, %v2437
      %v2571 = vadd.f32 %v2275, %v2437
      %v2572 = vadd.f32 %v2276, %v2437
      %v2573 = vadd.f32 %v2277, %v2437
      %v2574 = vadd.f32 %v2278, %v2437
      %v2575 = vadd.f32 %v2279, %v2437
      %v2576 = vadd.f32 %v2280, %v2437
      %v2577 = vadd.f32 %v2281, %v2437
      %v2578 = vadd.f32 %v2282, %v2437
      %v2579 = vadd.f32 %v2283, %v2437
      %v2580 = vadd.f32 %v2284, %v2437
      %v2581 = vadd.f32 %v2285, %v2437
      %v2582 = vadd.f32 %v2286, %v2437
      %v2583 = vadd.f32 %v2287, %v2437
      %v2584 = vadd.f32 %v2288, %v2437
      %v2585 = vadd.f32 %v2289, %v2437
      %v2586 = vadd.f32 %v2290, %v2437
      %v2587 = vadd.f32 %v2291, %v2442
      %v2588 = vadd.f32 %v2292, %v2442
      %v2589 = vadd.f32 %v2293, %v2442
      %v2590 = vadd.f32 %v2294, %v2442
      %v2591 = vadd.f32 %v2295, %v2442
      %v2592 = vadd.f32 %v2296, %v2442
      %v2593 = vadd.f32 %v2297, %v2442
      %v2594 = vadd.f32 %v2298, %v2442
      %v2595 = vadd.f32 %v2299, %v2442
      %v2596 = vadd.f32 %v2300, %v2442
      %v2597 = vadd.f32 %v2301, %v2442
      %v2598 = vadd.f32 %v2302, %v2442
      %v2599 = vadd.f32 %v2303, %v2442
      %v2600 = vadd.f32 %v2304, %v2442
      %v2601 = vadd.f32 %v2305, %v2442
      %v2602 = vadd.f32 %v2306, %v2442
      %v2603 = vadd.f32 %v2307, %v2442
      %v2604 = vadd.f32 %v2308, %v2442
      %v2605 = vadd.f32 %v2309, %v2442
      %v2606 = vadd.f32 %v2310, %v2442
      %v2607 = vadd.f32 %v2311, %v2442
      %v2608 = vadd.f32 %v2312, %v2442
      %v2609 = vadd.f32 %v2313, %v2442
      %v2610 = vadd.f32 %v2314, %v2442
      %v2611 = vadd.f32 %v2315, %v2442
      %v2612 = vadd.f32 %v2316, %v2442
      %v2613 = vadd.f32 %v2317, %v2442
      %v2614 = vadd.f32 %v2318, %v2442
      %v2615 = vadd.f32 %v2319, %v2442
      %v2616 = vadd.f32 %v2320, %v2442
      %v2617 = vadd.f32 %v2321, %v2442
      %v2618 = vadd.f32 %v2322, %v2442
      %v2619 = vadd.f32 %v2323, %v2447
      %v2620 = vadd.f32 %v2324, %v2447
      %v2621 = vadd.f32 %v2325, %v2447
      %v2622 = vadd.f32 %v2326, %v2447
      %v2623 = vadd.f32 %v2327, %v2447
      %v2624 = vadd.f32 %v2328, %v2447
      %v2625 = vadd.f32 %v2329, %v2447
      %v2626 = vadd.f32 %v2330, %v2447
      %v2627 = vadd.f32 %v2331, %v2447
      %v2628 = vadd.f32 %v2332, %v2447
      %v2629 = vadd.f32 %v2333, %v2447
      %v2630 = vadd.f32 %v2334, %v2447
      %v2631 = vadd.f32 %v2335, %v2447
      %v2632 = vadd.f32 %v2336, %v2447
      %v2633 = vadd.f32 %v2337, %v2447
      %v2634 = vadd.f32 %v2338, %v2447
      %v2635 = vadd.f32 %v2339, %v2447
      %v2636 = vadd.f32 %v2340, %v2447
      %v2637 = vadd.f32 %v2341, %v2447
      %v2638 = vadd.f32 %v2342, %v2447
      %v2639 = vadd.f32 %v2343, %v2447
      %v2640 = vadd.f32 %v2344, %v2447
      %v2641 = vadd.f32 %v2345, %v2447
      %v2642 = vadd.f32 %v2346, %v2447
      %v2643 = vadd.f32 %v2347, %v2447
      %v2644 = vadd.f32 %v2348, %v2447
      %v2645 = vadd.f32 %v2349, %v2447
      %v2646 = vadd.f32 %v2350, %v2447
      %v2647 = vadd.f32 %v2351, %v2447
      %v2648 = vadd.f32 %v2352, %v2447
      %v2649 = vadd.f32 %v2353, %v2447
      %v2650 = vadd.f32 %v2354, %v2447
      %v2651 = vadd.f32 %v2355, %v2452
      %v2652 = vadd.f32 %v2356, %v2452
      %v2653 = vadd.f32 %v2357, %v2452
      %v2654 = vadd.f32 %v2358, %v2452
      %v2655 = vadd.f32 %v2359, %v2452
      %v2656 = vadd.f32 %v2360, %v2452
      %v2657 = vadd.f32 %v2361, %v2452
      %v2658 = vadd.f32 %v2362, %v2452
      %v2659 = vadd.f32 %v2363, %v2452
      %v2660 = vadd.f32 %v2364, %v2452
      %v2661 = vadd.f32 %v2365, %v2452
      %v2662 = vadd.f32 %v2366, %v2452
      %v2663 = vadd.f32 %v2367, %v2452
      %v2664 = vadd.f32 %v2368, %v2452
      %v2665 = vadd.f32 %v2369, %v2452
      %v2666 = vadd.f32 %v2370, %v2452
      %v2667 = vadd.f32 %v2371, %v2452
      %v2668 = vadd.f32 %v2372, %v2452
      %v2669 = vadd.f32 %v2373, %v2452
      %v2670 = vadd.f32 %v2374, %v2452
      %v2671 = vadd.f32 %v2375, %v2452
      %v2672 = vadd.f32 %v2376, %v2452
      %v2673 = vadd.f32 %v2377, %v2452
      %v2674 = vadd.f32 %v2378, %v2452
      %v2675 = vadd.f32 %v2379, %v2452
      %v2676 = vadd.f32 %v2380, %v2452
      %v2677 = vadd.f32 %v2381, %v2452
      %v2678 = vadd.f32 %v2382, %v2452
      %v2679 = vadd.f32 %v2383, %v2452
      %v2680 = vadd.f32 %v2384, %v2452
      %v2681 = vadd.f32 %v2385, %v2452
      %v2682 = vadd.f32 %v2386, %v2452
      %v2683 = vadd.f32 %v2387, %v2457
      %v2684 = vadd.f32 %v2388, %v2457
      %v2685 = vadd.f32 %v2389, %v2457
      %v2686 = vadd.f32 %v2390, %v2457
      %v2687 = vadd.f32 %v2391, %v2457
      %v2688 = vadd.f32 %v2392, %v2457
      %v2689 = vadd.f32 %v2393, %v2457
      %v2690 = vadd.f32 %v2394, %v2457
      %v2691 = vadd.f32 %v2395, %v2457
      %v2692 = vadd.f32 %v2396, %v2457
      %v2693 = vadd.f32 %v2397, %v2457
      %v2694 = vadd.f32 %v2398, %v2457
      %v2695 = vadd.f32 %v2399, %v2457
      %v2696 = vadd.f32 %v2400, %v2457
      %v2697 = vadd.f32 %v2401, %v2457
      %v2698 = vadd.f32 %v2402, %v2457
      %v2699 = vadd.f32 %v2403, %v2457
      %v2700 = vadd.f32 %v2404, %v2457
      %v2701 = vadd.f32 %v2405, %v2457
      %v2702 = vadd.f32 %v2406, %v2457
      %v2703 = vadd.f32 %v2407, %v2457
      %v2704 = vadd.f32 %v2408, %v2457
      %v2705 = vadd.f32 %v2409, %v2457
      %v2706 = vadd.f32 %v2410, %v2457
      %v2707 = vadd.f32 %v2411, %v2457
      %v2708 = vadd.f32 %v2412, %v2457
      %v2709 = vadd.f32 %v2413, %v2457
      %v2710 = vadd.f32 %v2414, %v2457
      %v2711 = vadd.f32 %v2415, %v2457
      %v2712 = vadd.f32 %v2416, %v2457
      %v2713 = vadd.f32 %v2417, %v2457
      %v2714 = vadd.f32 %v2418, %v2457
      %v2715 = vmax.f32 %v2459, 0.0
      %v2716 = vmax.f32 %v2460, 0.0
      %v2717 = vmax.f32 %v2461, 0.0
      %v2718 = vmax.f32 %v2462, 0.0
      %v2719 = vmax.f32 %v2463, 0.0
      %v2720 = vmax.f32 %v2464, 0.0
      %v2721 = vmax.f32 %v2465, 0.0
      %v2722 = vmax.f32 %v2466, 0.0
      %v2723 = vmax.f32 %v2467, 0.0
      %v2724 = vmax.f32 %v2468, 0.0
      %v2725 = vmax.f32 %v2469, 0.0
      %v2726 = vmax.f32 %v2470, 0.0
      %v2727 = vmax.f32 %v2471, 0.0
      %v2728 = vmax.f32 %v2472, 0.0
      %v2729 = vmax.f32 %v2473, 0.0
      %v2730 = vmax.f32 %v2474, 0.0
      %v2731 = vmax.f32 %v2475, 0.0
      %v2732 = vmax.f32 %v2476, 0.0
      %v2733 = vmax.f32 %v2477, 0.0
      %v2734 = vmax.f32 %v2478, 0.0
      %v2735 = vmax.f32 %v2479, 0.0
      %v2736 = vmax.f32 %v2480, 0.0
      %v2737 = vmax.f32 %v2481, 0.0
      %v2738 = vmax.f32 %v2482, 0.0
      %v2739 = vmax.f32 %v2483, 0.0
      %v2740 = vmax.f32 %v2484, 0.0
      %v2741 = vmax.f32 %v2485, 0.0
      %v2742 = vmax.f32 %v2486, 0.0
      %v2743 = vmax.f32 %v2487, 0.0
      %v2744 = vmax.f32 %v2488, 0.0
      %v2745 = vmax.f32 %v2489, 0.0
      %v2746 = vmax.f32 %v2490, 0.0
      %v2747 = vmax.f32 %v2491, 0.0
      %v2748 = vmax.f32 %v2492, 0.0
      %v2749 = vmax.f32 %v2493, 0.0
      %v2750 = vmax.f32 %v2494, 0.0
      %v2751 = vmax.f32 %v2495, 0.0
      %v2752 = vmax.f32 %v2496, 0.0
      %v2753 = vmax.f32 %v2497, 0.0
      %v2754 = vmax.f32 %v2498, 0.0
      %v2755 = vmax.f32 %v2499, 0.0
      %v2756 = vmax.f32 %v2500, 0.0
      %v2757 = vmax.f32 %v2501, 0.0
      %v2758 = vmax.f32 %v2502, 0.0
      %v2759 = vmax.f32 %v2503, 0.0
      %v2760 = vmax.f32 %v2504, 0.0
      %v2761 = vmax.f32 %v2505, 0.0
      %v2762 = vmax.f32 %v2506, 0.0
      %v2763 = vmax.f32 %v2507, 0.0
      %v2764 = vmax.f32 %v2508, 0.0
      %v2765 = vmax.f32 %v2509, 0.0
      %v2766 = vmax.f32 %v2510, 0.0
      %v2767 = vmax.f32 %v2511, 0.0
      %v2768 = vmax.f32 %v2512, 0.0
      %v2769 = vmax.f32 %v2513, 0.0
      %v2770 = vmax.f32 %v2514, 0.0
      %v2771 = vmax.f32 %v2515, 0.0
      %v2772 = vmax.f32 %v2516, 0.0
      %v2773 = vmax.f32 %v2517, 0.0
      %v2774 = vmax.f32 %v2518, 0.0
      %v2775 = vmax.f32 %v2519, 0.0
      %v2776 = vmax.f32 %v2520, 0.0
      %v2777 = vmax.f32 %v2521, 0.0
      %v2778 = vmax.f32 %v2522, 0.0
      %v2779 = vmax.f32 %v2523, 0.0
      %v2780 = vmax.f32 %v2524, 0.0
      %v2781 = vmax.f32 %v2525, 0.0
      %v2782 = vmax.f32 %v2526, 0.0
      %v2783 = vmax.f32 %v2527, 0.0
      %v2784 = vmax.f32 %v2528, 0.0
      %v2785 = vmax.f32 %v2529, 0.0
      %v2786 = vmax.f32 %v2530, 0.0
      %v2787 = vmax.f32 %v2531, 0.0
      %v2788 = vmax.f32 %v2532, 0.0
      %v2789 = vmax.f32 %v2533, 0.0
      %v2790 = vmax.f32 %v2534, 0.0
      %v2791 = vmax.f32 %v2535, 0.0
      %v2792 = vmax.f32 %v2536, 0.0
      %v2793 = vmax.f32 %v2537, 0.0
      %v2794 = vmax.f32 %v2538, 0.0
      %v2795 = vmax.f32 %v2539, 0.0
      %v2796 = vmax.f32 %v2540, 0.0
      %v2797 = vmax.f32 %v2541, 0.0
      %v2798 = vmax.f32 %v2542, 0.0
      %v2799 = vmax.f32 %v2543, 0.0
      %v2800 = vmax.f32 %v2544, 0.0
      %v2801 = vmax.f32 %v2545, 0.0
      %v2802 = vmax.f32 %v2546, 0.0
      %v2803 = vmax.f32 %v2547, 0.0
      %v2804 = vmax.f32 %v2548, 0.0
      %v2805 = vmax.f32 %v2549, 0.0
      %v2806 = vmax.f32 %v2550, 0.0
      %v2807 = vmax.f32 %v2551, 0.0
      %v2808 = vmax.f32 %v2552, 0.0
      %v2809 = vmax.f32 %v2553, 0.0
      %v2810 = vmax.f32 %v2554, 0.0
      %v2811 = vmax.f32 %v2555, 0.0
      %v2812 = vmax.f32 %v2556, 0.0
      %v2813 = vmax.f32 %v2557, 0.0
      %v2814 = vmax.f32 %v2558, 0.0
      %v2815 = vmax.f32 %v2559, 0.0
      %v2816 = vmax.f32 %v2560, 0.0
      %v2817 = vmax.f32 %v2561, 0.0
      %v2818 = vmax.f32 %v2562, 0.0
      %v2819 = vmax.f32 %v2563, 0.0
      %v2820 = vmax.f32 %v2564, 0.0
      %v2821 = vmax.f32 %v2565, 0.0
      %v2822 = vmax.f32 %v2566, 0.0
      %v2823 = vmax.f32 %v2567, 0.0
      %v2824 = vmax.f32 %v2568, 0.0
      %v2825 = vmax.f32 %v2569, 0.0
      %v2826 = vmax.f32 %v2570, 0.0
      %v2827 = vmax.f32 %v2571, 0.0
      %v2828 = vmax.f32 %v2572, 0.0
      %v2829 = vmax.f32 %v2573, 0.0
      %v2830 = vmax.f32 %v2574, 0.0
      %v2831 = vmax.f32 %v2575, 0.0
      %v2832 = vmax.f32 %v2576, 0.0
      %v2833 = vmax.f32 %v2577, 0.0
      %v2834 = vmax.f32 %v2578, 0.0
      %v2835 = vmax.f32 %v2579, 0.0
      %v2836 = vmax.f32 %v2580, 0.0
      %v2837 = vmax.f32 %v2581, 0.0
      %v2838 = vmax.f32 %v2582, 0.0
      %v2839 = vmax.f32 %v2583, 0.0
      %v2840 = vmax.f32 %v2584, 0.0
      %v2841 = vmax.f32 %v2585, 0.0
      %v2842 = vmax.f32 %v2586, 0.0
      %v2843 = vmax.f32 %v2587, 0.0
      %v2844 = vmax.f32 %v2588, 0.0
      %v2845 = vmax.f32 %v2589, 0.0
      %v2846 = vmax.f32 %v2590, 0.0
      %v2847 = vmax.f32 %v2591, 0.0
      %v2848 = vmax.f32 %v2592, 0.0
      %v2849 = vmax.f32 %v2593, 0.0
      %v2850 = vmax.f32 %v2594, 0.0
      %v2851 = vmax.f32 %v2595, 0.0
      %v2852 = vmax.f32 %v2596, 0.0
      %v2853 = vmax.f32 %v2597, 0.0
      %v2854 = vmax.f32 %v2598, 0.0
      %v2855 = vmax.f32 %v2599, 0.0
      %v2856 = vmax.f32 %v2600, 0.0
      %v2857 = vmax.f32 %v2601, 0.0
      %v2858 = vmax.f32 %v2602, 0.0
      %v2859 = vmax.f32 %v2603, 0.0
      %v2860 = vmax.f32 %v2604, 0.0
      %v2861 = vmax.f32 %v2605, 0.0
      %v2862 = vmax.f32 %v2606, 0.0
      %v2863 = vmax.f32 %v2607, 0.0
      %v2864 = vmax.f32 %v2608, 0.0
      %v2865 = vmax.f32 %v2609, 0.0
      %v2866 = vmax.f32 %v2610, 0.0
      %v2867 = vmax.f32 %v2611, 0.0
      %v2868 = vmax.f32 %v2612, 0.0
      %v2869 = vmax.f32 %v2613, 0.0
      %v2870 = vmax.f32 %v2614, 0.0
      %v2871 = vmax.f32 %v2615, 0.0
      %v2872 = vmax.f32 %v2616, 0.0
      %v2873 = vmax.f32 %v2617, 0.0
      %v2874 = vmax.f32 %v2618, 0.0
      %v2875 = vmax.f32 %v2619, 0.0
      %v2876 = vmax.f32 %v2620, 0.0
      %v2877 = vmax.f32 %v2621, 0.0
      %v2878 = vmax.f32 %v2622, 0.0
      %v2879 = vmax.f32 %v2623, 0.0
      %v2880 = vmax.f32 %v2624, 0.0
      %v2881 = vmax.f32 %v2625, 0.0
      %v2882 = vmax.f32 %v2626, 0.0
      %v2883 = vmax.f32 %v2627, 0.0
      %v2884 = vmax.f32 %v2628, 0.0
      %v2885 = vmax.f32 %v2629, 0.0
      %v2886 = vmax.f32 %v2630, 0.0
      %v2887 = vmax.f32 %v2631, 0.0
      %v2888 = vmax.f32 %v2632, 0.0
      %v2889 = vmax.f32 %v2633, 0.0
      %v2890 = vmax.f32 %v2634, 0.0
      %v2891 = vmax.f32 %v2635, 0.0
      %v2892 = vmax.f32 %v2636, 0.0
      %v2893 = vmax.f32 %v2637, 0.0
      %v2894 = vmax.f32 %v2638, 0.0
      %v2895 = vmax.f32 %v2639, 0.0
      %v2896 = vmax.f32 %v2640, 0.0
      %v2897 = vmax.f32 %v2641, 0.0
      %v2898 = vmax.f32 %v2642, 0.0
      %v2899 = vmax.f32 %v2643, 0.0
      %v2900 = vmax.f32 %v2644, 0.0
      %v2901 = vmax.f32 %v2645, 0.0
      %v2902 = vmax.f32 %v2646, 0.0
      %v2903 = vmax.f32 %v2647, 0.0
      %v2904 = vmax.f32 %v2648, 0.0
      %v2905 = vmax.f32 %v2649, 0.0
      %v2906 = vmax.f32 %v2650, 0.0
      %v2907 = vmax.f32 %v2651, 0.0
      %v2908 = vmax.f32 %v2652, 0.0
      %v2909 = vmax.f32 %v2653, 0.0
      %v2910 = vmax.f32 %v2654, 0.0
      %v2911 = vmax.f32 %v2655, 0.0
      %v2912 = vmax.f32 %v2656, 0.0
      %v2913 = vmax.f32 %v2657, 0.0
      %v2914 = vmax.f32 %v2658, 0.0
      %v2915 = vmax.f32 %v2659, 0.0
      %v2916 = vmax.f32 %v2660, 0.0
      %v2917 = vmax.f32 %v2661, 0.0
      %v2918 = vmax.f32 %v2662, 0.0
      %v2919 = vmax.f32 %v2663, 0.0
      %v2920 = vmax.f32 %v2664, 0.0
      %v2921 = vmax.f32 %v2665, 0.0
      %v2922 = vmax.f32 %v2666, 0.0
      %v2923 = vmax.f32 %v2667, 0.0
      %v2924 = vmax.f32 %v2668, 0.0
      %v2925 = vmax.f32 %v2669, 0.0
      %v2926 = vmax.f32 %v2670, 0.0
      %v2927 = vmax.f32 %v2671, 0.0
      %v2928 = vmax.f32 %v2672, 0.0
      %v2929 = vmax.f32 %v2673, 0.0
      %v2930 = vmax.f32 %v2674, 0.0
      %v2931 = vmax.f32 %v2675, 0.0
      %v2932 = vmax.f32 %v2676, 0.0
      %v2933 = vmax.f32 %v2677, 0.0
      %v2934 = vmax.f32 %v2678, 0.0
      %v2935 = vmax.f32 %v2679, 0.0
      %v2936 = vmax.f32 %v2680, 0.0
      %v2937 = vmax.f32 %v2681, 0.0
      %v2938 = vmax.f32 %v2682, 0.0
      %v2939 = vmax.f32 %v2683, 0.0
      %v2940 = vmax.f32 %v2684, 0.0
      %v2941 = vmax.f32 %v2685, 0.0
      %v2942 = vmax.f32 %v2686, 0.0
      %v2943 = vmax.f32 %v2687, 0.0
      %v2944 = vmax.f32 %v2688, 0.0
      %v2945 = vmax.f32 %v2689, 0.0
      %v2946 = vmax.f32 %v2690, 0.0
      %v2947 = vmax.f32 %v2691, 0.0
      %v2948 = vmax.f32 %v2692, 0.0
      %v2949 = vmax.f32 %v2693, 0.0
      %v2950 = vmax.f32 %v2694, 0.0
      %v2951 = vmax.f32 %v2695, 0.0
      %v2952 = vmax.f32 %v2696, 0.0
      %v2953 = vmax.f32 %v2697, 0.0
      %v2954 = vmax.f32 %v2698, 0.0
      %v2955 = vmax.f32 %v2699, 0.0
      %v2956 = vmax.f32 %v2700, 0.0
      %v2957 = vmax.f32 %v2701, 0.0
      %v2958 = vmax.f32 %v2702, 0.0
      %v2959 = vmax.f32 %v2703, 0.0
      %v2960 = vmax.f32 %v2704, 0.0
      %v2961 = vmax.f32 %v2705, 0.0
      %v2962 = vmax.f32 %v2706, 0.0
      %v2963 = vmax.f32 %v2707, 0.0
      %v2964 = vmax.f32 %v2708, 0.0
      %v2965 = vmax.f32 %v2709, 0.0
      %v2966 = vmax.f32 %v2710, 0.0
      %v2967 = vmax.f32 %v2711, 0.0
      %v2968 = vmax.f32 %v2712, 0.0
      %v2969 = vmax.f32 %v2713, 0.0
      %v2970 = vmax.f32 %v2714, 0.0
      %v2971 = vmax.f32 %v2715, %v2716
      %v2972 = vmax.f32 %v2747, %v2748
      %v2973 = vmax.f32 %v2779, %v2780
      %v2974 = vmax.f32 %v2811, %v2812
      %v2975 = vmax.f32 %v2843, %v2844
      %v2976 = vmax.f32 %v2875, %v2876
      %v2977 = vmax.f32 %v2907, %v2908
      %v2978 = vmax.f32 %v2939, %v2940
      %v2979 = vmax.f32 %v2717, %v2718
      %v2980 = vmax.f32 %v2749, %v2750
      %v2981 = vmax.f32 %v2781, %v2782
      %v2982 = vmax.f32 %v2813, %v2814
      %v2983 = vmax.f32 %v2845, %v2846
      %v2984 = vmax.f32 %v2877, %v2878
      %v2985 = vmax.f32 %v2909, %v2910
      %v2986 = vmax.f32 %v2941, %v2942
      %v2987 = vmax.f32 %v2719, %v2720
      %v2988 = vmax.f32 %v2751, %v2752
      %v2989 = vmax.f32 %v2783, %v2784
      %v2990 = vmax.f32 %v2815, %v2816
      %v2991 = vmax.f32 %v2847, %v2848
      %v2992 = vmax.f32 %v2879, %v2880
      %v2993 = vmax.f32 %v2911, %v2912
      %v2994 = vmax.f32 %v2943, %v2944
      %v2995 = vmax.f32 %v2721, %v2722
      %v2996 = vmax.f32 %v2753, %v2754
      %v2997 = vmax.f32 %v2785, %v2786
      %v2998 = vmax.f32 %v2817, %v2818
      %v2999 = vmax.f32 %v2849, %v2850
      %v3000 = vmax.f32 %v2881, %v2882
      %v3001 = vmax.f32 %v2913, %v2914
      %v3002 = vmax.f32 %v2945, %v2946
      %v3003 = vmax.f32 %v2723, %v2724
      %v3004 = vmax.f32 %v2755, %v2756
      %v3005 = vmax.f32 %v2787, %v2788
      %v3006 = vmax.f32 %v2819, %v2820
      %v3007 = vmax.f32 %v2851, %v2852
      %v3008 = vmax.f32 %v2883, %v2884
      %v3009 = vmax.f32 %v2915, %v2916
      %v3010 = vmax.f32 %v2947, %v2948
      %v3011 = vmax.f32 %v2725, %v2726
      %v3012 = vmax.f32 %v2757, %v2758
      %v3013 = vmax.f32 %v2789, %v2790
      %v3014 = vmax.f32 %v2821, %v2822
      %v3015 = vmax.f32 %v2853, %v2854
      %v3016 = vmax.f32 %v2885, %v2886
      %v3017 = vmax.f32 %v2917, %v2918
      %v3018 = vmax.f32 %v2949, %v2950
      %v3019 = vmax.f32 %v2727, %v2728
      %v3020 = vmax.f32 %v2759, %v2760
      %v3021 = vmax.f32 %v2791, %v2792
      %v3022 = vmax.f32 %v2823, %v2824
      %v3023 = vmax.f32 %v2855, %v2856
      %v3024 = vmax.f32 %v2887, %v2888
      %v3025 = vmax.f32 %v2919, %v2920
      %v3026 = vmax.f32 %v2951, %v2952
      %v3027 = vmax.f32 %v2729, %v2730
      %v3028 = vmax.f32 %v2761, %v2762
      %v3029 = vmax.f32 %v2793, %v2794
      %v3030 = vmax.f32 %v2825, %v2826
      %v3031 = vmax.f32 %v2857, %v2858
      %v3032 = vmax.f32 %v2889, %v2890
      %v3033 = vmax.f32 %v2921, %v2922
      %v3034 = vmax.f32 %v2953, %v2954
      %v3035 = vmax.f32 %v2731, %v2732
      %v3036 = vmax.f32 %v2763, %v2764
      %v3037 = vmax.f32 %v2795, %v2796
      %v3038 = vmax.f32 %v2827, %v2828
      %v3039 = vmax.f32 %v2859, %v2860
      %v3040 = vmax.f32 %v2891, %v2892
      %v3041 = vmax.f32 %v2923, %v2924
      %v3042 = vmax.f32 %v2955, %v2956
      %v3043 = vmax.f32 %v2733, %v2734
      %v3044 = vmax.f32 %v2765, %v2766
      %v3045 = vmax.f32 %v2797, %v2798
      %v3046 = vmax.f32 %v2829, %v2830
      %v3047 = vmax.f32 %v2861, %v2862
      %v3048 = vmax.f32 %v2893, %v2894
      %v3049 = vmax.f32 %v2925, %v2926
      %v3050 = vmax.f32 %v2957, %v2958
      %v3051 = vmax.f32 %v2735, %v2736
      %v3052 = vmax.f32 %v2767, %v2768
      %v3053 = vmax.f32 %v2799, %v2800
      %v3054 = vmax.f32 %v2831, %v2832
      %v3055 = vmax.f32 %v2863, %v2864
      %v3056 = vmax.f32 %v2895, %v2896
      %v3057 = vmax.f32 %v2927, %v2928
      %v3058 = vmax.f32 %v2959, %v2960
      %v3059 = vmax.f32 %v2737, %v2738
      %v3060 = vmax.f32 %v2769, %v2770
      %v3061 = vmax.f32 %v2801, %v2802
      %v3062 = vmax.f32 %v2833, %v2834
      %v3063 = vmax.f32 %v2865, %v2866
      %v3064 = vmax.f32 %v2897, %v2898
      %v3065 = vmax.f32 %v2929, %v2930
      %v3066 = vmax.f32 %v2961, %v2962
      %v3067 = vmax.f32 %v2739, %v2740
      %v3068 = vmax.f32 %v2771, %v2772
      %v3069 = vmax.f32 %v2803, %v2804
      %v3070 = vmax.f32 %v2835, %v2836
      %v3071 = vmax.f32 %v2867, %v2868
      %v3072 = vmax.f32 %v2899, %v2900
      %v3073 = vmax.f32 %v2931, %v2932
      %v3074 = vmax.f32 %v2963, %v2964
      %v3075 = vmax.f32 %v2741, %v2742
      %v3076 = vmax.f32 %v2773, %v2774
      %v3077 = vmax.f32 %v2805, %v2806
      %v3078 = vmax.f32 %v2837, %v2838
      %v3079 = vmax.f32 %v2869, %v2870
      %v3080 = vmax.f32 %v2901, %v2902
      %v3081 = vmax.f32 %v2933, %v2934
      %v3082 = vmax.f32 %v2965, %v2966
      %v3083 = vmax.f32 %v2743, %v2744
      %v3084 = vmax.f32 %v2775, %v2776
      %v3085 = vmax.f32 %v2807, %v2808
      %v3086 = vmax.f32 %v2839, %v2840
      %v3087 = vmax.f32 %v2871, %v2872
      %v3088 = vmax.f32 %v2903, %v2904
      %v3089 = vmax.f32 %v2935, %v2936
      %v3090 = vmax.f32 %v2967, %v2968
      %v3091 = vmax.f32 %v2745, %v2746
      %v3092 = vmax.f32 %v2777, %v2778
      %v3093 = vmax.f32 %v2809, %v2810
      %v3094 = vmax.f32 %v2841, %v2842
      %v3095 = vmax.f32 %v2873, %v2874
      %v3096 = vmax.f32 %v2905, %v2906
      %v3097 = vmax.f32 %v2937, %v2938
      %v3098 = vmax.f32 %v2969, %v2970
      %v3099 = vld [vmem:[%s4] sm:$0xff]
      %v3100 = vld [vmem:[%s4 + $0x8] sm:$0xff]
      %v3101 = vld [vmem:[%s4 + $0x10] sm:$0xff]
      %v3102 = vld [vmem:[%s4 + $0x18] sm:$0xff]
      %v3103 = vld [vmem:[%s4 + $0x20] sm:$0xff]
      %v3104 = vld [vmem:[%s4 + $0x28] sm:$0xff]
      %v3105 = vld [vmem:[%s4 + $0x30] sm:$0xff]
      %v3106 = vld [vmem:[%s4 + $0x38] sm:$0xff]
      %v3107 = vld [vmem:[%s5] sm:$0xff]
      %v3108 = vld [vmem:[%s5 + $0x8] sm:$0xff]
      %v3109 = vld [vmem:[%s5 + $0x10] sm:$0xff]
      %v3110 = vld [vmem:[%s5 + $0x18] sm:$0xff]
      %v3111 = vld [vmem:[%s5 + $0x20] sm:$0xff]
      %v3112 = vld [vmem:[%s5 + $0x28] sm:$0xff]
      %v3113 = vld [vmem:[%s5 + $0x30] sm:$0xff]
      %v3114 = vld [vmem:[%s5 + $0x38] sm:$0xff]
      %v3115 = vld [vmem:[%s6] sm:$0xff]
      %v3116 = vld [vmem:[%s6 + $0x8] sm:$0xff]
      %v3117 = vld [vmem:[%s6 + $0x10] sm:$0xff]
      %v3118 = vld [vmem:[%s6 + $0x18] sm:$0xff]
      %v3119 = vld [vmem:[%s6 + $0x20] sm:$0xff]
      %v3120 = vld [vmem:[%s6 + $0x28] sm:$0xff]
      %v3121 = vld [vmem:[%s6 + $0x30] sm:$0xff]
      %v3122 = vld [vmem:[%s6 + $0x38] sm:$0xff]
      %v3123 = vpack.c.bf16 %v2972, %v2971
      %v3124 = vpack.c.bf16 %v2980, %v2979
      %v3125 = vpack.c.bf16 %v2988, %v2987
      %v3126 = vpack.c.bf16 %v2996, %v2995
      %v3127 = vpack.c.bf16 %v3004, %v3003
      %v3128 = vpack.c.bf16 %v3012, %v3011
      %v3129 = vpack.c.bf16 %v3020, %v3019
      %v3130 = vpack.c.bf16 %v3028, %v3027
      %v3131 = vpack.c.bf16 %v3036, %v3035
      %v3132 = vpack.c.bf16 %v3044, %v3043
      %v3133 = vpack.c.bf16 %v3052, %v3051
      %v3134 = vpack.c.bf16 %v3060, %v3059
      %v3135 = vpack.c.bf16 %v3068, %v3067
      %v3136 = vpack.c.bf16 %v3076, %v3075
      %v3137 = vpack.c.bf16 %v3084, %v3083
      %v3138 = vpack.c.bf16 %v2974, %v2973
      %v3139 = vpack.c.bf16 %v2982, %v2981
      %v3140 = vpack.c.bf16 %v2990, %v2989
      %v3141 = vpack.c.bf16 %v2998, %v2997
      %v3142 = vpack.c.bf16 %v3006, %v3005
      %v3143 = vpack.c.bf16 %v3014, %v3013
      %v3144 = vpack.c.bf16 %v3022, %v3021
      %v3145 = vpack.c.bf16 %v3030, %v3029
      %v3146 = vpack.c.bf16 %v3038, %v3037
      %v3147 = vpack.c.bf16 %v3046, %v3045
      %v3148 = vpack.c.bf16 %v3054, %v3053
      %v3149 = vpack.c.bf16 %v3062, %v3061
      %v3150 = vpack.c.bf16 %v3070, %v3069
      %v3151 = vpack.c.bf16 %v3078, %v3077
      %v3152 = vpack.c.bf16 %v3086, %v3085
      %v3153 = vpack.c.bf16 %v2976, %v2975
      %v3154 = vpack.c.bf16 %v2984, %v2983
      %v3155 = vpack.c.bf16 %v2992, %v2991
      %v3156 = vpack.c.bf16 %v3000, %v2999
      %v3157 = vpack.c.bf16 %v3008, %v3007
      %v3158 = vpack.c.bf16 %v3016, %v3015
      %v3159 = vpack.c.bf16 %v3024, %v3023
      %v3160 = vpack.c.bf16 %v3032, %v3031
      %v3161 = vpack.c.bf16 %v3040, %v3039
      %v3162 = vpack.c.bf16 %v3048, %v3047
      %v3163 = vpack.c.bf16 %v3056, %v3055
      %v3164 = vpack.c.bf16 %v3064, %v3063
      %v3165 = vpack.c.bf16 %v3072, %v3071
      %v3166 = vpack.c.bf16 %v3080, %v3079
      %v3167 = vpack.c.bf16 %v3088, %v3087
      %v3168 = vpack.c.bf16 %v2978, %v2977
      %v3169 = vpack.c.bf16 %v2986, %v2985
      %v3170 = vpack.c.bf16 %v2994, %v2993
      %v3171 = vpack.c.bf16 %v3002, %v3001
      %v3172 = vpack.c.bf16 %v3010, %v3009
      %v3173 = vpack.c.bf16 %v3018, %v3017
      %v3174 = vpack.c.bf16 %v3026, %v3025
      %v3175 = vpack.c.bf16 %v3034, %v3033
      %v3176 = vpack.c.bf16 %v3042, %v3041
      %v3177 = vpack.c.bf16 %v3050, %v3049
      %v3178 = vpack.c.bf16 %v3058, %v3057
      %v3179 = vpack.c.bf16 %v3066, %v3065
      %v3180 = vpack.c.bf16 %v3074, %v3073
      %v3181 = vpack.c.bf16 %v3082, %v3081
      %v3182 = vpack.c.bf16 %v3090, %v3089
      %v3183 = vpack.c.bf16 %v3092, %v3091
      %v3184 = vpack.c.bf16 %v3094, %v3093
      %v3185 = vpack.c.bf16 %v3096, %v3095
      %v3186 = vpack.c.bf16 %v3098, %v3097
      %v3195 = vunpack.c.l.b16 %v3099
      %v3196 = vunpack.c.h.b16 %v3099
      %v3197 = vunpack.c.l.b16 %v3100
      %v3198 = vunpack.c.h.b16 %v3100
      %v3199 = vunpack.c.l.b16 %v3101
      %v3200 = vunpack.c.h.b16 %v3101
      %v3201 = vunpack.c.l.b16 %v3102
      %v3202 = vunpack.c.h.b16 %v3102
      %v3203 = vunpack.c.l.b16 %v3103
      %v3204 = vunpack.c.h.b16 %v3103
      %v3205 = vunpack.c.l.b16 %v3104
      %v3206 = vunpack.c.h.b16 %v3104
      %v3207 = vunpack.c.l.b16 %v3105
      %v3208 = vunpack.c.h.b16 %v3105
      %v3209 = vunpack.c.l.b16 %v3106
      %v3210 = vunpack.c.h.b16 %v3106
      %v3211 = vpack.c.b16 %v3197, %v3195
      %v3212 = vpack.c.b16 %v3198, %v3196
      %v3213 = vpack.c.b16 %v3201, %v3199
      %v3214 = vpack.c.b16 %v3202, %v3200
      %v3215 = vpack.c.b16 %v3205, %v3203
      %v3216 = vpack.c.b16 %v3206, %v3204
      %v3217 = vpack.c.b16 %v3209, %v3207
      %v3218 = vpack.c.b16 %v3210, %v3208
      %vm3223 = vcmask 523264
      %v3225 = vsel %vm3223, %v3212, 0
      %v3228 = vsel %vm3223, %v3214, 0
      %v3231 = vsel %vm3223, %v3216, 0
      %v3234 = vsel %vm3223, %v3218, 0
      %3236 = vmatprep.subr.bf16.mxu0 %v3123
      %3237 = vmatpush1.bf16.msra.mxu0 %v768
      %3238 = vmatprep.subr.bf16.mxu0 %v3138
      %3239 = vmatpush1.bf16.msra.mxu0 %v768
      %3240 = vmatprep.subr.bf16.mxu0 %v3153
      %3241 = vmatpush1.bf16.msra.mxu0 %v768
      %3242 = vmatprep.subr.bf16.mxu0 %v3168
      %3243 = vmatpush1.bf16.msra.mxu0 %v768
      %3244 = vmatprep.subr.bf16.mxu0 %v3124
      %3245 = vmatpush1.bf16.msra.mxu0 %v3123
      %3246 = vmatprep.subr.bf16.mxu0 %v3139
      %3247 = vmatpush1.bf16.msra.mxu0 %v3138
      %3248 = vmatprep.subr.bf16.mxu0 %v3154
      %3249 = vmatpush1.bf16.msra.mxu0 %v3153
      %3250 = vmatprep.subr.bf16.mxu0 %v3169
      %3251 = vmatpush1.bf16.msra.mxu0 %v3168
      %3252 = vmatprep.subr.bf16.mxu0 %v3125
      %3253 = vmatpush1.bf16.msra.mxu0 %v3124
      %3254 = vmatprep.subr.bf16.mxu0 %v3140
      %3255 = vmatpush1.bf16.msra.mxu0 %v3139
      %3256 = vmatprep.subr.bf16.mxu0 %v3155
      %3257 = vmatpush1.bf16.msra.mxu0 %v3154
      %3258 = vmatprep.subr.bf16.mxu0 %v3170
      %3259 = vmatpush1.bf16.msra.mxu0 %v3169
      %3260 = vmatprep.subr.bf16.mxu0 0
      %3261 = vmatpush1.bf16.msra.mxu0 0
      %3262 = vmatprep.subr.bf16.mxu0 0
      %3263 = vmatpush1.bf16.msra.mxu0 0
      %3264 = vmatprep.subr.bf16.mxu0 0
      %3265 = vmatpush1.bf16.msra.mxu0 0
      %3266 = vmatprep.subr.bf16.mxu0 0
      %3267 = vmatpush1.bf16.msra.mxu0 0
      %3268 = vmatprep.mubr.bf16.mxu0 %v3225
      %3269 = vmatmul.mubr.bf16.gmra.mrb[0].mxu0 %v3211
      %v3270 = vpop.f32.mrb[0].mxu0
      %v3271 = vadd.f32 0.0, %v3270
      %v3272 = vpop.f32.mrb[0].mxu0
      %v3273 = vadd.f32 0.0, %v3272
      %v3274 = vpop.f32.mrb[0].mxu0
      %v3275 = vadd.f32 0.0, %v3274
      %v3276 = vpop.f32.mrb[0].mxu0
      %v3277 = vadd.f32 0.0, %v3276
      %3278 = vmatprep.mubr.bf16.mxu0 %v3228
      %3279 = vmatmul.mubr.bf16.gmra.mrb[0].mxu0 %v3213
      %v3280 = vpop.f32.mrb[0].mxu0
      %v3281 = vadd.f32 0.0, %v3280
      %v3282 = vpop.f32.mrb[0].mxu0
      %v3283 = vadd.f32 0.0, %v3282
      %v3284 = vpop.f32.mrb[0].mxu0
      %v3285 = vadd.f32 0.0, %v3284
      %v3286 = vpop.f32.mrb[0].mxu0
      %v3287 = vadd.f32 0.0, %v3286
      %3288 = vmatprep.mubr.bf16.mxu0 %v3231
      %3289 = vmatmul.mubr.bf16.gmra.mrb[0].mxu0 %v3215
      %v3290 = vpop.f32.mrb[0].mxu0
      %v3291 = vadd.f32 0.0, %v3290
      %v3292 = vpop.f32.mrb[0].mxu0
      %v3293 = vadd.f32 0.0, %v3292
      %v3294 = vpop.f32.mrb[0].mxu0
      %v3295 = vadd.f32 0.0, %v3294
      %v3296 = vpop.f32.mrb[0].mxu0
      %v3297 = vadd.f32 0.0, %v3296
      %3298 = vmatprep.mubr.bf16.mxu0 %v3234
      %3299 = vmatmul.mubr.bf16.gmra.mrb[0].mxu0 %v3217
      %v3300 = vpop.f32.mrb[0].mxu0
      %v3301 = vadd.f32 0.0, %v3300
      %v3302 = vpop.f32.mrb[0].mxu0
      %v3303 = vadd.f32 0.0, %v3302
      %v3304 = vpop.f32.mrb[0].mxu0
      %v3305 = vadd.f32 0.0, %v3304
      %v3306 = vpop.f32.mrb[0].mxu0
      %v3307 = vadd.f32 0.0, %v3306
      %3308 = vdwg.mxu0
      %3309 = vmatprep.subr.bf16.mxu0 %v3125
      %3310 = vmatpush1.bf16.msra.mxu0 %v3124
      %3311 = vmatprep.subr.bf16.mxu0 %v3140
      %3312 = vmatpush1.bf16.msra.mxu0 %v3139
      %3313 = vmatprep.subr.bf16.mxu0 %v3155
      %3314 = vmatpush1.bf16.msra.mxu0 %v3154
      %3315 = vmatprep.subr.bf16.mxu0 %v3170
      %3316 = vmatpush1.bf16.msra.mxu0 %v3169
      %3317 = vmatprep.subr.bf16.mxu0 %v3126
      %3318 = vmatpush1.bf16.msra.mxu0 %v3125
      %3319 = vmatprep.subr.bf16.mxu0 %v3141
      %3320 = vmatpush1.bf16.msra.mxu0 %v3140
      %3321 = vmatprep.subr.bf16.mxu0 %v3156
      %3322 = vmatpush1.bf16.msra.mxu0 %v3155
      %3323 = vmatprep.subr.bf16.mxu0 %v3171
      %3324 = vmatpush1.bf16.msra.mxu0 %v3170
      %3325 = vmatprep.subr.bf16.mxu0 %v3127
      %3326 = vmatpush1.bf16.msra.mxu0 %v3126
      %3327 = vmatprep.subr.bf16.mxu0 %v3142
      %3328 = vmatpush1.bf16.msra.mxu0 %v3141
      %3329 = vmatprep.subr.bf16.mxu0 %v3157
      %3330 = vmatpush1.bf16.msra.mxu0 %v3156
      %3331 = vmatprep.subr.bf16.mxu0 %v3172
      %3332 = vmatpush1.bf16.msra.mxu0 %v3171
      %3333 = vmatprep.subr.bf16.mxu0 0
      %3334 = vmatpush1.bf16.msra.mxu0 0
      %3335 = vmatprep.subr.bf16.mxu0 0
      %3336 = vmatpush1.bf16.msra.mxu0 0
      %3337 = vmatprep.subr.bf16.mxu0 0
      %3338 = vmatpush1.bf16.msra.mxu0 0
      %3339 = vmatprep.subr.bf16.mxu0 0
      %3340 = vmatpush1.bf16.msra.mxu0 0
      %3341 = vmatprep.mubr.bf16.mxu0 %v3225
      %3342 = vmatmul.mubr.bf16.gmra.mrb[0].mxu0 %v3211
      %v3343 = vpop.f32.mrb[0].mxu0
      %v3344 = vadd.f32 0.0, %v3343
      %v3345 = vpop.f32.mrb[0].mxu0
      %v3346 = vadd.f32 0.0, %v3345
      %v3347 = vpop.f32.mrb[0].mxu0
      %v3348 = vadd.f32 0.0, %v3347
      %v3349 = vpop.f32.mrb[0].mxu0
      %v3350 = vadd.f32 0.0, %v3349
      %3351 = vmatprep.mubr.bf16.mxu0 %v3228
      %3352 = vmatmul.mubr.bf16.gmra.mrb[0].mxu0 %v3213
      %v3353 = vpop.f32.mrb[0].mxu0
      %v3354 = vadd.f32 0.0, %v3353
      %v3355 = vpop.f32.mrb[0].mxu0
      %v3356 = vadd.f32 0.0, %v3355
      %v3357 = vpop.f32.mrb[0].mxu0
      %v3358 = vadd.f32 0.0, %v3357
      %v3359 = vpop.f32.mrb[0].mxu0
      %v3360 = vadd.f32 0.0, %v3359
      %3361 = vmatprep.mubr.bf16.mxu0 %v3231
      %3362 = vmatmul.mubr.bf16.gmra.mrb[0].mxu0 %v3215
      %v3363 = vpop.f32.mrb[0].mxu0
      %v3364 = vadd.f32 0.0, %v3363
      %v3365 = vpop.f32.mrb[0].mxu0
      %v3366 = vadd.f32 0.0, %v3365
      %v3367 = vpop.f32.mrb[0].mxu0
      %v3368 = vadd.f32 0.0, %v3367
      %v3369 = vpop.f32.mrb[0].mxu0
      %v3370 = vadd.f32 0.0, %v3369
      %3371 = vmatprep.mubr.bf16.mxu0 %v3234
      %3372 = vmatmul.mubr.bf16.gmra.mrb[0].mxu0 %v3217
      %v3373 = vpop.f32.mrb[0].mxu0
      %v3374 = vadd.f32 0.0, %v3373
      %v3375 = vpop.f32.mrb[0].mxu0
      %v3376 = vadd.f32 0.0, %v3375
      %v3377 = vpop.f32.mrb[0].mxu0
      %v3378 = vadd.f32 0.0, %v3377
      %v3379 = vpop.f32.mrb[0].mxu0
      %v3380 = vadd.f32 0.0, %v3379
      %3381 = vdwg.mxu0
      %3382 = vmatprep.subr.bf16.mxu0 %v3127
      %3383 = vmatpush1.bf16.msra.mxu0 %v3126
      %3384 = vmatprep.subr.bf16.mxu0 %v3142
      %3385 = vmatpush1.bf16.msra.mxu0 %v3141
      %3386 = vmatprep.subr.bf16.mxu0 %v3157
      %3387 = vmatpush1.bf16.msra.mxu0 %v3156
      %3388 = vmatprep.subr.bf16.mxu0 %v3172
      %3389 = vmatpush1.bf16.msra.mxu0 %v3171
      %3390 = vmatprep.subr.bf16.mxu0 %v3128
      %3391 = vmatpush1.bf16.msra.mxu0 %v3127
      %3392 = vmatprep.subr.bf16.mxu0 %v3143
      %3393 = vmatpush1.bf16.msra.mxu0 %v3142
      %3394 = vmatprep.subr.bf16.mxu0 %v3158
      %3395 = vmatpush1.bf16.msra.mxu0 %v3157
      %3396 = vmatprep.subr.bf16.mxu0 %v3173
      %3397 = vmatpush1.bf16.msra.mxu0 %v3172
      %3398 = vmatprep.subr.bf16.mxu0 %v3129
      %3399 = vmatpush1.bf16.msra.mxu0 %v3128
      %3400 = vmatprep.subr.bf16.mxu0 %v3144
      %3401 = vmatpush1.bf16.msra.mxu0 %v3143
      %3402 = vmatprep.subr.bf16.mxu0 %v3159
      %3403 = vmatpush1.bf16.msra.mxu0 %v3158
      %3404 = vmatprep.subr.bf16.mxu0 %v3174
      %3405 = vmatpush1.bf16.msra.mxu0 %v3173
      %3406 = vmatprep.subr.bf16.mxu0 0
      %3407 = vmatpush1.bf16.msra.mxu0 0
      %3408 = vmatprep.subr.bf16.mxu0 0
      %3409 = vmatpush1.bf16.msra.mxu0 0
      %3410 = vmatprep.subr.bf16.mxu0 0
      %3411 = vmatpush1.bf16.msra.mxu0 0
      %3412 = vmatprep.subr.bf16.mxu0 0
      %3413 = vmatpush1.bf16.msra.mxu0 0
      %3414 = vmatprep.mubr.bf16.mxu0 %v3225
      %3415 = vmatmul.mubr.bf16.gmra.mrb[0].mxu0 %v3211
      %v3416 = vpop.f32.mrb[0].mxu0
      %v3417 = vadd.f32 0.0, %v3416
      %v3418 = vpop.f32.mrb[0].mxu0
      %v3419 = vadd.f32 0.0, %v3418
      %v3420 = vpop.f32.mrb[0].mxu0
      %v3421 = vadd.f32 0.0, %v3420
      %v3422 = vpop.f32.mrb[0].mxu0
      %v3423 = vadd.f32 0.0, %v3422
      %3424 = vmatprep.mubr.bf16.mxu0 %v3228
      %3425 = vmatmul.mubr.bf16.gmra.mrb[0].mxu0 %v3213
      %v3426 = vpop.f32.mrb[0].mxu0
      %v3427 = vadd.f32 0.0, %v3426
      %v3428 = vpop.f32.mrb[0].mxu0
      %v3429 = vadd.f32 0.0, %v3428
      %v3430 = vpop.f32.mrb[0].mxu0
      %v3431 = vadd.f32 0.0, %v3430
      %v3432 = vpop.f32.mrb[0].mxu0
      %v3433 = vadd.f32 0.0, %v3432
      %3434 = vmatprep.mubr.bf16.mxu0 %v3231
      %3435 = vmatmul.mubr.bf16.gmra.mrb[0].mxu0 %v3215
      %v3436 = vpop.f32.mrb[0].mxu0
      %v3437 = vadd.f32 0.0, %v3436
      %v3438 = vpop.f32.mrb[0].mxu0
      %v3439 = vadd.f32 0.0, %v3438
      %v3440 = vpop.f32.mrb[0].mxu0
      %v3441 = vadd.f32 0.0, %v3440
      %v3442 = vpop.f32.mrb[0].mxu0
      %v3443 = vadd.f32 0.0, %v3442
      %3444 = vmatprep.mubr.bf16.mxu0 %v3234
      %3445 = vmatmul.mubr.bf16.gmra.mrb[0].mxu0 %v3217
      %v3446 = vpop.f32.mrb[0].mxu0
      %v3447 = vadd.f32 0.0, %v3446
      %v3448 = vpop.f32.mrb[0].mxu0
      %v3449 = vadd.f32 0.0, %v3448
      %v3450 = vpop.f32.mrb[0].mxu0
      %v3451 = vadd.f32 0.0, %v3450
      %v3452 = vpop.f32.mrb[0].mxu0
      %v3453 = vadd.f32 0.0, %v3452
      %3454 = vdwg.mxu0
      %3455 = vmatprep.subr.bf16.mxu0 %v3129
      %3456 = vmatpush1.bf16.msra.mxu0 %v3128
      %3457 = vmatprep.subr.bf16.mxu0 %v3144
      %3458 = vmatpush1.bf16.msra.mxu0 %v3143
      %3459 = vmatprep.subr.bf16.mxu0 %v3159
      %3460 = vmatpush1.bf16.msra.mxu0 %v3158
      %3461 = vmatprep.subr.bf16.mxu0 %v3174
      %3462 = vmatpush1.bf16.msra.mxu0 %v3173
      %3463 = vmatprep.subr.bf16.mxu0 %v3130
      %3464 = vmatpush1.bf16.msra.mxu0 %v3129
      %3465 = vmatprep.subr.bf16.mxu0 %v3145
      %3466 = vmatpush1.bf16.msra.mxu0 %v3144
      %3467 = vmatprep.subr.bf16.mxu0 %v3160
      %3468 = vmatpush1.bf16.msra.mxu0 %v3159
      %3469 = vmatprep.subr.bf16.mxu0 %v3175
      %3470 = vmatpush1.bf16.msra.mxu0 %v3174
      %3471 = vmatprep.subr.bf16.mxu0 %v3131
      %3472 = vmatpush1.bf16.msra.mxu0 %v3130
      %3473 = vmatprep.subr.bf16.mxu0 %v3146
      %3474 = vmatpush1.bf16.msra.mxu0 %v3145
      %3475 = vmatprep.subr.bf16.mxu0 %v3161
      %3476 = vmatpush1.bf16.msra.mxu0 %v3160
      %3477 = vmatprep.subr.bf16.mxu0 %v3176
      %3478 = vmatpush1.bf16.msra.mxu0 %v3175
      %3479 = vmatprep.subr.bf16.mxu0 0
      %3480 = vmatpush1.bf16.msra.mxu0 0
      %3481 = vmatprep.subr.bf16.mxu0 0
      %3482 = vmatpush1.bf16.msra.mxu0 0
      %3483 = vmatprep.subr.bf16.mxu0 0
      %3484 = vmatpush1.bf16.msra.mxu0 0
      %3485 = vmatprep.subr.bf16.mxu0 0
      %3486 = vmatpush1.bf16.msra.mxu0 0
      %3487 = vmatprep.mubr.bf16.mxu0 %v3225
      %3488 = vmatmul.mubr.bf16.gmra.mrb[0].mxu0 %v3211
      %v3489 = vpop.f32.mrb[0].mxu0
      %v3490 = vadd.f32 0.0, %v3489
      %v3491 = vpop.f32.mrb[0].mxu0
      %v3492 = vadd.f32 0.0, %v3491
      %v3493 = vpop.f32.mrb[0].mxu0
      %v3494 = vadd.f32 0.0, %v3493
      %v3495 = vpop.f32.mrb[0].mxu0
      %v3496 = vadd.f32 0.0, %v3495
      %3497 = vmatprep.mubr.bf16.mxu0 %v3228
      %3498 = vmatmul.mubr.bf16.gmra.mrb[0].mxu0 %v3213
      %v3499 = vpop.f32.mrb[0].mxu0
      %v3500 = vadd.f32 0.0, %v3499
      %v3501 = vpop.f32.mrb[0].mxu0
      %v3502 = vadd.f32 0.0, %v3501
      %v3503 = vpop.f32.mrb[0].mxu0
      %v3504 = vadd.f32 0.0, %v3503
      %v3505 = vpop.f32.mrb[0].mxu0
      %v3506 = vadd.f32 0.0, %v3505
      %3507 = vmatprep.mubr.bf16.mxu0 %v3231
      %3508 = vmatmul.mubr.bf16.gmra.mrb[0].mxu0 %v3215
      %v3509 = vpop.f32.mrb[0].mxu0
      %v3510 = vadd.f32 0.0, %v3509
      %v3511 = vpop.f32.mrb[0].mxu0
      %v3512 = vadd.f32 0.0, %v3511
      %v3513 = vpop.f32.mrb[0].mxu0
      %v3514 = vadd.f32 0.0, %v3513
      %v3515 = vpop.f32.mrb[0].mxu0
      %v3516 = vadd.f32 0.0, %v3515
      %3517 = vmatprep.mubr.bf16.mxu0 %v3234
      %3518 = vmatmul.mubr.bf16.gmra.mrb[0].mxu0 %v3217
      %v3519 = vpop.f32.mrb[0].mxu0
      %v3520 = vadd.f32 0.0, %v3519
      %v3521 = vpop.f32.mrb[0].mxu0
      %v3522 = vadd.f32 0.0, %v3521
      %v3523 = vpop.f32.mrb[0].mxu0
      %v3524 = vadd.f32 0.0, %v3523
      %v3525 = vpop.f32.mrb[0].mxu0
      %v3526 = vadd.f32 0.0, %v3525
      %3527 = vdwg.mxu0
      %3528 = vmatprep.subr.bf16.mxu0 %v3131
      %3529 = vmatpush1.bf16.msra.mxu0 %v3130
      %3530 = vmatprep.subr.bf16.mxu0 %v3146
      %3531 = vmatpush1.bf16.msra.mxu0 %v3145
      %3532 = vmatprep.subr.bf16.mxu0 %v3161
      %3533 = vmatpush1.bf16.msra.mxu0 %v3160
      %3534 = vmatprep.subr.bf16.mxu0 %v3176
      %3535 = vmatpush1.bf16.msra.mxu0 %v3175
      %3536 = vmatprep.subr.bf16.mxu0 %v3132
      %3537 = vmatpush1.bf16.msra.mxu0 %v3131
      %3538 = vmatprep.subr.bf16.mxu0 %v3147
      %3539 = vmatpush1.bf16.msra.mxu0 %v3146
      %3540 = vmatprep.subr.bf16.mxu0 %v3162
      %3541 = vmatpush1.bf16.msra.mxu0 %v3161
      %3542 = vmatprep.subr.bf16.mxu0 %v3177
      %3543 = vmatpush1.bf16.msra.mxu0 %v3176
      %3544 = vmatprep.subr.bf16.mxu0 %v3133
      %3545 = vmatpush1.bf16.msra.mxu0 %v3132
      %3546 = vmatprep.subr.bf16.mxu0 %v3148
      %3547 = vmatpush1.bf16.msra.mxu0 %v3147
      %3548 = vmatprep.subr.bf16.mxu0 %v3163
      %3549 = vmatpush1.bf16.msra.mxu0 %v3162
      %3550 = vmatprep.subr.bf16.mxu0 %v3178
      %3551 = vmatpush1.bf16.msra.mxu0 %v3177
      %3552 = vmatprep.subr.bf16.mxu0 0
      %3553 = vmatpush1.bf16.msra.mxu0 0
      %3554 = vmatprep.subr.bf16.mxu0 0
      %3555 = vmatpush1.bf16.msra.mxu0 0
      %3556 = vmatprep.subr.bf16.mxu0 0
      %3557 = vmatpush1.bf16.msra.mxu0 0
      %3558 = vmatprep.subr.bf16.mxu0 0
      %3559 = vmatpush1.bf16.msra.mxu0 0
      %3560 = vmatprep.mubr.bf16.mxu0 %v3225
      %3561 = vmatmul.mubr.bf16.gmra.mrb[0].mxu0 %v3211
      %v3562 = vpop.f32.mrb[0].mxu0
      %v3563 = vadd.f32 0.0, %v3562
      %v3564 = vpop.f32.mrb[0].mxu0
      %v3565 = vadd.f32 0.0, %v3564
      %v3566 = vpop.f32.mrb[0].mxu0
      %v3567 = vadd.f32 0.0, %v3566
      %v3568 = vpop.f32.mrb[0].mxu0
      %v3569 = vadd.f32 0.0, %v3568
      %3570 = vmatprep.mubr.bf16.mxu0 %v3228
      %3571 = vmatmul.mubr.bf16.gmra.mrb[0].mxu0 %v3213
      %v3572 = vpop.f32.mrb[0].mxu0
      %v3573 = vadd.f32 0.0, %v3572
      %v3574 = vpop.f32.mrb[0].mxu0
      %v3575 = vadd.f32 0.0, %v3574
      %v3576 = vpop.f32.mrb[0].mxu0
      %v3577 = vadd.f32 0.0, %v3576
      %v3578 = vpop.f32.mrb[0].mxu0
      %v3579 = vadd.f32 0.0, %v3578
      %3580 = vmatprep.mubr.bf16.mxu0 %v3231
      %3581 = vmatmul.mubr.bf16.gmra.mrb[0].mxu0 %v3215
      %v3582 = vpop.f32.mrb[0].mxu0
      %v3583 = vadd.f32 0.0, %v3582
      %v3584 = vpop.f32.mrb[0].mxu0
      %v3585 = vadd.f32 0.0, %v3584
      %v3586 = vpop.f32.mrb[0].mxu0
      %v3587 = vadd.f32 0.0, %v3586
      %v3588 = vpop.f32.mrb[0].mxu0
      %v3589 = vadd.f32 0.0, %v3588
      %3590 = vmatprep.mubr.bf16.mxu0 %v3234
      %3591 = vmatmul.mubr.bf16.gmra.mrb[0].mxu0 %v3217
      %v3592 = vpop.f32.mrb[0].mxu0
      %v3593 = vadd.f32 0.0, %v3592
      %v3594 = vpop.f32.mrb[0].mxu0
      %v3595 = vadd.f32 0.0, %v3594
      %v3596 = vpop.f32.mrb[0].mxu0
      %v3597 = vadd.f32 0.0, %v3596
      %v3598 = vpop.f32.mrb[0].mxu0
      %v3599 = vadd.f32 0.0, %v3598
      %3600 = vdwg.mxu0
      %3601 = vmatprep.subr.bf16.mxu0 %v3133
      %3602 = vmatpush1.bf16.msra.mxu0 %v3132
      %3603 = vmatprep.subr.bf16.mxu0 %v3148
      %3604 = vmatpush1.bf16.msra.mxu0 %v3147
      %3605 = vmatprep.subr.bf16.mxu0 %v3163
      %3606 = vmatpush1.bf16.msra.mxu0 %v3162
      %3607 = vmatprep.subr.bf16.mxu0 %v3178
      %3608 = vmatpush1.bf16.msra.mxu0 %v3177
      %3609 = vmatprep.subr.bf16.mxu0 %v3134
      %3610 = vmatpush1.bf16.msra.mxu0 %v3133
      %3611 = vmatprep.subr.bf16.mxu0 %v3149
      %3612 = vmatpush1.bf16.msra.mxu0 %v3148
      %3613 = vmatprep.subr.bf16.mxu0 %v3164
      %3614 = vmatpush1.bf16.msra.mxu0 %v3163
      %3615 = vmatprep.subr.bf16.mxu0 %v3179
      %3616 = vmatpush1.bf16.msra.mxu0 %v3178
      %3617 = vmatprep.subr.bf16.mxu0 %v3135
      %3618 = vmatpush1.bf16.msra.mxu0 %v3134
      %3619 = vmatprep.subr.bf16.mxu0 %v3150
      %3620 = vmatpush1.bf16.msra.mxu0 %v3149
      %3621 = vmatprep.subr.bf16.mxu0 %v3165
      %3622 = vmatpush1.bf16.msra.mxu0 %v3164
      %3623 = vmatprep.subr.bf16.mxu0 %v3180
      %3624 = vmatpush1.bf16.msra.mxu0 %v3179
      %3625 = vmatprep.subr.bf16.mxu0 0
      %3626 = vmatpush1.bf16.msra.mxu0 0
      %3627 = vmatprep.subr.bf16.mxu0 0
      %3628 = vmatpush1.bf16.msra.mxu0 0
      %3629 = vmatprep.subr.bf16.mxu0 0
      %3630 = vmatpush1.bf16.msra.mxu0 0
      %3631 = vmatprep.subr.bf16.mxu0 0
      %3632 = vmatpush1.bf16.msra.mxu0 0
      %3633 = vmatprep.mubr.bf16.mxu0 %v3225
      %3634 = vmatmul.mubr.bf16.gmra.mrb[0].mxu0 %v3211
      %v3635 = vpop.f32.mrb[0].mxu0
      %v3636 = vadd.f32 0.0, %v3635
      %v3637 = vpop.f32.mrb[0].mxu0
      %v3638 = vadd.f32 0.0, %v3637
      %v3639 = vpop.f32.mrb[0].mxu0
      %v3640 = vadd.f32 0.0, %v3639
      %v3641 = vpop.f32.mrb[0].mxu0
      %v3642 = vadd.f32 0.0, %v3641
      %3643 = vmatprep.mubr.bf16.mxu0 %v3228
      %3644 = vmatmul.mubr.bf16.gmra.mrb[0].mxu0 %v3213
      %v3645 = vpop.f32.mrb[0].mxu0
      %v3646 = vadd.f32 0.0, %v3645
      %v3647 = vpop.f32.mrb[0].mxu0
      %v3648 = vadd.f32 0.0, %v3647
      %v3649 = vpop.f32.mrb[0].mxu0
      %v3650 = vadd.f32 0.0, %v3649
      %v3651 = vpop.f32.mrb[0].mxu0
      %v3652 = vadd.f32 0.0, %v3651
      %3653 = vmatprep.mubr.bf16.mxu0 %v3231
      %3654 = vmatmul.mubr.bf16.gmra.mrb[0].mxu0 %v3215
      %v3655 = vpop.f32.mrb[0].mxu0
      %v3656 = vadd.f32 0.0, %v3655
      %v3657 = vpop.f32.mrb[0].mxu0
      %v3658 = vadd.f32 0.0, %v3657
      %v3659 = vpop.f32.mrb[0].mxu0
      %v3660 = vadd.f32 0.0, %v3659
      %v3661 = vpop.f32.mrb[0].mxu0
      %v3662 = vadd.f32 0.0, %v3661
      %3663 = vmatprep.mubr.bf16.mxu0 %v3234
      %3664 = vmatmul.mubr.bf16.gmra.mrb[0].mxu0 %v3217
      %v3665 = vpop.f32.mrb[0].mxu0
      %v3666 = vadd.f32 0.0, %v3665
      %v3667 = vpop.f32.mrb[0].mxu0
      %v3668 = vadd.f32 0.0, %v3667
      %v3669 = vpop.f32.mrb[0].mxu0
      %v3670 = vadd.f32 0.0, %v3669
      %v3671 = vpop.f32.mrb[0].mxu0
      %v3672 = vadd.f32 0.0, %v3671
      %3673 = vdwg.mxu0
      %3674 = vmatprep.subr.bf16.mxu0 %v3135
      %3675 = vmatpush1.bf16.msra.mxu0 %v3134
      %3676 = vmatprep.subr.bf16.mxu0 %v3150
      %3677 = vmatpush1.bf16.msra.mxu0 %v3149
      %3678 = vmatprep.subr.bf16.mxu0 %v3165
      %3679 = vmatpush1.bf16.msra.mxu0 %v3164
      %3680 = vmatprep.subr.bf16.mxu0 %v3180
      %3681 = vmatpush1.bf16.msra.mxu0 %v3179
      %3682 = vmatprep.subr.bf16.mxu0 %v3136
      %3683 = vmatpush1.bf16.msra.mxu0 %v3135
      %3684 = vmatprep.subr.bf16.mxu0 %v3151
      %3685 = vmatpush1.bf16.msra.mxu0 %v3150
      %3686 = vmatprep.subr.bf16.mxu0 %v3166
      %3687 = vmatpush1.bf16.msra.mxu0 %v3165
      %3688 = vmatprep.subr.bf16.mxu0 %v3181
      %3689 = vmatpush1.bf16.msra.mxu0 %v3180
      %3690 = vmatprep.subr.bf16.mxu0 %v3137
      %3691 = vmatpush1.bf16.msra.mxu0 %v3136
      %3692 = vmatprep.subr.bf16.mxu0 %v3152
      %3693 = vmatpush1.bf16.msra.mxu0 %v3151
      %3694 = vmatprep.subr.bf16.mxu0 %v3167
      %3695 = vmatpush1.bf16.msra.mxu0 %v3166
      %3696 = vmatprep.subr.bf16.mxu0 %v3182
      %3697 = vmatpush1.bf16.msra.mxu0 %v3181
      %3698 = vmatprep.subr.bf16.mxu0 0
      %3699 = vmatpush1.bf16.msra.mxu0 0
      %3700 = vmatprep.subr.bf16.mxu0 0
      %3701 = vmatpush1.bf16.msra.mxu0 0
      %3702 = vmatprep.subr.bf16.mxu0 0
      %3703 = vmatpush1.bf16.msra.mxu0 0
      %3704 = vmatprep.subr.bf16.mxu0 0
      %3705 = vmatpush1.bf16.msra.mxu0 0
      %3706 = vmatprep.mubr.bf16.mxu0 %v3225
      %3707 = vmatmul.mubr.bf16.gmra.mrb[0].mxu0 %v3211
      %v3708 = vpop.f32.mrb[0].mxu0
      %v3709 = vadd.f32 0.0, %v3708
      %v3710 = vpop.f32.mrb[0].mxu0
      %v3711 = vadd.f32 0.0, %v3710
      %v3712 = vpop.f32.mrb[0].mxu0
      %v3713 = vadd.f32 0.0, %v3712
      %v3714 = vpop.f32.mrb[0].mxu0
      %v3715 = vadd.f32 0.0, %v3714
      %3716 = vmatprep.mubr.bf16.mxu0 %v3228
      %3717 = vmatmul.mubr.bf16.gmra.mrb[0].mxu0 %v3213
      %v3718 = vpop.f32.mrb[0].mxu0
      %v3719 = vadd.f32 0.0, %v3718
      %v3720 = vpop.f32.mrb[0].mxu0
      %v3721 = vadd.f32 0.0, %v3720
      %v3722 = vpop.f32.mrb[0].mxu0
      %v3723 = vadd.f32 0.0, %v3722
      %v3724 = vpop.f32.mrb[0].mxu0
      %v3725 = vadd.f32 0.0, %v3724
      %3726 = vmatprep.mubr.bf16.mxu0 %v3231
      %3727 = vmatmul.mubr.bf16.gmra.mrb[0].mxu0 %v3215
      %v3728 = vpop.f32.mrb[0].mxu0
      %v3729 = vadd.f32 0.0, %v3728
      %v3730 = vpop.f32.mrb[0].mxu0
      %v3731 = vadd.f32 0.0, %v3730
      %v3732 = vpop.f32.mrb[0].mxu0
      %v3733 = vadd.f32 0.0, %v3732
      %v3734 = vpop.f32.mrb[0].mxu0
      %v3735 = vadd.f32 0.0, %v3734
      %3736 = vmatprep.mubr.bf16.mxu0 %v3234
      %3737 = vmatmul.mubr.bf16.gmra.mrb[0].mxu0 %v3217
      %v3738 = vpop.f32.mrb[0].mxu0
      %v3739 = vadd.f32 0.0, %v3738
      %v3740 = vpop.f32.mrb[0].mxu0
      %v3741 = vadd.f32 0.0, %v3740
      %v3742 = vpop.f32.mrb[0].mxu0
      %v3743 = vadd.f32 0.0, %v3742
      %v3744 = vpop.f32.mrb[0].mxu0
      %v3745 = vadd.f32 0.0, %v3744
      %3746 = vdwg.mxu0
      %3747 = vmatprep.subr.bf16.mxu0 %v3137
      %3748 = vmatpush1.bf16.msra.mxu0 %v3136
      %3749 = vmatprep.subr.bf16.mxu0 %v3152
      %3750 = vmatpush1.bf16.msra.mxu0 %v3151
      %3751 = vmatprep.subr.bf16.mxu0 %v3167
      %3752 = vmatpush1.bf16.msra.mxu0 %v3166
      %3753 = vmatprep.subr.bf16.mxu0 %v3182
      %3754 = vmatpush1.bf16.msra.mxu0 %v3181
      %3755 = vmatprep.subr.bf16.mxu0 %v3183
      %3756 = vmatpush1.bf16.msra.mxu0 %v3137
      %3757 = vmatprep.subr.bf16.mxu0 %v3184
      %3758 = vmatpush1.bf16.msra.mxu0 %v3152
      %3759 = vmatprep.subr.bf16.mxu0 %v3185
      %3760 = vmatpush1.bf16.msra.mxu0 %v3167
      %3761 = vmatprep.subr.bf16.mxu0 %v3186
      %3762 = vmatpush1.bf16.msra.mxu0 %v3182
      %3763 = vmatprep.subr.bf16.mxu0 %v768
      %3764 = vmatpush1.bf16.msra.mxu0 %v3183
      %3765 = vmatprep.subr.bf16.mxu0 %v768
      %3766 = vmatpush1.bf16.msra.mxu0 %v3184
      %3767 = vmatprep.subr.bf16.mxu0 %v768
      %3768 = vmatpush1.bf16.msra.mxu0 %v3185
      %3769 = vmatprep.subr.bf16.mxu0 %v768
      %3770 = vmatpush1.bf16.msra.mxu0 %v3186
      %3771 = vmatprep.subr.bf16.mxu0 0
      %3772 = vmatpush1.bf16.msra.mxu0 0
      %3773 = vmatprep.subr.bf16.mxu0 0
      %3774 = vmatpush1.bf16.msra.mxu0 0
      %3775 = vmatprep.subr.bf16.mxu0 0
      %3776 = vmatpush1.bf16.msra.mxu0 0
      %3777 = vmatprep.subr.bf16.mxu0 0
      %3778 = vmatpush1.bf16.msra.mxu0 0
      %3779 = vmatprep.mubr.bf16.mxu0 %v3225
      %3780 = vmatmul.mubr.bf16.gmra.mrb[0].mxu0 %v3211
      %v3781 = vpop.f32.mrb[0].mxu0
      %v3782 = vadd.f32 0.0, %v3781
      %v3783 = vpop.f32.mrb[0].mxu0
      %v3784 = vadd.f32 0.0, %v3783
      %v3785 = vpop.f32.mrb[0].mxu0
      %v3786 = vadd.f32 0.0, %v3785
      %v3787 = vpop.f32.mrb[0].mxu0
      %v3788 = vadd.f32 0.0, %v3787
      %3789 = vmatprep.mubr.bf16.mxu0 %v3228
      %3790 = vmatmul.mubr.bf16.gmra.mrb[0].mxu0 %v3213
      %v3791 = vpop.f32.mrb[0].mxu0
      %v3792 = vadd.f32 0.0, %v3791
      %v3793 = vpop.f32.mrb[0].mxu0
      %v3794 = vadd.f32 0.0, %v3793
      %v3795 = vpop.f32.mrb[0].mxu0
      %v3796 = vadd.f32 0.0, %v3795
      %v3797 = vpop.f32.mrb[0].mxu0
      %v3798 = vadd.f32 0.0, %v3797
      %3799 = vmatprep.mubr.bf16.mxu0 %v3231
      %3800 = vmatmul.mubr.bf16.gmra.mrb[0].mxu0 %v3215
      %v3801 = vpop.f32.mrb[0].mxu0
      %v3802 = vadd.f32 0.0, %v3801
      %v3803 = vpop.f32.mrb[0].mxu0
      %v3804 = vadd.f32 0.0, %v3803
      %v3805 = vpop.f32.mrb[0].mxu0
      %v3806 = vadd.f32 0.0, %v3805
      %v3807 = vpop.f32.mrb[0].mxu0
      %v3808 = vadd.f32 0.0, %v3807
      %3809 = vmatprep.mubr.bf16.mxu0 %v3234
      %3810 = vmatmul.mubr.bf16.gmra.mrb[0].mxu0 %v3217
      %v3811 = vpop.f32.mrb[0].mxu0
      %v3812 = vadd.f32 0.0, %v3811
      %v3813 = vpop.f32.mrb[0].mxu0
      %v3814 = vadd.f32 0.0, %v3813
      %v3815 = vpop.f32.mrb[0].mxu0
      %v3816 = vadd.f32 0.0, %v3815
      %v3817 = vpop.f32.mrb[0].mxu0
      %v3818 = vadd.f32 0.0, %v3817
      %3819 = vdwg.mxu0
      %3821 = vset.pattern.permute.xlu0 0
      %3822 = vperm.xlu0 %3821, %v3107
      %v3823 = vpop.permute.xlu0 %3822
      %3826 = vset.pattern.permute.xlu0 0
      %3827 = vperm.xlu0 %3826, %v3108
      %v3828 = vpop.permute.xlu0 %3827
      %3831 = vset.pattern.permute.xlu0 0
      %3832 = vperm.xlu0 %3831, %v3109
      %v3833 = vpop.permute.xlu0 %3832
      %3836 = vset.pattern.permute.xlu0 0
      %3837 = vperm.xlu0 %3836, %v3110
      %v3838 = vpop.permute.xlu0 %3837
      %3841 = vset.pattern.permute.xlu0 0
      %3842 = vperm.xlu0 %3841, %v3111
      %v3843 = vpop.permute.xlu0 %3842
      %3846 = vset.pattern.permute.xlu0 0
      %3847 = vperm.xlu0 %3846, %v3112
      %v3848 = vpop.permute.xlu0 %3847
      %3851 = vset.pattern.permute.xlu0 0
      %3852 = vperm.xlu0 %3851, %v3113
      %v3853 = vpop.permute.xlu0 %3852
      %3856 = vset.pattern.permute.xlu0 0
      %3857 = vperm.xlu0 %3856, %v3114
      %v3858 = vpop.permute.xlu0 %3857
      %v3860 = vmul.f32 %v3271, %v3823
      %v3861 = vmul.f32 %v3273, %v3823
      %v3862 = vmul.f32 %v3344, %v3823
      %v3863 = vmul.f32 %v3346, %v3823
      %v3864 = vmul.f32 %v3417, %v3823
      %v3865 = vmul.f32 %v3419, %v3823
      %v3866 = vmul.f32 %v3490, %v3823
      %v3867 = vmul.f32 %v3492, %v3823
      %v3868 = vmul.f32 %v3563, %v3823
      %v3869 = vmul.f32 %v3565, %v3823
      %v3870 = vmul.f32 %v3636, %v3823
      %v3871 = vmul.f32 %v3638, %v3823
      %v3872 = vmul.f32 %v3709, %v3823
      %v3873 = vmul.f32 %v3711, %v3823
      %v3874 = vmul.f32 %v3782, %v3823
      %v3875 = vmul.f32 %v3784, %v3823
      %v3876 = vmul.f32 %v3275, %v3828
      %v3877 = vmul.f32 %v3277, %v3828
      %v3878 = vmul.f32 %v3348, %v3828
      %v3879 = vmul.f32 %v3350, %v3828
      %v3880 = vmul.f32 %v3421, %v3828
      %v3881 = vmul.f32 %v3423, %v3828
      %v3882 = vmul.f32 %v3494, %v3828
      %v3883 = vmul.f32 %v3496, %v3828
      %v3884 = vmul.f32 %v3567, %v3828
      %v3885 = vmul.f32 %v3569, %v3828
      %v3886 = vmul.f32 %v3640, %v3828
      %v3887 = vmul.f32 %v3642, %v3828
      %v3888 = vmul.f32 %v3713, %v3828
      %v3889 = vmul.f32 %v3715, %v3828
      %v3890 = vmul.f32 %v3786, %v3828
      %v3891 = vmul.f32 %v3788, %v3828
      %v3892 = vmul.f32 %v3281, %v3833
      %v3893 = vmul.f32 %v3283, %v3833
      %v3894 = vmul.f32 %v3354, %v3833
      %v3895 = vmul.f32 %v3356, %v3833
      %v3896 = vmul.f32 %v3427, %v3833
      %v3897 = vmul.f32 %v3429, %v3833
      %v3898 = vmul.f32 %v3500, %v3833
      %v3899 = vmul.f32 %v3502, %v3833
      %v3900 = vmul.f32 %v3573, %v3833
      %v3901 = vmul.f32 %v3575, %v3833
      %v3902 = vmul.f32 %v3646, %v3833
      %v3903 = vmul.f32 %v3648, %v3833
      %v3904 = vmul.f32 %v3719, %v3833
      %v3905 = vmul.f32 %v3721, %v3833
      %v3906 = vmul.f32 %v3792, %v3833
      %v3907 = vmul.f32 %v3794, %v3833
      %v3908 = vmul.f32 %v3285, %v3838
      %v3909 = vmul.f32 %v3287, %v3838
      %v3910 = vmul.f32 %v3358, %v3838
      %v3911 = vmul.f32 %v3360, %v3838
      %v3912 = vmul.f32 %v3431, %v3838
      %v3913 = vmul.f32 %v3433, %v3838
      %v3914 = vmul.f32 %v3504, %v3838
      %v3915 = vmul.f32 %v3506, %v3838
      %v3916 = vmul.f32 %v3577, %v3838
      %v3917 = vmul.f32 %v3579, %v3838
      %v3918 = vmul.f32 %v3650, %v3838
      %v3919 = vmul.f32 %v3652, %v3838
      %v3920 = vmul.f32 %v3723, %v3838
      %v3921 = vmul.f32 %v3725, %v3838
      %v3922 = vmul.f32 %v3796, %v3838
      %v3923 = vmul.f32 %v3798, %v3838
      %v3924 = vmul.f32 %v3291, %v3843
      %v3925 = vmul.f32 %v3293, %v3843
      %v3926 = vmul.f32 %v3364, %v3843
      %v3927 = vmul.f32 %v3366, %v3843
      %v3928 = vmul.f32 %v3437, %v3843
      %v3929 = vmul.f32 %v3439, %v3843
      %v3930 = vmul.f32 %v3510, %v3843
      %v3931 = vmul.f32 %v3512, %v3843
      %v3932 = vmul.f32 %v3583, %v3843
      %v3933 = vmul.f32 %v3585, %v3843
      %v3934 = vmul.f32 %v3656, %v3843
      %v3935 = vmul.f32 %v3658, %v3843
      %v3936 = vmul.f32 %v3729, %v3843
      %v3937 = vmul.f32 %v3731, %v3843
      %v3938 = vmul.f32 %v3802, %v3843
      %v3939 = vmul.f32 %v3804, %v3843
      %v3940 = vmul.f32 %v3295, %v3848
      %v3941 = vmul.f32 %v3297, %v3848
      %v3942 = vmul.f32 %v3368, %v3848
      %v3943 = vmul.f32 %v3370, %v3848
      %v3944 = vmul.f32 %v3441, %v3848
      %v3945 = vmul.f32 %v3443, %v3848
      %v3946 = vmul.f32 %v3514, %v3848
      %v3947 = vmul.f32 %v3516, %v3848
      %v3948 = vmul.f32 %v3587, %v3848
      %v3949 = vmul.f32 %v3589, %v3848
      %v3950 = vmul.f32 %v3660, %v3848
      %v3951 = vmul.f32 %v3662, %v3848
      %v3952 = vmul.f32 %v3733, %v3848
      %v3953 = vmul.f32 %v3735, %v3848
      %v3954 = vmul.f32 %v3806, %v3848
      %v3955 = vmul.f32 %v3808, %v3848
      %v3956 = vmul.f32 %v3301, %v3853
      %v3957 = vmul.f32 %v3303, %v3853
      %v3958 = vmul.f32 %v3374, %v3853
      %v3959 = vmul.f32 %v3376, %v3853
      %v3960 = vmul.f32 %v3447, %v3853
      %v3961 = vmul.f32 %v3449, %v3853
      %v3962 = vmul.f32 %v3520, %v3853
      %v3963 = vmul.f32 %v3522, %v3853
      %v3964 = vmul.f32 %v3593, %v3853
      %v3965 = vmul.f32 %v3595, %v3853
      %v3966 = vmul.f32 %v3666, %v3853
      %v3967 = vmul.f32 %v3668, %v3853
      %v3968 = vmul.f32 %v3739, %v3853
      %v3969 = vmul.f32 %v3741, %v3853
      %v3970 = vmul.f32 %v3812, %v3853
      %v3971 = vmul.f32 %v3814, %v3853
      %v3972 = vmul.f32 %v3305, %v3858
      %v3973 = vmul.f32 %v3307, %v3858
      %v3974 = vmul.f32 %v3378, %v3858
      %v3975 = vmul.f32 %v3380, %v3858
      %v3976 = vmul.f32 %v3451, %v3858
      %v3977 = vmul.f32 %v3453, %v3858
      %v3978 = vmul.f32 %v3524, %v3858
      %v3979 = vmul.f32 %v3526, %v3858
      %v3980 = vmul.f32 %v3597, %v3858
      %v3981 = vmul.f32 %v3599, %v3858
      %v3982 = vmul.f32 %v3670, %v3858
      %v3983 = vmul.f32 %v3672, %v3858
      %v3984 = vmul.f32 %v3743, %v3858
      %v3985 = vmul.f32 %v3745, %v3858
      %v3986 = vmul.f32 %v3816, %v3858
      %v3987 = vmul.f32 %v3818, %v3858
      %3989 = vset.pattern.permute.xlu0 0
      %3990 = vperm.xlu0 %3989, %v3115
      %v3991 = vpop.permute.xlu0 %3990
      %3994 = vset.pattern.permute.xlu0 0
      %3995 = vperm.xlu0 %3994, %v3116
      %v3996 = vpop.permute.xlu0 %3995
      %3999 = vset.pattern.permute.xlu0 0
      %4000 = vperm.xlu0 %3999, %v3117
      %v4001 = vpop.permute.xlu0 %4000
      %4004 = vset.pattern.permute.xlu0 0
      %4005 = vperm.xlu0 %4004, %v3118
      %v4006 = vpop.permute.xlu0 %4005
      %4009 = vset.pattern.permute.xlu0 0
      %4010 = vperm.xlu0 %4009, %v3119
      %v4011 = vpop.permute.xlu0 %4010
      %4014 = vset.pattern.permute.xlu0 0
      %4015 = vperm.xlu0 %4014, %v3120
      %v4016 = vpop.permute.xlu0 %4015
      %4019 = vset.pattern.permute.xlu0 0
      %4020 = vperm.xlu0 %4019, %v3121
      %v4021 = vpop.permute.xlu0 %4020
      %4024 = vset.pattern.permute.xlu0 0
      %4025 = vperm.xlu0 %4024, %v3122
      %v4026 = vpop.permute.xlu0 %4025
      %v4028 = vadd.f32 %v3860, %v3991
      %v4029 = vadd.f32 %v3861, %v3991
      %v4030 = vadd.f32 %v3862, %v3991
      %v4031 = vadd.f32 %v3863, %v3991
      %v4032 = vadd.f32 %v3864, %v3991
      %v4033 = vadd.f32 %v3865, %v3991
      %v4034 = vadd.f32 %v3866, %v3991
      %v4035 = vadd.f32 %v3867, %v3991
      %v4036 = vadd.f32 %v3868, %v3991
      %v4037 = vadd.f32 %v3869, %v3991
      %v4038 = vadd.f32 %v3870, %v3991
      %v4039 = vadd.f32 %v3871, %v3991
      %v4040 = vadd.f32 %v3872, %v3991
      %v4041 = vadd.f32 %v3873, %v3991
      %v4042 = vadd.f32 %v3874, %v3991
      %v4043 = vadd.f32 %v3875, %v3991
      %v4044 = vadd.f32 %v3876, %v3996
      %v4045 = vadd.f32 %v3877, %v3996
      %v4046 = vadd.f32 %v3878, %v3996
      %v4047 = vadd.f32 %v3879, %v3996
      %v4048 = vadd.f32 %v3880, %v3996
      %v4049 = vadd.f32 %v3881, %v3996
      %v4050 = vadd.f32 %v3882, %v3996
      %v4051 = vadd.f32 %v3883, %v3996
      %v4052 = vadd.f32 %v3884, %v3996
      %v4053 = vadd.f32 %v3885, %v3996
      %v4054 = vadd.f32 %v3886, %v3996
      %v4055 = vadd.f32 %v3887, %v3996
      %v4056 = vadd.f32 %v3888, %v3996
      %v4057 = vadd.f32 %v3889, %v3996
      %v4058 = vadd.f32 %v3890, %v3996
      %v4059 = vadd.f32 %v3891, %v3996
      %v4060 = vadd.f32 %v3892, %v4001
      %v4061 = vadd.f32 %v3893, %v4001
      %v4062 = vadd.f32 %v3894, %v4001
      %v4063 = vadd.f32 %v3895, %v4001
      %v4064 = vadd.f32 %v3896, %v4001
      %v4065 = vadd.f32 %v3897, %v4001
      %v4066 = vadd.f32 %v3898, %v4001
      %v4067 = vadd.f32 %v3899, %v4001
      %v4068 = vadd.f32 %v3900, %v4001
      %v4069 = vadd.f32 %v3901, %v4001
      %v4070 = vadd.f32 %v3902, %v4001
      %v4071 = vadd.f32 %v3903, %v4001
      %v4072 = vadd.f32 %v3904, %v4001
      %v4073 = vadd.f32 %v3905, %v4001
      %v4074 = vadd.f32 %v3906, %v4001
      %v4075 = vadd.f32 %v3907, %v4001
      %v4076 = vadd.f32 %v3908, %v4006
      %v4077 = vadd.f32 %v3909, %v4006
      %v4078 = vadd.f32 %v3910, %v4006
      %v4079 = vadd.f32 %v3911, %v4006
      %v4080 = vadd.f32 %v3912, %v4006
      %v4081 = vadd.f32 %v3913, %v4006
      %v4082 = vadd.f32 %v3914, %v4006
      %v4083 = vadd.f32 %v3915, %v4006
      %v4084 = vadd.f32 %v3916, %v4006
      %v4085 = vadd.f32 %v3917, %v4006
      %v4086 = vadd.f32 %v3918, %v4006
      %v4087 = vadd.f32 %v3919, %v4006
      %v4088 = vadd.f32 %v3920, %v4006
      %v4089 = vadd.f32 %v3921, %v4006
      %v4090 = vadd.f32 %v3922, %v4006
      %v4091 = vadd.f32 %v3923, %v4006
      %v4092 = vadd.f32 %v3924, %v4011
      %v4093 = vadd.f32 %v3925, %v4011
      %v4094 = vadd.f32 %v3926, %v4011
      %v4095 = vadd.f32 %v3927, %v4011
      %v4096 = vadd.f32 %v3928, %v4011
      %v4097 = vadd.f32 %v3929, %v4011
      %v4098 = vadd.f32 %v3930, %v4011
      %v4099 = vadd.f32 %v3931, %v4011
      %v4100 = vadd.f32 %v3932, %v4011
      %v4101 = vadd.f32 %v3933, %v4011
      %v4102 = vadd.f32 %v3934, %v4011
      %v4103 = vadd.f32 %v3935, %v4011
      %v4104 = vadd.f32 %v3936, %v4011
      %v4105 = vadd.f32 %v3937, %v4011
      %v4106 = vadd.f32 %v3938, %v4011
      %v4107 = vadd.f32 %v3939, %v4011
      %v4108 = vadd.f32 %v3940, %v4016
      %v4109 = vadd.f32 %v3941, %v4016
      %v4110 = vadd.f32 %v3942, %v4016
      %v4111 = vadd.f32 %v3943, %v4016
      %v4112 = vadd.f32 %v3944, %v4016
      %v4113 = vadd.f32 %v3945, %v4016
      %v4114 = vadd.f32 %v3946, %v4016
      %v4115 = vadd.f32 %v3947, %v4016
      %v4116 = vadd.f32 %v3948, %v4016
      %v4117 = vadd.f32 %v3949, %v4016
      %v4118 = vadd.f32 %v3950, %v4016
      %v4119 = vadd.f32 %v3951, %v4016
      %v4120 = vadd.f32 %v3952, %v4016
      %v4121 = vadd.f32 %v3953, %v4016
      %v4122 = vadd.f32 %v3954, %v4016
      %v4123 = vadd.f32 %v3955, %v4016
      %v4124 = vadd.f32 %v3956, %v4021
      %v4125 = vadd.f32 %v3957, %v4021
      %v4126 = vadd.f32 %v3958, %v4021
      %v4127 = vadd.f32 %v3959, %v4021
      %v4128 = vadd.f32 %v3960, %v4021
      %v4129 = vadd.f32 %v3961, %v4021
      %v4130 = vadd.f32 %v3962, %v4021
      %v4131 = vadd.f32 %v3963, %v4021
      %v4132 = vadd.f32 %v3964, %v4021
      %v4133 = vadd.f32 %v3965, %v4021
      %v4134 = vadd.f32 %v3966, %v4021
      %v4135 = vadd.f32 %v3967, %v4021
      %v4136 = vadd.f32 %v3968, %v4021
      %v4137 = vadd.f32 %v3969, %v4021
      %v4138 = vadd.f32 %v3970, %v4021
      %v4139 = vadd.f32 %v3971, %v4021
      %v4140 = vadd.f32 %v3972, %v4026
      %v4141 = vadd.f32 %v3973, %v4026
      %v4142 = vadd.f32 %v3974, %v4026
      %v4143 = vadd.f32 %v3975, %v4026
      %v4144 = vadd.f32 %v3976, %v4026
      %v4145 = vadd.f32 %v3977, %v4026
      %v4146 = vadd.f32 %v3978, %v4026
      %v4147 = vadd.f32 %v3979, %v4026
      %v4148 = vadd.f32 %v3980, %v4026
      %v4149 = vadd.f32 %v3981, %v4026
      %v4150 = vadd.f32 %v3982, %v4026
      %v4151 = vadd.f32 %v3983, %v4026
      %v4152 = vadd.f32 %v3984, %v4026
      %v4153 = vadd.f32 %v3985, %v4026
      %v4154 = vadd.f32 %v3986, %v4026
      %v4155 = vadd.f32 %v3987, %v4026
      %v4156 = vmax.f32 %v4028, 0.0
      %v4157 = vmax.f32 %v4029, 0.0
      %v4158 = vmax.f32 %v4030, 0.0
      %v4159 = vmax.f32 %v4031, 0.0
      %v4160 = vmax.f32 %v4032, 0.0
      %v4161 = vmax.f32 %v4033, 0.0
      %v4162 = vmax.f32 %v4034, 0.0
      %v4163 = vmax.f32 %v4035, 0.0
      %v4164 = vmax.f32 %v4036, 0.0
      %v4165 = vmax.f32 %v4037, 0.0
      %v4166 = vmax.f32 %v4038, 0.0
      %v4167 = vmax.f32 %v4039, 0.0
      %v4168 = vmax.f32 %v4040, 0.0
      %v4169 = vmax.f32 %v4041, 0.0
      %v4170 = vmax.f32 %v4042, 0.0
      %v4171 = vmax.f32 %v4043, 0.0
      %v4172 = vmax.f32 %v4044, 0.0
      %v4173 = vmax.f32 %v4045, 0.0
      %v4174 = vmax.f32 %v4046, 0.0
      %v4175 = vmax.f32 %v4047, 0.0
      %v4176 = vmax.f32 %v4048, 0.0
      %v4177 = vmax.f32 %v4049, 0.0
      %v4178 = vmax.f32 %v4050, 0.0
      %v4179 = vmax.f32 %v4051, 0.0
      %v4180 = vmax.f32 %v4052, 0.0
      %v4181 = vmax.f32 %v4053, 0.0
      %v4182 = vmax.f32 %v4054, 0.0
      %v4183 = vmax.f32 %v4055, 0.0
      %v4184 = vmax.f32 %v4056, 0.0
      %v4185 = vmax.f32 %v4057, 0.0
      %v4186 = vmax.f32 %v4058, 0.0
      %v4187 = vmax.f32 %v4059, 0.0
      %v4188 = vmax.f32 %v4060, 0.0
      %v4189 = vmax.f32 %v4061, 0.0
      %v4190 = vmax.f32 %v4062, 0.0
      %v4191 = vmax.f32 %v4063, 0.0
      %v4192 = vmax.f32 %v4064, 0.0
      %v4193 = vmax.f32 %v4065, 0.0
      %v4194 = vmax.f32 %v4066, 0.0
      %v4195 = vmax.f32 %v4067, 0.0
      %v4196 = vmax.f32 %v4068, 0.0
      %v4197 = vmax.f32 %v4069, 0.0
      %v4198 = vmax.f32 %v4070, 0.0
      %v4199 = vmax.f32 %v4071, 0.0
      %v4200 = vmax.f32 %v4072, 0.0
      %v4201 = vmax.f32 %v4073, 0.0
      %v4202 = vmax.f32 %v4074, 0.0
      %v4203 = vmax.f32 %v4075, 0.0
      %v4204 = vmax.f32 %v4076, 0.0
      %v4205 = vmax.f32 %v4077, 0.0
      %v4206 = vmax.f32 %v4078, 0.0
      %v4207 = vmax.f32 %v4079, 0.0
      %v4208 = vmax.f32 %v4080, 0.0
      %v4209 = vmax.f32 %v4081, 0.0
      %v4210 = vmax.f32 %v4082, 0.0
      %v4211 = vmax.f32 %v4083, 0.0
      %v4212 = vmax.f32 %v4084, 0.0
      %v4213 = vmax.f32 %v4085, 0.0
      %v4214 = vmax.f32 %v4086, 0.0
      %v4215 = vmax.f32 %v4087, 0.0
      %v4216 = vmax.f32 %v4088, 0.0
      %v4217 = vmax.f32 %v4089, 0.0
      %v4218 = vmax.f32 %v4090, 0.0
      %v4219 = vmax.f32 %v4091, 0.0
      %v4220 = vmax.f32 %v4092, 0.0
      %v4221 = vmax.f32 %v4093, 0.0
      %v4222 = vmax.f32 %v4094, 0.0
      %v4223 = vmax.f32 %v4095, 0.0
      %v4224 = vmax.f32 %v4096, 0.0
      %v4225 = vmax.f32 %v4097, 0.0
      %v4226 = vmax.f32 %v4098, 0.0
      %v4227 = vmax.f32 %v4099, 0.0
      %v4228 = vmax.f32 %v4100, 0.0
      %v4229 = vmax.f32 %v4101, 0.0
      %v4230 = vmax.f32 %v4102, 0.0
      %v4231 = vmax.f32 %v4103, 0.0
      %v4232 = vmax.f32 %v4104, 0.0
      %v4233 = vmax.f32 %v4105, 0.0
      %v4234 = vmax.f32 %v4106, 0.0
      %v4235 = vmax.f32 %v4107, 0.0
      %v4236 = vmax.f32 %v4108, 0.0
      %v4237 = vmax.f32 %v4109, 0.0
      %v4238 = vmax.f32 %v4110, 0.0
      %v4239 = vmax.f32 %v4111, 0.0
      %v4240 = vmax.f32 %v4112, 0.0
      %v4241 = vmax.f32 %v4113, 0.0
      %v4242 = vmax.f32 %v4114, 0.0
      %v4243 = vmax.f32 %v4115, 0.0
      %v4244 = vmax.f32 %v4116, 0.0
      %v4245 = vmax.f32 %v4117, 0.0
      %v4246 = vmax.f32 %v4118, 0.0
      %v4247 = vmax.f32 %v4119, 0.0
      %v4248 = vmax.f32 %v4120, 0.0
      %v4249 = vmax.f32 %v4121, 0.0
      %v4250 = vmax.f32 %v4122, 0.0
      %v4251 = vmax.f32 %v4123, 0.0
      %v4252 = vmax.f32 %v4124, 0.0
      %v4253 = vmax.f32 %v4125, 0.0
      %v4254 = vmax.f32 %v4126, 0.0
      %v4255 = vmax.f32 %v4127, 0.0
      %v4256 = vmax.f32 %v4128, 0.0
      %v4257 = vmax.f32 %v4129, 0.0
      %v4258 = vmax.f32 %v4130, 0.0
      %v4259 = vmax.f32 %v4131, 0.0
      %v4260 = vmax.f32 %v4132, 0.0
      %v4261 = vmax.f32 %v4133, 0.0
      %v4262 = vmax.f32 %v4134, 0.0
      %v4263 = vmax.f32 %v4135, 0.0
      %v4264 = vmax.f32 %v4136, 0.0
      %v4265 = vmax.f32 %v4137, 0.0
      %v4266 = vmax.f32 %v4138, 0.0
      %v4267 = vmax.f32 %v4139, 0.0
      %v4268 = vmax.f32 %v4140, 0.0
      %v4269 = vmax.f32 %v4141, 0.0
      %v4270 = vmax.f32 %v4142, 0.0
      %v4271 = vmax.f32 %v4143, 0.0
      %v4272 = vmax.f32 %v4144, 0.0
      %v4273 = vmax.f32 %v4145, 0.0
      %v4274 = vmax.f32 %v4146, 0.0
      %v4275 = vmax.f32 %v4147, 0.0
      %v4276 = vmax.f32 %v4148, 0.0
      %v4277 = vmax.f32 %v4149, 0.0
      %v4278 = vmax.f32 %v4150, 0.0
      %v4279 = vmax.f32 %v4151, 0.0
      %v4280 = vmax.f32 %v4152, 0.0
      %v4281 = vmax.f32 %v4153, 0.0
      %v4282 = vmax.f32 %v4154, 0.0
      %v4283 = vmax.f32 %v4155, 0.0
      %v4284 = vmax.f32 %v4156, %v4157
      %v4285 = vmax.f32 %v4172, %v4173
      %v4286 = vmax.f32 %v4188, %v4189
      %v4287 = vmax.f32 %v4204, %v4205
      %v4288 = vmax.f32 %v4220, %v4221
      %v4289 = vmax.f32 %v4236, %v4237
      %v4290 = vmax.f32 %v4252, %v4253
      %v4291 = vmax.f32 %v4268, %v4269
      %v4292 = vmax.f32 %v4158, %v4159
      %v4293 = vmax.f32 %v4174, %v4175
      %v4294 = vmax.f32 %v4190, %v4191
      %v4295 = vmax.f32 %v4206, %v4207
      %v4296 = vmax.f32 %v4222, %v4223
      %v4297 = vmax.f32 %v4238, %v4239
      %v4298 = vmax.f32 %v4254, %v4255
      %v4299 = vmax.f32 %v4270, %v4271
      %v4300 = vmax.f32 %v4160, %v4161
      %v4301 = vmax.f32 %v4176, %v4177
      %v4302 = vmax.f32 %v4192, %v4193
      %v4303 = vmax.f32 %v4208, %v4209
      %v4304 = vmax.f32 %v4224, %v4225
      %v4305 = vmax.f32 %v4240, %v4241
      %v4306 = vmax.f32 %v4256, %v4257
      %v4307 = vmax.f32 %v4272, %v4273
      %v4308 = vmax.f32 %v4162, %v4163
      %v4309 = vmax.f32 %v4178, %v4179
      %v4310 = vmax.f32 %v4194, %v4195
      %v4311 = vmax.f32 %v4210, %v4211
      %v4312 = vmax.f32 %v4226, %v4227
      %v4313 = vmax.f32 %v4242, %v4243
      %v4314 = vmax.f32 %v4258, %v4259
      %v4315 = vmax.f32 %v4274, %v4275
      %v4316 = vmax.f32 %v4164, %v4165
      %v4317 = vmax.f32 %v4180, %v4181
      %v4318 = vmax.f32 %v4196, %v4197
      %v4319 = vmax.f32 %v4212, %v4213
      %v4320 = vmax.f32 %v4228, %v4229
      %v4321 = vmax.f32 %v4244, %v4245
      %v4322 = vmax.f32 %v4260, %v4261
      %v4323 = vmax.f32 %v4276, %v4277
      %v4324 = vmax.f32 %v4166, %v4167
      %v4325 = vmax.f32 %v4182, %v4183
      %v4326 = vmax.f32 %v4198, %v4199
      %v4327 = vmax.f32 %v4214, %v4215
      %v4328 = vmax.f32 %v4230, %v4231
      %v4329 = vmax.f32 %v4246, %v4247
      %v4330 = vmax.f32 %v4262, %v4263
      %v4331 = vmax.f32 %v4278, %v4279
      %v4332 = vmax.f32 %v4168, %v4169
      %v4333 = vmax.f32 %v4184, %v4185
      %v4334 = vmax.f32 %v4200, %v4201
      %v4335 = vmax.f32 %v4216, %v4217
      %v4336 = vmax.f32 %v4232, %v4233
      %v4337 = vmax.f32 %v4248, %v4249
      %v4338 = vmax.f32 %v4264, %v4265
      %v4339 = vmax.f32 %v4280, %v4281
      %v4340 = vmax.f32 %v4170, %v4171
      %v4341 = vmax.f32 %v4186, %v4187
      %v4342 = vmax.f32 %v4202, %v4203
      %v4343 = vmax.f32 %v4218, %v4219
      %v4344 = vmax.f32 %v4234, %v4235
      %v4345 = vmax.f32 %v4250, %v4251
      %v4346 = vmax.f32 %v4266, %v4267
      %v4347 = vmax.f32 %v4282, %v4283
      %v4348 = vld [vmem:[%s7] sm:$0xff]
      %v4349 = vld [vmem:[%s7 + $0x8] sm:$0xf]
      %v4350 = vld [vmem:[%s7 + $0xc] sm:$0xff]
      %v4351 = vld [vmem:[%s7 + $0x14] sm:$0xf]
      %v4352 = vld [vmem:[%s7 + $0x18] sm:$0xff]
      %v4353 = vld [vmem:[%s7 + $0x20] sm:$0xf]
      %v4354 = vld [vmem:[%s7 + $0x24] sm:$0xff]
      %v4355 = vld [vmem:[%s7 + $0x2c] sm:$0xf]
      %v4356 = vld [vmem:[%s7 + $0x30] sm:$0xff]
      %v4357 = vld [vmem:[%s7 + $0x38] sm:$0xf]
      %v4358 = vld [vmem:[%s7 + $0x3c] sm:$0xff]
      %v4359 = vld [vmem:[%s7 + $0x44] sm:$0xf]
      %v4360 = vld [vmem:[%s7 + $0x48] sm:$0xff]
      %v4361 = vld [vmem:[%s7 + $0x50] sm:$0xf]
      %v4362 = vld [vmem:[%s7 + $0x54] sm:$0xff]
      %v4363 = vld [vmem:[%s7 + $0x5c] sm:$0xf]
      %v4364 = vld [vmem:[%s8] sm:$0xff]
      %v4365 = vld [vmem:[%s8 + $0x8] sm:$0xff]
      %v4366 = vld [vmem:[%s8 + $0x10] sm:$0xff]
      %v4367 = vld [vmem:[%s8 + $0x18] sm:$0xff]
      %v4368 = vld [vmem:[%s8 + $0x20] sm:$0xff]
      %v4369 = vld [vmem:[%s8 + $0x28] sm:$0xff]
      %v4370 = vld [vmem:[%s8 + $0x30] sm:$0xff]
      %v4371 = vld [vmem:[%s8 + $0x38] sm:$0xff]
      %v4372 = vld [vmem:[%s9] sm:$0xff]
      %v4373 = vld [vmem:[%s9 + $0x8] sm:$0xff]
      %v4374 = vld [vmem:[%s9 + $0x10] sm:$0xff]
      %v4375 = vld [vmem:[%s9 + $0x18] sm:$0xff]
      %v4376 = vld [vmem:[%s9 + $0x20] sm:$0xff]
      %v4377 = vld [vmem:[%s9 + $0x28] sm:$0xff]
      %v4378 = vld [vmem:[%s9 + $0x30] sm:$0xff]
      %v4379 = vld [vmem:[%s9 + $0x38] sm:$0xff]
      %v4380 = vpack.c.bf16 %v4285, %v4284
      %v4381 = vpack.c.bf16 %v4293, %v4292
      %v4382 = vpack.c.bf16 %v4301, %v4300
      %v4383 = vpack.c.bf16 %v4309, %v4308
      %v4384 = vpack.c.bf16 %v4317, %v4316
      %v4385 = vpack.c.bf16 %v4325, %v4324
      %v4386 = vpack.c.bf16 %v4287, %v4286
      %v4387 = vpack.c.bf16 %v4295, %v4294
      %v4388 = vpack.c.bf16 %v4303, %v4302
      %v4389 = vpack.c.bf16 %v4311, %v4310
      %v4390 = vpack.c.bf16 %v4319, %v4318
      %v4391 = vpack.c.bf16 %v4327, %v4326
      %v4392 = vpack.c.bf16 %v4289, %v4288
      %v4393 = vpack.c.bf16 %v4297, %v4296
      %v4394 = vpack.c.bf16 %v4305, %v4304
      %v4395 = vpack.c.bf16 %v4313, %v4312
      %v4396 = vpack.c.bf16 %v4321, %v4320
      %v4397 = vpack.c.bf16 %v4329, %v4328
      %v4398 = vpack.c.bf16 %v4291, %v4290
      %v4399 = vpack.c.bf16 %v4299, %v4298
      %v4400 = vpack.c.bf16 %v4307, %v4306
      %v4401 = vpack.c.bf16 %v4315, %v4314
      %v4402 = vpack.c.bf16 %v4323, %v4322
      %v4403 = vpack.c.bf16 %v4331, %v4330
      %v4404 = vpack.c.bf16 %v4333, %v4332
      %v4405 = vpack.c.bf16 %v4335, %v4334
      %v4406 = vpack.c.bf16 %v4337, %v4336
      %v4407 = vpack.c.bf16 %v4339, %v4338
      %v4408 = vpack.c.bf16 %v4341, %v4340
      %v4409 = vpack.c.bf16 %v4343, %v4342
      %v4410 = vpack.c.bf16 %v4345, %v4344
      %v4411 = vpack.c.bf16 %v4347, %v4346
      %v4428 = vunpack.c.l.b16 %v4348
      %v4429 = vunpack.c.h.b16 %v4348
      %v4430 = vunpack.c.l.b16 %v4349
      %v4431 = vunpack.c.l.b16 %v4350
      %v4432 = vunpack.c.h.b16 %v4350
      %v4433 = vunpack.c.l.b16 %v4351
      %v4434 = vunpack.c.l.b16 %v4352
      %v4435 = vunpack.c.h.b16 %v4352
      %v4436 = vunpack.c.l.b16 %v4353
      %v4437 = vunpack.c.l.b16 %v4354
      %v4438 = vunpack.c.h.b16 %v4354
      %v4439 = vunpack.c.l.b16 %v4355
      %v4440 = vunpack.c.l.b16 %v4356
      %v4441 = vunpack.c.h.b16 %v4356
      %v4442 = vunpack.c.l.b16 %v4357
      %v4443 = vunpack.c.l.b16 %v4358
      %v4444 = vunpack.c.h.b16 %v4358
      %v4445 = vunpack.c.l.b16 %v4359
      %v4446 = vunpack.c.l.b16 %v4360
      %v4447 = vunpack.c.h.b16 %v4360
      %v4448 = vunpack.c.l.b16 %v4361
      %v4449 = vunpack.c.l.b16 %v4362
      %v4450 = vunpack.c.h.b16 %v4362
      %v4451 = vunpack.c.l.b16 %v4363
      %v4452 = vpack.c.b16 %v4431, %v4428
      %v4453 = vpack.c.b16 %v4432, %v4429
      %v4454 = vpack.c.b16 %v4433, %v4430
      %v4455 = vpack.c.b16 %v4437, %v4434
      %v4456 = vpack.c.b16 %v4438, %v4435
      %v4457 = vpack.c.b16 %v4439, %v4436
      %v4458 = vpack.c.b16 %v4443, %v4440
      %v4459 = vpack.c.b16 %v4444, %v4441
      %v4460 = vpack.c.b16 %v4445, %v4442
      %v4461 = vpack.c.b16 %v4449, %v4446
      %v4462 = vpack.c.b16 %v4450, %v4447
      %v4463 = vpack.c.b16 %v4451, %v4448
      %v4473 = vsel %vm3223, %v4454, 0
      %v4476 = vsel %vm3223, %v4457, 0
      %v4479 = vsel %vm3223, %v4460, 0
      %v4482 = vsel %vm3223, %v4463, 0
      %4484 = vmatprep.subr.bf16.mxu0 %v768
      %4485 = vmatpush1.bf16.msra.mxu0 %v768
      %4486 = vmatprep.subr.bf16.mxu0 %v768
      %4487 = vmatpush1.bf16.msra.mxu0 %v768
      %4488 = vmatprep.subr.bf16.mxu0 %v768
      %4489 = vmatpush1.bf16.msra.mxu0 %v768
      %4490 = vmatprep.subr.bf16.mxu0 %v768
      %4491 = vmatpush1.bf16.msra.mxu0 %v768
      %4492 = vmatprep.subr.bf16.mxu0 %v4380
      %4493 = vmatpush1.bf16.msra.mxu0 %v768
      %4494 = vmatprep.subr.bf16.mxu0 %v4386
      %4495 = vmatpush1.bf16.msra.mxu0 %v768
      %4496 = vmatprep.subr.bf16.mxu0 %v4392
      %4497 = vmatpush1.bf16.msra.mxu0 %v768
      %4498 = vmatprep.subr.bf16.mxu0 %v4398
      %4499 = vmatpush1.bf16.msra.mxu0 %v768
      %4500 = vmatprep.subr.bf16.mxu0 %v4381
      %4501 = vmatpush1.bf16.msra.mxu0 %v4380
      %4502 = vmatprep.subr.bf16.mxu0 %v4387
      %4503 = vmatpush1.bf16.msra.mxu0 %v4386
      %4504 = vmatprep.subr.bf16.mxu0 %v4393
      %4505 = vmatpush1.bf16.msra.mxu0 %v4392
      %4506 = vmatprep.subr.bf16.mxu0 %v4399
      %4507 = vmatpush1.bf16.msra.mxu0 %v4398
      %4508 = vmatprep.subr.bf16.mxu0 %v4382
      %4509 = vmatpush1.bf16.msra.mxu0 %v4381
      %4510 = vmatprep.subr.bf16.mxu0 %v4388
      %4511 = vmatpush1.bf16.msra.mxu0 %v4387
      %4512 = vmatprep.subr.bf16.mxu0 %v4394
      %4513 = vmatpush1.bf16.msra.mxu0 %v4393
      %4514 = vmatprep.subr.bf16.mxu0 %v4400
      %4515 = vmatpush1.bf16.msra.mxu0 %v4399
      %4516 = vmatprep.mubr.bf16.mxu0 %v4453
      %4517 = vmatmul.mubr.bf16.gmra.mrb[0].mxu0 %v4452
      %v4518 = vpop.f32.mrb[0].mxu0
      %v4519 = vadd.f32 0.0, %v4518
      %v4520 = vpop.f32.mrb[0].mxu0
      %v4521 = vadd.f32 0.0, %v4520
      %v4522 = vpop.f32.mrb[0].mxu0
      %v4523 = vadd.f32 0.0, %v4522
      %v4524 = vpop.f32.mrb[0].mxu0
      %v4525 = vadd.f32 0.0, %v4524
      %4526 = vmatprep.mubr.bf16.mxu0 %v4456
      %4527 = vmatmul.mubr.bf16.gmra.mrb[0].mxu0 %v4455
      %v4528 = vpop.f32.mrb[0].mxu0
      %v4529 = vadd.f32 0.0, %v4528
      %v4530 = vpop.f32.mrb[0].mxu0
      %v4531 = vadd.f32 0.0, %v4530
      %v4532 = vpop.f32.mrb[0].mxu0
      %v4533 = vadd.f32 0.0, %v4532
      %v4534 = vpop.f32.mrb[0].mxu0
      %v4535 = vadd.f32 0.0, %v4534
      %4536 = vmatprep.mubr.bf16.mxu0 %v4459
      %4537 = vmatmul.mubr.bf16.gmra.mrb[0].mxu0 %v4458
      %v4538 = vpop.f32.mrb[0].mxu0
      %v4539 = vadd.f32 0.0, %v4538
      %v4540 = vpop.f32.mrb[0].mxu0
      %v4541 = vadd.f32 0.0, %v4540
      %v4542 = vpop.f32.mrb[0].mxu0
      %v4543 = vadd.f32 0.0, %v4542
      %v4544 = vpop.f32.mrb[0].mxu0
      %v4545 = vadd.f32 0.0, %v4544
      %4546 = vmatprep.mubr.bf16.mxu0 %v4462
      %4547 = vmatmul.mubr.bf16.gmra.mrb[0].mxu0 %v4461
      %v4548 = vpop.f32.mrb[0].mxu0
      %v4549 = vadd.f32 0.0, %v4548
      %v4550 = vpop.f32.mrb[0].mxu0
      %v4551 = vadd.f32 0.0, %v4550
      %v4552 = vpop.f32.mrb[0].mxu0
      %v4553 = vadd.f32 0.0, %v4552
      %v4554 = vpop.f32.mrb[0].mxu0
      %v4555 = vadd.f32 0.0, %v4554
      %4556 = vdwg.mxu0
      %4557 = vmatprep.subr.bf16.mxu0 %v4383
      %4558 = vmatpush1.bf16.msra.mxu0 %v4382
      %4559 = vmatprep.subr.bf16.mxu0 %v4389
      %4560 = vmatpush1.bf16.msra.mxu0 %v4388
      %4561 = vmatprep.subr.bf16.mxu0 %v4395
      %4562 = vmatpush1.bf16.msra.mxu0 %v4394
      %4563 = vmatprep.subr.bf16.mxu0 %v4401
      %4564 = vmatpush1.bf16.msra.mxu0 %v4400
      %4565 = vmatprep.subr.bf16.mxu0 0
      %4566 = vmatpush1.bf16.msra.mxu0 0
      %4567 = vmatprep.subr.bf16.mxu0 0
      %4568 = vmatpush1.bf16.msra.mxu0 0
      %4569 = vmatprep.subr.bf16.mxu0 0
      %4570 = vmatpush1.bf16.msra.mxu0 0
      %4571 = vmatprep.subr.bf16.mxu0 0
      %4572 = vmatpush1.bf16.msra.mxu0 0
      %4573 = vmatprep.subr.bf16.mxu0 0
      %4574 = vmatpush1.bf16.msra.mxu0 0
      %4575 = vmatprep.subr.bf16.mxu0 0
      %4576 = vmatpush1.bf16.msra.mxu0 0
      %4577 = vmatprep.subr.bf16.mxu0 0
      %4578 = vmatpush1.bf16.msra.mxu0 0
      %4579 = vmatprep.subr.bf16.mxu0 0
      %4580 = vmatpush1.bf16.msra.mxu0 0
      %4581 = vmatprep.subr.bf16.mxu0 0
      %4582 = vmatpush1.bf16.msra.mxu0 0
      %4583 = vmatprep.subr.bf16.mxu0 0
      %4584 = vmatpush1.bf16.msra.mxu0 0
      %4585 = vmatprep.subr.bf16.mxu0 0
      %4586 = vmatpush1.bf16.msra.mxu0 0
      %4587 = vmatprep.subr.bf16.mxu0 0
      %4588 = vmatpush1.bf16.msra.mxu0 0
      %4589 = vmatprep.mubr.bf16.mxu0 0
      %4590 = vmatmul.mubr.bf16.gmra.mrb[0].mxu0 %v4473
      %v4591 = vpop.f32.mrb[0].mxu0
      %v4592 = vadd.f32 %v4519, %v4591
      %v4593 = vpop.f32.mrb[0].mxu0
      %v4594 = vadd.f32 %v4521, %v4593
      %v4595 = vpop.f32.mrb[0].mxu0
      %v4596 = vadd.f32 %v4523, %v4595
      %v4597 = vpop.f32.mrb[0].mxu0
      %v4598 = vadd.f32 %v4525, %v4597
      %4599 = vmatprep.mubr.bf16.mxu0 0
      %4600 = vmatmul.mubr.bf16.gmra.mrb[0].mxu0 %v4476
      %v4601 = vpop.f32.mrb[0].mxu0
      %v4602 = vadd.f32 %v4529, %v4601
      %v4603 = vpop.f32.mrb[0].mxu0
      %v4604 = vadd.f32 %v4531, %v4603
      %v4605 = vpop.f32.mrb[0].mxu0
      %v4606 = vadd.f32 %v4533, %v4605
      %v4607 = vpop.f32.mrb[0].mxu0
      %v4608 = vadd.f32 %v4535, %v4607
      %4609 = vmatprep.mubr.bf16.mxu0 0
      %4610 = vmatmul.mubr.bf16.gmra.mrb[0].mxu0 %v4479
      %v4611 = vpop.f32.mrb[0].mxu0
      %v4612 = vadd.f32 %v4539, %v4611
      %v4613 = vpop.f32.mrb[0].mxu0
      %v4614 = vadd.f32 %v4541, %v4613
      %v4615 = vpop.f32.mrb[0].mxu0
      %v4616 = vadd.f32 %v4543, %v4615
      %v4617 = vpop.f32.mrb[0].mxu0
      %v4618 = vadd.f32 %v4545, %v4617
      %4619 = vmatprep.mubr.bf16.mxu0 0
      %4620 = vmatmul.mubr.bf16.gmra.mrb[0].mxu0 %v4482
      %v4621 = vpop.f32.mrb[0].mxu0
      %v4622 = vadd.f32 %v4549, %v4621
      %v4623 = vpop.f32.mrb[0].mxu0
      %v4624 = vadd.f32 %v4551, %v4623
      %v4625 = vpop.f32.mrb[0].mxu0
      %v4626 = vadd.f32 %v4553, %v4625
      %v4627 = vpop.f32.mrb[0].mxu0
      %v4628 = vadd.f32 %v4555, %v4627
      %4629 = vdwg.mxu0
      %4630 = vmatprep.subr.bf16.mxu0 %v4381
      %4631 = vmatpush1.bf16.msra.mxu0 %v4380
      %4632 = vmatprep.subr.bf16.mxu0 %v4387
      %4633 = vmatpush1.bf16.msra.mxu0 %v4386
      %4634 = vmatprep.subr.bf16.mxu0 %v4393
      %4635 = vmatpush1.bf16.msra.mxu0 %v4392
      %4636 = vmatprep.subr.bf16.mxu0 %v4399
      %4637 = vmatpush1.bf16.msra.mxu0 %v4398
      %4638 = vmatprep.subr.bf16.mxu0 %v4382
      %4639 = vmatpush1.bf16.msra.mxu0 %v4381
      %4640 = vmatprep.subr.bf16.mxu0 %v4388
      %4641 = vmatpush1.bf16.msra.mxu0 %v4387
      %4642 = vmatprep.subr.bf16.mxu0 %v4394
      %4643 = vmatpush1.bf16.msra.mxu0 %v4393
      %4644 = vmatprep.subr.bf16.mxu0 %v4400
      %4645 = vmatpush1.bf16.msra.mxu0 %v4399
      %4646 = vmatprep.subr.bf16.mxu0 %v4383
      %4647 = vmatpush1.bf16.msra.mxu0 %v4382
      %4648 = vmatprep.subr.bf16.mxu0 %v4389
      %4649 = vmatpush1.bf16.msra.mxu0 %v4388
      %4650 = vmatprep.subr.bf16.mxu0 %v4395
      %4651 = vmatpush1.bf16.msra.mxu0 %v4394
      %4652 = vmatprep.subr.bf16.mxu0 %v4401
      %4653 = vmatpush1.bf16.msra.mxu0 %v4400
      %4654 = vmatprep.subr.bf16.mxu0 %v4384
      %4655 = vmatpush1.bf16.msra.mxu0 %v4383
      %4656 = vmatprep.subr.bf16.mxu0 %v4390
      %4657 = vmatpush1.bf16.msra.mxu0 %v4389
      %4658 = vmatprep.subr.bf16.mxu0 %v4396
      %4659 = vmatpush1.bf16.msra.mxu0 %v4395
      %4660 = vmatprep.subr.bf16.mxu0 %v4402
      %4661 = vmatpush1.bf16.msra.mxu0 %v4401
      %4662 = vmatprep.mubr.bf16.mxu0 %v4453
      %4663 = vmatmul.mubr.bf16.gmra.mrb[0].mxu0 %v4452
      %v4664 = vpop.f32.mrb[0].mxu0
      %v4665 = vadd.f32 0.0, %v4664
      %v4666 = vpop.f32.mrb[0].mxu0
      %v4667 = vadd.f32 0.0, %v4666
      %v4668 = vpop.f32.mrb[0].mxu0
      %v4669 = vadd.f32 0.0, %v4668
      %v4670 = vpop.f32.mrb[0].mxu0
      %v4671 = vadd.f32 0.0, %v4670
      %4672 = vmatprep.mubr.bf16.mxu0 %v4456
      %4673 = vmatmul.mubr.bf16.gmra.mrb[0].mxu0 %v4455
      %v4674 = vpop.f32.mrb[0].mxu0
      %v4675 = vadd.f32 0.0, %v4674
      %v4676 = vpop.f32.mrb[0].mxu0
      %v4677 = vadd.f32 0.0, %v4676
      %v4678 = vpop.f32.mrb[0].mxu0
      %v4679 = vadd.f32 0.0, %v4678
      %v4680 = vpop.f32.mrb[0].mxu0
      %v4681 = vadd.f32 0.0, %v4680
      %4682 = vmatprep.mubr.bf16.mxu0 %v4459
      %4683 = vmatmul.mubr.bf16.gmra.mrb[0].mxu0 %v4458
      %v4684 = vpop.f32.mrb[0].mxu0
      %v4685 = vadd.f32 0.0, %v4684
      %v4686 = vpop.f32.mrb[0].mxu0
      %v4687 = vadd.f32 0.0, %v4686
      %v4688 = vpop.f32.mrb[0].mxu0
      %v4689 = vadd.f32 0.0, %v4688
      %v4690 = vpop.f32.mrb[0].mxu0
      %v4691 = vadd.f32 0.0, %v4690
      %4692 = vmatprep.mubr.bf16.mxu0 %v4462
      %4693 = vmatmul.mubr.bf16.gmra.mrb[0].mxu0 %v4461
      %v4694 = vpop.f32.mrb[0].mxu0
      %v4695 = vadd.f32 0.0, %v4694
      %v4696 = vpop.f32.mrb[0].mxu0
      %v4697 = vadd.f32 0.0, %v4696
      %v4698 = vpop.f32.mrb[0].mxu0
      %v4699 = vadd.f32 0.0, %v4698
      %v4700 = vpop.f32.mrb[0].mxu0
      %v4701 = vadd.f32 0.0, %v4700
      %4702 = vdwg.mxu0
      %4703 = vmatprep.subr.bf16.mxu0 %v4385
      %4704 = vmatpush1.bf16.msra.mxu0 %v4384
      %4705 = vmatprep.subr.bf16.mxu0 %v4391
      %4706 = vmatpush1.bf16.msra.mxu0 %v4390
      %4707 = vmatprep.subr.bf16.mxu0 %v4397
      %4708 = vmatpush1.bf16.msra.mxu0 %v4396
      %4709 = vmatprep.subr.bf16.mxu0 %v4403
      %4710 = vmatpush1.bf16.msra.mxu0 %v4402
      %4711 = vmatprep.subr.bf16.mxu0 0
      %4712 = vmatpush1.bf16.msra.mxu0 0
      %4713 = vmatprep.subr.bf16.mxu0 0
      %4714 = vmatpush1.bf16.msra.mxu0 0
      %4715 = vmatprep.subr.bf16.mxu0 0
      %4716 = vmatpush1.bf16.msra.mxu0 0
      %4717 = vmatprep.subr.bf16.mxu0 0
      %4718 = vmatpush1.bf16.msra.mxu0 0
      %4719 = vmatprep.subr.bf16.mxu0 0
      %4720 = vmatpush1.bf16.msra.mxu0 0
      %4721 = vmatprep.subr.bf16.mxu0 0
      %4722 = vmatpush1.bf16.msra.mxu0 0
      %4723 = vmatprep.subr.bf16.mxu0 0
      %4724 = vmatpush1.bf16.msra.mxu0 0
      %4725 = vmatprep.subr.bf16.mxu0 0
      %4726 = vmatpush1.bf16.msra.mxu0 0
      %4727 = vmatprep.subr.bf16.mxu0 0
      %4728 = vmatpush1.bf16.msra.mxu0 0
      %4729 = vmatprep.subr.bf16.mxu0 0
      %4730 = vmatpush1.bf16.msra.mxu0 0
      %4731 = vmatprep.subr.bf16.mxu0 0
      %4732 = vmatpush1.bf16.msra.mxu0 0
      %4733 = vmatprep.subr.bf16.mxu0 0
      %4734 = vmatpush1.bf16.msra.mxu0 0
      %4735 = vmatprep.mubr.bf16.mxu0 0
      %4736 = vmatmul.mubr.bf16.gmra.mrb[0].mxu0 %v4473
      %v4737 = vpop.f32.mrb[0].mxu0
      %v4738 = vadd.f32 %v4665, %v4737
      %v4739 = vpop.f32.mrb[0].mxu0
      %v4740 = vadd.f32 %v4667, %v4739
      %v4741 = vpop.f32.mrb[0].mxu0
      %v4742 = vadd.f32 %v4669, %v4741
      %v4743 = vpop.f32.mrb[0].mxu0
      %v4744 = vadd.f32 %v4671, %v4743
      %4745 = vmatprep.mubr.bf16.mxu0 0
      %4746 = vmatmul.mubr.bf16.gmra.mrb[0].mxu0 %v4476
      %v4747 = vpop.f32.mrb[0].mxu0
      %v4748 = vadd.f32 %v4675, %v4747
      %v4749 = vpop.f32.mrb[0].mxu0
      %v4750 = vadd.f32 %v4677, %v4749
      %v4751 = vpop.f32.mrb[0].mxu0
      %v4752 = vadd.f32 %v4679, %v4751
      %v4753 = vpop.f32.mrb[0].mxu0
      %v4754 = vadd.f32 %v4681, %v4753
      %4755 = vmatprep.mubr.bf16.mxu0 0
      %4756 = vmatmul.mubr.bf16.gmra.mrb[0].mxu0 %v4479
      %v4757 = vpop.f32.mrb[0].mxu0
      %v4758 = vadd.f32 %v4685, %v4757
      %v4759 = vpop.f32.mrb[0].mxu0
      %v4760 = vadd.f32 %v4687, %v4759
      %v4761 = vpop.f32.mrb[0].mxu0
      %v4762 = vadd.f32 %v4689, %v4761
      %v4763 = vpop.f32.mrb[0].mxu0
      %v4764 = vadd.f32 %v4691, %v4763
      %4765 = vmatprep.mubr.bf16.mxu0 0
      %4766 = vmatmul.mubr.bf16.gmra.mrb[0].mxu0 %v4482
      %v4767 = vpop.f32.mrb[0].mxu0
      %v4768 = vadd.f32 %v4695, %v4767
      %v4769 = vpop.f32.mrb[0].mxu0
      %v4770 = vadd.f32 %v4697, %v4769
      %v4771 = vpop.f32.mrb[0].mxu0
      %v4772 = vadd.f32 %v4699, %v4771
      %v4773 = vpop.f32.mrb[0].mxu0
      %v4774 = vadd.f32 %v4701, %v4773
      %4775 = vdwg.mxu0
      %4776 = vmatprep.subr.bf16.mxu0 %v4383
      %4777 = vmatpush1.bf16.msra.mxu0 %v4382
      %4778 = vmatprep.subr.bf16.mxu0 %v4389
      %4779 = vmatpush1.bf16.msra.mxu0 %v4388
      %4780 = vmatprep.subr.bf16.mxu0 %v4395
      %4781 = vmatpush1.bf16.msra.mxu0 %v4394
      %4782 = vmatprep.subr.bf16.mxu0 %v4401
      %4783 = vmatpush1.bf16.msra.mxu0 %v4400
      %4784 = vmatprep.subr.bf16.mxu0 %v4384
      %4785 = vmatpush1.bf16.msra.mxu0 %v4383
      %4786 = vmatprep.subr.bf16.mxu0 %v4390
      %4787 = vmatpush1.bf16.msra.mxu0 %v4389
      %4788 = vmatprep.subr.bf16.mxu0 %v4396
      %4789 = vmatpush1.bf16.msra.mxu0 %v4395
      %4790 = vmatprep.subr.bf16.mxu0 %v4402
      %4791 = vmatpush1.bf16.msra.mxu0 %v4401
      %4792 = vmatprep.subr.bf16.mxu0 %v4385
      %4793 = vmatpush1.bf16.msra.mxu0 %v4384
      %4794 = vmatprep.subr.bf16.mxu0 %v4391
      %4795 = vmatpush1.bf16.msra.mxu0 %v4390
      %4796 = vmatprep.subr.bf16.mxu0 %v4397
      %4797 = vmatpush1.bf16.msra.mxu0 %v4396
      %4798 = vmatprep.subr.bf16.mxu0 %v4403
      %4799 = vmatpush1.bf16.msra.mxu0 %v4402
      %4800 = vmatprep.subr.bf16.mxu0 %v4404
      %4801 = vmatpush1.bf16.msra.mxu0 %v4385
      %4802 = vmatprep.subr.bf16.mxu0 %v4405
      %4803 = vmatpush1.bf16.msra.mxu0 %v4391
      %4804 = vmatprep.subr.bf16.mxu0 %v4406
      %4805 = vmatpush1.bf16.msra.mxu0 %v4397
      %4806 = vmatprep.subr.bf16.mxu0 %v4407
      %4807 = vmatpush1.bf16.msra.mxu0 %v4403
      %4808 = vmatprep.mubr.bf16.mxu0 %v4453
      %4809 = vmatmul.mubr.bf16.gmra.mrb[0].mxu0 %v4452
      %v4810 = vpop.f32.mrb[0].mxu0
      %v4811 = vadd.f32 0.0, %v4810
      %v4812 = vpop.f32.mrb[0].mxu0
      %v4813 = vadd.f32 0.0, %v4812
      %v4814 = vpop.f32.mrb[0].mxu0
      %v4815 = vadd.f32 0.0, %v4814
      %v4816 = vpop.f32.mrb[0].mxu0
      %v4817 = vadd.f32 0.0, %v4816
      %4818 = vmatprep.mubr.bf16.mxu0 %v4456
      %4819 = vmatmul.mubr.bf16.gmra.mrb[0].mxu0 %v4455
      %v4820 = vpop.f32.mrb[0].mxu0
      %v4821 = vadd.f32 0.0, %v4820
      %v4822 = vpop.f32.mrb[0].mxu0
      %v4823 = vadd.f32 0.0, %v4822
      %v4824 = vpop.f32.mrb[0].mxu0
      %v4825 = vadd.f32 0.0, %v4824
      %v4826 = vpop.f32.mrb[0].mxu0
      %v4827 = vadd.f32 0.0, %v4826
      %4828 = vmatprep.mubr.bf16.mxu0 %v4459
      %4829 = vmatmul.mubr.bf16.gmra.mrb[0].mxu0 %v4458
      %v4830 = vpop.f32.mrb[0].mxu0
      %v4831 = vadd.f32 0.0, %v4830
      %v4832 = vpop.f32.mrb[0].mxu0
      %v4833 = vadd.f32 0.0, %v4832
      %v4834 = vpop.f32.mrb[0].mxu0
      %v4835 = vadd.f32 0.0, %v4834
      %v4836 = vpop.f32.mrb[0].mxu0
      %v4837 = vadd.f32 0.0, %v4836
      %4838 = vmatprep.mubr.bf16.mxu0 %v4462
      %4839 = vmatmul.mubr.bf16.gmra.mrb[0].mxu0 %v4461
      %v4840 = vpop.f32.mrb[0].mxu0
      %v4841 = vadd.f32 0.0, %v4840
      %v4842 = vpop.f32.mrb[0].mxu0
      %v4843 = vadd.f32 0.0, %v4842
      %v4844 = vpop.f32.mrb[0].mxu0
      %v4845 = vadd.f32 0.0, %v4844
      %v4846 = vpop.f32.mrb[0].mxu0
      %v4847 = vadd.f32 0.0, %v4846
      %4848 = vdwg.mxu0
      %4849 = vmatprep.subr.bf16.mxu0 %v4408
      %4850 = vmatpush1.bf16.msra.mxu0 %v4404
      %4851 = vmatprep.subr.bf16.mxu0 %v4409
      %4852 = vmatpush1.bf16.msra.mxu0 %v4405
      %4853 = vmatprep.subr.bf16.mxu0 %v4410
      %4854 = vmatpush1.bf16.msra.mxu0 %v4406
      %4855 = vmatprep.subr.bf16.mxu0 %v4411
      %4856 = vmatpush1.bf16.msra.mxu0 %v4407
      %4857 = vmatprep.subr.bf16.mxu0 0
      %4858 = vmatpush1.bf16.msra.mxu0 0
      %4859 = vmatprep.subr.bf16.mxu0 0
      %4860 = vmatpush1.bf16.msra.mxu0 0
      %4861 = vmatprep.subr.bf16.mxu0 0
      %4862 = vmatpush1.bf16.msra.mxu0 0
      %4863 = vmatprep.subr.bf16.mxu0 0
      %4864 = vmatpush1.bf16.msra.mxu0 0
      %4865 = vmatprep.subr.bf16.mxu0 0
      %4866 = vmatpush1.bf16.msra.mxu0 0
      %4867 = vmatprep.subr.bf16.mxu0 0
      %4868 = vmatpush1.bf16.msra.mxu0 0
      %4869 = vmatprep.subr.bf16.mxu0 0
      %4870 = vmatpush1.bf16.msra.mxu0 0
      %4871 = vmatprep.subr.bf16.mxu0 0
      %4872 = vmatpush1.bf16.msra.mxu0 0
      %4873 = vmatprep.subr.bf16.mxu0 0
      %4874 = vmatpush1.bf16.msra.mxu0 0
      %4875 = vmatprep.subr.bf16.mxu0 0
      %4876 = vmatpush1.bf16.msra.mxu0 0
      %4877 = vmatprep.subr.bf16.mxu0 0
      %4878 = vmatpush1.bf16.msra.mxu0 0
      %4879 = vmatprep.subr.bf16.mxu0 0
      %4880 = vmatpush1.bf16.msra.mxu0 0
      %4881 = vmatprep.mubr.bf16.mxu0 0
      %4882 = vmatmul.mubr.bf16.gmra.mrb[0].mxu0 %v4473
      %v4883 = vpop.f32.mrb[0].mxu0
      %v4884 = vadd.f32 %v4811, %v4883
      %v4885 = vpop.f32.mrb[0].mxu0
      %v4886 = vadd.f32 %v4813, %v4885
      %v4887 = vpop.f32.mrb[0].mxu0
      %v4888 = vadd.f32 %v4815, %v4887
      %v4889 = vpop.f32.mrb[0].mxu0
      %v4890 = vadd.f32 %v4817, %v4889
      %4891 = vmatprep.mubr.bf16.mxu0 0
      %4892 = vmatmul.mubr.bf16.gmra.mrb[0].mxu0 %v4476
      %v4893 = vpop.f32.mrb[0].mxu0
      %v4894 = vadd.f32 %v4821, %v4893
      %v4895 = vpop.f32.mrb[0].mxu0
      %v4896 = vadd.f32 %v4823, %v4895
      %v4897 = vpop.f32.mrb[0].mxu0
      %v4898 = vadd.f32 %v4825, %v4897
      %v4899 = vpop.f32.mrb[0].mxu0
      %v4900 = vadd.f32 %v4827, %v4899
      %4901 = vmatprep.mubr.bf16.mxu0 0
      %4902 = vmatmul.mubr.bf16.gmra.mrb[0].mxu0 %v4479
      %v4903 = vpop.f32.mrb[0].mxu0
      %v4904 = vadd.f32 %v4831, %v4903
      %v4905 = vpop.f32.mrb[0].mxu0
      %v4906 = vadd.f32 %v4833, %v4905
      %v4907 = vpop.f32.mrb[0].mxu0
      %v4908 = vadd.f32 %v4835, %v4907
      %v4909 = vpop.f32.mrb[0].mxu0
      %v4910 = vadd.f32 %v4837, %v4909
      %4911 = vmatprep.mubr.bf16.mxu0 0
      %4912 = vmatmul.mubr.bf16.gmra.mrb[0].mxu0 %v4482
      %v4913 = vpop.f32.mrb[0].mxu0
      %v4914 = vadd.f32 %v4841, %v4913
      %v4915 = vpop.f32.mrb[0].mxu0
      %v4916 = vadd.f32 %v4843, %v4915
      %v4917 = vpop.f32.mrb[0].mxu0
      %v4918 = vadd.f32 %v4845, %v4917
      %v4919 = vpop.f32.mrb[0].mxu0
      %v4920 = vadd.f32 %v4847, %v4919
      %4921 = vdwg.mxu0
      %4922 = vmatprep.subr.bf16.mxu0 %v4385
      %4923 = vmatpush1.bf16.msra.mxu0 %v4384
      %4924 = vmatprep.subr.bf16.mxu0 %v4391
      %4925 = vmatpush1.bf16.msra.mxu0 %v4390
      %4926 = vmatprep.subr.bf16.mxu0 %v4397
      %4927 = vmatpush1.bf16.msra.mxu0 %v4396
      %4928 = vmatprep.subr.bf16.mxu0 %v4403
      %4929 = vmatpush1.bf16.msra.mxu0 %v4402
      %4930 = vmatprep.subr.bf16.mxu0 %v4404
      %4931 = vmatpush1.bf16.msra.mxu0 %v4385
      %4932 = vmatprep.subr.bf16.mxu0 %v4405
      %4933 = vmatpush1.bf16.msra.mxu0 %v4391
      %4934 = vmatprep.subr.bf16.mxu0 %v4406
      %4935 = vmatpush1.bf16.msra.mxu0 %v4397
      %4936 = vmatprep.subr.bf16.mxu0 %v4407
      %4937 = vmatpush1.bf16.msra.mxu0 %v4403
      %4938 = vmatprep.subr.bf16.mxu0 %v4408
      %4939 = vmatpush1.bf16.msra.mxu0 %v4404
      %4940 = vmatprep.subr.bf16.mxu0 %v4409
      %4941 = vmatpush1.bf16.msra.mxu0 %v4405
      %4942 = vmatprep.subr.bf16.mxu0 %v4410
      %4943 = vmatpush1.bf16.msra.mxu0 %v4406
      %4944 = vmatprep.subr.bf16.mxu0 %v4411
      %4945 = vmatpush1.bf16.msra.mxu0 %v4407
      %4946 = vmatprep.subr.bf16.mxu0 %v768
      %4947 = vmatpush1.bf16.msra.mxu0 %v4408
      %4948 = vmatprep.subr.bf16.mxu0 %v768
      %4949 = vmatpush1.bf16.msra.mxu0 %v4409
      %4950 = vmatprep.subr.bf16.mxu0 %v768
      %4951 = vmatpush1.bf16.msra.mxu0 %v4410
      %4952 = vmatprep.subr.bf16.mxu0 %v768
      %4953 = vmatpush1.bf16.msra.mxu0 %v4411
      %4954 = vmatprep.mubr.bf16.mxu0 %v4453
      %4955 = vmatmul.mubr.bf16.gmra.mrb[0].mxu0 %v4452
      %v4956 = vpop.f32.mrb[0].mxu0
      %v4957 = vadd.f32 0.0, %v4956
      %v4958 = vpop.f32.mrb[0].mxu0
      %v4959 = vadd.f32 0.0, %v4958
      %v4960 = vpop.f32.mrb[0].mxu0
      %v4961 = vadd.f32 0.0, %v4960
      %v4962 = vpop.f32.mrb[0].mxu0
      %v4963 = vadd.f32 0.0, %v4962
      %4964 = vmatprep.mubr.bf16.mxu0 %v4456
      %4965 = vmatmul.mubr.bf16.gmra.mrb[0].mxu0 %v4455
      %v4966 = vpop.f32.mrb[0].mxu0
      %v4967 = vadd.f32 0.0, %v4966
      %v4968 = vpop.f32.mrb[0].mxu0
      %v4969 = vadd.f32 0.0, %v4968
      %v4970 = vpop.f32.mrb[0].mxu0
      %v4971 = vadd.f32 0.0, %v4970
      %v4972 = vpop.f32.mrb[0].mxu0
      %v4973 = vadd.f32 0.0, %v4972
      %4974 = vmatprep.mubr.bf16.mxu0 %v4459
      %4975 = vmatmul.mubr.bf16.gmra.mrb[0].mxu0 %v4458
      %v4976 = vpop.f32.mrb[0].mxu0
      %v4977 = vadd.f32 0.0, %v4976
      %v4978 = vpop.f32.mrb[0].mxu0
      %v4979 = vadd.f32 0.0, %v4978
      %v4980 = vpop.f32.mrb[0].mxu0
      %v4981 = vadd.f32 0.0, %v4980
      %v4982 = vpop.f32.mrb[0].mxu0
      %v4983 = vadd.f32 0.0, %v4982
      %4984 = vmatprep.mubr.bf16.mxu0 %v4462
      %4985 = vmatmul.mubr.bf16.gmra.mrb[0].mxu0 %v4461
      %v4986 = vpop.f32.mrb[0].mxu0
      %v4987 = vadd.f32 0.0, %v4986
      %v4988 = vpop.f32.mrb[0].mxu0
      %v4989 = vadd.f32 0.0, %v4988
      %v4990 = vpop.f32.mrb[0].mxu0
      %v4991 = vadd.f32 0.0, %v4990
      %v4992 = vpop.f32.mrb[0].mxu0
      %v4993 = vadd.f32 0.0, %v4992
      %4994 = vdwg.mxu0
      %4995 = vmatprep.subr.bf16.mxu0 %v768
      %4996 = vmatpush1.bf16.msra.mxu0 %v768
      %4997 = vmatprep.subr.bf16.mxu0 %v768
      %4998 = vmatpush1.bf16.msra.mxu0 %v768
      %4999 = vmatprep.subr.bf16.mxu0 %v768
      %5000 = vmatpush1.bf16.msra.mxu0 %v768
      %5001 = vmatprep.subr.bf16.mxu0 %v768
      %5002 = vmatpush1.bf16.msra.mxu0 %v768
      %5003 = vmatprep.subr.bf16.mxu0 0
      %5004 = vmatpush1.bf16.msra.mxu0 0
      %5005 = vmatprep.subr.bf16.mxu0 0
      %5006 = vmatpush1.bf16.msra.mxu0 0
      %5007 = vmatprep.subr.bf16.mxu0 0
      %5008 = vmatpush1.bf16.msra.mxu0 0
      %5009 = vmatprep.subr.bf16.mxu0 0
      %5010 = vmatpush1.bf16.msra.mxu0 0
      %5011 = vmatprep.subr.bf16.mxu0 0
      %5012 = vmatpush1.bf16.msra.mxu0 0
      %5013 = vmatprep.subr.bf16.mxu0 0
      %5014 = vmatpush1.bf16.msra.mxu0 0
      %5015 = vmatprep.subr.bf16.mxu0 0
      %5016 = vmatpush1.bf16.msra.mxu0 0
      %5017 = vmatprep.subr.bf16.mxu0 0
      %5018 = vmatpush1.bf16.msra.mxu0 0
      %5019 = vmatprep.subr.bf16.mxu0 0
      %5020 = vmatpush1.bf16.msra.mxu0 0
      %5021 = vmatprep.subr.bf16.mxu0 0
      %5022 = vmatpush1.bf16.msra.mxu0 0
      %5023 = vmatprep.subr.bf16.mxu0 0
      %5024 = vmatpush1.bf16.msra.mxu0 0
      %5025 = vmatprep.subr.bf16.mxu0 0
      %5026 = vmatpush1.bf16.msra.mxu0 0
      %5027 = vmatprep.mubr.bf16.mxu0 0
      %5028 = vmatmul.mubr.bf16.gmra.mrb[0].mxu0 %v4473
      %v5029 = vpop.f32.mrb[0].mxu0
      %v5030 = vadd.f32 %v4957, %v5029
      %v5031 = vpop.f32.mrb[0].mxu0
      %v5032 = vadd.f32 %v4959, %v5031
      %v5033 = vpop.f32.mrb[0].mxu0
      %v5034 = vadd.f32 %v4961, %v5033
      %v5035 = vpop.f32.mrb[0].mxu0
      %v5036 = vadd.f32 %v4963, %v5035
      %5037 = vmatprep.mubr.bf16.mxu0 0
      %5038 = vmatmul.mubr.bf16.gmra.mrb[0].mxu0 %v4476
      %v5039 = vpop.f32.mrb[0].mxu0
      %v5040 = vadd.f32 %v4967, %v5039
      %v5041 = vpop.f32.mrb[0].mxu0
      %v5042 = vadd.f32 %v4969, %v5041
      %v5043 = vpop.f32.mrb[0].mxu0
      %v5044 = vadd.f32 %v4971, %v5043
      %v5045 = vpop.f32.mrb[0].mxu0
      %v5046 = vadd.f32 %v4973, %v5045
      %5047 = vmatprep.mubr.bf16.mxu0 0
      %5048 = vmatmul.mubr.bf16.gmra.mrb[0].mxu0 %v4479
      %v5049 = vpop.f32.mrb[0].mxu0
      %v5050 = vadd.f32 %v4977, %v5049
      %v5051 = vpop.f32.mrb[0].mxu0
      %v5052 = vadd.f32 %v4979, %v5051
      %v5053 = vpop.f32.mrb[0].mxu0
      %v5054 = vadd.f32 %v4981, %v5053
      %v5055 = vpop.f32.mrb[0].mxu0
      %v5056 = vadd.f32 %v4983, %v5055
      %5057 = vmatprep.mubr.bf16.mxu0 0
      %5058 = vmatmul.mubr.bf16.gmra.mrb[0].mxu0 %v4482
      %v5059 = vpop.f32.mrb[0].mxu0
      %v5060 = vadd.f32 %v4987, %v5059
      %v5061 = vpop.f32.mrb[0].mxu0
      %v5062 = vadd.f32 %v4989, %v5061
      %v5063 = vpop.f32.mrb[0].mxu0
      %v5064 = vadd.f32 %v4991, %v5063
      %v5065 = vpop.f32.mrb[0].mxu0
      %v5066 = vadd.f32 %v4993, %v5065
      %5067 = vdwg.mxu0
      %5069 = vset.pattern.permute.xlu0 0
      %5070 = vperm.xlu0 %5069, %v4364
      %v5071 = vpop.permute.xlu0 %5070
      %5074 = vset.pattern.permute.xlu0 0
      %5075 = vperm.xlu0 %5074, %v4365
      %v5076 = vpop.permute.xlu0 %5075
      %5079 = vset.pattern.permute.xlu0 0
      %5080 = vperm.xlu0 %5079, %v4366
      %v5081 = vpop.permute.xlu0 %5080
      %5084 = vset.pattern.permute.xlu0 0
      %5085 = vperm.xlu0 %5084, %v4367
      %v5086 = vpop.permute.xlu0 %5085
      %5089 = vset.pattern.permute.xlu0 0
      %5090 = vperm.xlu0 %5089, %v4368
      %v5091 = vpop.permute.xlu0 %5090
      %5094 = vset.pattern.permute.xlu0 0
      %5095 = vperm.xlu0 %5094, %v4369
      %v5096 = vpop.permute.xlu0 %5095
      %5099 = vset.pattern.permute.xlu0 0
      %5100 = vperm.xlu0 %5099, %v4370
      %v5101 = vpop.permute.xlu0 %5100
      %5104 = vset.pattern.permute.xlu0 0
      %5105 = vperm.xlu0 %5104, %v4371
      %v5106 = vpop.permute.xlu0 %5105
      %v5108 = vmul.f32 %v4592, %v5071
      %v5109 = vmul.f32 %v4594, %v5071
      %v5110 = vmul.f32 %v4738, %v5071
      %v5111 = vmul.f32 %v4740, %v5071
      %v5112 = vmul.f32 %v4884, %v5071
      %v5113 = vmul.f32 %v4886, %v5071
      %v5114 = vmul.f32 %v5030, %v5071
      %v5115 = vmul.f32 %v5032, %v5071
      %v5116 = vmul.f32 %v4596, %v5076
      %v5117 = vmul.f32 %v4598, %v5076
      %v5118 = vmul.f32 %v4742, %v5076
      %v5119 = vmul.f32 %v4744, %v5076
      %v5120 = vmul.f32 %v4888, %v5076
      %v5121 = vmul.f32 %v4890, %v5076
      %v5122 = vmul.f32 %v5034, %v5076
      %v5123 = vmul.f32 %v5036, %v5076
      %v5124 = vmul.f32 %v4602, %v5081
      %v5125 = vmul.f32 %v4604, %v5081
      %v5126 = vmul.f32 %v4748, %v5081
      %v5127 = vmul.f32 %v4750, %v5081
      %v5128 = vmul.f32 %v4894, %v5081
      %v5129 = vmul.f32 %v4896, %v5081
      %v5130 = vmul.f32 %v5040, %v5081
      %v5131 = vmul.f32 %v5042, %v5081
      %v5132 = vmul.f32 %v4606, %v5086
      %v5133 = vmul.f32 %v4608, %v5086
      %v5134 = vmul.f32 %v4752, %v5086
      %v5135 = vmul.f32 %v4754, %v5086
      %v5136 = vmul.f32 %v4898, %v5086
      %v5137 = vmul.f32 %v4900, %v5086
      %v5138 = vmul.f32 %v5044, %v5086
      %v5139 = vmul.f32 %v5046, %v5086
      %v5140 = vmul.f32 %v4612, %v5091
      %v5141 = vmul.f32 %v4614, %v5091
      %v5142 = vmul.f32 %v4758, %v5091
      %v5143 = vmul.f32 %v4760, %v5091
      %v5144 = vmul.f32 %v4904, %v5091
      %v5145 = vmul.f32 %v4906, %v5091
      %v5146 = vmul.f32 %v5050, %v5091
      %v5147 = vmul.f32 %v5052, %v5091
      %v5148 = vmul.f32 %v4616, %v5096
      %v5149 = vmul.f32 %v4618, %v5096
      %v5150 = vmul.f32 %v4762, %v5096
      %v5151 = vmul.f32 %v4764, %v5096
      %v5152 = vmul.f32 %v4908, %v5096
      %v5153 = vmul.f32 %v4910, %v5096
      %v5154 = vmul.f32 %v5054, %v5096
      %v5155 = vmul.f32 %v5056, %v5096
      %v5156 = vmul.f32 %v4622, %v5101
      %v5157 = vmul.f32 %v4624, %v5101
      %v5158 = vmul.f32 %v4768, %v5101
      %v5159 = vmul.f32 %v4770, %v5101
      %v5160 = vmul.f32 %v4914, %v5101
      %v5161 = vmul.f32 %v4916, %v5101
      %v5162 = vmul.f32 %v5060, %v5101
      %v5163 = vmul.f32 %v5062, %v5101
      %v5164 = vmul.f32 %v4626, %v5106
      %v5165 = vmul.f32 %v4628, %v5106
      %v5166 = vmul.f32 %v4772, %v5106
      %v5167 = vmul.f32 %v4774, %v5106
      %v5168 = vmul.f32 %v4918, %v5106
      %v5169 = vmul.f32 %v4920, %v5106
      %v5170 = vmul.f32 %v5064, %v5106
      %v5171 = vmul.f32 %v5066, %v5106
      %5173 = vset.pattern.permute.xlu0 0
      %5174 = vperm.xlu0 %5173, %v4372
      %v5175 = vpop.permute.xlu0 %5174
      %5178 = vset.pattern.permute.xlu0 0
      %5179 = vperm.xlu0 %5178, %v4373
      %v5180 = vpop.permute.xlu0 %5179
      %5183 = vset.pattern.permute.xlu0 0
      %5184 = vperm.xlu0 %5183, %v4374
      %v5185 = vpop.permute.xlu0 %5184
      %5188 = vset.pattern.permute.xlu0 0
      %5189 = vperm.xlu0 %5188, %v4375
      %v5190 = vpop.permute.xlu0 %5189
      %5193 = vset.pattern.permute.xlu0 0
      %5194 = vperm.xlu0 %5193, %v4376
      %v5195 = vpop.permute.xlu0 %5194
      %5198 = vset.pattern.permute.xlu0 0
      %5199 = vperm.xlu0 %5198, %v4377
      %v5200 = vpop.permute.xlu0 %5199
      %5203 = vset.pattern.permute.xlu0 0
      %5204 = vperm.xlu0 %5203, %v4378
      %v5205 = vpop.permute.xlu0 %5204
      %5208 = vset.pattern.permute.xlu0 0
      %5209 = vperm.xlu0 %5208, %v4379
      %v5210 = vpop.permute.xlu0 %5209
      %v5212 = vadd.f32 %v5108, %v5175
      %v5213 = vadd.f32 %v5109, %v5175
      %v5214 = vadd.f32 %v5110, %v5175
      %v5215 = vadd.f32 %v5111, %v5175
      %v5216 = vadd.f32 %v5112, %v5175
      %v5217 = vadd.f32 %v5113, %v5175
      %v5218 = vadd.f32 %v5114, %v5175
      %v5219 = vadd.f32 %v5115, %v5175
      %v5220 = vadd.f32 %v5116, %v5180
      %v5221 = vadd.f32 %v5117, %v5180
      %v5222 = vadd.f32 %v5118, %v5180
      %v5223 = vadd.f32 %v5119, %v5180
      %v5224 = vadd.f32 %v5120, %v5180
      %v5225 = vadd.f32 %v5121, %v5180
      %v5226 = vadd.f32 %v5122, %v5180
      %v5227 = vadd.f32 %v5123, %v5180
      %v5228 = vadd.f32 %v5124, %v5185
      %v5229 = vadd.f32 %v5125, %v5185
      %v5230 = vadd.f32 %v5126, %v5185
      %v5231 = vadd.f32 %v5127, %v5185
      %v5232 = vadd.f32 %v5128, %v5185
      %v5233 = vadd.f32 %v5129, %v5185
      %v5234 = vadd.f32 %v5130, %v5185
      %v5235 = vadd.f32 %v5131, %v5185
      %v5236 = vadd.f32 %v5132, %v5190
      %v5237 = vadd.f32 %v5133, %v5190
      %v5238 = vadd.f32 %v5134, %v5190
      %v5239 = vadd.f32 %v5135, %v5190
      %v5240 = vadd.f32 %v5136, %v5190
      %v5241 = vadd.f32 %v5137, %v5190
      %v5242 = vadd.f32 %v5138, %v5190
      %v5243 = vadd.f32 %v5139, %v5190
      %v5244 = vadd.f32 %v5140, %v5195
      %v5245 = vadd.f32 %v5141, %v5195
      %v5246 = vadd.f32 %v5142, %v5195
      %v5247 = vadd.f32 %v5143, %v5195
      %v5248 = vadd.f32 %v5144, %v5195
      %v5249 = vadd.f32 %v5145, %v5195
      %v5250 = vadd.f32 %v5146, %v5195
      %v5251 = vadd.f32 %v5147, %v5195
      %v5252 = vadd.f32 %v5148, %v5200
      %v5253 = vadd.f32 %v5149, %v5200
      %v5254 = vadd.f32 %v5150, %v5200
      %v5255 = vadd.f32 %v5151, %v5200
      %v5256 = vadd.f32 %v5152, %v5200
      %v5257 = vadd.f32 %v5153, %v5200
      %v5258 = vadd.f32 %v5154, %v5200
      %v5259 = vadd.f32 %v5155, %v5200
      %v5260 = vadd.f32 %v5156, %v5205
      %v5261 = vadd.f32 %v5157, %v5205
      %v5262 = vadd.f32 %v5158, %v5205
      %v5263 = vadd.f32 %v5159, %v5205
      %v5264 = vadd.f32 %v5160, %v5205
      %v5265 = vadd.f32 %v5161, %v5205
      %v5266 = vadd.f32 %v5162, %v5205
      %v5267 = vadd.f32 %v5163, %v5205
      %v5268 = vadd.f32 %v5164, %v5210
      %v5269 = vadd.f32 %v5165, %v5210
      %v5270 = vadd.f32 %v5166, %v5210
      %v5271 = vadd.f32 %v5167, %v5210
      %v5272 = vadd.f32 %v5168, %v5210
      %v5273 = vadd.f32 %v5169, %v5210
      %v5274 = vadd.f32 %v5170, %v5210
      %v5275 = vadd.f32 %v5171, %v5210
      %v5276 = vmax.f32 %v5212, 0.0
      %v5277 = vmax.f32 %v5213, 0.0
      %v5278 = vmax.f32 %v5214, 0.0
      %v5279 = vmax.f32 %v5215, 0.0
      %v5280 = vmax.f32 %v5216, 0.0
      %v5281 = vmax.f32 %v5217, 0.0
      %v5282 = vmax.f32 %v5218, 0.0
      %v5283 = vmax.f32 %v5219, 0.0
      %v5284 = vmax.f32 %v5220, 0.0
      %v5285 = vmax.f32 %v5221, 0.0
      %v5286 = vmax.f32 %v5222, 0.0
      %v5287 = vmax.f32 %v5223, 0.0
      %v5288 = vmax.f32 %v5224, 0.0
      %v5289 = vmax.f32 %v5225, 0.0
      %v5290 = vmax.f32 %v5226, 0.0
      %v5291 = vmax.f32 %v5227, 0.0
      %v5292 = vmax.f32 %v5228, 0.0
      %v5293 = vmax.f32 %v5229, 0.0
      %v5294 = vmax.f32 %v5230, 0.0
      %v5295 = vmax.f32 %v5231, 0.0
      %v5296 = vmax.f32 %v5232, 0.0
      %v5297 = vmax.f32 %v5233, 0.0
      %v5298 = vmax.f32 %v5234, 0.0
      %v5299 = vmax.f32 %v5235, 0.0
      %v5300 = vmax.f32 %v5236, 0.0
      %v5301 = vmax.f32 %v5237, 0.0
      %v5302 = vmax.f32 %v5238, 0.0
      %v5303 = vmax.f32 %v5239, 0.0
      %v5304 = vmax.f32 %v5240, 0.0
      %v5305 = vmax.f32 %v5241, 0.0
      %v5306 = vmax.f32 %v5242, 0.0
      %v5307 = vmax.f32 %v5243, 0.0
      %v5308 = vmax.f32 %v5244, 0.0
      %v5309 = vmax.f32 %v5245, 0.0
      %v5310 = vmax.f32 %v5246, 0.0
      %v5311 = vmax.f32 %v5247, 0.0
      %v5312 = vmax.f32 %v5248, 0.0
      %v5313 = vmax.f32 %v5249, 0.0
      %v5314 = vmax.f32 %v5250, 0.0
      %v5315 = vmax.f32 %v5251, 0.0
      %v5316 = vmax.f32 %v5252, 0.0
      %v5317 = vmax.f32 %v5253, 0.0
      %v5318 = vmax.f32 %v5254, 0.0
      %v5319 = vmax.f32 %v5255, 0.0
      %v5320 = vmax.f32 %v5256, 0.0
      %v5321 = vmax.f32 %v5257, 0.0
      %v5322 = vmax.f32 %v5258, 0.0
      %v5323 = vmax.f32 %v5259, 0.0
      %v5324 = vmax.f32 %v5260, 0.0
      %v5325 = vmax.f32 %v5261, 0.0
      %v5326 = vmax.f32 %v5262, 0.0
      %v5327 = vmax.f32 %v5263, 0.0
      %v5328 = vmax.f32 %v5264, 0.0
      %v5329 = vmax.f32 %v5265, 0.0
      %v5330 = vmax.f32 %v5266, 0.0
      %v5331 = vmax.f32 %v5267, 0.0
      %v5332 = vmax.f32 %v5268, 0.0
      %v5333 = vmax.f32 %v5269, 0.0
      %v5334 = vmax.f32 %v5270, 0.0
      %v5335 = vmax.f32 %v5271, 0.0
      %v5336 = vmax.f32 %v5272, 0.0
      %v5337 = vmax.f32 %v5273, 0.0
      %v5338 = vmax.f32 %v5274, 0.0
      %v5339 = vmax.f32 %v5275, 0.0
      %v5340 = vmax.f32 %v5276, %v5277
      %v5341 = vmax.f32 %v5284, %v5285
      %v5342 = vmax.f32 %v5292, %v5293
      %v5343 = vmax.f32 %v5300, %v5301
      %v5344 = vmax.f32 %v5308, %v5309
      %v5345 = vmax.f32 %v5316, %v5317
      %v5346 = vmax.f32 %v5324, %v5325
      %v5347 = vmax.f32 %v5332, %v5333
      %v5348 = vmax.f32 %v5278, %v5279
      %v5349 = vmax.f32 %v5286, %v5287
      %v5350 = vmax.f32 %v5294, %v5295
      %v5351 = vmax.f32 %v5302, %v5303
      %v5352 = vmax.f32 %v5310, %v5311
      %v5353 = vmax.f32 %v5318, %v5319
      %v5354 = vmax.f32 %v5326, %v5327
      %v5355 = vmax.f32 %v5334, %v5335
      %v5356 = vmax.f32 %v5280, %v5281
      %v5357 = vmax.f32 %v5288, %v5289
      %v5358 = vmax.f32 %v5296, %v5297
      %v5359 = vmax.f32 %v5304, %v5305
      %v5360 = vmax.f32 %v5312, %v5313
      %v5361 = vmax.f32 %v5320, %v5321
      %v5362 = vmax.f32 %v5328, %v5329
      %v5363 = vmax.f32 %v5336, %v5337
      %v5364 = vmax.f32 %v5282, %v5283
      %v5365 = vmax.f32 %v5290, %v5291
      %v5366 = vmax.f32 %v5298, %v5299
      %v5367 = vmax.f32 %v5306, %v5307
      %v5368 = vmax.f32 %v5314, %v5315
      %v5369 = vmax.f32 %v5322, %v5323
      %v5370 = vmax.f32 %v5330, %v5331
      %v5371 = vmax.f32 %v5338, %v5339
      %v5372 = vld [vmem:[%s10] sm:$0xff]
      %v5373 = vld [vmem:[%s10 + $0x8] sm:$0xff]
      %v5374 = vld [vmem:[%s10 + $0x10] sm:$0xff]
      %v5375 = vld [vmem:[%s10 + $0x18] sm:$0xff]
      %v5376 = vld [vmem:[%s10 + $0x20] sm:$0xff]
      %v5377 = vld [vmem:[%s10 + $0x28] sm:$0xff]
      %v5378 = vld [vmem:[%s10 + $0x30] sm:$0xff]
      %v5379 = vld [vmem:[%s10 + $0x38] sm:$0xff]
      %v5380 = vld [vmem:[%s10 + $0x40] sm:$0xff]
      %v5381 = vld [vmem:[%s10 + $0x48] sm:$0xff]
      %v5382 = vld [vmem:[%s10 + $0x50] sm:$0xff]
      %v5383 = vld [vmem:[%s10 + $0x58] sm:$0xff]
      %v5384 = vld [vmem:[%s10 + $0x60] sm:$0xff]
      %v5385 = vld [vmem:[%s10 + $0x68] sm:$0xff]
      %v5386 = vld [vmem:[%s10 + $0x70] sm:$0xff]
      %v5387 = vld [vmem:[%s10 + $0x78] sm:$0xff]
      %v5388 = vld [vmem:[%s11] sm:$0xff]
      %v5389 = vld [vmem:[%s11 + $0x8] sm:$0xff]
      %v5390 = vld [vmem:[%s11 + $0x10] sm:$0xff]
      %v5391 = vld [vmem:[%s11 + $0x18] sm:$0xff]
      %v5392 = vld [vmem:[%s11 + $0x20] sm:$0xff]
      %v5393 = vld [vmem:[%s11 + $0x28] sm:$0xff]
      %v5394 = vld [vmem:[%s11 + $0x30] sm:$0xff]
      %v5395 = vld [vmem:[%s11 + $0x38] sm:$0xff]
      %v5396 = vld [vmem:[%s11 + $0x40] sm:$0xff]
      %v5397 = vld [vmem:[%s11 + $0x48] sm:$0xff]
      %v5398 = vld [vmem:[%s11 + $0x50] sm:$0xff]
      %v5399 = vld [vmem:[%s11 + $0x58] sm:$0xff]
      %v5400 = vld [vmem:[%s11 + $0x60] sm:$0xff]
      %v5401 = vld [vmem:[%s11 + $0x68] sm:$0xff]
      %v5402 = vld [vmem:[%s11 + $0x70] sm:$0xff]
      %v5403 = vld [vmem:[%s11 + $0x78] sm:$0xff]
      %v5404 = vld [vmem:[%s12] sm:$0xff]
      %v5405 = vld [vmem:[%s12 + $0x8] sm:$0xff]
      %v5406 = vld [vmem:[%s12 + $0x10] sm:$0xff]
      %v5407 = vld [vmem:[%s12 + $0x18] sm:$0xff]
      %v5408 = vld [vmem:[%s12 + $0x20] sm:$0xff]
      %v5409 = vld [vmem:[%s12 + $0x28] sm:$0xff]
      %v5410 = vld [vmem:[%s12 + $0x30] sm:$0xff]
      %v5411 = vld [vmem:[%s12 + $0x38] sm:$0xff]
      %v5412 = vld [vmem:[%s12 + $0x40] sm:$0xff]
      %v5413 = vld [vmem:[%s12 + $0x48] sm:$0xff]
      %v5414 = vld [vmem:[%s12 + $0x50] sm:$0xff]
      %v5415 = vld [vmem:[%s12 + $0x58] sm:$0xff]
      %v5416 = vld [vmem:[%s12 + $0x60] sm:$0xff]
      %v5417 = vld [vmem:[%s12 + $0x68] sm:$0xff]
      %v5418 = vld [vmem:[%s12 + $0x70] sm:$0xff]
      %v5419 = vld [vmem:[%s12 + $0x78] sm:$0xff]
      %v5420 = vpack.c.bf16 %v5341, %v5340
      %v5421 = vpack.c.bf16 %v5349, %v5348
      %v5422 = vpack.c.bf16 %v5357, %v5356
      %v5423 = vpack.c.bf16 %v5343, %v5342
      %v5424 = vpack.c.bf16 %v5351, %v5350
      %v5425 = vpack.c.bf16 %v5359, %v5358
      %v5426 = vpack.c.bf16 %v5345, %v5344
      %v5427 = vpack.c.bf16 %v5353, %v5352
      %v5428 = vpack.c.bf16 %v5361, %v5360
      %v5429 = vpack.c.bf16 %v5347, %v5346
      %v5430 = vpack.c.bf16 %v5355, %v5354
      %v5431 = vpack.c.bf16 %v5363, %v5362
      %v5432 = vpack.c.bf16 %v5365, %v5364
      %v5433 = vpack.c.bf16 %v5367, %v5366
      %v5434 = vpack.c.bf16 %v5369, %v5368
      %v5435 = vpack.c.bf16 %v5371, %v5370
      %v5452 = vunpack.c.l.b16 %v5372
      %v5453 = vunpack.c.h.b16 %v5372
      %v5454 = vunpack.c.l.b16 %v5373
      %v5455 = vunpack.c.h.b16 %v5373
      %v5456 = vunpack.c.l.b16 %v5374
      %v5457 = vunpack.c.h.b16 %v5374
      %v5458 = vunpack.c.l.b16 %v5375
      %v5459 = vunpack.c.h.b16 %v5375
      %v5460 = vunpack.c.l.b16 %v5376
      %v5461 = vunpack.c.h.b16 %v5376
      %v5462 = vunpack.c.l.b16 %v5377
      %v5463 = vunpack.c.h.b16 %v5377
      %v5464 = vunpack.c.l.b16 %v5378
      %v5465 = vunpack.c.h.b16 %v5378
      %v5466 = vunpack.c.l.b16 %v5379
      %v5467 = vunpack.c.h.b16 %v5379
      %v5468 = vunpack.c.l.b16 %v5380
      %v5469 = vunpack.c.h.b16 %v5380
      %v5470 = vunpack.c.l.b16 %v5381
      %v5471 = vunpack.c.h.b16 %v5381
      %v5472 = vunpack.c.l.b16 %v5382
      %v5473 = vunpack.c.h.b16 %v5382
      %v5474 = vunpack.c.l.b16 %v5383
      %v5475 = vunpack.c.h.b16 %v5383
      %v5476 = vunpack.c.l.b16 %v5384
      %v5477 = vunpack.c.h.b16 %v5384
      %v5478 = vunpack.c.l.b16 %v5385
      %v5479 = vunpack.c.h.b16 %v5385
      %v5480 = vunpack.c.l.b16 %v5386
      %v5481 = vunpack.c.h.b16 %v5386
      %v5482 = vunpack.c.l.b16 %v5387
      %v5483 = vunpack.c.h.b16 %v5387
      %v5484 = vpack.c.b16 %v5454, %v5452
      %v5485 = vpack.c.b16 %v5455, %v5453
      %v5486 = vpack.c.b16 %v5458, %v5456
      %v5487 = vpack.c.b16 %v5459, %v5457
      %v5488 = vpack.c.b16 %v5462, %v5460
      %v5489 = vpack.c.b16 %v5463, %v5461
      %v5490 = vpack.c.b16 %v5466, %v5464
      %v5491 = vpack.c.b16 %v5467, %v5465
      %v5492 = vpack.c.b16 %v5470, %v5468
      %v5493 = vpack.c.b16 %v5471, %v5469
      %v5494 = vpack.c.b16 %v5474, %v5472
      %v5495 = vpack.c.b16 %v5475, %v5473
      %v5496 = vpack.c.b16 %v5478, %v5476
      %v5497 = vpack.c.b16 %v5479, %v5477
      %v5498 = vpack.c.b16 %v5482, %v5480
      %v5499 = vpack.c.b16 %v5483, %v5481
      %v5509 = vsel %vm3223, %v5485, 0
      %v5512 = vsel %vm3223, %v5487, 0
      %v5515 = vsel %vm3223, %v5489, 0
      %v5518 = vsel %vm3223, %v5491, 0
      %v5521 = vsel %vm3223, %v5493, 0
      %v5524 = vsel %vm3223, %v5495, 0
      %v5527 = vsel %vm3223, %v5497, 0
      %v5530 = vsel %vm3223, %v5499, 0
      %5532 = vmatprep.subr.bf16.mxu0 %v5420
      %5533 = vmatpush1.bf16.msra.mxu0 %v768
      %5534 = vmatprep.subr.bf16.mxu0 %v5423
      %5535 = vmatpush1.bf16.msra.mxu0 %v768
      %5536 = vmatprep.subr.bf16.mxu0 %v5426
      %5537 = vmatpush1.bf16.msra.mxu0 %v768
      %5538 = vmatprep.subr.bf16.mxu0 %v5429
      %5539 = vmatpush1.bf16.msra.mxu0 %v768
      %5540 = vmatprep.subr.bf16.mxu0 %v5421
      %5541 = vmatpush1.bf16.msra.mxu0 %v5420
      %5542 = vmatprep.subr.bf16.mxu0 %v5424
      %5543 = vmatpush1.bf16.msra.mxu0 %v5423
      %5544 = vmatprep.subr.bf16.mxu0 %v5427
      %5545 = vmatpush1.bf16.msra.mxu0 %v5426
      %5546 = vmatprep.subr.bf16.mxu0 %v5430
      %5547 = vmatpush1.bf16.msra.mxu0 %v5429
      %5548 = vmatprep.subr.bf16.mxu0 %v5422
      %5549 = vmatpush1.bf16.msra.mxu0 %v5421
      %5550 = vmatprep.subr.bf16.mxu0 %v5425
      %5551 = vmatpush1.bf16.msra.mxu0 %v5424
      %5552 = vmatprep.subr.bf16.mxu0 %v5428
      %5553 = vmatpush1.bf16.msra.mxu0 %v5427
      %5554 = vmatprep.subr.bf16.mxu0 %v5431
      %5555 = vmatpush1.bf16.msra.mxu0 %v5430
      %5556 = vmatprep.subr.bf16.mxu0 0
      %5557 = vmatpush1.bf16.msra.mxu0 0
      %5558 = vmatprep.subr.bf16.mxu0 0
      %5559 = vmatpush1.bf16.msra.mxu0 0
      %5560 = vmatprep.subr.bf16.mxu0 0
      %5561 = vmatpush1.bf16.msra.mxu0 0
      %5562 = vmatprep.subr.bf16.mxu0 0
      %5563 = vmatpush1.bf16.msra.mxu0 0
      %5564 = vmatprep.mubr.bf16.mxu0 %v5509
      %5565 = vmatmul.mubr.bf16.gmra.mrb[0].mxu0 %v5484
      %v5566 = vpop.f32.mrb[0].mxu0
      %v5567 = vadd.f32 0.0, %v5566
      %v5568 = vpop.f32.mrb[0].mxu0
      %v5569 = vadd.f32 0.0, %v5568
      %v5570 = vpop.f32.mrb[0].mxu0
      %v5571 = vadd.f32 0.0, %v5570
      %v5572 = vpop.f32.mrb[0].mxu0
      %v5573 = vadd.f32 0.0, %v5572
      %5574 = vmatprep.mubr.bf16.mxu0 %v5512
      %5575 = vmatmul.mubr.bf16.gmra.mrb[0].mxu0 %v5486
      %v5576 = vpop.f32.mrb[0].mxu0
      %v5577 = vadd.f32 0.0, %v5576
      %v5578 = vpop.f32.mrb[0].mxu0
      %v5579 = vadd.f32 0.0, %v5578
      %v5580 = vpop.f32.mrb[0].mxu0
      %v5581 = vadd.f32 0.0, %v5580
      %v5582 = vpop.f32.mrb[0].mxu0
      %v5583 = vadd.f32 0.0, %v5582
      %5584 = vmatprep.mubr.bf16.mxu0 %v5515
      %5585 = vmatmul.mubr.bf16.gmra.mrb[0].mxu0 %v5488
      %v5586 = vpop.f32.mrb[0].mxu0
      %v5587 = vadd.f32 0.0, %v5586
      %v5588 = vpop.f32.mrb[0].mxu0
      %v5589 = vadd.f32 0.0, %v5588
      %v5590 = vpop.f32.mrb[0].mxu0
      %v5591 = vadd.f32 0.0, %v5590
      %v5592 = vpop.f32.mrb[0].mxu0
      %v5593 = vadd.f32 0.0, %v5592
      %5594 = vmatprep.mubr.bf16.mxu0 %v5518
      %5595 = vmatmul.mubr.bf16.gmra.mrb[0].mxu0 %v5490
      %v5596 = vpop.f32.mrb[0].mxu0
      %v5597 = vadd.f32 0.0, %v5596
      %v5598 = vpop.f32.mrb[0].mxu0
      %v5599 = vadd.f32 0.0, %v5598
      %v5600 = vpop.f32.mrb[0].mxu0
      %v5601 = vadd.f32 0.0, %v5600
      %v5602 = vpop.f32.mrb[0].mxu0
      %v5603 = vadd.f32 0.0, %v5602
      %5604 = vmatprep.mubr.bf16.mxu0 %v5521
      %5605 = vmatmul.mubr.bf16.gmra.mrb[0].mxu0 %v5492
      %v5606 = vpop.f32.mrb[0].mxu0
      %v5607 = vadd.f32 0.0, %v5606
      %v5608 = vpop.f32.mrb[0].mxu0
      %v5609 = vadd.f32 0.0, %v5608
      %v5610 = vpop.f32.mrb[0].mxu0
      %v5611 = vadd.f32 0.0, %v5610
      %v5612 = vpop.f32.mrb[0].mxu0
      %v5613 = vadd.f32 0.0, %v5612
      %5614 = vmatprep.mubr.bf16.mxu0 %v5524
      %5615 = vmatmul.mubr.bf16.gmra.mrb[0].mxu0 %v5494
      %v5616 = vpop.f32.mrb[0].mxu0
      %v5617 = vadd.f32 0.0, %v5616
      %v5618 = vpop.f32.mrb[0].mxu0
      %v5619 = vadd.f32 0.0, %v5618
      %v5620 = vpop.f32.mrb[0].mxu0
      %v5621 = vadd.f32 0.0, %v5620
      %v5622 = vpop.f32.mrb[0].mxu0
      %v5623 = vadd.f32 0.0, %v5622
      %5624 = vmatprep.mubr.bf16.mxu0 %v5527
      %5625 = vmatmul.mubr.bf16.gmra.mrb[0].mxu0 %v5496
      %v5626 = vpop.f32.mrb[0].mxu0
      %v5627 = vadd.f32 0.0, %v5626
      %v5628 = vpop.f32.mrb[0].mxu0
      %v5629 = vadd.f32 0.0, %v5628
      %v5630 = vpop.f32.mrb[0].mxu0
      %v5631 = vadd.f32 0.0, %v5630
      %v5632 = vpop.f32.mrb[0].mxu0
      %v5633 = vadd.f32 0.0, %v5632
      %5634 = vmatprep.mubr.bf16.mxu0 %v5530
      %5635 = vmatmul.mubr.bf16.gmra.mrb[0].mxu0 %v5498
      %v5636 = vpop.f32.mrb[0].mxu0
      %v5637 = vadd.f32 0.0, %v5636
      %v5638 = vpop.f32.mrb[0].mxu0
      %v5639 = vadd.f32 0.0, %v5638
      %v5640 = vpop.f32.mrb[0].mxu0
      %v5641 = vadd.f32 0.0, %v5640
      %v5642 = vpop.f32.mrb[0].mxu0
      %v5643 = vadd.f32 0.0, %v5642
      %5644 = vdwg.mxu0
      %5645 = vmatprep.subr.bf16.mxu0 %v5422
      %5646 = vmatpush1.bf16.msra.mxu0 %v5421
      %5647 = vmatprep.subr.bf16.mxu0 %v5425
      %5648 = vmatpush1.bf16.msra.mxu0 %v5424
      %5649 = vmatprep.subr.bf16.mxu0 %v5428
      %5650 = vmatpush1.bf16.msra.mxu0 %v5427
      %5651 = vmatprep.subr.bf16.mxu0 %v5431
      %5652 = vmatpush1.bf16.msra.mxu0 %v5430
      %5653 = vmatprep.subr.bf16.mxu0 %v5432
      %5654 = vmatpush1.bf16.msra.mxu0 %v5422
      %5655 = vmatprep.subr.bf16.mxu0 %v5433
      %5656 = vmatpush1.bf16.msra.mxu0 %v5425
      %5657 = vmatprep.subr.bf16.mxu0 %v5434
      %5658 = vmatpush1.bf16.msra.mxu0 %v5428
      %5659 = vmatprep.subr.bf16.mxu0 %v5435
      %5660 = vmatpush1.bf16.msra.mxu0 %v5431
      %5661 = vmatprep.subr.bf16.mxu0 %v768
      %5662 = vmatpush1.bf16.msra.mxu0 %v5432
      %5663 = vmatprep.subr.bf16.mxu0 %v768
      %5664 = vmatpush1.bf16.msra.mxu0 %v5433
      %5665 = vmatprep.subr.bf16.mxu0 %v768
      %5666 = vmatpush1.bf16.msra.mxu0 %v5434
      %5667 = vmatprep.subr.bf16.mxu0 %v768
      %5668 = vmatpush1.bf16.msra.mxu0 %v5435
      %5669 = vmatprep.subr.bf16.mxu0 0
      %5670 = vmatpush1.bf16.msra.mxu0 0
      %5671 = vmatprep.subr.bf16.mxu0 0
      %5672 = vmatpush1.bf16.msra.mxu0 0
      %5673 = vmatprep.subr.bf16.mxu0 0
      %5674 = vmatpush1.bf16.msra.mxu0 0
      %5675 = vmatprep.subr.bf16.mxu0 0
      %5676 = vmatpush1.bf16.msra.mxu0 0
      %5677 = vmatprep.mubr.bf16.mxu0 %v5509
      %5678 = vmatmul.mubr.bf16.gmra.mrb[0].mxu0 %v5484
      %v5679 = vpop.f32.mrb[0].mxu0
      %v5680 = vadd.f32 0.0, %v5679
      %v5681 = vpop.f32.mrb[0].mxu0
      %v5682 = vadd.f32 0.0, %v5681
      %v5683 = vpop.f32.mrb[0].mxu0
      %v5684 = vadd.f32 0.0, %v5683
      %v5685 = vpop.f32.mrb[0].mxu0
      %v5686 = vadd.f32 0.0, %v5685
      %5687 = vmatprep.mubr.bf16.mxu0 %v5512
      %5688 = vmatmul.mubr.bf16.gmra.mrb[0].mxu0 %v5486
      %v5689 = vpop.f32.mrb[0].mxu0
      %v5690 = vadd.f32 0.0, %v5689
      %v5691 = vpop.f32.mrb[0].mxu0
      %v5692 = vadd.f32 0.0, %v5691
      %v5693 = vpop.f32.mrb[0].mxu0
      %v5694 = vadd.f32 0.0, %v5693
      %v5695 = vpop.f32.mrb[0].mxu0
      %v5696 = vadd.f32 0.0, %v5695
      %5697 = vmatprep.mubr.bf16.mxu0 %v5515
      %5698 = vmatmul.mubr.bf16.gmra.mrb[0].mxu0 %v5488
      %v5699 = vpop.f32.mrb[0].mxu0
      %v5700 = vadd.f32 0.0, %v5699
      %v5701 = vpop.f32.mrb[0].mxu0
      %v5702 = vadd.f32 0.0, %v5701
      %v5703 = vpop.f32.mrb[0].mxu0
      %v5704 = vadd.f32 0.0, %v5703
      %v5705 = vpop.f32.mrb[0].mxu0
      %v5706 = vadd.f32 0.0, %v5705
      %5707 = vmatprep.mubr.bf16.mxu0 %v5518
      %5708 = vmatmul.mubr.bf16.gmra.mrb[0].mxu0 %v5490
      %v5709 = vpop.f32.mrb[0].mxu0
      %v5710 = vadd.f32 0.0, %v5709
      %v5711 = vpop.f32.mrb[0].mxu0
      %v5712 = vadd.f32 0.0, %v5711
      %v5713 = vpop.f32.mrb[0].mxu0
      %v5714 = vadd.f32 0.0, %v5713
      %v5715 = vpop.f32.mrb[0].mxu0
      %v5716 = vadd.f32 0.0, %v5715
      %5717 = vmatprep.mubr.bf16.mxu0 %v5521
      %5718 = vmatmul.mubr.bf16.gmra.mrb[0].mxu0 %v5492
      %v5719 = vpop.f32.mrb[0].mxu0
      %v5720 = vadd.f32 0.0, %v5719
      %v5721 = vpop.f32.mrb[0].mxu0
      %v5722 = vadd.f32 0.0, %v5721
      %v5723 = vpop.f32.mrb[0].mxu0
      %v5724 = vadd.f32 0.0, %v5723
      %v5725 = vpop.f32.mrb[0].mxu0
      %v5726 = vadd.f32 0.0, %v5725
      %5727 = vmatprep.mubr.bf16.mxu0 %v5524
      %5728 = vmatmul.mubr.bf16.gmra.mrb[0].mxu0 %v5494
      %v5729 = vpop.f32.mrb[0].mxu0
      %v5730 = vadd.f32 0.0, %v5729
      %v5731 = vpop.f32.mrb[0].mxu0
      %v5732 = vadd.f32 0.0, %v5731
      %v5733 = vpop.f32.mrb[0].mxu0
      %v5734 = vadd.f32 0.0, %v5733
      %v5735 = vpop.f32.mrb[0].mxu0
      %v5736 = vadd.f32 0.0, %v5735
      %5737 = vmatprep.mubr.bf16.mxu0 %v5527
      %5738 = vmatmul.mubr.bf16.gmra.mrb[0].mxu0 %v5496
      %v5739 = vpop.f32.mrb[0].mxu0
      %v5740 = vadd.f32 0.0, %v5739
      %v5741 = vpop.f32.mrb[0].mxu0
      %v5742 = vadd.f32 0.0, %v5741
      %v5743 = vpop.f32.mrb[0].mxu0
      %v5744 = vadd.f32 0.0, %v5743
      %v5745 = vpop.f32.mrb[0].mxu0
      %v5746 = vadd.f32 0.0, %v5745
      %5747 = vmatprep.mubr.bf16.mxu0 %v5530
      %5748 = vmatmul.mubr.bf16.gmra.mrb[0].mxu0 %v5498
      %v5749 = vpop.f32.mrb[0].mxu0
      %v5750 = vadd.f32 0.0, %v5749
      %v5751 = vpop.f32.mrb[0].mxu0
      %v5752 = vadd.f32 0.0, %v5751
      %v5753 = vpop.f32.mrb[0].mxu0
      %v5754 = vadd.f32 0.0, %v5753
      %v5755 = vpop.f32.mrb[0].mxu0
      %v5756 = vadd.f32 0.0, %v5755
      %5757 = vdwg.mxu0
      %5759 = vset.pattern.permute.xlu0 0
      %5760 = vperm.xlu0 %5759, %v5388
      %v5761 = vpop.permute.xlu0 %5760
      %5764 = vset.pattern.permute.xlu0 0
      %5765 = vperm.xlu0 %5764, %v5389
      %v5766 = vpop.permute.xlu0 %5765
      %5769 = vset.pattern.permute.xlu0 0
      %5770 = vperm.xlu0 %5769, %v5390
      %v5771 = vpop.permute.xlu0 %5770
      %5774 = vset.pattern.permute.xlu0 0
      %5775 = vperm.xlu0 %5774, %v5391
      %v5776 = vpop.permute.xlu0 %5775
      %5779 = vset.pattern.permute.xlu0 0
      %5780 = vperm.xlu0 %5779, %v5392
      %v5781 = vpop.permute.xlu0 %5780
      %5784 = vset.pattern.permute.xlu0 0
      %5785 = vperm.xlu0 %5784, %v5393
      %v5786 = vpop.permute.xlu0 %5785
      %5789 = vset.pattern.permute.xlu0 0
      %5790 = vperm.xlu0 %5789, %v5394
      %v5791 = vpop.permute.xlu0 %5790
      %5794 = vset.pattern.permute.xlu0 0
      %5795 = vperm.xlu0 %5794, %v5395
      %v5796 = vpop.permute.xlu0 %5795
      %5799 = vset.pattern.permute.xlu0 0
      %5800 = vperm.xlu0 %5799, %v5396
      %v5801 = vpop.permute.xlu0 %5800
      %5804 = vset.pattern.permute.xlu0 0
      %5805 = vperm.xlu0 %5804, %v5397
      %v5806 = vpop.permute.xlu0 %5805
      %5809 = vset.pattern.permute.xlu0 0
      %5810 = vperm.xlu0 %5809, %v5398
      %v5811 = vpop.permute.xlu0 %5810
      %5814 = vset.pattern.permute.xlu0 0
      %5815 = vperm.xlu0 %5814, %v5399
      %v5816 = vpop.permute.xlu0 %5815
      %5819 = vset.pattern.permute.xlu0 0
      %5820 = vperm.xlu0 %5819, %v5400
      %v5821 = vpop.permute.xlu0 %5820
      %5824 = vset.pattern.permute.xlu0 0
      %5825 = vperm.xlu0 %5824, %v5401
      %v5826 = vpop.permute.xlu0 %5825
      %5829 = vset.pattern.permute.xlu0 0
      %5830 = vperm.xlu0 %5829, %v5402
      %v5831 = vpop.permute.xlu0 %5830
      %5834 = vset.pattern.permute.xlu0 0
      %5835 = vperm.xlu0 %5834, %v5403
      %v5836 = vpop.permute.xlu0 %5835
      %v5838 = vmul.f32 %v5567, %v5761
      %v5839 = vmul.f32 %v5569, %v5761
      %v5840 = vmul.f32 %v5680, %v5761
      %v5841 = vmul.f32 %v5682, %v5761
      %v5842 = vmul.f32 %v5571, %v5766
      %v5843 = vmul.f32 %v5573, %v5766
      %v5844 = vmul.f32 %v5684, %v5766
      %v5845 = vmul.f32 %v5686, %v5766
      %v5846 = vmul.f32 %v5577, %v5771
      %v5847 = vmul.f32 %v5579, %v5771
      %v5848 = vmul.f32 %v5690, %v5771
      %v5849 = vmul.f32 %v5692, %v5771
      %v5850 = vmul.f32 %v5581, %v5776
      %v5851 = vmul.f32 %v5583, %v5776
      %v5852 = vmul.f32 %v5694, %v5776
      %v5853 = vmul.f32 %v5696, %v5776
      %v5854 = vmul.f32 %v5587, %v5781
      %v5855 = vmul.f32 %v5589, %v5781
      %v5856 = vmul.f32 %v5700, %v5781
      %v5857 = vmul.f32 %v5702, %v5781
      %v5858 = vmul.f32 %v5591, %v5786
      %v5859 = vmul.f32 %v5593, %v5786
      %v5860 = vmul.f32 %v5704, %v5786
      %v5861 = vmul.f32 %v5706, %v5786
      %v5862 = vmul.f32 %v5597, %v5791
      %v5863 = vmul.f32 %v5599, %v5791
      %v5864 = vmul.f32 %v5710, %v5791
      %v5865 = vmul.f32 %v5712, %v5791
      %v5866 = vmul.f32 %v5601, %v5796
      %v5867 = vmul.f32 %v5603, %v5796
      %v5868 = vmul.f32 %v5714, %v5796
      %v5869 = vmul.f32 %v5716, %v5796
      %v5870 = vmul.f32 %v5607, %v5801
      %v5871 = vmul.f32 %v5609, %v5801
      %v5872 = vmul.f32 %v5720, %v5801
      %v5873 = vmul.f32 %v5722, %v5801
      %v5874 = vmul.f32 %v5611, %v5806
      %v5875 = vmul.f32 %v5613, %v5806
      %v5876 = vmul.f32 %v5724, %v5806
      %v5877 = vmul.f32 %v5726, %v5806
      %v5878 = vmul.f32 %v5617, %v5811
      %v5879 = vmul.f32 %v5619, %v5811
      %v5880 = vmul.f32 %v5730, %v5811
      %v5881 = vmul.f32 %v5732, %v5811
      %v5882 = vmul.f32 %v5621, %v5816
      %v5883 = vmul.f32 %v5623, %v5816
      %v5884 = vmul.f32 %v5734, %v5816
      %v5885 = vmul.f32 %v5736, %v5816
      %v5886 = vmul.f32 %v5627, %v5821
      %v5887 = vmul.f32 %v5629, %v5821
      %v5888 = vmul.f32 %v5740, %v5821
      %v5889 = vmul.f32 %v5742, %v5821
      %v5890 = vmul.f32 %v5631, %v5826
      %v5891 = vmul.f32 %v5633, %v5826
      %v5892 = vmul.f32 %v5744, %v5826
      %v5893 = vmul.f32 %v5746, %v5826
      %v5894 = vmul.f32 %v5637, %v5831
      %v5895 = vmul.f32 %v5639, %v5831
      %v5896 = vmul.f32 %v5750, %v5831
      %v5897 = vmul.f32 %v5752, %v5831
      %v5898 = vmul.f32 %v5641, %v5836
      %v5899 = vmul.f32 %v5643, %v5836
      %v5900 = vmul.f32 %v5754, %v5836
      %v5901 = vmul.f32 %v5756, %v5836
      %5903 = vset.pattern.permute.xlu0 0
      %5904 = vperm.xlu0 %5903, %v5404
      %v5905 = vpop.permute.xlu0 %5904
      %5908 = vset.pattern.permute.xlu0 0
      %5909 = vperm.xlu0 %5908, %v5405
      %v5910 = vpop.permute.xlu0 %5909
      %5913 = vset.pattern.permute.xlu0 0
      %5914 = vperm.xlu0 %5913, %v5406
      %v5915 = vpop.permute.xlu0 %5914
      %5918 = vset.pattern.permute.xlu0 0
      %5919 = vperm.xlu0 %5918, %v5407
      %v5920 = vpop.permute.xlu0 %5919
      %5923 = vset.pattern.permute.xlu0 0
      %5924 = vperm.xlu0 %5923, %v5408
      %v5925 = vpop.permute.xlu0 %5924
      %5928 = vset.pattern.permute.xlu0 0
      %5929 = vperm.xlu0 %5928, %v5409
      %v5930 = vpop.permute.xlu0 %5929
      %5933 = vset.pattern.permute.xlu0 0
      %5934 = vperm.xlu0 %5933, %v5410
      %v5935 = vpop.permute.xlu0 %5934
      %5938 = vset.pattern.permute.xlu0 0
      %5939 = vperm.xlu0 %5938, %v5411
      %v5940 = vpop.permute.xlu0 %5939
      %5943 = vset.pattern.permute.xlu0 0
      %5944 = vperm.xlu0 %5943, %v5412
      %v5945 = vpop.permute.xlu0 %5944
      %5948 = vset.pattern.permute.xlu0 0
      %5949 = vperm.xlu0 %5948, %v5413
      %v5950 = vpop.permute.xlu0 %5949
      %5953 = vset.pattern.permute.xlu0 0
      %5954 = vperm.xlu0 %5953, %v5414
      %v5955 = vpop.permute.xlu0 %5954
      %5958 = vset.pattern.permute.xlu0 0
      %5959 = vperm.xlu0 %5958, %v5415
      %v5960 = vpop.permute.xlu0 %5959
      %5963 = vset.pattern.permute.xlu0 0
      %5964 = vperm.xlu0 %5963, %v5416
      %v5965 = vpop.permute.xlu0 %5964
      %5968 = vset.pattern.permute.xlu0 0
      %5969 = vperm.xlu0 %5968, %v5417
      %v5970 = vpop.permute.xlu0 %5969
      %5973 = vset.pattern.permute.xlu0 0
      %5974 = vperm.xlu0 %5973, %v5418
      %v5975 = vpop.permute.xlu0 %5974
      %5978 = vset.pattern.permute.xlu0 0
      %5979 = vperm.xlu0 %5978, %v5419
      %v5980 = vpop.permute.xlu0 %5979
      %v5982 = vadd.f32 %v5838, %v5905
      %v5983 = vadd.f32 %v5839, %v5905
      %v5984 = vadd.f32 %v5840, %v5905
      %v5985 = vadd.f32 %v5841, %v5905
      %v5986 = vadd.f32 %v5842, %v5910
      %v5987 = vadd.f32 %v5843, %v5910
      %v5988 = vadd.f32 %v5844, %v5910
      %v5989 = vadd.f32 %v5845, %v5910
      %v5990 = vadd.f32 %v5846, %v5915
      %v5991 = vadd.f32 %v5847, %v5915
      %v5992 = vadd.f32 %v5848, %v5915
      %v5993 = vadd.f32 %v5849, %v5915
      %v5994 = vadd.f32 %v5850, %v5920
      %v5995 = vadd.f32 %v5851, %v5920
      %v5996 = vadd.f32 %v5852, %v5920
      %v5997 = vadd.f32 %v5853, %v5920
      %v5998 = vadd.f32 %v5854, %v5925
      %v5999 = vadd.f32 %v5855, %v5925
      %v6000 = vadd.f32 %v5856, %v5925
      %v6001 = vadd.f32 %v5857, %v5925
      %v6002 = vadd.f32 %v5858, %v5930
      %v6003 = vadd.f32 %v5859, %v5930
      %v6004 = vadd.f32 %v5860, %v5930
      %v6005 = vadd.f32 %v5861, %v5930
      %v6006 = vadd.f32 %v5862, %v5935
      %v6007 = vadd.f32 %v5863, %v5935
      %v6008 = vadd.f32 %v5864, %v5935
      %v6009 = vadd.f32 %v5865, %v5935
      %v6010 = vadd.f32 %v5866, %v5940
      %v6011 = vadd.f32 %v5867, %v5940
      %v6012 = vadd.f32 %v5868, %v5940
      %v6013 = vadd.f32 %v5869, %v5940
      %v6014 = vadd.f32 %v5870, %v5945
      %v6015 = vadd.f32 %v5871, %v5945
      %v6016 = vadd.f32 %v5872, %v5945
      %v6017 = vadd.f32 %v5873, %v5945
      %v6018 = vadd.f32 %v5874, %v5950
      %v6019 = vadd.f32 %v5875, %v5950
      %v6020 = vadd.f32 %v5876, %v5950
      %v6021 = vadd.f32 %v5877, %v5950
      %v6022 = vadd.f32 %v5878, %v5955
      %v6023 = vadd.f32 %v5879, %v5955
      %v6024 = vadd.f32 %v5880, %v5955
      %v6025 = vadd.f32 %v5881, %v5955
      %v6026 = vadd.f32 %v5882, %v5960
      %v6027 = vadd.f32 %v5883, %v5960
      %v6028 = vadd.f32 %v5884, %v5960
      %v6029 = vadd.f32 %v5885, %v5960
      %v6030 = vadd.f32 %v5886, %v5965
      %v6031 = vadd.f32 %v5887, %v5965
      %v6032 = vadd.f32 %v5888, %v5965
      %v6033 = vadd.f32 %v5889, %v5965
      %v6034 = vadd.f32 %v5890, %v5970
      %v6035 = vadd.f32 %v5891, %v5970
      %v6036 = vadd.f32 %v5892, %v5970
      %v6037 = vadd.f32 %v5893, %v5970
      %v6038 = vadd.f32 %v5894, %v5975
      %v6039 = vadd.f32 %v5895, %v5975
      %v6040 = vadd.f32 %v5896, %v5975
      %v6041 = vadd.f32 %v5897, %v5975
      %v6042 = vadd.f32 %v5898, %v5980
      %v6043 = vadd.f32 %v5899, %v5980
      %v6044 = vadd.f32 %v5900, %v5980
      %v6045 = vadd.f32 %v5901, %v5980
      %v6046 = vmax.f32 %v5982, 0.0
      %v6047 = vmax.f32 %v5983, 0.0
      %v6048 = vmax.f32 %v5984, 0.0
      %v6049 = vmax.f32 %v5985, 0.0
      %v6050 = vmax.f32 %v5986, 0.0
      %v6051 = vmax.f32 %v5987, 0.0
      %v6052 = vmax.f32 %v5988, 0.0
      %v6053 = vmax.f32 %v5989, 0.0
      %v6054 = vmax.f32 %v5990, 0.0
      %v6055 = vmax.f32 %v5991, 0.0
      %v6056 = vmax.f32 %v5992, 0.0
      %v6057 = vmax.f32 %v5993, 0.0
      %v6058 = vmax.f32 %v5994, 0.0
      %v6059 = vmax.f32 %v5995, 0.0
      %v6060 = vmax.f32 %v5996, 0.0
      %v6061 = vmax.f32 %v5997, 0.0
      %v6062 = vmax.f32 %v5998, 0.0
      %v6063 = vmax.f32 %v5999, 0.0
      %v6064 = vmax.f32 %v6000, 0.0
      %v6065 = vmax.f32 %v6001, 0.0
      %v6066 = vmax.f32 %v6002, 0.0
      %v6067 = vmax.f32 %v6003, 0.0
      %v6068 = vmax.f32 %v6004, 0.0
      %v6069 = vmax.f32 %v6005, 0.0
      %v6070 = vmax.f32 %v6006, 0.0
      %v6071 = vmax.f32 %v6007, 0.0
      %v6072 = vmax.f32 %v6008, 0.0
      %v6073 = vmax.f32 %v6009, 0.0
      %v6074 = vmax.f32 %v6010, 0.0
      %v6075 = vmax.f32 %v6011, 0.0
      %v6076 = vmax.f32 %v6012, 0.0
      %v6077 = vmax.f32 %v6013, 0.0
      %v6078 = vmax.f32 %v6014, 0.0
      %v6079 = vmax.f32 %v6015, 0.0
      %v6080 = vmax.f32 %v6016, 0.0
      %v6081 = vmax.f32 %v6017, 0.0
      %v6082 = vmax.f32 %v6018, 0.0
      %v6083 = vmax.f32 %v6019, 0.0
      %v6084 = vmax.f32 %v6020, 0.0
      %v6085 = vmax.f32 %v6021, 0.0
      %v6086 = vmax.f32 %v6022, 0.0
      %v6087 = vmax.f32 %v6023, 0.0
      %v6088 = vmax.f32 %v6024, 0.0
      %v6089 = vmax.f32 %v6025, 0.0
      %v6090 = vmax.f32 %v6026, 0.0
      %v6091 = vmax.f32 %v6027, 0.0
      %v6092 = vmax.f32 %v6028, 0.0
      %v6093 = vmax.f32 %v6029, 0.0
      %v6094 = vmax.f32 %v6030, 0.0
      %v6095 = vmax.f32 %v6031, 0.0
      %v6096 = vmax.f32 %v6032, 0.0
      %v6097 = vmax.f32 %v6033, 0.0
      %v6098 = vmax.f32 %v6034, 0.0
      %v6099 = vmax.f32 %v6035, 0.0
      %v6100 = vmax.f32 %v6036, 0.0
      %v6101 = vmax.f32 %v6037, 0.0
      %v6102 = vmax.f32 %v6038, 0.0
      %v6103 = vmax.f32 %v6039, 0.0
      %v6104 = vmax.f32 %v6040, 0.0
      %v6105 = vmax.f32 %v6041, 0.0
      %v6106 = vmax.f32 %v6042, 0.0
      %v6107 = vmax.f32 %v6043, 0.0
      %v6108 = vmax.f32 %v6044, 0.0
      %v6109 = vmax.f32 %v6045, 0.0
      %v6110 = vmax.f32 %v6046, %v6047
      %v6111 = vmax.f32 %v6050, %v6051
      %v6112 = vmax.f32 %v6054, %v6055
      %v6113 = vmax.f32 %v6058, %v6059
      %v6114 = vmax.f32 %v6062, %v6063
      %v6115 = vmax.f32 %v6066, %v6067
      %v6116 = vmax.f32 %v6070, %v6071
      %v6117 = vmax.f32 %v6074, %v6075
      %v6118 = vmax.f32 %v6078, %v6079
      %v6119 = vmax.f32 %v6082, %v6083
      %v6120 = vmax.f32 %v6086, %v6087
      %v6121 = vmax.f32 %v6090, %v6091
      %v6122 = vmax.f32 %v6094, %v6095
      %v6123 = vmax.f32 %v6098, %v6099
      %v6124 = vmax.f32 %v6102, %v6103
      %v6125 = vmax.f32 %v6106, %v6107
      %v6126 = vmax.f32 %v6048, %v6049
      %v6127 = vmax.f32 %v6052, %v6053
      %v6128 = vmax.f32 %v6056, %v6057
      %v6129 = vmax.f32 %v6060, %v6061
      %v6130 = vmax.f32 %v6064, %v6065
      %v6131 = vmax.f32 %v6068, %v6069
      %v6132 = vmax.f32 %v6072, %v6073
      %v6133 = vmax.f32 %v6076, %v6077
      %v6134 = vmax.f32 %v6080, %v6081
      %v6135 = vmax.f32 %v6084, %v6085
      %v6136 = vmax.f32 %v6088, %v6089
      %v6137 = vmax.f32 %v6092, %v6093
      %v6138 = vmax.f32 %v6096, %v6097
      %v6139 = vmax.f32 %v6100, %v6101
      %v6140 = vmax.f32 %v6104, %v6105
      %v6141 = vmax.f32 %v6108, %v6109
      %v6142 = vld [vmem:[%s13] sm:$0xff]
      %v6143 = vld [vmem:[%s13 + $0x8] sm:$0xff]
      %v6144 = vld [vmem:[%s13 + $0x10] sm:$0xff]
      %v6145 = vld [vmem:[%s13 + $0x18] sm:$0xff]
      %v6146 = vld [vmem:[%s13 + $0x20] sm:$0xff]
      %v6147 = vld [vmem:[%s13 + $0x28] sm:$0xff]
      %v6148 = vld [vmem:[%s13 + $0x30] sm:$0xff]
      %v6149 = vld [vmem:[%s13 + $0x38] sm:$0xff]
      %v6150 = vld [vmem:[%s13 + $0x40] sm:$0xff]
      %v6151 = vld [vmem:[%s13 + $0x48] sm:$0xff]
      %v6152 = vld [vmem:[%s13 + $0x50] sm:$0xff]
      %v6153 = vld [vmem:[%s13 + $0x58] sm:$0xff]
      %v6154 = vld [vmem:[%s13 + $0x60] sm:$0xff]
      %v6155 = vld [vmem:[%s13 + $0x68] sm:$0xff]
      %v6156 = vld [vmem:[%s13 + $0x70] sm:$0xff]
      %v6157 = vld [vmem:[%s13 + $0x78] sm:$0xff]
      %v6158 = vld [vmem:[%s13 + $0x80] sm:$0xff]
      %v6159 = vld [vmem:[%s13 + $0x88] sm:$0xff]
      %v6160 = vld [vmem:[%s13 + $0x90] sm:$0xff]
      %v6161 = vld [vmem:[%s13 + $0x98] sm:$0xff]
      %v6162 = vld [vmem:[%s13 + $0xa0] sm:$0xff]
      %v6163 = vld [vmem:[%s13 + $0xa8] sm:$0xff]
      %v6164 = vld [vmem:[%s13 + $0xb0] sm:$0xff]
      %v6165 = vld [vmem:[%s13 + $0xb8] sm:$0xff]
      %v6166 = vld [vmem:[%s13 + $0xc0] sm:$0xff]
      %v6167 = vld [vmem:[%s13 + $0xc8] sm:$0xff]
      %v6168 = vld [vmem:[%s13 + $0xd0] sm:$0xff]
      %v6169 = vld [vmem:[%s13 + $0xd8] sm:$0xff]
      %v6170 = vld [vmem:[%s13 + $0xe0] sm:$0xff]
      %v6171 = vld [vmem:[%s13 + $0xe8] sm:$0xff]
      %v6172 = vld [vmem:[%s13 + $0xf0] sm:$0xff]
      %v6173 = vld [vmem:[%s13 + $0xf8] sm:$0xff]
      %v6174 = vpack.c.bf16 %v6111, %v6110
      %v6175 = vpack.c.bf16 %v6113, %v6112
      %v6176 = vpack.c.bf16 %v6115, %v6114
      %v6177 = vpack.c.bf16 %v6117, %v6116
      %v6178 = vpack.c.bf16 %v6119, %v6118
      %v6179 = vpack.c.bf16 %v6121, %v6120
      %v6180 = vpack.c.bf16 %v6123, %v6122
      %v6181 = vpack.c.bf16 %v6125, %v6124
      %v6182 = vpack.c.bf16 %v6127, %v6126
      %v6183 = vpack.c.bf16 %v6129, %v6128
      %v6184 = vpack.c.bf16 %v6131, %v6130
      %v6185 = vpack.c.bf16 %v6133, %v6132
      %v6186 = vpack.c.bf16 %v6135, %v6134
      %v6187 = vpack.c.bf16 %v6137, %v6136
      %v6188 = vpack.c.bf16 %v6139, %v6138
      %v6189 = vpack.c.bf16 %v6141, %v6140
      %v6190 = vld [vmem:[%s14] sm:$0xff]
      %v6191 = vld [vmem:[%s14 + $0x8] sm:$0xff]
      %v6192 = vld [vmem:[%s14 + $0x10] sm:$0xff]
      %v6193 = vld [vmem:[%s14 + $0x18] sm:$0xff]
      %v6194 = vld [vmem:[%s14 + $0x20] sm:$0xff]
      %v6195 = vld [vmem:[%s14 + $0x28] sm:$0xff]
      %v6196 = vld [vmem:[%s14 + $0x30] sm:$0xff]
      %v6197 = vld [vmem:[%s14 + $0x38] sm:$0xff]
      %v6198 = vld [vmem:[%s14 + $0x40] sm:$0xff]
      %v6199 = vld [vmem:[%s14 + $0x48] sm:$0xff]
      %v6200 = vld [vmem:[%s14 + $0x50] sm:$0xff]
      %v6201 = vld [vmem:[%s14 + $0x58] sm:$0xff]
      %v6202 = vld [vmem:[%s14 + $0x60] sm:$0xff]
      %v6203 = vld [vmem:[%s14 + $0x68] sm:$0xff]
      %v6204 = vld [vmem:[%s14 + $0x70] sm:$0xff]
      %v6205 = vld [vmem:[%s14 + $0x78] sm:$0xff]
      %v6206 = vld [vmem:[%s14 + $0x80] sm:$0xff]
      %v6207 = vld [vmem:[%s14 + $0x88] sm:$0xff]
      %v6208 = vld [vmem:[%s14 + $0x90] sm:$0xff]
      %v6209 = vld [vmem:[%s14 + $0x98] sm:$0xff]
      %v6210 = vld [vmem:[%s14 + $0xa0] sm:$0xff]
      %v6211 = vld [vmem:[%s14 + $0xa8] sm:$0xff]
      %v6212 = vld [vmem:[%s14 + $0xb0] sm:$0xff]
      %v6213 = vld [vmem:[%s14 + $0xb8] sm:$0xff]
      %v6214 = vld [vmem:[%s14 + $0xc0] sm:$0xff]
      %v6215 = vld [vmem:[%s14 + $0xc8] sm:$0xff]
      %v6216 = vld [vmem:[%s14 + $0xd0] sm:$0xff]
      %v6217 = vld [vmem:[%s14 + $0xd8] sm:$0xff]
      %v6218 = vld [vmem:[%s14 + $0xe0] sm:$0xff]
      %v6219 = vld [vmem:[%s14 + $0xe8] sm:$0xff]
      %v6220 = vld [vmem:[%s14 + $0xf0] sm:$0xff]
      %v6221 = vld [vmem:[%s14 + $0xf8] sm:$0xff]
      %6223 = vset.pattern.permute.xlu0 0
      %6224 = vperm.xlu0 %6223, %v6190
      %v6225 = vpop.permute.xlu0 %6224
      %6228 = vset.pattern.permute.xlu0 0
      %6229 = vperm.xlu0 %6228, %v6191
      %v6230 = vpop.permute.xlu0 %6229
      %6233 = vset.pattern.permute.xlu0 0
      %6234 = vperm.xlu0 %6233, %v6192
      %v6235 = vpop.permute.xlu0 %6234
      %6238 = vset.pattern.permute.xlu0 0
      %6239 = vperm.xlu0 %6238, %v6193
      %v6240 = vpop.permute.xlu0 %6239
      %6243 = vset.pattern.permute.xlu0 0
      %6244 = vperm.xlu0 %6243, %v6194
      %v6245 = vpop.permute.xlu0 %6244
      %6248 = vset.pattern.permute.xlu0 0
      %6249 = vperm.xlu0 %6248, %v6195
      %v6250 = vpop.permute.xlu0 %6249
      %6253 = vset.pattern.permute.xlu0 0
      %6254 = vperm.xlu0 %6253, %v6196
      %v6255 = vpop.permute.xlu0 %6254
      %6258 = vset.pattern.permute.xlu0 0
      %6259 = vperm.xlu0 %6258, %v6197
      %v6260 = vpop.permute.xlu0 %6259
      %6263 = vset.pattern.permute.xlu0 0
      %6264 = vperm.xlu0 %6263, %v6198
      %v6265 = vpop.permute.xlu0 %6264
      %6268 = vset.pattern.permute.xlu0 0
      %6269 = vperm.xlu0 %6268, %v6199
      %v6270 = vpop.permute.xlu0 %6269
      %6273 = vset.pattern.permute.xlu0 0
      %6274 = vperm.xlu0 %6273, %v6200
      %v6275 = vpop.permute.xlu0 %6274
      %6278 = vset.pattern.permute.xlu0 0
      %6279 = vperm.xlu0 %6278, %v6201
      %v6280 = vpop.permute.xlu0 %6279
      %6283 = vset.pattern.permute.xlu0 0
      %6284 = vperm.xlu0 %6283, %v6202
      %v6285 = vpop.permute.xlu0 %6284
      %6288 = vset.pattern.permute.xlu0 0
      %6289 = vperm.xlu0 %6288, %v6203
      %v6290 = vpop.permute.xlu0 %6289
      %6293 = vset.pattern.permute.xlu0 0
      %6294 = vperm.xlu0 %6293, %v6204
      %v6295 = vpop.permute.xlu0 %6294
      %6298 = vset.pattern.permute.xlu0 0
      %6299 = vperm.xlu0 %6298, %v6205
      %v6300 = vpop.permute.xlu0 %6299
      %6303 = vset.pattern.permute.xlu0 0
      %6304 = vperm.xlu0 %6303, %v6206
      %v6305 = vpop.permute.xlu0 %6304
      %6308 = vset.pattern.permute.xlu0 0
      %6309 = vperm.xlu0 %6308, %v6207
      %v6310 = vpop.permute.xlu0 %6309
      %6313 = vset.pattern.permute.xlu0 0
      %6314 = vperm.xlu0 %6313, %v6208
      %v6315 = vpop.permute.xlu0 %6314
      %6318 = vset.pattern.permute.xlu0 0
      %6319 = vperm.xlu0 %6318, %v6209
      %v6320 = vpop.permute.xlu0 %6319
      %6323 = vset.pattern.permute.xlu0 0
      %6324 = vperm.xlu0 %6323, %v6210
      %v6325 = vpop.permute.xlu0 %6324
      %6328 = vset.pattern.permute.xlu0 0
      %6329 = vperm.xlu0 %6328, %v6211
      %v6330 = vpop.permute.xlu0 %6329
      %6333 = vset.pattern.permute.xlu0 0
      %6334 = vperm.xlu0 %6333, %v6212
      %v6335 = vpop.permute.xlu0 %6334
      %6338 = vset.pattern.permute.xlu0 0
      %6339 = vperm.xlu0 %6338, %v6213
      %v6340 = vpop.permute.xlu0 %6339
      %6343 = vset.pattern.permute.xlu0 0
      %6344 = vperm.xlu0 %6343, %v6214
      %v6345 = vpop.permute.xlu0 %6344
      %6348 = vset.pattern.permute.xlu0 0
      %6349 = vperm.xlu0 %6348, %v6215
      %v6350 = vpop.permute.xlu0 %6349
      %6353 = vset.pattern.permute.xlu0 0
      %6354 = vperm.xlu0 %6353, %v6216
      %v6355 = vpop.permute.xlu0 %6354
      %6358 = vset.pattern.permute.xlu0 0
      %6359 = vperm.xlu0 %6358, %v6217
      %v6360 = vpop.permute.xlu0 %6359
      %6363 = vset.pattern.permute.xlu0 0
      %6364 = vperm.xlu0 %6363, %v6218
      %v6365 = vpop.permute.xlu0 %6364
      %6368 = vset.pattern.permute.xlu0 0
      %6369 = vperm.xlu0 %6368, %v6219
      %v6370 = vpop.permute.xlu0 %6369
      %6373 = vset.pattern.permute.xlu0 0
      %6374 = vperm.xlu0 %6373, %v6220
      %v6375 = vpop.permute.xlu0 %6374
      %6378 = vset.pattern.permute.xlu0 0
      %6379 = vperm.xlu0 %6378, %v6221
      %v6380 = vpop.permute.xlu0 %6379
      %v6414 = vunpack.c.l.b16 %v6142
      %v6415 = vunpack.c.h.b16 %v6142
      %v6416 = vunpack.c.l.b16 %v6143
      %v6417 = vunpack.c.h.b16 %v6143
      %v6418 = vunpack.c.l.b16 %v6144
      %v6419 = vunpack.c.h.b16 %v6144
      %v6420 = vunpack.c.l.b16 %v6145
      %v6421 = vunpack.c.h.b16 %v6145
      %v6422 = vunpack.c.l.b16 %v6146
      %v6423 = vunpack.c.h.b16 %v6146
      %v6424 = vunpack.c.l.b16 %v6147
      %v6425 = vunpack.c.h.b16 %v6147
      %v6426 = vunpack.c.l.b16 %v6148
      %v6427 = vunpack.c.h.b16 %v6148
      %v6428 = vunpack.c.l.b16 %v6149
      %v6429 = vunpack.c.h.b16 %v6149
      %v6430 = vunpack.c.l.b16 %v6150
      %v6431 = vunpack.c.h.b16 %v6150
      %v6432 = vunpack.c.l.b16 %v6151
      %v6433 = vunpack.c.h.b16 %v6151
      %v6434 = vunpack.c.l.b16 %v6152
      %v6435 = vunpack.c.h.b16 %v6152
      %v6436 = vunpack.c.l.b16 %v6153
      %v6437 = vunpack.c.h.b16 %v6153
      %v6438 = vunpack.c.l.b16 %v6154
      %v6439 = vunpack.c.h.b16 %v6154
      %v6440 = vunpack.c.l.b16 %v6155
      %v6441 = vunpack.c.h.b16 %v6155
      %v6442 = vunpack.c.l.b16 %v6156
      %v6443 = vunpack.c.h.b16 %v6156
      %v6444 = vunpack.c.l.b16 %v6157
      %v6445 = vunpack.c.h.b16 %v6157
      %v6446 = vunpack.c.l.b16 %v6158
      %v6447 = vunpack.c.h.b16 %v6158
      %v6448 = vunpack.c.l.b16 %v6159
      %v6449 = vunpack.c.h.b16 %v6159
      %v6450 = vunpack.c.l.b16 %v6160
      %v6451 = vunpack.c.h.b16 %v6160
      %v6452 = vunpack.c.l.b16 %v6161
      %v6453 = vunpack.c.h.b16 %v6161
      %v6454 = vunpack.c.l.b16 %v6162
      %v6455 = vunpack.c.h.b16 %v6162
      %v6456 = vunpack.c.l.b16 %v6163
      %v6457 = vunpack.c.h.b16 %v6163
      %v6458 = vunpack.c.l.b16 %v6164
      %v6459 = vunpack.c.h.b16 %v6164
      %v6460 = vunpack.c.l.b16 %v6165
      %v6461 = vunpack.c.h.b16 %v6165
      %v6462 = vunpack.c.l.b16 %v6166
      %v6463 = vunpack.c.h.b16 %v6166
      %v6464 = vunpack.c.l.b16 %v6167
      %v6465 = vunpack.c.h.b16 %v6167
      %v6466 = vunpack.c.l.b16 %v6168
      %v6467 = vunpack.c.h.b16 %v6168
      %v6468 = vunpack.c.l.b16 %v6169
      %v6469 = vunpack.c.h.b16 %v6169
      %v6470 = vunpack.c.l.b16 %v6170
      %v6471 = vunpack.c.h.b16 %v6170
      %v6472 = vunpack.c.l.b16 %v6171
      %v6473 = vunpack.c.h.b16 %v6171
      %v6474 = vunpack.c.l.b16 %v6172
      %v6475 = vunpack.c.h.b16 %v6172
      %v6476 = vunpack.c.l.b16 %v6173
      %v6477 = vunpack.c.h.b16 %v6173
      %v6478 = vpack.c.b16 %v6416, %v6414
      %v6479 = vpack.c.b16 %v6417, %v6415
      %v6480 = vpack.c.b16 %v6420, %v6418
      %v6481 = vpack.c.b16 %v6421, %v6419
      %v6482 = vpack.c.b16 %v6424, %v6422
      %v6483 = vpack.c.b16 %v6425, %v6423
      %v6484 = vpack.c.b16 %v6428, %v6426
      %v6485 = vpack.c.b16 %v6429, %v6427
      %v6486 = vpack.c.b16 %v6432, %v6430
      %v6487 = vpack.c.b16 %v6433, %v6431
      %v6488 = vpack.c.b16 %v6436, %v6434
      %v6489 = vpack.c.b16 %v6437, %v6435
      %v6490 = vpack.c.b16 %v6440, %v6438
      %v6491 = vpack.c.b16 %v6441, %v6439
      %v6492 = vpack.c.b16 %v6444, %v6442
      %v6493 = vpack.c.b16 %v6445, %v6443
      %v6494 = vpack.c.b16 %v6448, %v6446
      %v6495 = vpack.c.b16 %v6449, %v6447
      %v6496 = vpack.c.b16 %v6452, %v6450
      %v6497 = vpack.c.b16 %v6453, %v6451
      %v6498 = vpack.c.b16 %v6456, %v6454
      %v6499 = vpack.c.b16 %v6457, %v6455
      %v6500 = vpack.c.b16 %v6460, %v6458
      %v6501 = vpack.c.b16 %v6461, %v6459
      %v6502 = vpack.c.b16 %v6464, %v6462
      %v6503 = vpack.c.b16 %v6465, %v6463
      %v6504 = vpack.c.b16 %v6468, %v6466
      %v6505 = vpack.c.b16 %v6469, %v6467
      %v6506 = vpack.c.b16 %v6472, %v6470
      %v6507 = vpack.c.b16 %v6473, %v6471
      %v6508 = vpack.c.b16 %v6476, %v6474
      %v6509 = vpack.c.b16 %v6477, %v6475
      %6542 = vmatprep.subr.bf16.mxu0 0
      %6543 = vmatpush1.bf16.msra.mxu0 %v6174
      %6544 = vmatprep.subr.bf16.mxu0 0
      %6545 = vmatpush1.bf16.msra.mxu0 %v6175
      %6546 = vmatprep.subr.bf16.mxu0 0
      %6547 = vmatpush1.bf16.msra.mxu0 %v6176
      %6548 = vmatprep.subr.bf16.mxu0 0
      %6549 = vmatpush1.bf16.msra.mxu0 %v6177
      %6550 = vmatprep.subr.bf16.mxu0 0
      %6551 = vmatpush1.bf16.msra.mxu0 %v6178
      %6552 = vmatprep.subr.bf16.mxu0 0
      %6553 = vmatpush1.bf16.msra.mxu0 %v6179
      %6554 = vmatprep.subr.bf16.mxu0 0
      %6555 = vmatpush1.bf16.msra.mxu0 %v6180
      %6556 = vmatprep.subr.bf16.mxu0 0
      %6557 = vmatpush1.bf16.msra.mxu0 %v6181
      %6558 = vmatprep.subr.bf16.mxu0 0
      %6559 = vmatpush1.bf16.msra.mxu0 %v6182
      %6560 = vmatprep.subr.bf16.mxu0 0
      %6561 = vmatpush1.bf16.msra.mxu0 %v6183
      %6562 = vmatprep.subr.bf16.mxu0 0
      %6563 = vmatpush1.bf16.msra.mxu0 %v6184
      %6564 = vmatprep.subr.bf16.mxu0 0
      %6565 = vmatpush1.bf16.msra.mxu0 %v6185
      %6566 = vmatprep.subr.bf16.mxu0 0
      %6567 = vmatpush1.bf16.msra.mxu0 %v6186
      %6568 = vmatprep.subr.bf16.mxu0 0
      %6569 = vmatpush1.bf16.msra.mxu0 %v6187
      %6570 = vmatprep.subr.bf16.mxu0 0
      %6571 = vmatpush1.bf16.msra.mxu0 %v6188
      %6572 = vmatprep.subr.bf16.mxu0 0
      %6573 = vmatpush1.bf16.msra.mxu0 %v6189
      %6574 = vmatprep.mubr.bf16.mxu0 %v6479
      %6575 = vmatmul.mubr.bf16.gmra.mrb[0].mxu0 %v6478
      %v6576 = vpop.f32.mrb[0].mxu0
      %v6577 = vadd.f32 %v6225, %v6576
      %v6578 = vpop.f32.mrb[0].mxu0
      %v6579 = vpop.f32.mrb[0].mxu0
      %v6580 = vadd.f32 %v6230, %v6579
      %v6581 = vpop.f32.mrb[0].mxu0
      %6582 = vmatprep.mubr.bf16.mxu0 %v6481
      %6583 = vmatmul.mubr.bf16.gmra.mrb[0].mxu0 %v6480
      %v6584 = vpop.f32.mrb[0].mxu0
      %v6585 = vadd.f32 %v6235, %v6584
      %v6586 = vpop.f32.mrb[0].mxu0
      %v6587 = vpop.f32.mrb[0].mxu0
      %v6588 = vadd.f32 %v6240, %v6587
      %v6589 = vpop.f32.mrb[0].mxu0
      %6590 = vmatprep.mubr.bf16.mxu0 %v6483
      %6591 = vmatmul.mubr.bf16.gmra.mrb[0].mxu0 %v6482
      %v6592 = vpop.f32.mrb[0].mxu0
      %v6593 = vadd.f32 %v6245, %v6592
      %v6594 = vpop.f32.mrb[0].mxu0
      %v6595 = vpop.f32.mrb[0].mxu0
      %v6596 = vadd.f32 %v6250, %v6595
      %v6597 = vpop.f32.mrb[0].mxu0
      %6598 = vmatprep.mubr.bf16.mxu0 %v6485
      %6599 = vmatmul.mubr.bf16.gmra.mrb[0].mxu0 %v6484
      %v6600 = vpop.f32.mrb[0].mxu0
      %v6601 = vadd.f32 %v6255, %v6600
      %v6602 = vpop.f32.mrb[0].mxu0
      %v6603 = vpop.f32.mrb[0].mxu0
      %v6604 = vadd.f32 %v6260, %v6603
      %v6605 = vpop.f32.mrb[0].mxu0
      %6606 = vmatprep.mubr.bf16.mxu0 %v6487
      %6607 = vmatmul.mubr.bf16.gmra.mrb[0].mxu0 %v6486
      %v6608 = vpop.f32.mrb[0].mxu0
      %v6609 = vadd.f32 %v6265, %v6608
      %v6610 = vpop.f32.mrb[0].mxu0
      %v6611 = vpop.f32.mrb[0].mxu0
      %v6612 = vadd.f32 %v6270, %v6611
      %v6613 = vpop.f32.mrb[0].mxu0
      %6614 = vmatprep.mubr.bf16.mxu0 %v6489
      %6615 = vmatmul.mubr.bf16.gmra.mrb[0].mxu0 %v6488
      %v6616 = vpop.f32.mrb[0].mxu0
      %v6617 = vadd.f32 %v6275, %v6616
      %v6618 = vpop.f32.mrb[0].mxu0
      %v6619 = vpop.f32.mrb[0].mxu0
      %v6620 = vadd.f32 %v6280, %v6619
      %v6621 = vpop.f32.mrb[0].mxu0
      %6622 = vmatprep.mubr.bf16.mxu0 %v6491
      %6623 = vmatmul.mubr.bf16.gmra.mrb[0].mxu0 %v6490
      %v6624 = vpop.f32.mrb[0].mxu0
      %v6625 = vadd.f32 %v6285, %v6624
      %v6626 = vpop.f32.mrb[0].mxu0
      %v6627 = vpop.f32.mrb[0].mxu0
      %v6628 = vadd.f32 %v6290, %v6627
      %v6629 = vpop.f32.mrb[0].mxu0
      %6630 = vmatprep.mubr.bf16.mxu0 %v6493
      %6631 = vmatmul.mubr.bf16.gmra.mrb[0].mxu0 %v6492
      %v6632 = vpop.f32.mrb[0].mxu0
      %v6633 = vadd.f32 %v6295, %v6632
      %v6634 = vpop.f32.mrb[0].mxu0
      %v6635 = vpop.f32.mrb[0].mxu0
      %v6636 = vadd.f32 %v6300, %v6635
      %v6637 = vpop.f32.mrb[0].mxu0
      %6638 = vmatprep.mubr.bf16.mxu0 %v6495
      %6639 = vmatmul.mubr.bf16.gmra.mrb[0].mxu0 %v6494
      %v6640 = vpop.f32.mrb[0].mxu0
      %v6641 = vadd.f32 %v6305, %v6640
      %v6642 = vpop.f32.mrb[0].mxu0
      %v6643 = vpop.f32.mrb[0].mxu0
      %v6644 = vadd.f32 %v6310, %v6643
      %v6645 = vpop.f32.mrb[0].mxu0
      %6646 = vmatprep.mubr.bf16.mxu0 %v6497
      %6647 = vmatmul.mubr.bf16.gmra.mrb[0].mxu0 %v6496
      %v6648 = vpop.f32.mrb[0].mxu0
      %v6649 = vadd.f32 %v6315, %v6648
      %v6650 = vpop.f32.mrb[0].mxu0
      %v6651 = vpop.f32.mrb[0].mxu0
      %v6652 = vadd.f32 %v6320, %v6651
      %v6653 = vpop.f32.mrb[0].mxu0
      %6654 = vmatprep.mubr.bf16.mxu0 %v6499
      %6655 = vmatmul.mubr.bf16.gmra.mrb[0].mxu0 %v6498
      %v6656 = vpop.f32.mrb[0].mxu0
      %v6657 = vadd.f32 %v6325, %v6656
      %v6658 = vpop.f32.mrb[0].mxu0
      %v6659 = vpop.f32.mrb[0].mxu0
      %v6660 = vadd.f32 %v6330, %v6659
      %v6661 = vpop.f32.mrb[0].mxu0
      %6662 = vmatprep.mubr.bf16.mxu0 %v6501
      %6663 = vmatmul.mubr.bf16.gmra.mrb[0].mxu0 %v6500
      %v6664 = vpop.f32.mrb[0].mxu0
      %v6665 = vadd.f32 %v6335, %v6664
      %v6666 = vpop.f32.mrb[0].mxu0
      %v6667 = vpop.f32.mrb[0].mxu0
      %v6668 = vadd.f32 %v6340, %v6667
      %v6669 = vpop.f32.mrb[0].mxu0
      %6670 = vmatprep.mubr.bf16.mxu0 %v6503
      %6671 = vmatmul.mubr.bf16.gmra.mrb[0].mxu0 %v6502
      %v6672 = vpop.f32.mrb[0].mxu0
      %v6673 = vadd.f32 %v6345, %v6672
      %v6674 = vpop.f32.mrb[0].mxu0
      %v6675 = vpop.f32.mrb[0].mxu0
      %v6676 = vadd.f32 %v6350, %v6675
      %v6677 = vpop.f32.mrb[0].mxu0
      %6678 = vmatprep.mubr.bf16.mxu0 %v6505
      %6679 = vmatmul.mubr.bf16.gmra.mrb[0].mxu0 %v6504
      %v6680 = vpop.f32.mrb[0].mxu0
      %v6681 = vadd.f32 %v6355, %v6680
      %v6682 = vpop.f32.mrb[0].mxu0
      %v6683 = vpop.f32.mrb[0].mxu0
      %v6684 = vadd.f32 %v6360, %v6683
      %v6685 = vpop.f32.mrb[0].mxu0
      %6686 = vmatprep.mubr.bf16.mxu0 %v6507
      %6687 = vmatmul.mubr.bf16.gmra.mrb[0].mxu0 %v6506
      %v6688 = vpop.f32.mrb[0].mxu0
      %v6689 = vadd.f32 %v6365, %v6688
      %v6690 = vpop.f32.mrb[0].mxu0
      %v6691 = vpop.f32.mrb[0].mxu0
      %v6692 = vadd.f32 %v6370, %v6691
      %v6693 = vpop.f32.mrb[0].mxu0
      %6694 = vmatprep.mubr.bf16.mxu0 %v6509
      %6695 = vmatmul.mubr.bf16.gmra.mrb[0].mxu0 %v6508
      %v6696 = vpop.f32.mrb[0].mxu0
      %v6697 = vadd.f32 %v6375, %v6696
      %v6698 = vpop.f32.mrb[0].mxu0
      %v6699 = vpop.f32.mrb[0].mxu0
      %v6700 = vadd.f32 %v6380, %v6699
      %v6701 = vpop.f32.mrb[0].mxu0
      %6702 = vdwg.mxu0
      %v6703 = vld [vmem:[%s15] sm:$0xff]
      %v6704 = vld [vmem:[%s15 + $0x8] sm:$0xff]
      %v6705 = vld [vmem:[%s15 + $0x10] sm:$0xff]
      %v6706 = vld [vmem:[%s15 + $0x18] sm:$0xff]
      %v6707 = vld [vmem:[%s15 + $0x20] sm:$0xff]
      %v6708 = vld [vmem:[%s15 + $0x28] sm:$0xff]
      %v6709 = vld [vmem:[%s15 + $0x30] sm:$0xff]
      %v6710 = vld [vmem:[%s15 + $0x38] sm:$0xff]
      %v6711 = vld [vmem:[%s15 + $0x40] sm:$0xff]
      %v6712 = vld [vmem:[%s15 + $0x48] sm:$0xff]
      %v6713 = vld [vmem:[%s15 + $0x50] sm:$0xff]
      %v6714 = vld [vmem:[%s15 + $0x58] sm:$0xff]
      %v6715 = vld [vmem:[%s15 + $0x60] sm:$0xff]
      %v6716 = vld [vmem:[%s15 + $0x68] sm:$0xff]
      %v6717 = vld [vmem:[%s15 + $0x70] sm:$0xff]
      %v6718 = vld [vmem:[%s15 + $0x78] sm:$0xff]
      %v6719 = vld [vmem:[%s15 + $0x80] sm:$0xff]
      %v6720 = vld [vmem:[%s15 + $0x88] sm:$0xff]
      %v6721 = vld [vmem:[%s15 + $0x90] sm:$0xff]
      %v6722 = vld [vmem:[%s15 + $0x98] sm:$0xff]
      %v6723 = vld [vmem:[%s15 + $0xa0] sm:$0xff]
      %v6724 = vld [vmem:[%s15 + $0xa8] sm:$0xff]
      %v6725 = vld [vmem:[%s15 + $0xb0] sm:$0xff]
      %v6726 = vld [vmem:[%s15 + $0xb8] sm:$0xff]
      %v6727 = vld [vmem:[%s15 + $0xc0] sm:$0xff]
      %v6728 = vld [vmem:[%s15 + $0xc8] sm:$0xff]
      %v6729 = vld [vmem:[%s15 + $0xd0] sm:$0xff]
      %v6730 = vld [vmem:[%s15 + $0xd8] sm:$0xff]
      %v6731 = vld [vmem:[%s15 + $0xe0] sm:$0xff]
      %v6732 = vld [vmem:[%s15 + $0xe8] sm:$0xff]
      %v6733 = vld [vmem:[%s15 + $0xf0] sm:$0xff]
      %v6734 = vld [vmem:[%s15 + $0xf8] sm:$0xff]
      %6736 = vset.pattern.permute.xlu0 0
      %6737 = vperm.xlu0 %6736, %v6703
      %v6738 = vpop.permute.xlu0 %6737
      %6741 = vset.pattern.permute.xlu0 0
      %6742 = vperm.xlu0 %6741, %v6704
      %v6743 = vpop.permute.xlu0 %6742
      %6746 = vset.pattern.permute.xlu0 0
      %6747 = vperm.xlu0 %6746, %v6705
      %v6748 = vpop.permute.xlu0 %6747
      %6751 = vset.pattern.permute.xlu0 0
      %6752 = vperm.xlu0 %6751, %v6706
      %v6753 = vpop.permute.xlu0 %6752
      %6756 = vset.pattern.permute.xlu0 0
      %6757 = vperm.xlu0 %6756, %v6707
      %v6758 = vpop.permute.xlu0 %6757
      %6761 = vset.pattern.permute.xlu0 0
      %6762 = vperm.xlu0 %6761, %v6708
      %v6763 = vpop.permute.xlu0 %6762
      %6766 = vset.pattern.permute.xlu0 0
      %6767 = vperm.xlu0 %6766, %v6709
      %v6768 = vpop.permute.xlu0 %6767
      %6771 = vset.pattern.permute.xlu0 0
      %6772 = vperm.xlu0 %6771, %v6710
      %v6773 = vpop.permute.xlu0 %6772
      %6776 = vset.pattern.permute.xlu0 0
      %6777 = vperm.xlu0 %6776, %v6711
      %v6778 = vpop.permute.xlu0 %6777
      %6781 = vset.pattern.permute.xlu0 0
      %6782 = vperm.xlu0 %6781, %v6712
      %v6783 = vpop.permute.xlu0 %6782
      %6786 = vset.pattern.permute.xlu0 0
      %6787 = vperm.xlu0 %6786, %v6713
      %v6788 = vpop.permute.xlu0 %6787
      %6791 = vset.pattern.permute.xlu0 0
      %6792 = vperm.xlu0 %6791, %v6714
      %v6793 = vpop.permute.xlu0 %6792
      %6796 = vset.pattern.permute.xlu0 0
      %6797 = vperm.xlu0 %6796, %v6715
      %v6798 = vpop.permute.xlu0 %6797
      %6801 = vset.pattern.permute.xlu0 0
      %6802 = vperm.xlu0 %6801, %v6716
      %v6803 = vpop.permute.xlu0 %6802
      %6806 = vset.pattern.permute.xlu0 0
      %6807 = vperm.xlu0 %6806, %v6717
      %v6808 = vpop.permute.xlu0 %6807
      %6811 = vset.pattern.permute.xlu0 0
      %6812 = vperm.xlu0 %6811, %v6718
      %v6813 = vpop.permute.xlu0 %6812
      %6816 = vset.pattern.permute.xlu0 0
      %6817 = vperm.xlu0 %6816, %v6719
      %v6818 = vpop.permute.xlu0 %6817
      %6821 = vset.pattern.permute.xlu0 0
      %6822 = vperm.xlu0 %6821, %v6720
      %v6823 = vpop.permute.xlu0 %6822
      %6826 = vset.pattern.permute.xlu0 0
      %6827 = vperm.xlu0 %6826, %v6721
      %v6828 = vpop.permute.xlu0 %6827
      %6831 = vset.pattern.permute.xlu0 0
      %6832 = vperm.xlu0 %6831, %v6722
      %v6833 = vpop.permute.xlu0 %6832
      %6836 = vset.pattern.permute.xlu0 0
      %6837 = vperm.xlu0 %6836, %v6723
      %v6838 = vpop.permute.xlu0 %6837
      %6841 = vset.pattern.permute.xlu0 0
      %6842 = vperm.xlu0 %6841, %v6724
      %v6843 = vpop.permute.xlu0 %6842
      %6846 = vset.pattern.permute.xlu0 0
      %6847 = vperm.xlu0 %6846, %v6725
      %v6848 = vpop.permute.xlu0 %6847
      %6851 = vset.pattern.permute.xlu0 0
      %6852 = vperm.xlu0 %6851, %v6726
      %v6853 = vpop.permute.xlu0 %6852
      %6856 = vset.pattern.permute.xlu0 0
      %6857 = vperm.xlu0 %6856, %v6727
      %v6858 = vpop.permute.xlu0 %6857
      %6861 = vset.pattern.permute.xlu0 0
      %6862 = vperm.xlu0 %6861, %v6728
      %v6863 = vpop.permute.xlu0 %6862
      %6866 = vset.pattern.permute.xlu0 0
      %6867 = vperm.xlu0 %6866, %v6729
      %v6868 = vpop.permute.xlu0 %6867
      %6871 = vset.pattern.permute.xlu0 0
      %6872 = vperm.xlu0 %6871, %v6730
      %v6873 = vpop.permute.xlu0 %6872
      %6876 = vset.pattern.permute.xlu0 0
      %6877 = vperm.xlu0 %6876, %v6731
      %v6878 = vpop.permute.xlu0 %6877
      %6881 = vset.pattern.permute.xlu0 0
      %6882 = vperm.xlu0 %6881, %v6732
      %v6883 = vpop.permute.xlu0 %6882
      %6886 = vset.pattern.permute.xlu0 0
      %6887 = vperm.xlu0 %6886, %v6733
      %v6888 = vpop.permute.xlu0 %6887
      %6891 = vset.pattern.permute.xlu0 0
      %6892 = vperm.xlu0 %6891, %v6734
      %v6893 = vpop.permute.xlu0 %6892
      %v6895 = vmul.f32 %v6577, %v6738
      %v6896 = vmul.f32 %v6580, %v6743
      %v6897 = vmul.f32 %v6585, %v6748
      %v6898 = vmul.f32 %v6588, %v6753
      %v6899 = vmul.f32 %v6593, %v6758
      %v6900 = vmul.f32 %v6596, %v6763
      %v6901 = vmul.f32 %v6601, %v6768
      %v6902 = vmul.f32 %v6604, %v6773
      %v6903 = vmul.f32 %v6609, %v6778
      %v6904 = vmul.f32 %v6612, %v6783
      %v6905 = vmul.f32 %v6617, %v6788
      %v6906 = vmul.f32 %v6620, %v6793
      %v6907 = vmul.f32 %v6625, %v6798
      %v6908 = vmul.f32 %v6628, %v6803
      %v6909 = vmul.f32 %v6633, %v6808
      %v6910 = vmul.f32 %v6636, %v6813
      %v6911 = vmul.f32 %v6641, %v6818
      %v6912 = vmul.f32 %v6644, %v6823
      %v6913 = vmul.f32 %v6649, %v6828
      %v6914 = vmul.f32 %v6652, %v6833
      %v6915 = vmul.f32 %v6657, %v6838
      %v6916 = vmul.f32 %v6660, %v6843
      %v6917 = vmul.f32 %v6665, %v6848
      %v6918 = vmul.f32 %v6668, %v6853
      %v6919 = vmul.f32 %v6673, %v6858
      %v6920 = vmul.f32 %v6676, %v6863
      %v6921 = vmul.f32 %v6681, %v6868
      %v6922 = vmul.f32 %v6684, %v6873
      %v6923 = vmul.f32 %v6689, %v6878
      %v6924 = vmul.f32 %v6692, %v6883
      %v6925 = vmul.f32 %v6697, %v6888
      %v6926 = vmul.f32 %v6700, %v6893
      %v6927 = vld [vmem:[%s16] sm:$0xff]
      %v6928 = vld [vmem:[%s16 + $0x8] sm:$0xff]
      %v6929 = vld [vmem:[%s16 + $0x10] sm:$0xff]
      %v6930 = vld [vmem:[%s16 + $0x18] sm:$0xff]
      %v6931 = vld [vmem:[%s16 + $0x20] sm:$0xff]
      %v6932 = vld [vmem:[%s16 + $0x28] sm:$0xff]
      %v6933 = vld [vmem:[%s16 + $0x30] sm:$0xff]
      %v6934 = vld [vmem:[%s16 + $0x38] sm:$0xff]
      %v6935 = vld [vmem:[%s16 + $0x40] sm:$0xff]
      %v6936 = vld [vmem:[%s16 + $0x48] sm:$0xff]
      %v6937 = vld [vmem:[%s16 + $0x50] sm:$0xff]
      %v6938 = vld [vmem:[%s16 + $0x58] sm:$0xff]
      %v6939 = vld [vmem:[%s16 + $0x60] sm:$0xff]
      %v6940 = vld [vmem:[%s16 + $0x68] sm:$0xff]
      %v6941 = vld [vmem:[%s16 + $0x70] sm:$0xff]
      %v6942 = vld [vmem:[%s16 + $0x78] sm:$0xff]
      %v6943 = vld [vmem:[%s16 + $0x80] sm:$0xff]
      %v6944 = vld [vmem:[%s16 + $0x88] sm:$0xff]
      %v6945 = vld [vmem:[%s16 + $0x90] sm:$0xff]
      %v6946 = vld [vmem:[%s16 + $0x98] sm:$0xff]
      %v6947 = vld [vmem:[%s16 + $0xa0] sm:$0xff]
      %v6948 = vld [vmem:[%s16 + $0xa8] sm:$0xff]
      %v6949 = vld [vmem:[%s16 + $0xb0] sm:$0xff]
      %v6950 = vld [vmem:[%s16 + $0xb8] sm:$0xff]
      %v6951 = vld [vmem:[%s16 + $0xc0] sm:$0xff]
      %v6952 = vld [vmem:[%s16 + $0xc8] sm:$0xff]
      %v6953 = vld [vmem:[%s16 + $0xd0] sm:$0xff]
      %v6954 = vld [vmem:[%s16 + $0xd8] sm:$0xff]
      %v6955 = vld [vmem:[%s16 + $0xe0] sm:$0xff]
      %v6956 = vld [vmem:[%s16 + $0xe8] sm:$0xff]
      %v6957 = vld [vmem:[%s16 + $0xf0] sm:$0xff]
      %v6958 = vld [vmem:[%s16 + $0xf8] sm:$0xff]
      %6960 = vset.pattern.permute.xlu0 0
      %6961 = vperm.xlu0 %6960, %v6927
      %v6962 = vpop.permute.xlu0 %6961
      %6965 = vset.pattern.permute.xlu0 0
      %6966 = vperm.xlu0 %6965, %v6928
      %v6967 = vpop.permute.xlu0 %6966
      %6970 = vset.pattern.permute.xlu0 0
      %6971 = vperm.xlu0 %6970, %v6929
      %v6972 = vpop.permute.xlu0 %6971
      %6975 = vset.pattern.permute.xlu0 0
      %6976 = vperm.xlu0 %6975, %v6930
      %v6977 = vpop.permute.xlu0 %6976
      %6980 = vset.pattern.permute.xlu0 0
      %6981 = vperm.xlu0 %6980, %v6931
      %v6982 = vpop.permute.xlu0 %6981
      %6985 = vset.pattern.permute.xlu0 0
      %6986 = vperm.xlu0 %6985, %v6932
      %v6987 = vpop.permute.xlu0 %6986
      %6990 = vset.pattern.permute.xlu0 0
      %6991 = vperm.xlu0 %6990, %v6933
      %v6992 = vpop.permute.xlu0 %6991
      %6995 = vset.pattern.permute.xlu0 0
      %6996 = vperm.xlu0 %6995, %v6934
      %v6997 = vpop.permute.xlu0 %6996
      %7000 = vset.pattern.permute.xlu0 0
      %7001 = vperm.xlu0 %7000, %v6935
      %v7002 = vpop.permute.xlu0 %7001
      %7005 = vset.pattern.permute.xlu0 0
      %7006 = vperm.xlu0 %7005, %v6936
      %v7007 = vpop.permute.xlu0 %7006
      %7010 = vset.pattern.permute.xlu0 0
      %7011 = vperm.xlu0 %7010, %v6937
      %v7012 = vpop.permute.xlu0 %7011
      %7015 = vset.pattern.permute.xlu0 0
      %7016 = vperm.xlu0 %7015, %v6938
      %v7017 = vpop.permute.xlu0 %7016
      %7020 = vset.pattern.permute.xlu0 0
      %7021 = vperm.xlu0 %7020, %v6939
      %v7022 = vpop.permute.xlu0 %7021
      %7025 = vset.pattern.permute.xlu0 0
      %7026 = vperm.xlu0 %7025, %v6940
      %v7027 = vpop.permute.xlu0 %7026
      %7030 = vset.pattern.permute.xlu0 0
      %7031 = vperm.xlu0 %7030, %v6941
      %v7032 = vpop.permute.xlu0 %7031
      %7035 = vset.pattern.permute.xlu0 0
      %7036 = vperm.xlu0 %7035, %v6942
      %v7037 = vpop.permute.xlu0 %7036
      %7040 = vset.pattern.permute.xlu0 0
      %7041 = vperm.xlu0 %7040, %v6943
      %v7042 = vpop.permute.xlu0 %7041
      %7045 = vset.pattern.permute.xlu0 0
      %7046 = vperm.xlu0 %7045, %v6944
      %v7047 = vpop.permute.xlu0 %7046
      %7050 = vset.pattern.permute.xlu0 0
      %7051 = vperm.xlu0 %7050, %v6945
      %v7052 = vpop.permute.xlu0 %7051
      %7055 = vset.pattern.permute.xlu0 0
      %7056 = vperm.xlu0 %7055, %v6946
      %v7057 = vpop.permute.xlu0 %7056
      %7060 = vset.pattern.permute.xlu0 0
      %7061 = vperm.xlu0 %7060, %v6947
      %v7062 = vpop.permute.xlu0 %7061
      %7065 = vset.pattern.permute.xlu0 0
      %7066 = vperm.xlu0 %7065, %v6948
      %v7067 = vpop.permute.xlu0 %7066
      %7070 = vset.pattern.permute.xlu0 0
      %7071 = vperm.xlu0 %7070, %v6949
      %v7072 = vpop.permute.xlu0 %7071
      %7075 = vset.pattern.permute.xlu0 0
      %7076 = vperm.xlu0 %7075, %v6950
      %v7077 = vpop.permute.xlu0 %7076
      %7080 = vset.pattern.permute.xlu0 0
      %7081 = vperm.xlu0 %7080, %v6951
      %v7082 = vpop.permute.xlu0 %7081
      %7085 = vset.pattern.permute.xlu0 0
      %7086 = vperm.xlu0 %7085, %v6952
      %v7087 = vpop.permute.xlu0 %7086
      %7090 = vset.pattern.permute.xlu0 0
      %7091 = vperm.xlu0 %7090, %v6953
      %v7092 = vpop.permute.xlu0 %7091
      %7095 = vset.pattern.permute.xlu0 0
      %7096 = vperm.xlu0 %7095, %v6954
      %v7097 = vpop.permute.xlu0 %7096
      %7100 = vset.pattern.permute.xlu0 0
      %7101 = vperm.xlu0 %7100, %v6955
      %v7102 = vpop.permute.xlu0 %7101
      %7105 = vset.pattern.permute.xlu0 0
      %7106 = vperm.xlu0 %7105, %v6956
      %v7107 = vpop.permute.xlu0 %7106
      %7110 = vset.pattern.permute.xlu0 0
      %7111 = vperm.xlu0 %7110, %v6957
      %v7112 = vpop.permute.xlu0 %7111
      %7115 = vset.pattern.permute.xlu0 0
      %7116 = vperm.xlu0 %7115, %v6958
      %v7117 = vpop.permute.xlu0 %7116
      %v7119 = vadd.f32 %v6895, %v6962
      %v7120 = vadd.f32 %v6896, %v6967
      %v7121 = vadd.f32 %v6897, %v6972
      %v7122 = vadd.f32 %v6898, %v6977
      %v7123 = vadd.f32 %v6899, %v6982
      %v7124 = vadd.f32 %v6900, %v6987
      %v7125 = vadd.f32 %v6901, %v6992
      %v7126 = vadd.f32 %v6902, %v6997
      %v7127 = vadd.f32 %v6903, %v7002
      %v7128 = vadd.f32 %v6904, %v7007
      %v7129 = vadd.f32 %v6905, %v7012
      %v7130 = vadd.f32 %v6906, %v7017
      %v7131 = vadd.f32 %v6907, %v7022
      %v7132 = vadd.f32 %v6908, %v7027
      %v7133 = vadd.f32 %v6909, %v7032
      %v7134 = vadd.f32 %v6910, %v7037
      %v7135 = vadd.f32 %v6911, %v7042
      %v7136 = vadd.f32 %v6912, %v7047
      %v7137 = vadd.f32 %v6913, %v7052
      %v7138 = vadd.f32 %v6914, %v7057
      %v7139 = vadd.f32 %v6915, %v7062
      %v7140 = vadd.f32 %v6916, %v7067
      %v7141 = vadd.f32 %v6917, %v7072
      %v7142 = vadd.f32 %v6918, %v7077
      %v7143 = vadd.f32 %v6919, %v7082
      %v7144 = vadd.f32 %v6920, %v7087
      %v7145 = vadd.f32 %v6921, %v7092
      %v7146 = vadd.f32 %v6922, %v7097
      %v7147 = vadd.f32 %v6923, %v7102
      %v7148 = vadd.f32 %v6924, %v7107
      %v7149 = vadd.f32 %v6925, %v7112
      %v7150 = vadd.f32 %v6926, %v7117
      %v7151 = vmax.f32 %v7119, 0.0
      %v7152 = vmax.f32 %v7120, 0.0
      %v7153 = vmax.f32 %v7121, 0.0
      %v7154 = vmax.f32 %v7122, 0.0
      %v7155 = vmax.f32 %v7123, 0.0
      %v7156 = vmax.f32 %v7124, 0.0
      %v7157 = vmax.f32 %v7125, 0.0
      %v7158 = vmax.f32 %v7126, 0.0
      %v7159 = vmax.f32 %v7127, 0.0
      %v7160 = vmax.f32 %v7128, 0.0
      %v7161 = vmax.f32 %v7129, 0.0
      %v7162 = vmax.f32 %v7130, 0.0
      %v7163 = vmax.f32 %v7131, 0.0
      %v7164 = vmax.f32 %v7132, 0.0
      %v7165 = vmax.f32 %v7133, 0.0
      %v7166 = vmax.f32 %v7134, 0.0
      %v7167 = vmax.f32 %v7135, 0.0
      %v7168 = vmax.f32 %v7136, 0.0
      %v7169 = vmax.f32 %v7137, 0.0
      %v7170 = vmax.f32 %v7138, 0.0
      %v7171 = vmax.f32 %v7139, 0.0
      %v7172 = vmax.f32 %v7140, 0.0
      %v7173 = vmax.f32 %v7141, 0.0
      %v7174 = vmax.f32 %v7142, 0.0
      %v7175 = vmax.f32 %v7143, 0.0
      %v7176 = vmax.f32 %v7144, 0.0
      %v7177 = vmax.f32 %v7145, 0.0
      %v7178 = vmax.f32 %v7146, 0.0
      %v7179 = vmax.f32 %v7147, 0.0
      %v7180 = vmax.f32 %v7148, 0.0
      %v7181 = vmax.f32 %v7149, 0.0
      %v7182 = vmax.f32 %v7150, 0.0
      %v7183 = vld [vmem:[%s17] sm:$0xff]
      %v7184 = vld [vmem:[%s17 + $0x8] sm:$0xff]
      %v7185 = vld [vmem:[%s17 + $0x10] sm:$0xff]
      %v7186 = vld [vmem:[%s17 + $0x18] sm:$0xff]
      %v7187 = vld [vmem:[%s17 + $0x20] sm:$0xff]
      %v7188 = vld [vmem:[%s17 + $0x28] sm:$0xff]
      %v7189 = vld [vmem:[%s17 + $0x30] sm:$0xff]
      %v7190 = vld [vmem:[%s17 + $0x38] sm:$0xff]
      %v7191 = vld [vmem:[%s17 + $0x40] sm:$0xff]
      %v7192 = vld [vmem:[%s17 + $0x48] sm:$0xff]
      %v7193 = vld [vmem:[%s17 + $0x50] sm:$0xff]
      %v7194 = vld [vmem:[%s17 + $0x58] sm:$0xff]
      %v7195 = vld [vmem:[%s17 + $0x60] sm:$0xff]
      %v7196 = vld [vmem:[%s17 + $0x68] sm:$0xff]
      %v7197 = vld [vmem:[%s17 + $0x70] sm:$0xff]
      %v7198 = vld [vmem:[%s17 + $0x78] sm:$0xff]
      %v7199 = vld [vmem:[%s17 + $0x80] sm:$0xff]
      %v7200 = vld [vmem:[%s17 + $0x88] sm:$0xff]
      %v7201 = vld [vmem:[%s17 + $0x90] sm:$0xff]
      %v7202 = vld [vmem:[%s17 + $0x98] sm:$0xff]
      %v7203 = vld [vmem:[%s17 + $0xa0] sm:$0xff]
      %v7204 = vld [vmem:[%s17 + $0xa8] sm:$0xff]
      %v7205 = vld [vmem:[%s17 + $0xb0] sm:$0xff]
      %v7206 = vld [vmem:[%s17 + $0xb8] sm:$0xff]
      %v7207 = vld [vmem:[%s17 + $0xc0] sm:$0xff]
      %v7208 = vld [vmem:[%s17 + $0xc8] sm:$0xff]
      %v7209 = vld [vmem:[%s17 + $0xd0] sm:$0xff]
      %v7210 = vld [vmem:[%s17 + $0xd8] sm:$0xff]
      %v7211 = vld [vmem:[%s17 + $0xe0] sm:$0xff]
      %v7212 = vld [vmem:[%s17 + $0xe8] sm:$0xff]
      %v7213 = vld [vmem:[%s17 + $0xf0] sm:$0xff]
      %v7214 = vld [vmem:[%s17 + $0xf8] sm:$0xff]
      %v7215 = vpack.c.bf16 %v7152, %v7151
      %v7216 = vpack.c.bf16 %v7154, %v7153
      %v7217 = vpack.c.bf16 %v7156, %v7155
      %v7218 = vpack.c.bf16 %v7158, %v7157
      %v7219 = vpack.c.bf16 %v7160, %v7159
      %v7220 = vpack.c.bf16 %v7162, %v7161
      %v7221 = vpack.c.bf16 %v7164, %v7163
      %v7222 = vpack.c.bf16 %v7166, %v7165
      %v7223 = vpack.c.bf16 %v7168, %v7167
      %v7224 = vpack.c.bf16 %v7170, %v7169
      %v7225 = vpack.c.bf16 %v7172, %v7171
      %v7226 = vpack.c.bf16 %v7174, %v7173
      %v7227 = vpack.c.bf16 %v7176, %v7175
      %v7228 = vpack.c.bf16 %v7178, %v7177
      %v7229 = vpack.c.bf16 %v7180, %v7179
      %v7230 = vpack.c.bf16 %v7182, %v7181
      %v7231 = vld [vmem:[%s18] sm:$0xff]
      %v7232 = vld [vmem:[%s18 + $0x8] sm:$0xff]
      %v7233 = vld [vmem:[%s18 + $0x10] sm:$0xff]
      %v7234 = vld [vmem:[%s18 + $0x18] sm:$0xff]
      %v7235 = vld [vmem:[%s18 + $0x20] sm:$0xff]
      %v7236 = vld [vmem:[%s18 + $0x28] sm:$0xff]
      %v7237 = vld [vmem:[%s18 + $0x30] sm:$0xff]
      %v7238 = vld [vmem:[%s18 + $0x38] sm:$0xff]
      %v7239 = vld [vmem:[%s18 + $0x40] sm:$0xff]
      %v7240 = vld [vmem:[%s18 + $0x48] sm:$0xff]
      %v7241 = vld [vmem:[%s18 + $0x50] sm:$0xff]
      %v7242 = vld [vmem:[%s18 + $0x58] sm:$0xff]
      %v7243 = vld [vmem:[%s18 + $0x60] sm:$0xff]
      %v7244 = vld [vmem:[%s18 + $0x68] sm:$0xff]
      %v7245 = vld [vmem:[%s18 + $0x70] sm:$0xff]
      %v7246 = vld [vmem:[%s18 + $0x78] sm:$0xff]
      %v7247 = vld [vmem:[%s18 + $0x80] sm:$0xff]
      %v7248 = vld [vmem:[%s18 + $0x88] sm:$0xff]
      %v7249 = vld [vmem:[%s18 + $0x90] sm:$0xff]
      %v7250 = vld [vmem:[%s18 + $0x98] sm:$0xff]
      %v7251 = vld [vmem:[%s18 + $0xa0] sm:$0xff]
      %v7252 = vld [vmem:[%s18 + $0xa8] sm:$0xff]
      %v7253 = vld [vmem:[%s18 + $0xb0] sm:$0xff]
      %v7254 = vld [vmem:[%s18 + $0xb8] sm:$0xff]
      %v7255 = vld [vmem:[%s18 + $0xc0] sm:$0xff]
      %v7256 = vld [vmem:[%s18 + $0xc8] sm:$0xff]
      %v7257 = vld [vmem:[%s18 + $0xd0] sm:$0xff]
      %v7258 = vld [vmem:[%s18 + $0xd8] sm:$0xff]
      %v7259 = vld [vmem:[%s18 + $0xe0] sm:$0xff]
      %v7260 = vld [vmem:[%s18 + $0xe8] sm:$0xff]
      %v7261 = vld [vmem:[%s18 + $0xf0] sm:$0xff]
      %v7262 = vld [vmem:[%s18 + $0xf8] sm:$0xff]
      %7264 = vset.pattern.permute.xlu0 0
      %7265 = vperm.xlu0 %7264, %v7231
      %v7266 = vpop.permute.xlu0 %7265
      %7269 = vset.pattern.permute.xlu0 0
      %7270 = vperm.xlu0 %7269, %v7232
      %v7271 = vpop.permute.xlu0 %7270
      %7274 = vset.pattern.permute.xlu0 0
      %7275 = vperm.xlu0 %7274, %v7233
      %v7276 = vpop.permute.xlu0 %7275
      %7279 = vset.pattern.permute.xlu0 0
      %7280 = vperm.xlu0 %7279, %v7234
      %v7281 = vpop.permute.xlu0 %7280
      %7284 = vset.pattern.permute.xlu0 0
      %7285 = vperm.xlu0 %7284, %v7235
      %v7286 = vpop.permute.xlu0 %7285
      %7289 = vset.pattern.permute.xlu0 0
      %7290 = vperm.xlu0 %7289, %v7236
      %v7291 = vpop.permute.xlu0 %7290
      %7294 = vset.pattern.permute.xlu0 0
      %7295 = vperm.xlu0 %7294, %v7237
      %v7296 = vpop.permute.xlu0 %7295
      %7299 = vset.pattern.permute.xlu0 0
      %7300 = vperm.xlu0 %7299, %v7238
      %v7301 = vpop.permute.xlu0 %7300
      %7304 = vset.pattern.permute.xlu0 0
      %7305 = vperm.xlu0 %7304, %v7239
      %v7306 = vpop.permute.xlu0 %7305
      %7309 = vset.pattern.permute.xlu0 0
      %7310 = vperm.xlu0 %7309, %v7240
      %v7311 = vpop.permute.xlu0 %7310
      %7314 = vset.pattern.permute.xlu0 0
      %7315 = vperm.xlu0 %7314, %v7241
      %v7316 = vpop.permute.xlu0 %7315
      %7319 = vset.pattern.permute.xlu0 0
      %7320 = vperm.xlu0 %7319, %v7242
      %v7321 = vpop.permute.xlu0 %7320
      %7324 = vset.pattern.permute.xlu0 0
      %7325 = vperm.xlu0 %7324, %v7243
      %v7326 = vpop.permute.xlu0 %7325
      %7329 = vset.pattern.permute.xlu0 0
      %7330 = vperm.xlu0 %7329, %v7244
      %v7331 = vpop.permute.xlu0 %7330
      %7334 = vset.pattern.permute.xlu0 0
      %7335 = vperm.xlu0 %7334, %v7245
      %v7336 = vpop.permute.xlu0 %7335
      %7339 = vset.pattern.permute.xlu0 0
      %7340 = vperm.xlu0 %7339, %v7246
      %v7341 = vpop.permute.xlu0 %7340
      %7344 = vset.pattern.permute.xlu0 0
      %7345 = vperm.xlu0 %7344, %v7247
      %v7346 = vpop.permute.xlu0 %7345
      %7349 = vset.pattern.permute.xlu0 0
      %7350 = vperm.xlu0 %7349, %v7248
      %v7351 = vpop.permute.xlu0 %7350
      %7354 = vset.pattern.permute.xlu0 0
      %7355 = vperm.xlu0 %7354, %v7249
      %v7356 = vpop.permute.xlu0 %7355
      %7359 = vset.pattern.permute.xlu0 0
      %7360 = vperm.xlu0 %7359, %v7250
      %v7361 = vpop.permute.xlu0 %7360
      %7364 = vset.pattern.permute.xlu0 0
      %7365 = vperm.xlu0 %7364, %v7251
      %v7366 = vpop.permute.xlu0 %7365
      %7369 = vset.pattern.permute.xlu0 0
      %7370 = vperm.xlu0 %7369, %v7252
      %v7371 = vpop.permute.xlu0 %7370
      %7374 = vset.pattern.permute.xlu0 0
      %7375 = vperm.xlu0 %7374, %v7253
      %v7376 = vpop.permute.xlu0 %7375
      %7379 = vset.pattern.permute.xlu0 0
      %7380 = vperm.xlu0 %7379, %v7254
      %v7381 = vpop.permute.xlu0 %7380
      %7384 = vset.pattern.permute.xlu0 0
      %7385 = vperm.xlu0 %7384, %v7255
      %v7386 = vpop.permute.xlu0 %7385
      %7389 = vset.pattern.permute.xlu0 0
      %7390 = vperm.xlu0 %7389, %v7256
      %v7391 = vpop.permute.xlu0 %7390
      %7394 = vset.pattern.permute.xlu0 0
      %7395 = vperm.xlu0 %7394, %v7257
      %v7396 = vpop.permute.xlu0 %7395
      %7399 = vset.pattern.permute.xlu0 0
      %7400 = vperm.xlu0 %7399, %v7258
      %v7401 = vpop.permute.xlu0 %7400
      %7404 = vset.pattern.permute.xlu0 0
      %7405 = vperm.xlu0 %7404, %v7259
      %v7406 = vpop.permute.xlu0 %7405
      %7409 = vset.pattern.permute.xlu0 0
      %7410 = vperm.xlu0 %7409, %v7260
      %v7411 = vpop.permute.xlu0 %7410
      %7414 = vset.pattern.permute.xlu0 0
      %7415 = vperm.xlu0 %7414, %v7261
      %v7416 = vpop.permute.xlu0 %7415
      %7419 = vset.pattern.permute.xlu0 0
      %7420 = vperm.xlu0 %7419, %v7262
      %v7421 = vpop.permute.xlu0 %7420
      %v7455 = vunpack.c.l.b16 %v7183
      %v7456 = vunpack.c.h.b16 %v7183
      %v7457 = vunpack.c.l.b16 %v7184
      %v7458 = vunpack.c.h.b16 %v7184
      %v7459 = vunpack.c.l.b16 %v7185
      %v7460 = vunpack.c.h.b16 %v7185
      %v7461 = vunpack.c.l.b16 %v7186
      %v7462 = vunpack.c.h.b16 %v7186
      %v7463 = vunpack.c.l.b16 %v7187
      %v7464 = vunpack.c.h.b16 %v7187
      %v7465 = vunpack.c.l.b16 %v7188
      %v7466 = vunpack.c.h.b16 %v7188
      %v7467 = vunpack.c.l.b16 %v7189
      %v7468 = vunpack.c.h.b16 %v7189
      %v7469 = vunpack.c.l.b16 %v7190
      %v7470 = vunpack.c.h.b16 %v7190
      %v7471 = vunpack.c.l.b16 %v7191
      %v7472 = vunpack.c.h.b16 %v7191
      %v7473 = vunpack.c.l.b16 %v7192
      %v7474 = vunpack.c.h.b16 %v7192
      %v7475 = vunpack.c.l.b16 %v7193
      %v7476 = vunpack.c.h.b16 %v7193
      %v7477 = vunpack.c.l.b16 %v7194
      %v7478 = vunpack.c.h.b16 %v7194
      %v7479 = vunpack.c.l.b16 %v7195
      %v7480 = vunpack.c.h.b16 %v7195
      %v7481 = vunpack.c.l.b16 %v7196
      %v7482 = vunpack.c.h.b16 %v7196
      %v7483 = vunpack.c.l.b16 %v7197
      %v7484 = vunpack.c.h.b16 %v7197
      %v7485 = vunpack.c.l.b16 %v7198
      %v7486 = vunpack.c.h.b16 %v7198
      %v7487 = vunpack.c.l.b16 %v7199
      %v7488 = vunpack.c.h.b16 %v7199
      %v7489 = vunpack.c.l.b16 %v7200
      %v7490 = vunpack.c.h.b16 %v7200
      %v7491 = vunpack.c.l.b16 %v7201
      %v7492 = vunpack.c.h.b16 %v7201
      %v7493 = vunpack.c.l.b16 %v7202
      %v7494 = vunpack.c.h.b16 %v7202
      %v7495 = vunpack.c.l.b16 %v7203
      %v7496 = vunpack.c.h.b16 %v7203
      %v7497 = vunpack.c.l.b16 %v7204
      %v7498 = vunpack.c.h.b16 %v7204
      %v7499 = vunpack.c.l.b16 %v7205
      %v7500 = vunpack.c.h.b16 %v7205
      %v7501 = vunpack.c.l.b16 %v7206
      %v7502 = vunpack.c.h.b16 %v7206
      %v7503 = vunpack.c.l.b16 %v7207
      %v7504 = vunpack.c.h.b16 %v7207
      %v7505 = vunpack.c.l.b16 %v7208
      %v7506 = vunpack.c.h.b16 %v7208
      %v7507 = vunpack.c.l.b16 %v7209
      %v7508 = vunpack.c.h.b16 %v7209
      %v7509 = vunpack.c.l.b16 %v7210
      %v7510 = vunpack.c.h.b16 %v7210
      %v7511 = vunpack.c.l.b16 %v7211
      %v7512 = vunpack.c.h.b16 %v7211
      %v7513 = vunpack.c.l.b16 %v7212
      %v7514 = vunpack.c.h.b16 %v7212
      %v7515 = vunpack.c.l.b16 %v7213
      %v7516 = vunpack.c.h.b16 %v7213
      %v7517 = vunpack.c.l.b16 %v7214
      %v7518 = vunpack.c.h.b16 %v7214
      %v7519 = vpack.c.b16 %v7457, %v7455
      %v7520 = vpack.c.b16 %v7458, %v7456
      %v7521 = vpack.c.b16 %v7461, %v7459
      %v7522 = vpack.c.b16 %v7462, %v7460
      %v7523 = vpack.c.b16 %v7465, %v7463
      %v7524 = vpack.c.b16 %v7466, %v7464
      %v7525 = vpack.c.b16 %v7469, %v7467
      %v7526 = vpack.c.b16 %v7470, %v7468
      %v7527 = vpack.c.b16 %v7473, %v7471
      %v7528 = vpack.c.b16 %v7474, %v7472
      %v7529 = vpack.c.b16 %v7477, %v7475
      %v7530 = vpack.c.b16 %v7478, %v7476
      %v7531 = vpack.c.b16 %v7481, %v7479
      %v7532 = vpack.c.b16 %v7482, %v7480
      %v7533 = vpack.c.b16 %v7485, %v7483
      %v7534 = vpack.c.b16 %v7486, %v7484
      %v7535 = vpack.c.b16 %v7489, %v7487
      %v7536 = vpack.c.b16 %v7490, %v7488
      %v7537 = vpack.c.b16 %v7493, %v7491
      %v7538 = vpack.c.b16 %v7494, %v7492
      %v7539 = vpack.c.b16 %v7497, %v7495
      %v7540 = vpack.c.b16 %v7498, %v7496
      %v7541 = vpack.c.b16 %v7501, %v7499
      %v7542 = vpack.c.b16 %v7502, %v7500
      %v7543 = vpack.c.b16 %v7505, %v7503
      %v7544 = vpack.c.b16 %v7506, %v7504
      %v7545 = vpack.c.b16 %v7509, %v7507
      %v7546 = vpack.c.b16 %v7510, %v7508
      %v7547 = vpack.c.b16 %v7513, %v7511
      %v7548 = vpack.c.b16 %v7514, %v7512
      %v7549 = vpack.c.b16 %v7517, %v7515
      %v7550 = vpack.c.b16 %v7518, %v7516
      %7583 = vmatprep.subr.bf16.mxu0 0
      %7584 = vmatpush1.bf16.msra.mxu0 %v7215
      %7585 = vmatprep.subr.bf16.mxu0 0
      %7586 = vmatpush1.bf16.msra.mxu0 %v7216
      %7587 = vmatprep.subr.bf16.mxu0 0
      %7588 = vmatpush1.bf16.msra.mxu0 %v7217
      %7589 = vmatprep.subr.bf16.mxu0 0
      %7590 = vmatpush1.bf16.msra.mxu0 %v7218
      %7591 = vmatprep.subr.bf16.mxu0 0
      %7592 = vmatpush1.bf16.msra.mxu0 %v7219
      %7593 = vmatprep.subr.bf16.mxu0 0
      %7594 = vmatpush1.bf16.msra.mxu0 %v7220
      %7595 = vmatprep.subr.bf16.mxu0 0
      %7596 = vmatpush1.bf16.msra.mxu0 %v7221
      %7597 = vmatprep.subr.bf16.mxu0 0
      %7598 = vmatpush1.bf16.msra.mxu0 %v7222
      %7599 = vmatprep.subr.bf16.mxu0 0
      %7600 = vmatpush1.bf16.msra.mxu0 %v7223
      %7601 = vmatprep.subr.bf16.mxu0 0
      %7602 = vmatpush1.bf16.msra.mxu0 %v7224
      %7603 = vmatprep.subr.bf16.mxu0 0
      %7604 = vmatpush1.bf16.msra.mxu0 %v7225
      %7605 = vmatprep.subr.bf16.mxu0 0
      %7606 = vmatpush1.bf16.msra.mxu0 %v7226
      %7607 = vmatprep.subr.bf16.mxu0 0
      %7608 = vmatpush1.bf16.msra.mxu0 %v7227
      %7609 = vmatprep.subr.bf16.mxu0 0
      %7610 = vmatpush1.bf16.msra.mxu0 %v7228
      %7611 = vmatprep.subr.bf16.mxu0 0
      %7612 = vmatpush1.bf16.msra.mxu0 %v7229
      %7613 = vmatprep.subr.bf16.mxu0 0
      %7614 = vmatpush1.bf16.msra.mxu0 %v7230
      %7615 = vmatprep.mubr.bf16.mxu0 %v7520
      %7616 = vmatmul.mubr.bf16.gmra.mrb[0].mxu0 %v7519
      %v7617 = vpop.f32.mrb[0].mxu0
      %v7618 = vadd.f32 %v7266, %v7617
      %v7619 = vpop.f32.mrb[0].mxu0
      %v7620 = vpop.f32.mrb[0].mxu0
      %v7621 = vadd.f32 %v7271, %v7620
      %v7622 = vpop.f32.mrb[0].mxu0
      %7623 = vmatprep.mubr.bf16.mxu0 %v7522
      %7624 = vmatmul.mubr.bf16.gmra.mrb[0].mxu0 %v7521
      %v7625 = vpop.f32.mrb[0].mxu0
      %v7626 = vadd.f32 %v7276, %v7625
      %v7627 = vpop.f32.mrb[0].mxu0
      %v7628 = vpop.f32.mrb[0].mxu0
      %v7629 = vadd.f32 %v7281, %v7628
      %v7630 = vpop.f32.mrb[0].mxu0
      %7631 = vmatprep.mubr.bf16.mxu0 %v7524
      %7632 = vmatmul.mubr.bf16.gmra.mrb[0].mxu0 %v7523
      %v7633 = vpop.f32.mrb[0].mxu0
      %v7634 = vadd.f32 %v7286, %v7633
      %v7635 = vpop.f32.mrb[0].mxu0
      %v7636 = vpop.f32.mrb[0].mxu0
      %v7637 = vadd.f32 %v7291, %v7636
      %v7638 = vpop.f32.mrb[0].mxu0
      %7639 = vmatprep.mubr.bf16.mxu0 %v7526
      %7640 = vmatmul.mubr.bf16.gmra.mrb[0].mxu0 %v7525
      %v7641 = vpop.f32.mrb[0].mxu0
      %v7642 = vadd.f32 %v7296, %v7641
      %v7643 = vpop.f32.mrb[0].mxu0
      %v7644 = vpop.f32.mrb[0].mxu0
      %v7645 = vadd.f32 %v7301, %v7644
      %v7646 = vpop.f32.mrb[0].mxu0
      %7647 = vmatprep.mubr.bf16.mxu0 %v7528
      %7648 = vmatmul.mubr.bf16.gmra.mrb[0].mxu0 %v7527
      %v7649 = vpop.f32.mrb[0].mxu0
      %v7650 = vadd.f32 %v7306, %v7649
      %v7651 = vpop.f32.mrb[0].mxu0
      %v7652 = vpop.f32.mrb[0].mxu0
      %v7653 = vadd.f32 %v7311, %v7652
      %v7654 = vpop.f32.mrb[0].mxu0
      %7655 = vmatprep.mubr.bf16.mxu0 %v7530
      %7656 = vmatmul.mubr.bf16.gmra.mrb[0].mxu0 %v7529
      %v7657 = vpop.f32.mrb[0].mxu0
      %v7658 = vadd.f32 %v7316, %v7657
      %v7659 = vpop.f32.mrb[0].mxu0
      %v7660 = vpop.f32.mrb[0].mxu0
      %v7661 = vadd.f32 %v7321, %v7660
      %v7662 = vpop.f32.mrb[0].mxu0
      %7663 = vmatprep.mubr.bf16.mxu0 %v7532
      %7664 = vmatmul.mubr.bf16.gmra.mrb[0].mxu0 %v7531
      %v7665 = vpop.f32.mrb[0].mxu0
      %v7666 = vadd.f32 %v7326, %v7665
      %v7667 = vpop.f32.mrb[0].mxu0
      %v7668 = vpop.f32.mrb[0].mxu0
      %v7669 = vadd.f32 %v7331, %v7668
      %v7670 = vpop.f32.mrb[0].mxu0
      %7671 = vmatprep.mubr.bf16.mxu0 %v7534
      %7672 = vmatmul.mubr.bf16.gmra.mrb[0].mxu0 %v7533
      %v7673 = vpop.f32.mrb[0].mxu0
      %v7674 = vadd.f32 %v7336, %v7673
      %v7675 = vpop.f32.mrb[0].mxu0
      %v7676 = vpop.f32.mrb[0].mxu0
      %v7677 = vadd.f32 %v7341, %v7676
      %v7678 = vpop.f32.mrb[0].mxu0
      %7679 = vmatprep.mubr.bf16.mxu0 %v7536
      %7680 = vmatmul.mubr.bf16.gmra.mrb[0].mxu0 %v7535
      %v7681 = vpop.f32.mrb[0].mxu0
      %v7682 = vadd.f32 %v7346, %v7681
      %v7683 = vpop.f32.mrb[0].mxu0
      %v7684 = vpop.f32.mrb[0].mxu0
      %v7685 = vadd.f32 %v7351, %v7684
      %v7686 = vpop.f32.mrb[0].mxu0
      %7687 = vmatprep.mubr.bf16.mxu0 %v7538
      %7688 = vmatmul.mubr.bf16.gmra.mrb[0].mxu0 %v7537
      %v7689 = vpop.f32.mrb[0].mxu0
      %v7690 = vadd.f32 %v7356, %v7689
      %v7691 = vpop.f32.mrb[0].mxu0
      %v7692 = vpop.f32.mrb[0].mxu0
      %v7693 = vadd.f32 %v7361, %v7692
      %v7694 = vpop.f32.mrb[0].mxu0
      %7695 = vmatprep.mubr.bf16.mxu0 %v7540
      %7696 = vmatmul.mubr.bf16.gmra.mrb[0].mxu0 %v7539
      %v7697 = vpop.f32.mrb[0].mxu0
      %v7698 = vadd.f32 %v7366, %v7697
      %v7699 = vpop.f32.mrb[0].mxu0
      %v7700 = vpop.f32.mrb[0].mxu0
      %v7701 = vadd.f32 %v7371, %v7700
      %v7702 = vpop.f32.mrb[0].mxu0
      %7703 = vmatprep.mubr.bf16.mxu0 %v7542
      %7704 = vmatmul.mubr.bf16.gmra.mrb[0].mxu0 %v7541
      %v7705 = vpop.f32.mrb[0].mxu0
      %v7706 = vadd.f32 %v7376, %v7705
      %v7707 = vpop.f32.mrb[0].mxu0
      %v7708 = vpop.f32.mrb[0].mxu0
      %v7709 = vadd.f32 %v7381, %v7708
      %v7710 = vpop.f32.mrb[0].mxu0
      %7711 = vmatprep.mubr.bf16.mxu0 %v7544
      %7712 = vmatmul.mubr.bf16.gmra.mrb[0].mxu0 %v7543
      %v7713 = vpop.f32.mrb[0].mxu0
      %v7714 = vadd.f32 %v7386, %v7713
      %v7715 = vpop.f32.mrb[0].mxu0
      %v7716 = vpop.f32.mrb[0].mxu0
      %v7717 = vadd.f32 %v7391, %v7716
      %v7718 = vpop.f32.mrb[0].mxu0
      %7719 = vmatprep.mubr.bf16.mxu0 %v7546
      %7720 = vmatmul.mubr.bf16.gmra.mrb[0].mxu0 %v7545
      %v7721 = vpop.f32.mrb[0].mxu0
      %v7722 = vadd.f32 %v7396, %v7721
      %v7723 = vpop.f32.mrb[0].mxu0
      %v7724 = vpop.f32.mrb[0].mxu0
      %v7725 = vadd.f32 %v7401, %v7724
      %v7726 = vpop.f32.mrb[0].mxu0
      %7727 = vmatprep.mubr.bf16.mxu0 %v7548
      %7728 = vmatmul.mubr.bf16.gmra.mrb[0].mxu0 %v7547
      %v7729 = vpop.f32.mrb[0].mxu0
      %v7730 = vadd.f32 %v7406, %v7729
      %v7731 = vpop.f32.mrb[0].mxu0
      %v7732 = vpop.f32.mrb[0].mxu0
      %v7733 = vadd.f32 %v7411, %v7732
      %v7734 = vpop.f32.mrb[0].mxu0
      %7735 = vmatprep.mubr.bf16.mxu0 %v7550
      %7736 = vmatmul.mubr.bf16.gmra.mrb[0].mxu0 %v7549
      %v7737 = vpop.f32.mrb[0].mxu0
      %v7738 = vadd.f32 %v7416, %v7737
      %v7739 = vpop.f32.mrb[0].mxu0
      %v7740 = vpop.f32.mrb[0].mxu0
      %v7741 = vadd.f32 %v7421, %v7740
      %v7742 = vpop.f32.mrb[0].mxu0
      %7743 = vdwg.mxu0
      %v7744 = vld [vmem:[%s19] sm:$0xff]
      %v7745 = vld [vmem:[%s19 + $0x8] sm:$0xff]
      %v7746 = vld [vmem:[%s19 + $0x10] sm:$0xff]
      %v7747 = vld [vmem:[%s19 + $0x18] sm:$0xff]
      %v7748 = vld [vmem:[%s19 + $0x20] sm:$0xff]
      %v7749 = vld [vmem:[%s19 + $0x28] sm:$0xff]
      %v7750 = vld [vmem:[%s19 + $0x30] sm:$0xff]
      %v7751 = vld [vmem:[%s19 + $0x38] sm:$0xff]
      %v7752 = vld [vmem:[%s19 + $0x40] sm:$0xff]
      %v7753 = vld [vmem:[%s19 + $0x48] sm:$0xff]
      %v7754 = vld [vmem:[%s19 + $0x50] sm:$0xff]
      %v7755 = vld [vmem:[%s19 + $0x58] sm:$0xff]
      %v7756 = vld [vmem:[%s19 + $0x60] sm:$0xff]
      %v7757 = vld [vmem:[%s19 + $0x68] sm:$0xff]
      %v7758 = vld [vmem:[%s19 + $0x70] sm:$0xff]
      %v7759 = vld [vmem:[%s19 + $0x78] sm:$0xff]
      %v7760 = vld [vmem:[%s19 + $0x80] sm:$0xff]
      %v7761 = vld [vmem:[%s19 + $0x88] sm:$0xff]
      %v7762 = vld [vmem:[%s19 + $0x90] sm:$0xff]
      %v7763 = vld [vmem:[%s19 + $0x98] sm:$0xff]
      %v7764 = vld [vmem:[%s19 + $0xa0] sm:$0xff]
      %v7765 = vld [vmem:[%s19 + $0xa8] sm:$0xff]
      %v7766 = vld [vmem:[%s19 + $0xb0] sm:$0xff]
      %v7767 = vld [vmem:[%s19 + $0xb8] sm:$0xff]
      %v7768 = vld [vmem:[%s19 + $0xc0] sm:$0xff]
      %v7769 = vld [vmem:[%s19 + $0xc8] sm:$0xff]
      %v7770 = vld [vmem:[%s19 + $0xd0] sm:$0xff]
      %v7771 = vld [vmem:[%s19 + $0xd8] sm:$0xff]
      %v7772 = vld [vmem:[%s19 + $0xe0] sm:$0xff]
      %v7773 = vld [vmem:[%s19 + $0xe8] sm:$0xff]
      %v7774 = vld [vmem:[%s19 + $0xf0] sm:$0xff]
      %v7775 = vld [vmem:[%s19 + $0xf8] sm:$0xff]
      %7777 = vset.pattern.permute.xlu0 0
      %7778 = vperm.xlu0 %7777, %v7744
      %v7779 = vpop.permute.xlu0 %7778
      %7782 = vset.pattern.permute.xlu0 0
      %7783 = vperm.xlu0 %7782, %v7745
      %v7784 = vpop.permute.xlu0 %7783
      %7787 = vset.pattern.permute.xlu0 0
      %7788 = vperm.xlu0 %7787, %v7746
      %v7789 = vpop.permute.xlu0 %7788
      %7792 = vset.pattern.permute.xlu0 0
      %7793 = vperm.xlu0 %7792, %v7747
      %v7794 = vpop.permute.xlu0 %7793
      %7797 = vset.pattern.permute.xlu0 0
      %7798 = vperm.xlu0 %7797, %v7748
      %v7799 = vpop.permute.xlu0 %7798
      %7802 = vset.pattern.permute.xlu0 0
      %7803 = vperm.xlu0 %7802, %v7749
      %v7804 = vpop.permute.xlu0 %7803
      %7807 = vset.pattern.permute.xlu0 0
      %7808 = vperm.xlu0 %7807, %v7750
      %v7809 = vpop.permute.xlu0 %7808
      %7812 = vset.pattern.permute.xlu0 0
      %7813 = vperm.xlu0 %7812, %v7751
      %v7814 = vpop.permute.xlu0 %7813
      %7817 = vset.pattern.permute.xlu0 0
      %7818 = vperm.xlu0 %7817, %v7752
      %v7819 = vpop.permute.xlu0 %7818
      %7822 = vset.pattern.permute.xlu0 0
      %7823 = vperm.xlu0 %7822, %v7753
      %v7824 = vpop.permute.xlu0 %7823
      %7827 = vset.pattern.permute.xlu0 0
      %7828 = vperm.xlu0 %7827, %v7754
      %v7829 = vpop.permute.xlu0 %7828
      %7832 = vset.pattern.permute.xlu0 0
      %7833 = vperm.xlu0 %7832, %v7755
      %v7834 = vpop.permute.xlu0 %7833
      %7837 = vset.pattern.permute.xlu0 0
      %7838 = vperm.xlu0 %7837, %v7756
      %v7839 = vpop.permute.xlu0 %7838
      %7842 = vset.pattern.permute.xlu0 0
      %7843 = vperm.xlu0 %7842, %v7757
      %v7844 = vpop.permute.xlu0 %7843
      %7847 = vset.pattern.permute.xlu0 0
      %7848 = vperm.xlu0 %7847, %v7758
      %v7849 = vpop.permute.xlu0 %7848
      %7852 = vset.pattern.permute.xlu0 0
      %7853 = vperm.xlu0 %7852, %v7759
      %v7854 = vpop.permute.xlu0 %7853
      %7857 = vset.pattern.permute.xlu0 0
      %7858 = vperm.xlu0 %7857, %v7760
      %v7859 = vpop.permute.xlu0 %7858
      %7862 = vset.pattern.permute.xlu0 0
      %7863 = vperm.xlu0 %7862, %v7761
      %v7864 = vpop.permute.xlu0 %7863
      %7867 = vset.pattern.permute.xlu0 0
      %7868 = vperm.xlu0 %7867, %v7762
      %v7869 = vpop.permute.xlu0 %7868
      %7872 = vset.pattern.permute.xlu0 0
      %7873 = vperm.xlu0 %7872, %v7763
      %v7874 = vpop.permute.xlu0 %7873
      %7877 = vset.pattern.permute.xlu0 0
      %7878 = vperm.xlu0 %7877, %v7764
      %v7879 = vpop.permute.xlu0 %7878
      %7882 = vset.pattern.permute.xlu0 0
      %7883 = vperm.xlu0 %7882, %v7765
      %v7884 = vpop.permute.xlu0 %7883
      %7887 = vset.pattern.permute.xlu0 0
      %7888 = vperm.xlu0 %7887, %v7766
      %v7889 = vpop.permute.xlu0 %7888
      %7892 = vset.pattern.permute.xlu0 0
      %7893 = vperm.xlu0 %7892, %v7767
      %v7894 = vpop.permute.xlu0 %7893
      %7897 = vset.pattern.permute.xlu0 0
      %7898 = vperm.xlu0 %7897, %v7768
      %v7899 = vpop.permute.xlu0 %7898
      %7902 = vset.pattern.permute.xlu0 0
      %7903 = vperm.xlu0 %7902, %v7769
      %v7904 = vpop.permute.xlu0 %7903
      %7907 = vset.pattern.permute.xlu0 0
      %7908 = vperm.xlu0 %7907, %v7770
      %v7909 = vpop.permute.xlu0 %7908
      %7912 = vset.pattern.permute.xlu0 0
      %7913 = vperm.xlu0 %7912, %v7771
      %v7914 = vpop.permute.xlu0 %7913
      %7917 = vset.pattern.permute.xlu0 0
      %7918 = vperm.xlu0 %7917, %v7772
      %v7919 = vpop.permute.xlu0 %7918
      %7922 = vset.pattern.permute.xlu0 0
      %7923 = vperm.xlu0 %7922, %v7773
      %v7924 = vpop.permute.xlu0 %7923
      %7927 = vset.pattern.permute.xlu0 0
      %7928 = vperm.xlu0 %7927, %v7774
      %v7929 = vpop.permute.xlu0 %7928
      %7932 = vset.pattern.permute.xlu0 0
      %7933 = vperm.xlu0 %7932, %v7775
      %v7934 = vpop.permute.xlu0 %7933
      %v7936 = vmul.f32 %v7618, %v7779
      %v7937 = vmul.f32 %v7621, %v7784
      %v7938 = vmul.f32 %v7626, %v7789
      %v7939 = vmul.f32 %v7629, %v7794
      %v7940 = vmul.f32 %v7634, %v7799
      %v7941 = vmul.f32 %v7637, %v7804
      %v7942 = vmul.f32 %v7642, %v7809
      %v7943 = vmul.f32 %v7645, %v7814
      %v7944 = vmul.f32 %v7650, %v7819
      %v7945 = vmul.f32 %v7653, %v7824
      %v7946 = vmul.f32 %v7658, %v7829
      %v7947 = vmul.f32 %v7661, %v7834
      %v7948 = vmul.f32 %v7666, %v7839
      %v7949 = vmul.f32 %v7669, %v7844
      %v7950 = vmul.f32 %v7674, %v7849
      %v7951 = vmul.f32 %v7677, %v7854
      %v7952 = vmul.f32 %v7682, %v7859
      %v7953 = vmul.f32 %v7685, %v7864
      %v7954 = vmul.f32 %v7690, %v7869
      %v7955 = vmul.f32 %v7693, %v7874
      %v7956 = vmul.f32 %v7698, %v7879
      %v7957 = vmul.f32 %v7701, %v7884
      %v7958 = vmul.f32 %v7706, %v7889
      %v7959 = vmul.f32 %v7709, %v7894
      %v7960 = vmul.f32 %v7714, %v7899
      %v7961 = vmul.f32 %v7717, %v7904
      %v7962 = vmul.f32 %v7722, %v7909
      %v7963 = vmul.f32 %v7725, %v7914
      %v7964 = vmul.f32 %v7730, %v7919
      %v7965 = vmul.f32 %v7733, %v7924
      %v7966 = vmul.f32 %v7738, %v7929
      %v7967 = vmul.f32 %v7741, %v7934
      %v7968 = vld [vmem:[%s20] sm:$0xff]
      %v7969 = vld [vmem:[%s20 + $0x8] sm:$0xff]
      %v7970 = vld [vmem:[%s20 + $0x10] sm:$0xff]
      %v7971 = vld [vmem:[%s20 + $0x18] sm:$0xff]
      %v7972 = vld [vmem:[%s20 + $0x20] sm:$0xff]
      %v7973 = vld [vmem:[%s20 + $0x28] sm:$0xff]
      %v7974 = vld [vmem:[%s20 + $0x30] sm:$0xff]
      %v7975 = vld [vmem:[%s20 + $0x38] sm:$0xff]
      %v7976 = vld [vmem:[%s20 + $0x40] sm:$0xff]
      %v7977 = vld [vmem:[%s20 + $0x48] sm:$0xff]
      %v7978 = vld [vmem:[%s20 + $0x50] sm:$0xff]
      %v7979 = vld [vmem:[%s20 + $0x58] sm:$0xff]
      %v7980 = vld [vmem:[%s20 + $0x60] sm:$0xff]
      %v7981 = vld [vmem:[%s20 + $0x68] sm:$0xff]
      %v7982 = vld [vmem:[%s20 + $0x70] sm:$0xff]
      %v7983 = vld [vmem:[%s20 + $0x78] sm:$0xff]
      %v7984 = vld [vmem:[%s20 + $0x80] sm:$0xff]
      %v7985 = vld [vmem:[%s20 + $0x88] sm:$0xff]
      %v7986 = vld [vmem:[%s20 + $0x90] sm:$0xff]
      %v7987 = vld [vmem:[%s20 + $0x98] sm:$0xff]
      %v7988 = vld [vmem:[%s20 + $0xa0] sm:$0xff]
      %v7989 = vld [vmem:[%s20 + $0xa8] sm:$0xff]
      %v7990 = vld [vmem:[%s20 + $0xb0] sm:$0xff]
      %v7991 = vld [vmem:[%s20 + $0xb8] sm:$0xff]
      %v7992 = vld [vmem:[%s20 + $0xc0] sm:$0xff]
      %v7993 = vld [vmem:[%s20 + $0xc8] sm:$0xff]
      %v7994 = vld [vmem:[%s20 + $0xd0] sm:$0xff]
      %v7995 = vld [vmem:[%s20 + $0xd8] sm:$0xff]
      %v7996 = vld [vmem:[%s20 + $0xe0] sm:$0xff]
      %v7997 = vld [vmem:[%s20 + $0xe8] sm:$0xff]
      %v7998 = vld [vmem:[%s20 + $0xf0] sm:$0xff]
      %v7999 = vld [vmem:[%s20 + $0xf8] sm:$0xff]
      %8001 = vset.pattern.permute.xlu0 0
      %8002 = vperm.xlu0 %8001, %v7968
      %v8003 = vpop.permute.xlu0 %8002
      %8006 = vset.pattern.permute.xlu0 0
      %8007 = vperm.xlu0 %8006, %v7969
      %v8008 = vpop.permute.xlu0 %8007
      %8011 = vset.pattern.permute.xlu0 0
      %8012 = vperm.xlu0 %8011, %v7970
      %v8013 = vpop.permute.xlu0 %8012
      %8016 = vset.pattern.permute.xlu0 0
      %8017 = vperm.xlu0 %8016, %v7971
      %v8018 = vpop.permute.xlu0 %8017
      %8021 = vset.pattern.permute.xlu0 0
      %8022 = vperm.xlu0 %8021, %v7972
      %v8023 = vpop.permute.xlu0 %8022
      %8026 = vset.pattern.permute.xlu0 0
      %8027 = vperm.xlu0 %8026, %v7973
      %v8028 = vpop.permute.xlu0 %8027
      %8031 = vset.pattern.permute.xlu0 0
      %8032 = vperm.xlu0 %8031, %v7974
      %v8033 = vpop.permute.xlu0 %8032
      %8036 = vset.pattern.permute.xlu0 0
      %8037 = vperm.xlu0 %8036, %v7975
      %v8038 = vpop.permute.xlu0 %8037
      %8041 = vset.pattern.permute.xlu0 0
      %8042 = vperm.xlu0 %8041, %v7976
      %v8043 = vpop.permute.xlu0 %8042
      %8046 = vset.pattern.permute.xlu0 0
      %8047 = vperm.xlu0 %8046, %v7977
      %v8048 = vpop.permute.xlu0 %8047
      %8051 = vset.pattern.permute.xlu0 0
      %8052 = vperm.xlu0 %8051, %v7978
      %v8053 = vpop.permute.xlu0 %8052
      %8056 = vset.pattern.permute.xlu0 0
      %8057 = vperm.xlu0 %8056, %v7979
      %v8058 = vpop.permute.xlu0 %8057
      %8061 = vset.pattern.permute.xlu0 0
      %8062 = vperm.xlu0 %8061, %v7980
      %v8063 = vpop.permute.xlu0 %8062
      %8066 = vset.pattern.permute.xlu0 0
      %8067 = vperm.xlu0 %8066, %v7981
      %v8068 = vpop.permute.xlu0 %8067
      %8071 = vset.pattern.permute.xlu0 0
      %8072 = vperm.xlu0 %8071, %v7982
      %v8073 = vpop.permute.xlu0 %8072
      %8076 = vset.pattern.permute.xlu0 0
      %8077 = vperm.xlu0 %8076, %v7983
      %v8078 = vpop.permute.xlu0 %8077
      %8081 = vset.pattern.permute.xlu0 0
      %8082 = vperm.xlu0 %8081, %v7984
      %v8083 = vpop.permute.xlu0 %8082
      %8086 = vset.pattern.permute.xlu0 0
      %8087 = vperm.xlu0 %8086, %v7985
      %v8088 = vpop.permute.xlu0 %8087
      %8091 = vset.pattern.permute.xlu0 0
      %8092 = vperm.xlu0 %8091, %v7986
      %v8093 = vpop.permute.xlu0 %8092
      %8096 = vset.pattern.permute.xlu0 0
      %8097 = vperm.xlu0 %8096, %v7987
      %v8098 = vpop.permute.xlu0 %8097
      %8101 = vset.pattern.permute.xlu0 0
      %8102 = vperm.xlu0 %8101, %v7988
      %v8103 = vpop.permute.xlu0 %8102
      %8106 = vset.pattern.permute.xlu0 0
      %8107 = vperm.xlu0 %8106, %v7989
      %v8108 = vpop.permute.xlu0 %8107
      %8111 = vset.pattern.permute.xlu0 0
      %8112 = vperm.xlu0 %8111, %v7990
      %v8113 = vpop.permute.xlu0 %8112
      %8116 = vset.pattern.permute.xlu0 0
      %8117 = vperm.xlu0 %8116, %v7991
      %v8118 = vpop.permute.xlu0 %8117
      %8121 = vset.pattern.permute.xlu0 0
      %8122 = vperm.xlu0 %8121, %v7992
      %v8123 = vpop.permute.xlu0 %8122
      %8126 = vset.pattern.permute.xlu0 0
      %8127 = vperm.xlu0 %8126, %v7993
      %v8128 = vpop.permute.xlu0 %8127
      %8131 = vset.pattern.permute.xlu0 0
      %8132 = vperm.xlu0 %8131, %v7994
      %v8133 = vpop.permute.xlu0 %8132
      %8136 = vset.pattern.permute.xlu0 0
      %8137 = vperm.xlu0 %8136, %v7995
      %v8138 = vpop.permute.xlu0 %8137
      %8141 = vset.pattern.permute.xlu0 0
      %8142 = vperm.xlu0 %8141, %v7996
      %v8143 = vpop.permute.xlu0 %8142
      %8146 = vset.pattern.permute.xlu0 0
      %8147 = vperm.xlu0 %8146, %v7997
      %v8148 = vpop.permute.xlu0 %8147
      %8151 = vset.pattern.permute.xlu0 0
      %8152 = vperm.xlu0 %8151, %v7998
      %v8153 = vpop.permute.xlu0 %8152
      %8156 = vset.pattern.permute.xlu0 0
      %8157 = vperm.xlu0 %8156, %v7999
      %v8158 = vpop.permute.xlu0 %8157
      %v8160 = vadd.f32 %v7936, %v8003
      %v8161 = vadd.f32 %v7937, %v8008
      %v8162 = vadd.f32 %v7938, %v8013
      %v8163 = vadd.f32 %v7939, %v8018
      %v8164 = vadd.f32 %v7940, %v8023
      %v8165 = vadd.f32 %v7941, %v8028
      %v8166 = vadd.f32 %v7942, %v8033
      %v8167 = vadd.f32 %v7943, %v8038
      %v8168 = vadd.f32 %v7944, %v8043
      %v8169 = vadd.f32 %v7945, %v8048
      %v8170 = vadd.f32 %v7946, %v8053
      %v8171 = vadd.f32 %v7947, %v8058
      %v8172 = vadd.f32 %v7948, %v8063
      %v8173 = vadd.f32 %v7949, %v8068
      %v8174 = vadd.f32 %v7950, %v8073
      %v8175 = vadd.f32 %v7951, %v8078
      %v8176 = vadd.f32 %v7952, %v8083
      %v8177 = vadd.f32 %v7953, %v8088
      %v8178 = vadd.f32 %v7954, %v8093
      %v8179 = vadd.f32 %v7955, %v8098
      %v8180 = vadd.f32 %v7956, %v8103
      %v8181 = vadd.f32 %v7957, %v8108
      %v8182 = vadd.f32 %v7958, %v8113
      %v8183 = vadd.f32 %v7959, %v8118
      %v8184 = vadd.f32 %v7960, %v8123
      %v8185 = vadd.f32 %v7961, %v8128
      %v8186 = vadd.f32 %v7962, %v8133
      %v8187 = vadd.f32 %v7963, %v8138
      %v8188 = vadd.f32 %v7964, %v8143
      %v8189 = vadd.f32 %v7965, %v8148
      %v8190 = vadd.f32 %v7966, %v8153
      %v8191 = vadd.f32 %v7967, %v8158
      %v8192 = vmax.f32 %v8160, 0.0
      %v8193 = vmax.f32 %v8161, 0.0
      %v8194 = vmax.f32 %v8162, 0.0
      %v8195 = vmax.f32 %v8163, 0.0
      %v8196 = vmax.f32 %v8164, 0.0
      %v8197 = vmax.f32 %v8165, 0.0
      %v8198 = vmax.f32 %v8166, 0.0
      %v8199 = vmax.f32 %v8167, 0.0
      %v8200 = vmax.f32 %v8168, 0.0
      %v8201 = vmax.f32 %v8169, 0.0
      %v8202 = vmax.f32 %v8170, 0.0
      %v8203 = vmax.f32 %v8171, 0.0
      %v8204 = vmax.f32 %v8172, 0.0
      %v8205 = vmax.f32 %v8173, 0.0
      %v8206 = vmax.f32 %v8174, 0.0
      %v8207 = vmax.f32 %v8175, 0.0
      %v8208 = vmax.f32 %v8176, 0.0
      %v8209 = vmax.f32 %v8177, 0.0
      %v8210 = vmax.f32 %v8178, 0.0
      %v8211 = vmax.f32 %v8179, 0.0
      %v8212 = vmax.f32 %v8180, 0.0
      %v8213 = vmax.f32 %v8181, 0.0
      %v8214 = vmax.f32 %v8182, 0.0
      %v8215 = vmax.f32 %v8183, 0.0
      %v8216 = vmax.f32 %v8184, 0.0
      %v8217 = vmax.f32 %v8185, 0.0
      %v8218 = vmax.f32 %v8186, 0.0
      %v8219 = vmax.f32 %v8187, 0.0
      %v8220 = vmax.f32 %v8188, 0.0
      %v8221 = vmax.f32 %v8189, 0.0
      %v8222 = vmax.f32 %v8190, 0.0
      %v8223 = vmax.f32 %v8191, 0.0
      %v8224 = vld [vmem:[%s21] sm:$0xff]
      %v8225 = vpack.c.bf16 %v8193, %v8192
      %v8226 = vpack.c.bf16 %v8195, %v8194
      %v8227 = vpack.c.bf16 %v8197, %v8196
      %v8228 = vpack.c.bf16 %v8199, %v8198
      %v8229 = vpack.c.bf16 %v8201, %v8200
      %v8230 = vpack.c.bf16 %v8203, %v8202
      %v8231 = vpack.c.bf16 %v8205, %v8204
      %v8232 = vpack.c.bf16 %v8207, %v8206
      %v8233 = vpack.c.bf16 %v8209, %v8208
      %v8234 = vpack.c.bf16 %v8211, %v8210
      %v8235 = vpack.c.bf16 %v8213, %v8212
      %v8236 = vpack.c.bf16 %v8215, %v8214
      %v8237 = vpack.c.bf16 %v8217, %v8216
      %v8238 = vpack.c.bf16 %v8219, %v8218
      %v8239 = vpack.c.bf16 %v8221, %v8220
      %v8240 = vpack.c.bf16 %v8223, %v8222
      %v8241 = vld [vmem:[%s22] sm:$0xff]
      %8243 = vset.pattern.permute.xlu0 0
      %8244 = vperm.xlu0 %8243, %v8241
      %v8245 = vpop.permute.xlu0 %8244
      %v8248 = vunpack.c.l.b16 %v8224
      %v8249 = vunpack.c.h.b16 %v8224
      %v8250 = vpack.c.b16 %v8248, %v8248
      %v8251 = vpack.c.b16 %v8249, %v8249
      %8254 = vmatprep.subr.bf16.mxu0 0
      %8255 = vmatpush1.bf16.msra.mxu0 %v8225
      %8256 = vmatprep.subr.bf16.mxu0 0
      %8257 = vmatpush1.bf16.msra.mxu0 %v8226
      %8258 = vmatprep.subr.bf16.mxu0 0
      %8259 = vmatpush1.bf16.msra.mxu0 %v8227
      %8260 = vmatprep.subr.bf16.mxu0 0
      %8261 = vmatpush1.bf16.msra.mxu0 %v8228
      %8262 = vmatprep.subr.bf16.mxu0 0
      %8263 = vmatpush1.bf16.msra.mxu0 %v8229
      %8264 = vmatprep.subr.bf16.mxu0 0
      %8265 = vmatpush1.bf16.msra.mxu0 %v8230
      %8266 = vmatprep.subr.bf16.mxu0 0
      %8267 = vmatpush1.bf16.msra.mxu0 %v8231
      %8268 = vmatprep.subr.bf16.mxu0 0
      %8269 = vmatpush1.bf16.msra.mxu0 %v8232
      %8270 = vmatprep.subr.bf16.mxu0 0
      %8271 = vmatpush1.bf16.msra.mxu0 %v8233
      %8272 = vmatprep.subr.bf16.mxu0 0
      %8273 = vmatpush1.bf16.msra.mxu0 %v8234
      %8274 = vmatprep.subr.bf16.mxu0 0
      %8275 = vmatpush1.bf16.msra.mxu0 %v8235
      %8276 = vmatprep.subr.bf16.mxu0 0
      %8277 = vmatpush1.bf16.msra.mxu0 %v8236
      %8278 = vmatprep.subr.bf16.mxu0 0
      %8279 = vmatpush1.bf16.msra.mxu0 %v8237
      %8280 = vmatprep.subr.bf16.mxu0 0
      %8281 = vmatpush1.bf16.msra.mxu0 %v8238
      %8282 = vmatprep.subr.bf16.mxu0 0
      %8283 = vmatpush1.bf16.msra.mxu0 %v8239
      %8284 = vmatprep.subr.bf16.mxu0 0
      %8285 = vmatpush1.bf16.msra.mxu0 %v8240
      %8286 = vmatprep.mubr.bf16.mxu0 %v8251
      %8287 = vmatmul.mubr.bf16.gmra.mrb[0].mxu0 %v8250
      %v8288 = vpop.f32.mrb[0].mxu0
      %v8289 = vadd.f32 %v8245, %v8288
      %v8290 = vpop.f32.mrb[0].mxu0
      %v8291 = vpop.f32.mrb[0].mxu0
      %v8292 = vpop.f32.mrb[0].mxu0
      %8293 = vdwg.mxu0
      %8294 = vst [vmem:[%s710] sm:$0xff] %v8289
      %p8295 = scmp.lt.s32.totalorder %s34, 1
      %s8296 = scalar_select %p8295, %s34, 1
      %s8297 = smul.addr %s8296, 8
      %s8298 = scalar_lea.vmem %s23, %s8297
      // Predicated region
      $region113: #{deepstarr_forward.1} parent=111 // pred_check
        %p8299 = pneg %p540
      $region114: #{deepstarr_forward.1} parent=111 // pred_check_branch
        %8301 = sbr.rel (%p8299) target = $region116
      $region115: #{deepstarr_forward.1} parent=111 // pred_region
        _
      $region116: #{deepstarr_forward.1} parent=111 // pred_fallthru
        _
    $region112: #{deepstarr_forward.1} parent=5 // pred_fallthru
      _
    %p8302 = scmp.le.s32.totalorder 2, %s29
    // Predicated region
    $region117: #{deepstarr_forward.1} parent=5 // pred_check
      %p8303 = pneg %p8302
    $region118: #{deepstarr_forward.1} parent=5 // pred_check_branch
      %8305 = sbr.rel (%p8303) target = $region120
    $region119: #{deepstarr_forward.1} parent=5 // pred_region
      %s8306 = ssub.s32 %s29, 2
      // Predicated region
      $region121: #{deepstarr_forward.1} parent=119 // pred_check
        %p8307 = pneg %p546
      $region122: #{deepstarr_forward.1} parent=119 // pred_check_branch
        %8309 = sbr.rel (%p8307) target = $region124
      $region123: #{deepstarr_forward.1} parent=119 // pred_region
        %p8310 = scmp.lt.s32.totalorder %s35, 1
        %s8311 = scalar_select %p8310, %s35, 1
        %s8312 = smul.addr %s8311, 8
        %s8313 = scalar_lea.vmem %s23, %s8312
      $region124: #{deepstarr_forward.1} parent=119 // pred_fallthru
        _
    $region120: #{deepstarr_forward.1} parent=5 // pred_fallthru
      _
  $region6: #{deepstarr_forward.1} parent=0 // loop_footer
    %s33 = sadd.s32 1, %s29
  $region7: #{deepstarr_forward.1} parent=0 // loop_footer_branch
    %28 = sbr.rel target = $region3
  $region8: #{deepstarr_forward.1} parent=0 // loop_exit
    _

</llo_original>
